<compile_context>
chip_gen: v5e
topology: v5e:2x2
jax: 0.10.0
libtpu: 0.0.40
codegen_flags: <defaults>
</compile_context>

<pallas_src>
import numpy as np
import jax
import jax.numpy as jnp
from jax import lax
from jax.experimental import pallas as pl
from jax.experimental.pallas import tpu as pltpu

# ---- model hyper-parameters (small, consistent with the module's forward) ----
B = 2             # batch
IMG = 16          # image spatial size
CIN = 3           # image channels
CF = 2048         # resnet.fc.in_features (global-avg-pooled feature width)
EMBED = 32        # embed_size
HIDDEN = 64       # hidden_size
VOCAB = 128       # vocab_size
NUM_LAYERS = 2    # num_layers (kernel specialized for 2 stacked LSTM layers)
T_CAP = 8         # caption length
MODEL_TYPE = "LSTM"

HW = IMG * IMG            # 256 spatial positions per image
KP = 128                  # im2col contraction dim padded 27 -> 128 (lane-dense)
B_PAD = 8                 # batch padded to 8 sublanes
HP = 128                  # hidden padded to 128 lanes (aligned gate groups)
CF_CHUNK = 512            # encoder CF tile: overlaps conv_w/emb_w DMA with conv compute
NC = CF // CF_CHUNK

# pooling matrix: row b averages the HW rows of image b; rows b>=B are zero padding.
POOL_NP = np.zeros((B_PAD, B * HW), np.float32)
for _b in range(B):
    POOL_NP[_b, _b * HW:(_b + 1) * HW] = 1.0 / HW


# =============================== fused Pallas kernel ===============================

def fused_kernel(xcap_ref,                       # (T_CAP-1, B_PAD, HP) bf16 caption embeds
                 patches_ref, convw_ref, pool_ref, embw_ref, embb_ref,
                 w0_ref, b0_ref, w1_ref, b1_ref, fcw_ref, fcb_ref,
                 out_ref,                        # (T_CAP, B_PAD, VOCAB) f32 logits
                 feat_ref, hbuf_ref):            # scratch: feat acc, per-step h1 buffer
    c = pl.program_id(0)

    # ------------- encoder: conv(as matmul) + ReLU + avg-pool + embed, per CF chunk -------------
    @pl.when(c == 0)
    def _():
        feat_ref[...] = jnp.zeros_like(feat_ref)

    conv = jnp.maximum(
        jnp.dot(patches_ref[...], convw_ref[...],
                preferred_element_type=jnp.float32), 0.0)             # (B*HW, CF_CHUNK) f32
    pooled = jnp.dot(pool_ref[...], conv,
                     preferred_element_type=jnp.float32)              # (B_PAD, CF_CHUNK) f32
    feat_ref[...] += jnp.dot(pooled.astype(jnp.bfloat16), embw_ref[...],
                             preferred_element_type=jnp.float32)      # (B_PAD, EMBED) f32

    # ------------- decoder: 2-layer LSTM + batched FC, runs on the last CF chunk -------------
    @pl.when(c == pl.num_programs(0) - 1)
    def _():
        w0 = w0_ref[...]; b0 = b0_ref[...]
        w1 = w1_ref[...]; b1 = b1_ref[...]
        T = out_ref.shape[0]

        def cell(xh_bf16, c_prev, w, b):
            # ONE fused [x|h] @ [wih;whh] matmul; every gate is an aligned 128-lane group
            gates = jnp.dot(xh_bf16, w, preferred_element_type=jnp.float32) + b
            i = jax.nn.sigmoid(gates[:, 0 * HP:1 * HP])
            f = jax.nn.sigmoid(gates[:, 1 * HP:2 * HP])
            g = jnp.tanh(gates[:, 2 * HP:3 * HP])
            o = jax.nn.sigmoid(gates[:, 3 * HP:4 * HP])
            c_new = f * c_prev + i * g
            h_new = o * jnp.tanh(c_new)       # padded lanes stay exactly 0
            return h_new, c_new

        def step(x_bf16, h0, c0, h1, c1):
            xh0 = jnp.concatenate([x_bf16, h0.astype(jnp.bfloat16)], axis=-1)
            h0, c0 = cell(xh0, c0, w0, b0)
            xh1 = jnp.concatenate([h0.astype(jnp.bfloat16),
                                   h1.astype(jnp.bfloat16)], axis=-1)
            h1, c1 = cell(xh1, c1, w1, b1)
            return h0, c0, h1, c1

        # t = 0: input is the encoder feature vector (padded to 128 lanes).
        feat = feat_ref[...] + embb_ref[...]                          # (B_PAD, EMBED)
        x0 = jnp.concatenate(
            [feat, jnp.zeros((B_PAD, HP - EMBED), jnp.float32)], axis=-1
        ).astype(jnp.bfloat16)                                        # (B_PAD, HP)

        z = jnp.zeros((B_PAD, HP), jnp.float32)
        h0, c0, h1, c1 = step(x0, z, z, z, z)
        hbuf_ref[0] = h1

        def body(t, carry):
            h0, c0, h1, c1 = step(xcap_ref[t - 1], *carry)            # precomputed embeds
            hbuf_ref[t] = h1
            return (h0, c0, h1, c1)

        lax.fori_loop(1, T, body, (h0, c0, h1, c1), unroll=True)

        # batched FC projection off the recurrence + single lane-dense (64,128) store
        hall = hbuf_ref[...].reshape(T * B_PAD, HP).astype(jnp.bfloat16)
        logits = jnp.dot(hall, fcw_ref[...],
                         preferred_element_type=jnp.float32) + fcb_ref[...]
        out_ref[...] = logits.reshape(T, B_PAD, VOCAB)


# =============================== wrappers =====================================

def im2col_3x3(x):
    """x: (B, C, H, W) NCHW -> patches (B, H*W, C*9), padding=1, stride=1."""
    Bn, C, H, W = x.shape
    xp = jnp.pad(x, ((0, 0), (0, 0), (1, 1), (1, 1)))
    cols = []
    for di in range(3):
        for dj in range(3):
            cols.append(xp[:, :, di:di + H, dj:dj + W])
    p = jnp.stack(cols, axis=2)                      # (B, C, 9, H, W)
    p = p.transpose(0, 3, 4, 1, 2).reshape(Bn, H * W, C * 9)
    return p


def _full_spec(shape):
    return pl.BlockSpec(shape, lambda c, _n=len(shape): (0,) * _n)


def encoder_decoder_forward(images, captions, kp):
    # im2col + lane-dense K padding; bf16 MXU operand.
    patches = im2col_3x3(images).reshape(B * HW, CIN * 9)
    patches = jnp.pad(patches, ((0, 0), (0, KP - CIN * 9))).astype(jnp.bfloat16)
    pool = jnp.asarray(POOL_NP)

    # Embedding lookup hoisted off the serial in-kernel recurrence: tiny (B, T-1) gather
    # here, padded to (T-1, B_PAD, HP) bf16 rows the kernel slices per step.
    # (OOB caption indices would clamp silently; synthetic data is always < VOCAB.)
    xcap = jnp.transpose(kp["word_emb"][captions[:, :T_CAP - 1]], (1, 0, 2))
    xcap = jnp.pad(xcap, ((0, 0), (0, B_PAD - B), (0, HP - EMBED)))

    out = pl.pallas_call(
        fused_kernel,
        out_shape=jax.ShapeDtypeStruct((T_CAP, B_PAD, VOCAB), jnp.float32),
        grid_spec=pltpu.PrefetchScalarGridSpec(
            num_scalar_prefetch=0,
            grid=(NC,),                                             # CF chunks
            in_specs=[
                _full_spec((T_CAP - 1, B_PAD, HP)),                 # caption embeddings
                _full_spec((B * HW, KP)),                           # patches
                pl.BlockSpec((KP, CF_CHUNK), lambda c: (0, c)),     # conv_w chunk
                _full_spec((B_PAD, B * HW)),                        # pooling matrix
                pl.BlockSpec((CF_CHUNK, EMBED), lambda c: (c, 0)),  # emb_w chunk
                _full_spec((1, EMBED)),                             # emb_b
                _full_spec((2 * HP, 4 * HP)),                       # W0 = [wih0; whh0]
                _full_spec((1, 4 * HP)),                            # b0
                _full_spec((2 * HP, 4 * HP)),                       # W1 = [wih1; whh1]
                _full_spec((1, 4 * HP)),                            # b1
                _full_spec((HP, VOCAB)),                            # fc_w (padded rows)
                _full_spec((1, VOCAB)),                             # fc_b
            ],
            out_specs=_full_spec((T_CAP, B_PAD, VOCAB)),
            scratch_shapes=[
                pltpu.VMEM((B_PAD, EMBED), jnp.float32),            # feat accumulator
                pltpu.VMEM((T_CAP, B_PAD, HP), jnp.float32),        # per-step h1 buffer
            ],
        ),
        compiler_params=pltpu.CompilerParams(
            dimension_semantics=("arbitrary",),
            vmem_limit_bytes=32 * 1024 * 1024),
    )(xcap, patches, kp["conv_w"], pool, kp["emb_w"], kp["emb_b"],
      kp["w0"], kp["b0"], kp["w1"], kp["b1"], kp["fc_w"], kp["fc_b"])

    # (T, B_PAD, V) -> (B, T, V): drop padding rows, batch-major like the module.
    return jnp.swapaxes(out, 0, 1)[:B]


# ======================= pure-JAX reference (for checking) ====================

def reference_forward(images, captions, params):
    patches = im2col_3x3(images)
    # match the kernel's bf16 rounding of the conv MXU input (weights are already
    # bf16-representable); all accumulation stays f32.
    patches = patches.astype(jnp.bfloat16).astype(jnp.float32)
    conv = jnp.maximum(jnp.einsum("bpk,kc->bpc", patches, params["conv_w"]), 0.0)
    feat = conv.mean(axis=1)
    features = feat @ params["emb_w"] + params["emb_b"][0]
    emb_cap = params["word_emb"][captions]
    x = jnp.concatenate([features[:, None, :], emb_cap], axis=1)

    def run_layer(x_btf, wih, whh, b):
        def step(carry, xt):
            hprev, cprev = carry
            gates = xt @ wih + hprev @ whh + b[0]
            i = jax.nn.sigmoid(gates[:, 0 * HIDDEN:1 * HIDDEN])
            f = jax.nn.sigmoid(gates[:, 1 * HIDDEN:2 * HIDDEN])
            g = jnp.tanh(gates[:, 2 * HIDDEN:3 * HIDDEN])
            o = jax.nn.sigmoid(gates[:, 3 * HIDDEN:4 * HIDDEN])
            c = f * cprev + i * g
            h = o * jnp.tanh(c)
            return (h, c), h
        z = jnp.zeros((x_btf.shape[0], HIDDEN), jnp.float32)
        _, hs = lax.scan(step, (z, z), jnp.swapaxes(x_btf, 0, 1))
        return jnp.swapaxes(hs, 0, 1)

    h = x
    for (wih, whh, b) in params["lstm"]:
        h = run_layer(h, wih, whh, b)
    h_trim = h[:, :-1, :]
    out = h_trim.reshape(-1, HIDDEN) @ params["fc_w"] + params["fc_b"][0]
    return out.reshape(B, T_CAP, VOCAB)


# =============================== params =======================================

def _quant_bf16(w):
    """Round weights to bf16-representable values (kernel stores them as bf16)."""
    return w.astype(jnp.bfloat16).astype(jnp.float32)


def init_params(key):
    ks = jax.random.split(key, 16)
    p = {}
    # synthetic ResNet stand-in conv: (C_in*3*3, CF)
    p["conv_w"] = _quant_bf16(jax.random.normal(ks[0], (CIN * 9, CF), jnp.float32) * 0.05)
    # EncoderCNN.embed: weight ~ N(0, 0.02), bias = 0   (stored transposed: (CF, EMBED))
    p["emb_w"] = _quant_bf16(jax.random.normal(ks[1], (CF, EMBED), jnp.float32) * 0.02)
    p["emb_b"] = jnp.zeros((1, EMBED), jnp.float32)
    # nn.Embedding default ~ N(0, 1)
    p["word_emb"] = _quant_bf16(jax.random.normal(ks[2], (VOCAB, EMBED), jnp.float32))
    # stacked LSTM, PyTorch default init U(-1/sqrt(H), 1/sqrt(H)), gate order i,f,g,o
    kbound = 1.0 / np.sqrt(HIDDEN)
    lstm = []
    ki = 3
    for layer in range(NUM_LAYERS):
        in_dim = EMBED if layer == 0 else HIDDEN
        wih = _quant_bf16(jax.random.uniform(ks[ki], (in_dim, 4 * HIDDEN), jnp.float32,
                                             -kbound, kbound))
        whh = _quant_bf16(jax.random.uniform(ks[ki + 1], (HIDDEN, 4 * HIDDEN), jnp.float32,
                                             -kbound, kbound))
        bih = jax.random.uniform(ks[ki + 2], (4 * HIDDEN,), jnp.float32, -kbound, kbound)
        bhh = jax.random.uniform(ks[ki + 3], (4 * HIDDEN,), jnp.float32, -kbound, kbound)
        lstm.append((wih, whh, (bih + bhh)[None, :]))
        ki += 4
    p["lstm"] = lstm
    # RNNDecoder.fc: xavier_uniform weight, normal bias (stored transposed: (HIDDEN, VOCAB))
    bound = float(np.sqrt(6.0 / (HIDDEN + VOCAB)))
    p["fc_w"] = _quant_bf16(jax.random.uniform(ks[ki], (HIDDEN, VOCAB), jnp.float32,
                                               -bound, bound))
    p["fc_b"] = jax.random.normal(ks[ki + 1], (1, VOCAB), jnp.float32)
    return p


def pad_params_for_kernel(p):
    """Repack weights into the fused, lane-dense, bf16 kernel layout (same math)."""
    assert NUM_LAYERS == 2, "fused kernel is specialized for 2 stacked LSTM layers"
    (wih0, whh0, b0), (wih1, whh1, b1) = p["lstm"]

    def fuse(wih, whh):
        # rows 0:HP <- wih (x half), rows HP:2HP <- whh (h half); each gate in its own
        # 128-lane group; zero padding keeps the math exact.
        w = jnp.zeros((2 * HP, 4 * HP), jnp.float32)
        for k in range(4):
            w = w.at[:wih.shape[0], k * HP:k * HP + HIDDEN].set(
                wih[:, k * HIDDEN:(k + 1) * HIDDEN])
            w = w.at[HP:HP + HIDDEN, k * HP:k * HP + HIDDEN].set(
                whh[:, k * HIDDEN:(k + 1) * HIDDEN])
        return w.astype(jnp.bfloat16)

    def pad_bias(b):
        o = jnp.zeros((1, 4 * HP), jnp.float32)
        for k in range(4):
            o = o.at[:, k * HP:k * HP + HIDDEN].set(b[:, k * HIDDEN:(k + 1) * HIDDEN])
        return o

    return {
        "conv_w": jnp.pad(p["conv_w"], ((0, KP - CIN * 9), (0, 0))).astype(jnp.bfloat16),
        "emb_w": p["emb_w"].astype(jnp.bfloat16),
        "emb_b": p["emb_b"],
        "word_emb": p["word_emb"].astype(jnp.bfloat16),
        "w0": fuse(wih0, whh0), "b0": pad_bias(b0),
        "w1": fuse(wih1, whh1), "b1": pad_bias(b1),
        "fc_w": jnp.pad(p["fc_w"], ((0, HP - HIDDEN), (0, 0))).astype(jnp.bfloat16),
        "fc_b": p["fc_b"],
    }


# =============================== main =========================================

if __name__ == "__main__":
    key = jax.random.PRNGKey(0)
    k_param, k_img, k_cap = jax.random.split(key, 3)

    images = jax.random.normal(k_img, (B, CIN, IMG, IMG), jnp.float32)   # NCHW
    captions = jax.random.randint(k_cap, (B, T_CAP), 0, VOCAB, jnp.int32)
    params = init_params(k_param)
    kparams = pad_params_for_kernel(params)

    fwd = jax.jit(encoder_decoder_forward)
    out = jax.block_until_ready(fwd(images, captions, kparams))
    assert out.shape == (B, T_CAP, VOCAB), out.shape

    ref = reference_forward(images, captions, params)
    # bf16 MXU operands (f32 accumulation) vs f32 reference: small activation-cast error.
    np.testing.assert_allclose(np.asarray(out), np.asarray(ref), rtol=1e-2, atol=1e-2)

    print("KERNEL_OK")
</pallas_src>

<mosaic_0001>
module attributes {stable_mosaic.version = 11 : i64} {
  func.func @fused_kernel(%arg0: i32, %arg1: memref<7x8x128xbf16, #tpu.memory_space<vmem>>, %arg2: memref<512x128xbf16, #tpu.memory_space<vmem>>, %arg3: memref<128x512xbf16, #tpu.memory_space<vmem>>, %arg4: memref<8x512xf32, #tpu.memory_space<vmem>>, %arg5: memref<512x32xbf16, #tpu.memory_space<vmem>>, %arg6: memref<1x32xf32, #tpu.memory_space<vmem>>, %arg7: memref<256x512xbf16, #tpu.memory_space<vmem>>, %arg8: memref<1x512xf32, #tpu.memory_space<vmem>>, %arg9: memref<256x512xbf16, #tpu.memory_space<vmem>>, %arg10: memref<1x512xf32, #tpu.memory_space<vmem>>, %arg11: memref<128x128xbf16, #tpu.memory_space<vmem>>, %arg12: memref<1x128xf32, #tpu.memory_space<vmem>>, %arg13: memref<8x8x128xf32, #tpu.memory_space<vmem>>, %arg14: memref<8x32xf32, #tpu.memory_space<vmem>>, %arg15: memref<8x8x128xf32, #tpu.memory_space<vmem>>) attributes {dimension_semantics = [#tpu.dimension_semantics<arbitrary>], iteration_bounds = array<i64: 4>, scalar_prefetch = 0 : i64, scratch_operands = 2 : i64, tpu.core_type = #tpu.core_type<tc>, window_params = [{pipeline_mode = #tpu.pipeline_mode<synchronous>, transform_indices = @transform_0, window_bounds = array<i64: 7, 8, 128>}, {pipeline_mode = #tpu.pipeline_mode<synchronous>, transform_indices = @transform_1, window_bounds = array<i64: 512, 128>}, {transform_indices = @transform_2, window_bounds = array<i64: 128, 512>}, {pipeline_mode = #tpu.pipeline_mode<synchronous>, transform_indices = @transform_3, window_bounds = array<i64: 8, 512>}, {transform_indices = @transform_4, window_bounds = array<i64: 512, 32>}, {pipeline_mode = #tpu.pipeline_mode<synchronous>, transform_indices = @transform_5, window_bounds = array<i64: 1, 32>}, {pipeline_mode = #tpu.pipeline_mode<synchronous>, transform_indices = @transform_6, window_bounds = array<i64: 256, 512>}, {pipeline_mode = #tpu.pipeline_mode<synchronous>, transform_indices = @transform_7, window_bounds = array<i64: 1, 512>}, {pipeline_mode = #tpu.pipeline_mode<synchronous>, transform_indices = @transform_8, window_bounds = array<i64: 256, 512>}, {pipeline_mode = #tpu.pipeline_mode<synchronous>, transform_indices = @transform_9, window_bounds = array<i64: 1, 512>}, {pipeline_mode = #tpu.pipeline_mode<synchronous>, transform_indices = @transform_10, window_bounds = array<i64: 128, 128>}, {pipeline_mode = #tpu.pipeline_mode<synchronous>, transform_indices = @transform_11, window_bounds = array<i64: 1, 128>}, {pipeline_mode = #tpu.pipeline_mode<synchronous>, transform_indices = @transform_12, window_bounds = array<i64: 8, 8, 128>}]} {
    %c0_i32 = arith.constant 0 : i32
    %0 = arith.cmpi eq, %arg0, %c0_i32 : i32
    %1 = arith.extui %0 : i1 to i32
    %c0_i32_0 = arith.constant 0 : i32
    %2 = arith.cmpi ne, %1, %c0_i32_0 : i32
    scf.if %2 {
      %cst_16 = arith.constant 0.000000e+00 : f32
      %19 = vector.broadcast %cst_16 : f32 to vector<8x32xf32>
      %c0_17 = arith.constant 0 : index
      %c0_18 = arith.constant 0 : index
      %20 = vector.load %arg14[%c0_17, %c0_18] : memref<8x32xf32, #tpu.memory_space<vmem>>, vector<8x32xf32>
      tpu.vector_store %arg14[%c0_17, %c0_18], %19 {strides = array<i32>} : memref<8x32xf32, #tpu.memory_space<vmem>>, vector<8x32xf32>,
    } else {
    }
    %c0 = arith.constant 0 : index
    %c0_1 = arith.constant 0 : index
    %3 = vector.load %arg2[%c0, %c0_1] : memref<512x128xbf16, #tpu.memory_space<vmem>>, vector<512x128xbf16>
    %c0_2 = arith.constant 0 : index
    %c0_3 = arith.constant 0 : index
    %4 = vector.load %arg3[%c0_2, %c0_3] : memref<128x512xbf16, #tpu.memory_space<vmem>>, vector<128x512xbf16>
    %cst = arith.constant dense<0.000000e+00> : vector<512x512xf32>
    %5 = tpu.matmul %3, %4, %cst {dimension_numbers = #tpu.dot_dimension_numbers<[1], [0], [0], [1], [0, 0, 1, 1], [], []>} : vector<512x128xbf16>, vector<128x512xbf16>, vector<512x512xf32> -> vector<512x512xf32>
    %cst_4 = arith.constant 0.000000e+00 : f32
    %6 = vector.broadcast %cst_4 : f32 to vector<512x512xf32>
    %7 = arith.maximumf %5, %6 : vector<512x512xf32>
    %c0_5 = arith.constant 0 : index
    %c0_6 = arith.constant 0 : index
    %8 = vector.load %arg4[%c0_5, %c0_6] : memref<8x512xf32, #tpu.memory_space<vmem>>, vector<8x512xf32>
    %cst_7 = arith.constant dense<0.000000e+00> : vector<8x512xf32>
    %9 = tpu.matmul %8, %7, %cst_7 {dimension_numbers = #tpu.dot_dimension_numbers<[1], [0], [0], [1], [0, 0, 1, 1], [], []>} : vector<8x512xf32>, vector<512x512xf32>, vector<8x512xf32> -> vector<8x512xf32>
    %c0_8 = arith.constant 0 : index
    %c0_9 = arith.constant 0 : index
    %10 = vector.load %arg14[%c0_8, %c0_9] : memref<8x32xf32, #tpu.memory_space<vmem>>, vector<8x32xf32>
    %11 = arith.truncf %9 : vector<8x512xf32> to vector<8x512xbf16>
    %c0_10 = arith.constant 0 : index
    %c0_11 = arith.constant 0 : index
    %12 = vector.load %arg5[%c0_10, %c0_11] : memref<512x32xbf16, #tpu.memory_space<vmem>>, vector<512x32xbf16>
    %cst_12 = arith.constant dense<0.000000e+00> : vector<8x32xf32>
    %13 = tpu.matmul %11, %12, %cst_12 {dimension_numbers = #tpu.dot_dimension_numbers<[1], [0], [0], [1], [0, 0, 1, 1], [], []>} : vector<8x512xbf16>, vector<512x32xbf16>, vector<8x32xf32> -> vector<8x32xf32>
    %14 = arith.addf %10, %13 : vector<8x32xf32>
    %c0_13 = arith.constant 0 : index
    %c0_14 = arith.constant 0 : index
    %15 = vector.load %arg14[%c0_13, %c0_14] : memref<8x32xf32, #tpu.memory_space<vmem>>, vector<8x32xf32>
    tpu.vector_store %arg14[%c0_13, %c0_14], %14 {strides = array<i32>} : memref<8x32xf32, #tpu.memory_space<vmem>>, vector<8x32xf32>,
    %c3_i32 = arith.constant 3 : i32
    %16 = arith.cmpi eq, %arg0, %c3_i32 : i32
    %17 = arith.extui %16 : i1 to i32
    %c0_i32_15 = arith.constant 0 : i32
    %18 = arith.cmpi ne, %17, %c0_i32_15 : i32
    scf.if %18 {
      %c0_16 = arith.constant 0 : index
      %c0_17 = arith.constant 0 : index
      %19 = vector.load %arg7[%c0_16, %c0_17] : memref<256x512xbf16, #tpu.memory_space<vmem>>, vector<256x512xbf16>
      %c0_18 = arith.constant 0 : index
      %c0_19 = arith.constant 0 : index
      %20 = vector.load %arg8[%c0_18, %c0_19] : memref<1x512xf32, #tpu.memory_space<vmem>>, vector<1x512xf32>
      %c0_20 = arith.constant 0 : index
      %c0_21 = arith.constant 0 : index
      %21 = vector.load %arg9[%c0_20, %c0_21] : memref<256x512xbf16, #tpu.memory_space<vmem>>, vector<256x512xbf16>
      %c0_22 = arith.constant 0 : index
      %c0_23 = arith.constant 0 : index
      %22 = vector.load %arg10[%c0_22, %c0_23] : memref<1x512xf32, #tpu.memory_space<vmem>>, vector<1x512xf32>
      %c0_24 = arith.constant 0 : index
      %c0_25 = arith.constant 0 : index
      %23 = vector.load %arg14[%c0_24, %c0_25] : memref<8x32xf32, #tpu.memory_space<vmem>>, vector<8x32xf32>
      %c0_26 = arith.constant 0 : index
      %c0_27 = arith.constant 0 : index
      %24 = vector.load %arg6[%c0_26, %c0_27] : memref<1x32xf32, #tpu.memory_space<vmem>>, vector<1x32xf32>
      %25 = vector.broadcast %24 : vector<1x32xf32> to vector<8x32xf32>
      %26 = arith.addf %23, %25 : vector<8x32xf32>
      %cst_28 = arith.constant 0.000000e+00 : f32
      %27 = vector.broadcast %cst_28 : f32 to vector<8x96xf32>
      %28 = tpu.concatenate %26, %27 in 1 : vector<8x32xf32>, vector<8x96xf32> -> vector<8x128xf32>
      %29 = arith.truncf %28 : vector<8x128xf32> to vector<8x128xbf16>
      %cst_29 = arith.constant 0.000000e+00 : f32
      %30 = vector.broadcast %cst_29 : f32 to vector<8x128xf32>
      %31 = arith.truncf %30 : vector<8x128xf32> to vector<8x128xbf16>
      %32 = tpu.concatenate %29, %31 in 1 : vector<8x128xbf16>, vector<8x128xbf16> -> vector<8x256xbf16>
      %cst_30 = arith.constant dense<0.000000e+00> : vector<8x512xf32>
      %33 = tpu.matmul %32, %19, %cst_30 {dimension_numbers = #tpu.dot_dimension_numbers<[1], [0], [0], [1], [0, 0, 1, 1], [], []>} : vector<8x256xbf16>, vector<256x512xbf16>, vector<8x512xf32> -> vector<8x512xf32>
      %34 = vector.broadcast %20 : vector<1x512xf32> to vector<8x512xf32>
      %35 = arith.addf %33, %34 : vector<8x512xf32>
      %36 = vector.extract_strided_slice %35 {offsets = [0, 0], sizes = [8, 128], strides = [1, 1]} : vector<8x512xf32> to vector<8x128xf32>
      %37 = arith.negf %36 : vector<8x128xf32>
      %38 = math.exp %37 : vector<8x128xf32>
      %cst_31 = arith.constant 1.000000e+00 : f32
      %39 = vector.broadcast %cst_31 : f32 to vector<8x128xf32>
      %40 = arith.addf %39, %38 : vector<8x128xf32>
      %41 = arith.divf %39, %40 : vector<8x128xf32>
      %42 = vector.extract_strided_slice %35 {offsets = [0, 128], sizes = [8, 128], strides = [1, 1]} : vector<8x512xf32> to vector<8x128xf32>
      %43 = arith.negf %42 : vector<8x128xf32>
      %44 = math.exp %43 : vector<8x128xf32>
      %cst_32 = arith.constant 1.000000e+00 : f32
      %45 = vector.broadcast %cst_32 : f32 to vector<8x128xf32>
      %46 = arith.addf %45, %44 : vector<8x128xf32>
      %47 = arith.divf %45, %46 : vector<8x128xf32>
      %48 = vector.extract_strided_slice %35 {offsets = [0, 256], sizes = [8, 128], strides = [1, 1]} : vector<8x512xf32> to vector<8x128xf32>
      %49 = math.tanh %48 : vector<8x128xf32>
      %50 = vector.extract_strided_slice %35 {offsets = [0, 384], sizes = [8, 128], strides = [1, 1]} : vector<8x512xf32> to vector<8x128xf32>
      %51 = arith.negf %50 : vector<8x128xf32>
      %52 = math.exp %51 : vector<8x128xf32>
      %cst_33 = arith.constant 1.000000e+00 : f32
      %53 = vector.broadcast %cst_33 : f32 to vector<8x128xf32>
      %54 = arith.addf %53, %52 : vector<8x128xf32>
      %55 = arith.divf %53, %54 : vector<8x128xf32>
      %56 = arith.mulf %47, %30 : vector<8x128xf32>
      %57 = arith.mulf %41, %49 : vector<8x128xf32>
      %58 = arith.addf %56, %57 : vector<8x128xf32>
      %59 = math.tanh %58 : vector<8x128xf32>
      %60 = arith.mulf %55, %59 : vector<8x128xf32>
      %61 = arith.truncf %60 : vector<8x128xf32> to vector<8x128xbf16>
      %62 = arith.truncf %30 : vector<8x128xf32> to vector<8x128xbf16>
      %63 = tpu.concatenate %61, %62 in 1 : vector<8x128xbf16>, vector<8x128xbf16> -> vector<8x256xbf16>
      %cst_34 = arith.constant dense<0.000000e+00> : vector<8x512xf32>
      %64 = tpu.matmul %63, %21, %cst_34 {dimension_numbers = #tpu.dot_dimension_numbers<[1], [0], [0], [1], [0, 0, 1, 1], [], []>} : vector<8x256xbf16>, vector<256x512xbf16>, vector<8x512xf32> -> vector<8x512xf32>
      %65 = vector.broadcast %22 : vector<1x512xf32> to vector<8x512xf32>
      %66 = arith.addf %64, %65 : vector<8x512xf32>
      %67 = vector.extract_strided_slice %66 {offsets = [0, 0], sizes = [8, 128], strides = [1, 1]} : vector<8x512xf32> to vector<8x128xf32>
      %68 = arith.negf %67 : vector<8x128xf32>
      %69 = math.exp %68 : vector<8x128xf32>
      %cst_35 = arith.constant 1.000000e+00 : f32
      %70 = vector.broadcast %cst_35 : f32 to vector<8x128xf32>
      %71 = arith.addf %70, %69 : vector<8x128xf32>
      %72 = arith.divf %70, %71 : vector<8x128xf32>
      %73 = vector.extract_strided_slice %66 {offsets = [0, 128], sizes = [8, 128], strides = [1, 1]} : vector<8x512xf32> to vector<8x128xf32>
      %74 = arith.negf %73 : vector<8x128xf32>
      %75 = math.exp %74 : vector<8x128xf32>
      %cst_36 = arith.constant 1.000000e+00 : f32
      %76 = vector.broadcast %cst_36 : f32 to vector<8x128xf32>
      %77 = arith.addf %76, %75 : vector<8x128xf32>
      %78 = arith.divf %76, %77 : vector<8x128xf32>
      %79 = vector.extract_strided_slice %66 {offsets = [0, 256], sizes = [8, 128], strides = [1, 1]} : vector<8x512xf32> to vector<8x128xf32>
      %80 = math.tanh %79 : vector<8x128xf32>
      %81 = vector.extract_strided_slice %66 {offsets = [0, 384], sizes = [8, 128], strides = [1, 1]} : vector<8x512xf32> to vector<8x128xf32>
      %82 = arith.negf %81 : vector<8x128xf32>
      %83 = math.exp %82 : vector<8x128xf32>
      %cst_37 = arith.constant 1.000000e+00 : f32
      %84 = vector.broadcast %cst_37 : f32 to vector<8x128xf32>
      %85 = arith.addf %84, %83 : vector<8x128xf32>
      %86 = arith.divf %84, %85 : vector<8x128xf32>
      %87 = arith.mulf %78, %30 : vector<8x128xf32>
      %88 = arith.mulf %72, %80 : vector<8x128xf32>
      %89 = arith.addf %87, %88 : vector<8x128xf32>
      %90 = math.tanh %89 : vector<8x128xf32>
      %91 = arith.mulf %86, %90 : vector<8x128xf32>
      %c0_38 = arith.constant 0 : index
      %c0_39 = arith.constant 0 : index
      %c0_40 = arith.constant 0 : index
      %92 = vector.load %arg15[%c0_38, %c0_39, %c0_40] : memref<8x8x128xf32, #tpu.memory_space<vmem>>, vector<1x8x128xf32>
      %93 = vector.shape_cast %92 : vector<1x8x128xf32> to vector<8x128xf32>
      %94 = vector.shape_cast %91 : vector<8x128xf32> to vector<1x8x128xf32>
      tpu.vector_store %arg15[%c0_38, %c0_39, %c0_40], %94 {strides = array<i32>} : memref<8x8x128xf32, #tpu.memory_space<vmem>>, vector<1x8x128xf32>,
      %c1_i32 = arith.constant 1 : i32
      %c1_i32_41 = arith.constant 1 : i32
      %95 = arith.subi %c1_i32, %c1_i32_41 : i32
      %96 = arith.index_cast %95 : i32 to index
      %c0_42 = arith.constant 0 : index
      %c0_43 = arith.constant 0 : index
      %97 = vector.load %arg1[%96, %c0_42, %c0_43] : memref<7x8x128xbf16, #tpu.memory_space<vmem>>, vector<1x8x128xbf16>
      %98 = vector.shape_cast %97 : vector<1x8x128xbf16> to vector<8x128xbf16>
      %99 = arith.truncf %60 : vector<8x128xf32> to vector<8x128xbf16>
      %100 = tpu.concatenate %98, %99 in 1 : vector<8x128xbf16>, vector<8x128xbf16> -> vector<8x256xbf16>
      %cst_44 = arith.constant dense<0.000000e+00> : vector<8x512xf32>
      %101 = tpu.matmul %100, %19, %cst_44 {dimension_numbers = #tpu.dot_dimension_numbers<[1], [0], [0], [1], [0, 0, 1, 1], [], []>} : vector<8x256xbf16>, vector<256x512xbf16>, vector<8x512xf32> -> vector<8x512xf32>
      %102 = vector.broadcast %20 : vector<1x512xf32> to vector<8x512xf32>
      %103 = arith.addf %101, %102 : vector<8x512xf32>
      %104 = vector.extract_strided_slice %103 {offsets = [0, 0], sizes = [8, 128], strides = [1, 1]} : vector<8x512xf32> to vector<8x128xf32>
      %105 = arith.negf %104 : vector<8x128xf32>
      %106 = math.exp %105 : vector<8x128xf32>
      %cst_45 = arith.constant 1.000000e+00 : f32
      %107 = vector.broadcast %cst_45 : f32 to vector<8x128xf32>
      %108 = arith.addf %107, %106 : vector<8x128xf32>
      %109 = arith.divf %107, %108 : vector<8x128xf32>
      %110 = vector.extract_strided_slice %103 {offsets = [0, 128], sizes = [8, 128], strides = [1, 1]} : vector<8x512xf32> to vector<8x128xf32>
      %111 = arith.negf %110 : vector<8x128xf32>
      %112 = math.exp %111 : vector<8x128xf32>
      %cst_46 = arith.constant 1.000000e+00 : f32
      %113 = vector.broadcast %cst_46 : f32 to vector<8x128xf32>
      %114 = arith.addf %113, %112 : vector<8x128xf32>
      %115 = arith.divf %113, %114 : vector<8x128xf32>
      %116 = vector.extract_strided_slice %103 {offsets = [0, 256], sizes = [8, 128], strides = [1, 1]} : vector<8x512xf32> to vector<8x128xf32>
      %117 = math.tanh %116 : vector<8x128xf32>
      %118 = vector.extract_strided_slice %103 {offsets = [0, 384], sizes = [8, 128], strides = [1, 1]} : vector<8x512xf32> to vector<8x128xf32>
      %119 = arith.negf %118 : vector<8x128xf32>
      %120 = math.exp %119 : vector<8x128xf32>
      %cst_47 = arith.constant 1.000000e+00 : f32
      %121 = vector.broadcast %cst_47 : f32 to vector<8x128xf32>
      %122 = arith.addf %121, %120 : vector<8x128xf32>
      %123 = arith.divf %121, %122 : vector<8x128xf32>
      %124 = arith.mulf %115, %58 : vector<8x128xf32>
      %125 = arith.mulf %109, %117 : vector<8x128xf32>
      %126 = arith.addf %124, %125 : vector<8x128xf32>
      %127 = math.tanh %126 : vector<8x128xf32>
      %128 = arith.mulf %123, %127 : vector<8x128xf32>
      %129 = arith.truncf %128 : vector<8x128xf32> to vector<8x128xbf16>
      %130 = arith.truncf %91 : vector<8x128xf32> to vector<8x128xbf16>
      %131 = tpu.concatenate %129, %130 in 1 : vector<8x128xbf16>, vector<8x128xbf16> -> vector<8x256xbf16>
      %cst_48 = arith.constant dense<0.000000e+00> : vector<8x512xf32>
      %132 = tpu.matmul %131, %21, %cst_48 {dimension_numbers = #tpu.dot_dimension_numbers<[1], [0], [0], [1], [0, 0, 1, 1], [], []>} : vector<8x256xbf16>, vector<256x512xbf16>, vector<8x512xf32> -> vector<8x512xf32>
      %133 = vector.broadcast %22 : vector<1x512xf32> to vector<8x512xf32>
      %134 = arith.addf %132, %133 : vector<8x512xf32>
      %135 = vector.extract_strided_slice %134 {offsets = [0, 0], sizes = [8, 128], strides = [1, 1]} : vector<8x512xf32> to vector<8x128xf32>
      %136 = arith.negf %135 : vector<8x128xf32>
      %137 = math.exp %136 : vector<8x128xf32>
      %cst_49 = arith.constant 1.000000e+00 : f32
      %138 = vector.broadcast %cst_49 : f32 to vector<8x128xf32>
      %139 = arith.addf %138, %137 : vector<8x128xf32>
      %140 = arith.divf %138, %139 : vector<8x128xf32>
      %141 = vector.extract_strided_slice %134 {offsets = [0, 128], sizes = [8, 128], strides = [1, 1]} : vector<8x512xf32> to vector<8x128xf32>
      %142 = arith.negf %141 : vector<8x128xf32>
      %143 = math.exp %142 : vector<8x128xf32>
      %cst_50 = arith.constant 1.000000e+00 : f32
      %144 = vector.broadcast %cst_50 : f32 to vector<8x128xf32>
      %145 = arith.addf %144, %143 : vector<8x128xf32>
      %146 = arith.divf %144, %145 : vector<8x128xf32>
      %147 = vector.extract_strided_slice %134 {offsets = [0, 256], sizes = [8, 128], strides = [1, 1]} : vector<8x512xf32> to vector<8x128xf32>
      %148 = math.tanh %147 : vector<8x128xf32>
      %149 = vector.extract_strided_slice %134 {offsets = [0, 384], sizes = [8, 128], strides = [1, 1]} : vector<8x512xf32> to vector<8x128xf32>
      %150 = arith.negf %149 : vector<8x128xf32>
      %151 = math.exp %150 : vector<8x128xf32>
      %cst_51 = arith.constant 1.000000e+00 : f32
      %152 = vector.broadcast %cst_51 : f32 to vector<8x128xf32>
      %153 = arith.addf %152, %151 : vector<8x128xf32>
      %154 = arith.divf %152, %153 : vector<8x128xf32>
      %155 = arith.mulf %146, %89 : vector<8x128xf32>
      %156 = arith.mulf %140, %148 : vector<8x128xf32>
      %157 = arith.addf %155, %156 : vector<8x128xf32>
      %158 = math.tanh %157 : vector<8x128xf32>
      %159 = arith.mulf %154, %158 : vector<8x128xf32>
      %160 = arith.index_cast %c1_i32 : i32 to index
      %c0_52 = arith.constant 0 : index
      %c0_53 = arith.constant 0 : index
      %161 = vector.load %arg15[%160, %c0_52, %c0_53] : memref<8x8x128xf32, #tpu.memory_space<vmem>>, vector<1x8x128xf32>
      %162 = vector.shape_cast %161 : vector<1x8x128xf32> to vector<8x128xf32>
      %163 = vector.shape_cast %159 : vector<8x128xf32> to vector<1x8x128xf32>
      tpu.vector_store %arg15[%160, %c0_52, %c0_53], %163 {strides = array<i32>} : memref<8x8x128xf32, #tpu.memory_space<vmem>>, vector<1x8x128xf32>,
      %c2_i32 = arith.constant 2 : i32
      %c1_i32_54 = arith.constant 1 : i32
      %164 = arith.subi %c2_i32, %c1_i32_54 : i32
      %165 = arith.index_cast %164 : i32 to index
      %c0_55 = arith.constant 0 : index
      %c0_56 = arith.constant 0 : index
      %166 = vector.load %arg1[%165, %c0_55, %c0_56] : memref<7x8x128xbf16, #tpu.memory_space<vmem>>, vector<1x8x128xbf16>
      %167 = vector.shape_cast %166 : vector<1x8x128xbf16> to vector<8x128xbf16>
      %168 = arith.truncf %128 : vector<8x128xf32> to vector<8x128xbf16>
      %169 = tpu.concatenate %167, %168 in 1 : vector<8x128xbf16>, vector<8x128xbf16> -> vector<8x256xbf16>
      %cst_57 = arith.constant dense<0.000000e+00> : vector<8x512xf32>
      %170 = tpu.matmul %169, %19, %cst_57 {dimension_numbers = #tpu.dot_dimension_numbers<[1], [0], [0], [1], [0, 0, 1, 1], [], []>} : vector<8x256xbf16>, vector<256x512xbf16>, vector<8x512xf32> -> vector<8x512xf32>
      %171 = vector.broadcast %20 : vector<1x512xf32> to vector<8x512xf32>
      %172 = arith.addf %170, %171 : vector<8x512xf32>
      %173 = vector.extract_strided_slice %172 {offsets = [0, 0], sizes = [8, 128], strides = [1, 1]} : vector<8x512xf32> to vector<8x128xf32>
      %174 = arith.negf %173 : vector<8x128xf32>
      %175 = math.exp %174 : vector<8x128xf32>
      %cst_58 = arith.constant 1.000000e+00 : f32
      %176 = vector.broadcast %cst_58 : f32 to vector<8x128xf32>
      %177 = arith.addf %176, %175 : vector<8x128xf32>
      %178 = arith.divf %176, %177 : vector<8x128xf32>
      %179 = vector.extract_strided_slice %172 {offsets = [0, 128], sizes = [8, 128], strides = [1, 1]} : vector<8x512xf32> to vector<8x128xf32>
      %180 = arith.negf %179 : vector<8x128xf32>
      %181 = math.exp %180 : vector<8x128xf32>
      %cst_59 = arith.constant 1.000000e+00 : f32
      %182 = vector.broadcast %cst_59 : f32 to vector<8x128xf32>
      %183 = arith.addf %182, %181 : vector<8x128xf32>
      %184 = arith.divf %182, %183 : vector<8x128xf32>
      %185 = vector.extract_strided_slice %172 {offsets = [0, 256], sizes = [8, 128], strides = [1, 1]} : vector<8x512xf32> to vector<8x128xf32>
      %186 = math.tanh %185 : vector<8x128xf32>
      %187 = vector.extract_strided_slice %172 {offsets = [0, 384], sizes = [8, 128], strides = [1, 1]} : vector<8x512xf32> to vector<8x128xf32>
      %188 = arith.negf %187 : vector<8x128xf32>
      %189 = math.exp %188 : vector<8x128xf32>
      %cst_60 = arith.constant 1.000000e+00 : f32
      %190 = vector.broadcast %cst_60 : f32 to vector<8x128xf32>
      %191 = arith.addf %190, %189 : vector<8x128xf32>
      %192 = arith.divf %190, %191 : vector<8x128xf32>
      %193 = arith.mulf %184, %126 : vector<8x128xf32>
      %194 = arith.mulf %178, %186 : vector<8x128xf32>
      %195 = arith.addf %193, %194 : vector<8x128xf32>
      %196 = math.tanh %195 : vector<8x128xf32>
      %197 = arith.mulf %192, %196 : vector<8x128xf32>
      %198 = arith.truncf %197 : vector<8x128xf32> to vector<8x128xbf16>
      %199 = arith.truncf %159 : vector<8x128xf32> to vector<8x128xbf16>
      %200 = tpu.concatenate %198, %199 in 1 : vector<8x128xbf16>, vector<8x128xbf16> -> vector<8x256xbf16>
      %cst_61 = arith.constant dense<0.000000e+00> : vector<8x512xf32>
      %201 = tpu.matmul %200, %21, %cst_61 {dimension_numbers = #tpu.dot_dimension_numbers<[1], [0], [0], [1], [0, 0, 1, 1], [], []>} : vector<8x256xbf16>, vector<256x512xbf16>, vector<8x512xf32> -> vector<8x512xf32>
      %202 = vector.broadcast %22 : vector<1x512xf32> to vector<8x512xf32>
      %203 = arith.addf %201, %202 : vector<8x512xf32>
      %204 = vector.extract_strided_slice %203 {offsets = [0, 0], sizes = [8, 128], strides = [1, 1]} : vector<8x512xf32> to vector<8x128xf32>
      %205 = arith.negf %204 : vector<8x128xf32>
      %206 = math.exp %205 : vector<8x128xf32>
      %cst_62 = arith.constant 1.000000e+00 : f32
      %207 = vector.broadcast %cst_62 : f32 to vector<8x128xf32>
      %208 = arith.addf %207, %206 : vector<8x128xf32>
      %209 = arith.divf %207, %208 : vector<8x128xf32>
      %210 = vector.extract_strided_slice %203 {offsets = [0, 128], sizes = [8, 128], strides = [1, 1]} : vector<8x512xf32> to vector<8x128xf32>
      %211 = arith.negf %210 : vector<8x128xf32>
      %212 = math.exp %211 : vector<8x128xf32>
      %cst_63 = arith.constant 1.000000e+00 : f32
      %213 = vector.broadcast %cst_63 : f32 to vector<8x128xf32>
      %214 = arith.addf %213, %212 : vector<8x128xf32>
      %215 = arith.divf %213, %214 : vector<8x128xf32>
      %216 = vector.extract_strided_slice %203 {offsets = [0, 256], sizes = [8, 128], strides = [1, 1]} : vector<8x512xf32> to vector<8x128xf32>
      %217 = math.tanh %216 : vector<8x128xf32>
      %218 = vector.extract_strided_slice %203 {offsets = [0, 384], sizes = [8, 128], strides = [1, 1]} : vector<8x512xf32> to vector<8x128xf32>
      %219 = arith.negf %218 : vector<8x128xf32>
      %220 = math.exp %219 : vector<8x128xf32>
      %cst_64 = arith.constant 1.000000e+00 : f32
      %221 = vector.broadcast %cst_64 : f32 to vector<8x128xf32>
      %222 = arith.addf %221, %220 : vector<8x128xf32>
      %223 = arith.divf %221, %222 : vector<8x128xf32>
      %224 = arith.mulf %215, %157 : vector<8x128xf32>
      %225 = arith.mulf %209, %217 : vector<8x128xf32>
      %226 = arith.addf %224, %225 : vector<8x128xf32>
      %227 = math.tanh %226 : vector<8x128xf32>
      %228 = arith.mulf %223, %227 : vector<8x128xf32>
      %229 = arith.index_cast %c2_i32 : i32 to index
      %c0_65 = arith.constant 0 : index
      %c0_66 = arith.constant 0 : index
      %230 = vector.load %arg15[%229, %c0_65, %c0_66] : memref<8x8x128xf32, #tpu.memory_space<vmem>>, vector<1x8x128xf32>
      %231 = vector.shape_cast %230 : vector<1x8x128xf32> to vector<8x128xf32>
      %232 = vector.shape_cast %228 : vector<8x128xf32> to vector<1x8x128xf32>
      tpu.vector_store %arg15[%229, %c0_65, %c0_66], %232 {strides = array<i32>} : memref<8x8x128xf32, #tpu.memory_space<vmem>>, vector<1x8x128xf32>,
      %c3_i32_67 = arith.constant 3 : i32
      %c1_i32_68 = arith.constant 1 : i32
      %233 = arith.subi %c3_i32_67, %c1_i32_68 : i32
      %234 = arith.index_cast %233 : i32 to index
      %c0_69 = arith.constant 0 : index
      %c0_70 = arith.constant 0 : index
      %235 = vector.load %arg1[%234, %c0_69, %c0_70] : memref<7x8x128xbf16, #tpu.memory_space<vmem>>, vector<1x8x128xbf16>
      %236 = vector.shape_cast %235 : vector<1x8x128xbf16> to vector<8x128xbf16>
      %237 = arith.truncf %197 : vector<8x128xf32> to vector<8x128xbf16>
      %238 = tpu.concatenate %236, %237 in 1 : vector<8x128xbf16>, vector<8x128xbf16> -> vector<8x256xbf16>
      %cst_71 = arith.constant dense<0.000000e+00> : vector<8x512xf32>
      %239 = tpu.matmul %238, %19, %cst_71 {dimension_numbers = #tpu.dot_dimension_numbers<[1], [0], [0], [1], [0, 0, 1, 1], [], []>} : vector<8x256xbf16>, vector<256x512xbf16>, vector<8x512xf32> -> vector<8x512xf32>
      %240 = vector.broadcast %20 : vector<1x512xf32> to vector<8x512xf32>
      %241 = arith.addf %239, %240 : vector<8x512xf32>
      %242 = vector.extract_strided_slice %241 {offsets = [0, 0], sizes = [8, 128], strides = [1, 1]} : vector<8x512xf32> to vector<8x128xf32>
      %243 = arith.negf %242 : vector<8x128xf32>
      %244 = math.exp %243 : vector<8x128xf32>
      %cst_72 = arith.constant 1.000000e+00 : f32
      %245 = vector.broadcast %cst_72 : f32 to vector<8x128xf32>
      %246 = arith.addf %245, %244 : vector<8x128xf32>
      %247 = arith.divf %245, %246 : vector<8x128xf32>
      %248 = vector.extract_strided_slice %241 {offsets = [0, 128], sizes = [8, 128], strides = [1, 1]} : vector<8x512xf32> to vector<8x128xf32>
      %249 = arith.negf %248 : vector<8x128xf32>
      %250 = math.exp %249 : vector<8x128xf32>
      %cst_73 = arith.constant 1.000000e+00 : f32
      %251 = vector.broadcast %cst_73 : f32 to vector<8x128xf32>
      %252 = arith.addf %251, %250 : vector<8x128xf32>
      %253 = arith.divf %251, %252 : vector<8x128xf32>
      %254 = vector.extract_strided_slice %241 {offsets = [0, 256], sizes = [8, 128], strides = [1, 1]} : vector<8x512xf32> to vector<8x128xf32>
      %255 = math.tanh %254 : vector<8x128xf32>
      %256 = vector.extract_strided_slice %241 {offsets = [0, 384], sizes = [8, 128], strides = [1, 1]} : vector<8x512xf32> to vector<8x128xf32>
      %257 = arith.negf %256 : vector<8x128xf32>
      %258 = math.exp %257 : vector<8x128xf32>
      %cst_74 = arith.constant 1.000000e+00 : f32
      %259 = vector.broadcast %cst_74 : f32 to vector<8x128xf32>
      %260 = arith.addf %259, %258 : vector<8x128xf32>
      %261 = arith.divf %259, %260 : vector<8x128xf32>
      %262 = arith.mulf %253, %195 : vector<8x128xf32>
      %263 = arith.mulf %247, %255 : vector<8x128xf32>
      %264 = arith.addf %262, %263 : vector<8x128xf32>
      %265 = math.tanh %264 : vector<8x128xf32>
      %266 = arith.mulf %261, %265 : vector<8x128xf32>
      %267 = arith.truncf %266 : vector<8x128xf32> to vector<8x128xbf16>
      %268 = arith.truncf %228 : vector<8x128xf32> to vector<8x128xbf16>
      %269 = tpu.concatenate %267, %268 in 1 : vector<8x128xbf16>, vector<8x128xbf16> -> vector<8x256xbf16>
      %cst_75 = arith.constant dense<0.000000e+00> : vector<8x512xf32>
      %270 = tpu.matmul %269, %21, %cst_75 {dimension_numbers = #tpu.dot_dimension_numbers<[1], [0], [0], [1], [0, 0, 1, 1], [], []>} : vector<8x256xbf16>, vector<256x512xbf16>, vector<8x512xf32> -> vector<8x512xf32>
      %271 = vector.broadcast %22 : vector<1x512xf32> to vector<8x512xf32>
      %272 = arith.addf %270, %271 : vector<8x512xf32>
      %273 = vector.extract_strided_slice %272 {offsets = [0, 0], sizes = [8, 128], strides = [1, 1]} : vector<8x512xf32> to vector<8x128xf32>
      %274 = arith.negf %273 : vector<8x128xf32>
      %275 = math.exp %274 : vector<8x128xf32>
      %cst_76 = arith.constant 1.000000e+00 : f32
      %276 = vector.broadcast %cst_76 : f32 to vector<8x128xf32>
      %277 = arith.addf %276, %275 : vector<8x128xf32>
      %278 = arith.divf %276, %277 : vector<8x128xf32>
      %279 = vector.extract_strided_slice %272 {offsets = [0, 128], sizes = [8, 128], strides = [1, 1]} : vector<8x512xf32> to vector<8x128xf32>
      %280 = arith.negf %279 : vector<8x128xf32>
      %281 = math.exp %280 : vector<8x128xf32>
      %cst_77 = arith.constant 1.000000e+00 : f32
      %282 = vector.broadcast %cst_77 : f32 to vector<8x128xf32>
      %283 = arith.addf %282, %281 : vector<8x128xf32>
      %284 = arith.divf %282, %283 : vector<8x128xf32>
      %285 = vector.extract_strided_slice %272 {offsets = [0, 256], sizes = [8, 128], strides = [1, 1]} : vector<8x512xf32> to vector<8x128xf32>
      %286 = math.tanh %285 : vector<8x128xf32>
      %287 = vector.extract_strided_slice %272 {offsets = [0, 384], sizes = [8, 128], strides = [1, 1]} : vector<8x512xf32> to vector<8x128xf32>
      %288 = arith.negf %287 : vector<8x128xf32>
      %289 = math.exp %288 : vector<8x128xf32>
      %cst_78 = arith.constant 1.000000e+00 : f32
      %290 = vector.broadcast %cst_78 : f32 to vector<8x128xf32>
      %291 = arith.addf %290, %289 : vector<8x128xf32>
      %292 = arith.divf %290, %291 : vector<8x128xf32>
      %293 = arith.mulf %284, %226 : vector<8x128xf32>
      %294 = arith.mulf %278, %286 : vector<8x128xf32>
      %295 = arith.addf %293, %294 : vector<8x128xf32>
      %296 = math.tanh %295 : vector<8x128xf32>
      %297 = arith.mulf %292, %296 : vector<8x128xf32>
      %298 = arith.index_cast %c3_i32_67 : i32 to index
      %c0_79 = arith.constant 0 : index
      %c0_80 = arith.constant 0 : index
      %299 = vector.load %arg15[%298, %c0_79, %c0_80] : memref<8x8x128xf32, #tpu.memory_space<vmem>>, vector<1x8x128xf32>
      %300 = vector.shape_cast %299 : vector<1x8x128xf32> to vector<8x128xf32>
      %301 = vector.shape_cast %297 : vector<8x128xf32> to vector<1x8x128xf32>
      tpu.vector_store %arg15[%298, %c0_79, %c0_80], %301 {strides = array<i32>} : memref<8x8x128xf32, #tpu.memory_space<vmem>>, vector<1x8x128xf32>,
      %c4_i32 = arith.constant 4 : i32
      %c1_i32_81 = arith.constant 1 : i32
      %302 = arith.subi %c4_i32, %c1_i32_81 : i32
      %303 = arith.index_cast %302 : i32 to index
      %c0_82 = arith.constant 0 : index
      %c0_83 = arith.constant 0 : index
      %304 = vector.load %arg1[%303, %c0_82, %c0_83] : memref<7x8x128xbf16, #tpu.memory_space<vmem>>, vector<1x8x128xbf16>
      %305 = vector.shape_cast %304 : vector<1x8x128xbf16> to vector<8x128xbf16>
      %306 = arith.truncf %266 : vector<8x128xf32> to vector<8x128xbf16>
      %307 = tpu.concatenate %305, %306 in 1 : vector<8x128xbf16>, vector<8x128xbf16> -> vector<8x256xbf16>
      %cst_84 = arith.constant dense<0.000000e+00> : vector<8x512xf32>
      %308 = tpu.matmul %307, %19, %cst_84 {dimension_numbers = #tpu.dot_dimension_numbers<[1], [0], [0], [1], [0, 0, 1, 1], [], []>} : vector<8x256xbf16>, vector<256x512xbf16>, vector<8x512xf32> -> vector<8x512xf32>
      %309 = vector.broadcast %20 : vector<1x512xf32> to vector<8x512xf32>
      %310 = arith.addf %308, %309 : vector<8x512xf32>
      %311 = vector.extract_strided_slice %310 {offsets = [0, 0], sizes = [8, 128], strides = [1, 1]} : vector<8x512xf32> to vector<8x128xf32>
      %312 = arith.negf %311 : vector<8x128xf32>
      %313 = math.exp %312 : vector<8x128xf32>
      %cst_85 = arith.constant 1.000000e+00 : f32
      %314 = vector.broadcast %cst_85 : f32 to vector<8x128xf32>
      %315 = arith.addf %314, %313 : vector<8x128xf32>
      %316 = arith.divf %314, %315 : vector<8x128xf32>
      %317 = vector.extract_strided_slice %310 {offsets = [0, 128], sizes = [8, 128], strides = [1, 1]} : vector<8x512xf32> to vector<8x128xf32>
      %318 = arith.negf %317 : vector<8x128xf32>
      %319 = math.exp %318 : vector<8x128xf32>
      %cst_86 = arith.constant 1.000000e+00 : f32
      %320 = vector.broadcast %cst_86 : f32 to vector<8x128xf32>
      %321 = arith.addf %320, %319 : vector<8x128xf32>
      %322 = arith.divf %320, %321 : vector<8x128xf32>
      %323 = vector.extract_strided_slice %310 {offsets = [0, 256], sizes = [8, 128], strides = [1, 1]} : vector<8x512xf32> to vector<8x128xf32>
      %324 = math.tanh %323 : vector<8x128xf32>
      %325 = vector.extract_strided_slice %310 {offsets = [0, 384], sizes = [8, 128], strides = [1, 1]} : vector<8x512xf32> to vector<8x128xf32>
      %326 = arith.negf %325 : vector<8x128xf32>
      %327 = math.exp %326 : vector<8x128xf32>
      %cst_87 = arith.constant 1.000000e+00 : f32
      %328 = vector.broadcast %cst_87 : f32 to vector<8x128xf32>
      %329 = arith.addf %328, %327 : vector<8x128xf32>
      %330 = arith.divf %328, %329 : vector<8x128xf32>
      %331 = arith.mulf %322, %264 : vector<8x128xf32>
      %332 = arith.mulf %316, %324 : vector<8x128xf32>
      %333 = arith.addf %331, %332 : vector<8x128xf32>
      %334 = math.tanh %333 : vector<8x128xf32>
      %335 = arith.mulf %330, %334 : vector<8x128xf32>
      %336 = arith.truncf %335 : vector<8x128xf32> to vector<8x128xbf16>
      %337 = arith.truncf %297 : vector<8x128xf32> to vector<8x128xbf16>
      %338 = tpu.concatenate %336, %337 in 1 : vector<8x128xbf16>, vector<8x128xbf16> -> vector<8x256xbf16>
      %cst_88 = arith.constant dense<0.000000e+00> : vector<8x512xf32>
      %339 = tpu.matmul %338, %21, %cst_88 {dimension_numbers = #tpu.dot_dimension_numbers<[1], [0], [0], [1], [0, 0, 1, 1], [], []>} : vector<8x256xbf16>, vector<256x512xbf16>, vector<8x512xf32> -> vector<8x512xf32>
      %340 = vector.broadcast %22 : vector<1x512xf32> to vector<8x512xf32>
      %341 = arith.addf %339, %340 : vector<8x512xf32>
      %342 = vector.extract_strided_slice %341 {offsets = [0, 0], sizes = [8, 128], strides = [1, 1]} : vector<8x512xf32> to vector<8x128xf32>
      %343 = arith.negf %342 : vector<8x128xf32>
      %344 = math.exp %343 : vector<8x128xf32>
      %cst_89 = arith.constant 1.000000e+00 : f32
      %345 = vector.broadcast %cst_89 : f32 to vector<8x128xf32>
      %346 = arith.addf %345, %344 : vector<8x128xf32>
      %347 = arith.divf %345, %346 : vector<8x128xf32>
      %348 = vector.extract_strided_slice %341 {offsets = [0, 128], sizes = [8, 128], strides = [1, 1]} : vector<8x512xf32> to vector<8x128xf32>
      %349 = arith.negf %348 : vector<8x128xf32>
      %350 = math.exp %349 : vector<8x128xf32>
      %cst_90 = arith.constant 1.000000e+00 : f32
      %351 = vector.broadcast %cst_90 : f32 to vector<8x128xf32>
      %352 = arith.addf %351, %350 : vector<8x128xf32>
      %353 = arith.divf %351, %352 : vector<8x128xf32>
      %354 = vector.extract_strided_slice %341 {offsets = [0, 256], sizes = [8, 128], strides = [1, 1]} : vector<8x512xf32> to vector<8x128xf32>
      %355 = math.tanh %354 : vector<8x128xf32>
      %356 = vector.extract_strided_slice %341 {offsets = [0, 384], sizes = [8, 128], strides = [1, 1]} : vector<8x512xf32> to vector<8x128xf32>
      %357 = arith.negf %356 : vector<8x128xf32>
      %358 = math.exp %357 : vector<8x128xf32>
      %cst_91 = arith.constant 1.000000e+00 : f32
      %359 = vector.broadcast %cst_91 : f32 to vector<8x128xf32>
      %360 = arith.addf %359, %358 : vector<8x128xf32>
      %361 = arith.divf %359, %360 : vector<8x128xf32>
      %362 = arith.mulf %353, %295 : vector<8x128xf32>
      %363 = arith.mulf %347, %355 : vector<8x128xf32>
      %364 = arith.addf %362, %363 : vector<8x128xf32>
      %365 = math.tanh %364 : vector<8x128xf32>
      %366 = arith.mulf %361, %365 : vector<8x128xf32>
      %367 = arith.index_cast %c4_i32 : i32 to index
      %c0_92 = arith.constant 0 : index
      %c0_93 = arith.constant 0 : index
      %368 = vector.load %arg15[%367, %c0_92, %c0_93] : memref<8x8x128xf32, #tpu.memory_space<vmem>>, vector<1x8x128xf32>
      %369 = vector.shape_cast %368 : vector<1x8x128xf32> to vector<8x128xf32>
      %370 = vector.shape_cast %366 : vector<8x128xf32> to vector<1x8x128xf32>
      tpu.vector_store %arg15[%367, %c0_92, %c0_93], %370 {strides = array<i32>} : memref<8x8x128xf32, #tpu.memory_space<vmem>>, vector<1x8x128xf32>,
      %c5_i32 = arith.constant 5 : i32
      %c1_i32_94 = arith.constant 1 : i32
      %371 = arith.subi %c5_i32, %c1_i32_94 : i32
      %372 = arith.index_cast %371 : i32 to index
      %c0_95 = arith.constant 0 : index
      %c0_96 = arith.constant 0 : index
      %373 = vector.load %arg1[%372, %c0_95, %c0_96] : memref<7x8x128xbf16, #tpu.memory_space<vmem>>, vector<1x8x128xbf16>
      %374 = vector.shape_cast %373 : vector<1x8x128xbf16> to vector<8x128xbf16>
      %375 = arith.truncf %335 : vector<8x128xf32> to vector<8x128xbf16>
      %376 = tpu.concatenate %374, %375 in 1 : vector<8x128xbf16>, vector<8x128xbf16> -> vector<8x256xbf16>
      %cst_97 = arith.constant dense<0.000000e+00> : vector<8x512xf32>
      %377 = tpu.matmul %376, %19, %cst_97 {dimension_numbers = #tpu.dot_dimension_numbers<[1], [0], [0], [1], [0, 0, 1, 1], [], []>} : vector<8x256xbf16>, vector<256x512xbf16>, vector<8x512xf32> -> vector<8x512xf32>
      %378 = vector.broadcast %20 : vector<1x512xf32> to vector<8x512xf32>
      %379 = arith.addf %377, %378 : vector<8x512xf32>
      %380 = vector.extract_strided_slice %379 {offsets = [0, 0], sizes = [8, 128], strides = [1, 1]} : vector<8x512xf32> to vector<8x128xf32>
      %381 = arith.negf %380 : vector<8x128xf32>
      %382 = math.exp %381 : vector<8x128xf32>
      %cst_98 = arith.constant 1.000000e+00 : f32
      %383 = vector.broadcast %cst_98 : f32 to vector<8x128xf32>
      %384 = arith.addf %383, %382 : vector<8x128xf32>
      %385 = arith.divf %383, %384 : vector<8x128xf32>
      %386 = vector.extract_strided_slice %379 {offsets = [0, 128], sizes = [8, 128], strides = [1, 1]} : vector<8x512xf32> to vector<8x128xf32>
      %387 = arith.negf %386 : vector<8x128xf32>
      %388 = math.exp %387 : vector<8x128xf32>
      %cst_99 = arith.constant 1.000000e+00 : f32
      %389 = vector.broadcast %cst_99 : f32 to vector<8x128xf32>
      %390 = arith.addf %389, %388 : vector<8x128xf32>
      %391 = arith.divf %389, %390 : vector<8x128xf32>
      %392 = vector.extract_strided_slice %379 {offsets = [0, 256], sizes = [8, 128], strides = [1, 1]} : vector<8x512xf32> to vector<8x128xf32>
      %393 = math.tanh %392 : vector<8x128xf32>
      %394 = vector.extract_strided_slice %379 {offsets = [0, 384], sizes = [8, 128], strides = [1, 1]} : vector<8x512xf32> to vector<8x128xf32>
      %395 = arith.negf %394 : vector<8x128xf32>
      %396 = math.exp %395 : vector<8x128xf32>
      %cst_100 = arith.constant 1.000000e+00 : f32
      %397 = vector.broadcast %cst_100 : f32 to vector<8x128xf32>
      %398 = arith.addf %397, %396 : vector<8x128xf32>
      %399 = arith.divf %397, %398 : vector<8x128xf32>
      %400 = arith.mulf %391, %333 : vector<8x128xf32>
      %401 = arith.mulf %385, %393 : vector<8x128xf32>
      %402 = arith.addf %400, %401 : vector<8x128xf32>
      %403 = math.tanh %402 : vector<8x128xf32>
      %404 = arith.mulf %399, %403 : vector<8x128xf32>
      %405 = arith.truncf %404 : vector<8x128xf32> to vector<8x128xbf16>
      %406 = arith.truncf %366 : vector<8x128xf32> to vector<8x128xbf16>
      %407 = tpu.concatenate %405, %406 in 1 : vector<8x128xbf16>, vector<8x128xbf16> -> vector<8x256xbf16>
      %cst_101 = arith.constant dense<0.000000e+00> : vector<8x512xf32>
      %408 = tpu.matmul %407, %21, %cst_101 {dimension_numbers = #tpu.dot_dimension_numbers<[1], [0], [0], [1], [0, 0, 1, 1], [], []>} : vector<8x256xbf16>, vector<256x512xbf16>, vector<8x512xf32> -> vector<8x512xf32>
      %409 = vector.broadcast %22 : vector<1x512xf32> to vector<8x512xf32>
      %410 = arith.addf %408, %409 : vector<8x512xf32>
      %411 = vector.extract_strided_slice %410 {offsets = [0, 0], sizes = [8, 128], strides = [1, 1]} : vector<8x512xf32> to vector<8x128xf32>
      %412 = arith.negf %411 : vector<8x128xf32>
      %413 = math.exp %412 : vector<8x128xf32>
      %cst_102 = arith.constant 1.000000e+00 : f32
      %414 = vector.broadcast %cst_102 : f32 to vector<8x128xf32>
      %415 = arith.addf %414, %413 : vector<8x128xf32>
      %416 = arith.divf %414, %415 : vector<8x128xf32>
      %417 = vector.extract_strided_slice %410 {offsets = [0, 128], sizes = [8, 128], strides = [1, 1]} : vector<8x512xf32> to vector<8x128xf32>
      %418 = arith.negf %417 : vector<8x128xf32>
      %419 = math.exp %418 : vector<8x128xf32>
      %cst_103 = arith.constant 1.000000e+00 : f32
      %420 = vector.broadcast %cst_103 : f32 to vector<8x128xf32>
      %421 = arith.addf %420, %419 : vector<8x128xf32>
      %422 = arith.divf %420, %421 : vector<8x128xf32>
      %423 = vector.extract_strided_slice %410 {offsets = [0, 256], sizes = [8, 128], strides = [1, 1]} : vector<8x512xf32> to vector<8x128xf32>
      %424 = math.tanh %423 : vector<8x128xf32>
      %425 = vector.extract_strided_slice %410 {offsets = [0, 384], sizes = [8, 128], strides = [1, 1]} : vector<8x512xf32> to vector<8x128xf32>
      %426 = arith.negf %425 : vector<8x128xf32>
      %427 = math.exp %426 : vector<8x128xf32>
      %cst_104 = arith.constant 1.000000e+00 : f32
      %428 = vector.broadcast %cst_104 : f32 to vector<8x128xf32>
      %429 = arith.addf %428, %427 : vector<8x128xf32>
      %430 = arith.divf %428, %429 : vector<8x128xf32>
      %431 = arith.mulf %422, %364 : vector<8x128xf32>
      %432 = arith.mulf %416, %424 : vector<8x128xf32>
      %433 = arith.addf %431, %432 : vector<8x128xf32>
      %434 = math.tanh %433 : vector<8x128xf32>
      %435 = arith.mulf %430, %434 : vector<8x128xf32>
      %436 = arith.index_cast %c5_i32 : i32 to index
      %c0_105 = arith.constant 0 : index
      %c0_106 = arith.constant 0 : index
      %437 = vector.load %arg15[%436, %c0_105, %c0_106] : memref<8x8x128xf32, #tpu.memory_space<vmem>>, vector<1x8x128xf32>
      %438 = vector.shape_cast %437 : vector<1x8x128xf32> to vector<8x128xf32>
      %439 = vector.shape_cast %435 : vector<8x128xf32> to vector<1x8x128xf32>
      tpu.vector_store %arg15[%436, %c0_105, %c0_106], %439 {strides = array<i32>} : memref<8x8x128xf32, #tpu.memory_space<vmem>>, vector<1x8x128xf32>,
      %c6_i32 = arith.constant 6 : i32
      %c1_i32_107 = arith.constant 1 : i32
      %440 = arith.subi %c6_i32, %c1_i32_107 : i32
      %441 = arith.index_cast %440 : i32 to index
      %c0_108 = arith.constant 0 : index
      %c0_109 = arith.constant 0 : index
      %442 = vector.load %arg1[%441, %c0_108, %c0_109] : memref<7x8x128xbf16, #tpu.memory_space<vmem>>, vector<1x8x128xbf16>
      %443 = vector.shape_cast %442 : vector<1x8x128xbf16> to vector<8x128xbf16>
      %444 = arith.truncf %404 : vector<8x128xf32> to vector<8x128xbf16>
      %445 = tpu.concatenate %443, %444 in 1 : vector<8x128xbf16>, vector<8x128xbf16> -> vector<8x256xbf16>
      %cst_110 = arith.constant dense<0.000000e+00> : vector<8x512xf32>
      %446 = tpu.matmul %445, %19, %cst_110 {dimension_numbers = #tpu.dot_dimension_numbers<[1], [0], [0], [1], [0, 0, 1, 1], [], []>} : vector<8x256xbf16>, vector<256x512xbf16>, vector<8x512xf32> -> vector<8x512xf32>
      %447 = vector.broadcast %20 : vector<1x512xf32> to vector<8x512xf32>
      %448 = arith.addf %446, %447 : vector<8x512xf32>
      %449 = vector.extract_strided_slice %448 {offsets = [0, 0], sizes = [8, 128], strides = [1, 1]} : vector<8x512xf32> to vector<8x128xf32>
      %450 = arith.negf %449 : vector<8x128xf32>
      %451 = math.exp %450 : vector<8x128xf32>
      %cst_111 = arith.constant 1.000000e+00 : f32
      %452 = vector.broadcast %cst_111 : f32 to vector<8x128xf32>
      %453 = arith.addf %452, %451 : vector<8x128xf32>
      %454 = arith.divf %452, %453 : vector<8x128xf32>
      %455 = vector.extract_strided_slice %448 {offsets = [0, 128], sizes = [8, 128], strides = [1, 1]} : vector<8x512xf32> to vector<8x128xf32>
      %456 = arith.negf %455 : vector<8x128xf32>
      %457 = math.exp %456 : vector<8x128xf32>
      %cst_112 = arith.constant 1.000000e+00 : f32
      %458 = vector.broadcast %cst_112 : f32 to vector<8x128xf32>
      %459 = arith.addf %458, %457 : vector<8x128xf32>
      %460 = arith.divf %458, %459 : vector<8x128xf32>
      %461 = vector.extract_strided_slice %448 {offsets = [0, 256], sizes = [8, 128], strides = [1, 1]} : vector<8x512xf32> to vector<8x128xf32>
      %462 = math.tanh %461 : vector<8x128xf32>
      %463 = vector.extract_strided_slice %448 {offsets = [0, 384], sizes = [8, 128], strides = [1, 1]} : vector<8x512xf32> to vector<8x128xf32>
      %464 = arith.negf %463 : vector<8x128xf32>
      %465 = math.exp %464 : vector<8x128xf32>
      %cst_113 = arith.constant 1.000000e+00 : f32
      %466 = vector.broadcast %cst_113 : f32 to vector<8x128xf32>
      %467 = arith.addf %466, %465 : vector<8x128xf32>
      %468 = arith.divf %466, %467 : vector<8x128xf32>
      %469 = arith.mulf %460, %402 : vector<8x128xf32>
      %470 = arith.mulf %454, %462 : vector<8x128xf32>
      %471 = arith.addf %469, %470 : vector<8x128xf32>
      %472 = math.tanh %471 : vector<8x128xf32>
      %473 = arith.mulf %468, %472 : vector<8x128xf32>
      %474 = arith.truncf %473 : vector<8x128xf32> to vector<8x128xbf16>
      %475 = arith.truncf %435 : vector<8x128xf32> to vector<8x128xbf16>
      %476 = tpu.concatenate %474, %475 in 1 : vector<8x128xbf16>, vector<8x128xbf16> -> vector<8x256xbf16>
      %cst_114 = arith.constant dense<0.000000e+00> : vector<8x512xf32>
      %477 = tpu.matmul %476, %21, %cst_114 {dimension_numbers = #tpu.dot_dimension_numbers<[1], [0], [0], [1], [0, 0, 1, 1], [], []>} : vector<8x256xbf16>, vector<256x512xbf16>, vector<8x512xf32> -> vector<8x512xf32>
      %478 = vector.broadcast %22 : vector<1x512xf32> to vector<8x512xf32>
      %479 = arith.addf %477, %478 : vector<8x512xf32>
      %480 = vector.extract_strided_slice %479 {offsets = [0, 0], sizes = [8, 128], strides = [1, 1]} : vector<8x512xf32> to vector<8x128xf32>
      %481 = arith.negf %480 : vector<8x128xf32>
      %482 = math.exp %481 : vector<8x128xf32>
      %cst_115 = arith.constant 1.000000e+00 : f32
      %483 = vector.broadcast %cst_115 : f32 to vector<8x128xf32>
      %484 = arith.addf %483, %482 : vector<8x128xf32>
      %485 = arith.divf %483, %484 : vector<8x128xf32>
      %486 = vector.extract_strided_slice %479 {offsets = [0, 128], sizes = [8, 128], strides = [1, 1]} : vector<8x512xf32> to vector<8x128xf32>
      %487 = arith.negf %486 : vector<8x128xf32>
      %488 = math.exp %487 : vector<8x128xf32>
      %cst_116 = arith.constant 1.000000e+00 : f32
      %489 = vector.broadcast %cst_116 : f32 to vector<8x128xf32>
      %490 = arith.addf %489, %488 : vector<8x128xf32>
      %491 = arith.divf %489, %490 : vector<8x128xf32>
      %492 = vector.extract_strided_slice %479 {offsets = [0, 256], sizes = [8, 128], strides = [1, 1]} : vector<8x512xf32> to vector<8x128xf32>
      %493 = math.tanh %492 : vector<8x128xf32>
      %494 = vector.extract_strided_slice %479 {offsets = [0, 384], sizes = [8, 128], strides = [1, 1]} : vector<8x512xf32> to vector<8x128xf32>
      %495 = arith.negf %494 : vector<8x128xf32>
      %496 = math.exp %495 : vector<8x128xf32>
      %cst_117 = arith.constant 1.000000e+00 : f32
      %497 = vector.broadcast %cst_117 : f32 to vector<8x128xf32>
      %498 = arith.addf %497, %496 : vector<8x128xf32>
      %499 = arith.divf %497, %498 : vector<8x128xf32>
      %500 = arith.mulf %491, %433 : vector<8x128xf32>
      %501 = arith.mulf %485, %493 : vector<8x128xf32>
      %502 = arith.addf %500, %501 : vector<8x128xf32>
      %503 = math.tanh %502 : vector<8x128xf32>
      %504 = arith.mulf %499, %503 : vector<8x128xf32>
      %505 = arith.index_cast %c6_i32 : i32 to index
      %c0_118 = arith.constant 0 : index
      %c0_119 = arith.constant 0 : index
      %506 = vector.load %arg15[%505, %c0_118, %c0_119] : memref<8x8x128xf32, #tpu.memory_space<vmem>>, vector<1x8x128xf32>
      %507 = vector.shape_cast %506 : vector<1x8x128xf32> to vector<8x128xf32>
      %508 = vector.shape_cast %504 : vector<8x128xf32> to vector<1x8x128xf32>
      tpu.vector_store %arg15[%505, %c0_118, %c0_119], %508 {strides = array<i32>} : memref<8x8x128xf32, #tpu.memory_space<vmem>>, vector<1x8x128xf32>,
      %c7_i32 = arith.constant 7 : i32
      %c1_i32_120 = arith.constant 1 : i32
      %509 = arith.subi %c7_i32, %c1_i32_120 : i32
      %510 = arith.index_cast %509 : i32 to index
      %c0_121 = arith.constant 0 : index
      %c0_122 = arith.constant 0 : index
      %511 = vector.load %arg1[%510, %c0_121, %c0_122] : memref<7x8x128xbf16, #tpu.memory_space<vmem>>, vector<1x8x128xbf16>
      %512 = vector.shape_cast %511 : vector<1x8x128xbf16> to vector<8x128xbf16>
      %513 = arith.truncf %473 : vector<8x128xf32> to vector<8x128xbf16>
      %514 = tpu.concatenate %512, %513 in 1 : vector<8x128xbf16>, vector<8x128xbf16> -> vector<8x256xbf16>
      %cst_123 = arith.constant dense<0.000000e+00> : vector<8x512xf32>
      %515 = tpu.matmul %514, %19, %cst_123 {dimension_numbers = #tpu.dot_dimension_numbers<[1], [0], [0], [1], [0, 0, 1, 1], [], []>} : vector<8x256xbf16>, vector<256x512xbf16>, vector<8x512xf32> -> vector<8x512xf32>
      %516 = vector.broadcast %20 : vector<1x512xf32> to vector<8x512xf32>
      %517 = arith.addf %515, %516 : vector<8x512xf32>
      %518 = vector.extract_strided_slice %517 {offsets = [0, 0], sizes = [8, 128], strides = [1, 1]} : vector<8x512xf32> to vector<8x128xf32>
      %519 = arith.negf %518 : vector<8x128xf32>
      %520 = math.exp %519 : vector<8x128xf32>
      %cst_124 = arith.constant 1.000000e+00 : f32
      %521 = vector.broadcast %cst_124 : f32 to vector<8x128xf32>
      %522 = arith.addf %521, %520 : vector<8x128xf32>
      %523 = arith.divf %521, %522 : vector<8x128xf32>
      %524 = vector.extract_strided_slice %517 {offsets = [0, 128], sizes = [8, 128], strides = [1, 1]} : vector<8x512xf32> to vector<8x128xf32>
      %525 = arith.negf %524 : vector<8x128xf32>
      %526 = math.exp %525 : vector<8x128xf32>
      %cst_125 = arith.constant 1.000000e+00 : f32
      %527 = vector.broadcast %cst_125 : f32 to vector<8x128xf32>
      %528 = arith.addf %527, %526 : vector<8x128xf32>
      %529 = arith.divf %527, %528 : vector<8x128xf32>
      %530 = vector.extract_strided_slice %517 {offsets = [0, 256], sizes = [8, 128], strides = [1, 1]} : vector<8x512xf32> to vector<8x128xf32>
      %531 = math.tanh %530 : vector<8x128xf32>
      %532 = vector.extract_strided_slice %517 {offsets = [0, 384], sizes = [8, 128], strides = [1, 1]} : vector<8x512xf32> to vector<8x128xf32>
      %533 = arith.negf %532 : vector<8x128xf32>
      %534 = math.exp %533 : vector<8x128xf32>
      %cst_126 = arith.constant 1.000000e+00 : f32
      %535 = vector.broadcast %cst_126 : f32 to vector<8x128xf32>
      %536 = arith.addf %535, %534 : vector<8x128xf32>
      %537 = arith.divf %535, %536 : vector<8x128xf32>
      %538 = arith.mulf %529, %471 : vector<8x128xf32>
      %539 = arith.mulf %523, %531 : vector<8x128xf32>
      %540 = arith.addf %538, %539 : vector<8x128xf32>
      %541 = math.tanh %540 : vector<8x128xf32>
      %542 = arith.mulf %537, %541 : vector<8x128xf32>
      %543 = arith.truncf %542 : vector<8x128xf32> to vector<8x128xbf16>
      %544 = arith.truncf %504 : vector<8x128xf32> to vector<8x128xbf16>
      %545 = tpu.concatenate %543, %544 in 1 : vector<8x128xbf16>, vector<8x128xbf16> -> vector<8x256xbf16>
      %cst_127 = arith.constant dense<0.000000e+00> : vector<8x512xf32>
      %546 = tpu.matmul %545, %21, %cst_127 {dimension_numbers = #tpu.dot_dimension_numbers<[1], [0], [0], [1], [0, 0, 1, 1], [], []>} : vector<8x256xbf16>, vector<256x512xbf16>, vector<8x512xf32> -> vector<8x512xf32>
      %547 = vector.broadcast %22 : vector<1x512xf32> to vector<8x512xf32>
      %548 = arith.addf %546, %547 : vector<8x512xf32>
      %549 = vector.extract_strided_slice %548 {offsets = [0, 0], sizes = [8, 128], strides = [1, 1]} : vector<8x512xf32> to vector<8x128xf32>
      %550 = arith.negf %549 : vector<8x128xf32>
      %551 = math.exp %550 : vector<8x128xf32>
      %cst_128 = arith.constant 1.000000e+00 : f32
      %552 = vector.broadcast %cst_128 : f32 to vector<8x128xf32>
      %553 = arith.addf %552, %551 : vector<8x128xf32>
      %554 = arith.divf %552, %553 : vector<8x128xf32>
      %555 = vector.extract_strided_slice %548 {offsets = [0, 128], sizes = [8, 128], strides = [1, 1]} : vector<8x512xf32> to vector<8x128xf32>
      %556 = arith.negf %555 : vector<8x128xf32>
      %557 = math.exp %556 : vector<8x128xf32>
      %cst_129 = arith.constant 1.000000e+00 : f32
      %558 = vector.broadcast %cst_129 : f32 to vector<8x128xf32>
      %559 = arith.addf %558, %557 : vector<8x128xf32>
      %560 = arith.divf %558, %559 : vector<8x128xf32>
      %561 = vector.extract_strided_slice %548 {offsets = [0, 256], sizes = [8, 128], strides = [1, 1]} : vector<8x512xf32> to vector<8x128xf32>
      %562 = math.tanh %561 : vector<8x128xf32>
      %563 = vector.extract_strided_slice %548 {offsets = [0, 384], sizes = [8, 128], strides = [1, 1]} : vector<8x512xf32> to vector<8x128xf32>
      %564 = arith.negf %563 : vector<8x128xf32>
      %565 = math.exp %564 : vector<8x128xf32>
      %cst_130 = arith.constant 1.000000e+00 : f32
      %566 = vector.broadcast %cst_130 : f32 to vector<8x128xf32>
      %567 = arith.addf %566, %565 : vector<8x128xf32>
      %568 = arith.divf %566, %567 : vector<8x128xf32>
      %569 = arith.mulf %560, %502 : vector<8x128xf32>
      %570 = arith.mulf %554, %562 : vector<8x128xf32>
      %571 = arith.addf %569, %570 : vector<8x128xf32>
      %572 = math.tanh %571 : vector<8x128xf32>
      %573 = arith.mulf %568, %572 : vector<8x128xf32>
      %574 = arith.index_cast %c7_i32 : i32 to index
      %c0_131 = arith.constant 0 : index
      %c0_132 = arith.constant 0 : index
      %575 = vector.load %arg15[%574, %c0_131, %c0_132] : memref<8x8x128xf32, #tpu.memory_space<vmem>>, vector<1x8x128xf32>
      %576 = vector.shape_cast %575 : vector<1x8x128xf32> to vector<8x128xf32>
      %577 = vector.shape_cast %573 : vector<8x128xf32> to vector<1x8x128xf32>
      tpu.vector_store %arg15[%574, %c0_131, %c0_132], %577 {strides = array<i32>} : memref<8x8x128xf32, #tpu.memory_space<vmem>>, vector<1x8x128xf32>,
      %c7_i32_133 = arith.constant 7 : i32
      %c0_134 = arith.constant 0 : index
      %c0_135 = arith.constant 0 : index
      %c0_136 = arith.constant 0 : index
      %578 = vector.load %arg15[%c0_134, %c0_135, %c0_136] : memref<8x8x128xf32, #tpu.memory_space<vmem>>, vector<8x8x128xf32>
      %579 = vector.shape_cast %578 : vector<8x8x128xf32> to vector<64x128xf32>
      %580 = arith.truncf %579 : vector<64x128xf32> to vector<64x128xbf16>
      %c0_137 = arith.constant 0 : index
      %c0_138 = arith.constant 0 : index
      %581 = vector.load %arg11[%c0_137, %c0_138] : memref<128x128xbf16, #tpu.memory_space<vmem>>, vector<128x128xbf16>
      %cst_139 = arith.constant dense<0.000000e+00> : vector<64x128xf32>
      %582 = tpu.matmul %580, %581, %cst_139 {dimension_numbers = #tpu.dot_dimension_numbers<[1], [0], [0], [1], [0, 0, 1, 1], [], []>} : vector<64x128xbf16>, vector<128x128xbf16>, vector<64x128xf32> -> vector<64x128xf32>
      %c0_140 = arith.constant 0 : index
      %c0_141 = arith.constant 0 : index
      %583 = vector.load %arg12[%c0_140, %c0_141] : memref<1x128xf32, #tpu.memory_space<vmem>>, vector<1x128xf32>
      %584 = vector.broadcast %583 : vector<1x128xf32> to vector<64x128xf32>
      %585 = arith.addf %582, %584 : vector<64x128xf32>
      %586 = vector.shape_cast %585 : vector<64x128xf32> to vector<8x8x128xf32>
      %c0_142 = arith.constant 0 : index
      %c0_143 = arith.constant 0 : index
      %c0_144 = arith.constant 0 : index
      %587 = vector.load %arg13[%c0_142, %c0_143, %c0_144] : memref<8x8x128xf32, #tpu.memory_space<vmem>>, vector<8x8x128xf32>
      tpu.vector_store %arg13[%c0_142, %c0_143, %c0_144], %586 {strides = array<i32>} : memref<8x8x128xf32, #tpu.memory_space<vmem>>, vector<8x8x128xf32>,
    } else {
    }
    return
  }
  func.func @transform_0(%arg0: i32) -> (i32, i32, i32) {
    %c0_i32 = arith.constant 0 : i32
    %c0_i32_0 = arith.constant 0 : i32
    %c0_i32_1 = arith.constant 0 : i32
    %c0_i32_2 = arith.constant 0 : i32
    return %c0_i32, %c0_i32_0, %c0_i32_1 : i32, i32, i32
  }
  func.func @transform_1(%arg0: i32) -> (i32, i32) {
    %c0_i32 = arith.constant 0 : i32
    %c0_i32_0 = arith.constant 0 : i32
    %c0_i32_1 = arith.constant 0 : i32
    return %c0_i32, %c0_i32_0 : i32, i32
  }
  func.func @transform_2(%arg0: i32) -> (i32, i32) {
    %c0_i32 = arith.constant 0 : i32
    %c0_i32_0 = arith.constant 0 : i32
    return %c0_i32, %arg0 : i32, i32
  }
  func.func @transform_3(%arg0: i32) -> (i32, i32) {
    %c0_i32 = arith.constant 0 : i32
    %c0_i32_0 = arith.constant 0 : i32
    %c0_i32_1 = arith.constant 0 : i32
    return %c0_i32, %c0_i32_0 : i32, i32
  }
  func.func @transform_4(%arg0: i32) -> (i32, i32) {
    %c0_i32 = arith.constant 0 : i32
    %c0_i32_0 = arith.constant 0 : i32
    return %arg0, %c0_i32 : i32, i32
  }
  func.func @transform_5(%arg0: i32) -> (i32, i32) {
    %c0_i32 = arith.constant 0 : i32
    %c0_i32_0 = arith.constant 0 : i32
    %c0_i32_1 = arith.constant 0 : i32
    return %c0_i32, %c0_i32_0 : i32, i32
  }
  func.func @transform_6(%arg0: i32) -> (i32, i32) {
    %c0_i32 = arith.constant 0 : i32
    %c0_i32_0 = arith.constant 0 : i32
    %c0_i32_1 = arith.constant 0 : i32
    return %c0_i32, %c0_i32_0 : i32, i32
  }
  func.func @transform_7(%arg0: i32) -> (i32, i32) {
    %c0_i32 = arith.constant 0 : i32
    %c0_i32_0 = arith.constant 0 : i32
    %c0_i32_1 = arith.constant 0 : i32
    return %c0_i32, %c0_i32_0 : i32, i32
  }
  func.func @transform_8(%arg0: i32) -> (i32, i32) {
    %c0_i32 = arith.constant 0 : i32
    %c0_i32_0 = arith.constant 0 : i32
    %c0_i32_1 = arith.constant 0 : i32
    return %c0_i32, %c0_i32_0 : i32, i32
  }
  func.func @transform_9(%arg0: i32) -> (i32, i32) {
    %c0_i32 = arith.constant 0 : i32
    %c0_i32_0 = arith.constant 0 : i32
    %c0_i32_1 = arith.constant 0 : i32
    return %c0_i32, %c0_i32_0 : i32, i32
  }
  func.func @transform_10(%arg0: i32) -> (i32, i32) {
    %c0_i32 = arith.constant 0 : i32
    %c0_i32_0 = arith.constant 0 : i32
    %c0_i32_1 = arith.constant 0 : i32
    return %c0_i32, %c0_i32_0 : i32, i32
  }
  func.func @transform_11(%arg0: i32) -> (i32, i32) {
    %c0_i32 = arith.constant 0 : i32
    %c0_i32_0 = arith.constant 0 : i32
    %c0_i32_1 = arith.constant 0 : i32
    return %c0_i32, %c0_i32_0 : i32, i32
  }
  func.func @transform_12(%arg0: i32) -> (i32, i32, i32) {
    %c0_i32 = arith.constant 0 : i32
    %c0_i32_0 = arith.constant 0 : i32
    %c0_i32_1 = arith.constant 0 : i32
    %c0_i32_2 = arith.constant 0 : i32
    return %c0_i32, %c0_i32_0, %c0_i32_1 : i32, i32, i32
  }
}

</mosaic_0001>

<llo_original>
// kernel: encoder_decoder_forward.1
$region0: #{encoder_decoder_forward.1}
  #allocation0 [shape = 'u32[]', space=smem, size = 0x4, offset = 0x4, fixed_abs, tag = 'smem constant byte address 0x4 - core index']
  #allocation1 [shape = 'u32[72,128]{1,0:T(1,128)}', space=vmem, size = 0x9000, scoped, tag = 'internal scratch']
  #allocation2 [shape = 'f32[8,32]{1,0:T(8,128)}', space=vmem, size = 0x1000, scoped, tag = 'scratch operand']
  #allocation3 [shape = 'f32[8,8,128]{2,1,0:T(8,128)}', space=vmem, size = 0x8000, scoped, tag = 'scratch operand']
  %s0 = inlined_call_operand.vmem [shape: bf16[7,8,128], index: 0, kind: input, shape index: {}]
  %s1 = inlined_call_operand.vmem [shape: bf16[512,128], index: 1, kind: input, shape index: {}]
  %s2 = inlined_call_operand.vmem [shape: bf16[128,2048], index: 2, kind: input, shape index: {}]
  %s3 = inlined_call_operand.vmem [shape: f32[8,512], index: 3, kind: input, shape index: {}]
  %s4 = inlined_call_operand.vmem [shape: bf16[2048,32], index: 4, kind: input, shape index: {}]
  %s5 = inlined_call_operand.vmem [shape: f32[1,32], index: 5, kind: input, shape index: {}]
  %s6 = inlined_call_operand.vmem [shape: bf16[256,512], index: 6, kind: input, shape index: {}]
  %s7 = inlined_call_operand.vmem [shape: f32[1,512], index: 7, kind: input, shape index: {}]
  %s8 = inlined_call_operand.vmem [shape: bf16[256,512], index: 8, kind: input, shape index: {}]
  %s9 = inlined_call_operand.vmem [shape: f32[1,512], index: 9, kind: input, shape index: {}]
  %s10 = inlined_call_operand.vmem [shape: bf16[128,128], index: 10, kind: input, shape index: {}]
  %s11 = inlined_call_operand.vmem [shape: f32[1,128], index: 11, kind: input, shape index: {}]
  %s12 = inlined_call_operand.vmem [shape: f32[8,8,128], index: 12, kind: output, shape index: {}]
  %s13 = sld [smem:[#allocation0]]
  $region112: #{encoder_decoder_forward.1} parent=0
    _
  %s15 = ssub.s32 1, %s13
  %s16 = scalar_select 0, %s15, %s13
  $region1: #{encoder_decoder_forward.1} parent=0
    #allocation4 [shape = 'u8[262144]{0}', space=vmem, size = 0x40000, scoped, tag = 'input window, operand 2']
    loop: start=0, step=1, limit=6
    $region2: #{encoder_decoder_forward.1} parent=1 // loop_pre_header
      _
    $region3: #{encoder_decoder_forward.1} parent=1 // loop_header
      %s18 = sphi 0, %s22
      %p19 = scmp.ge.s32.totalorder %s18, 6
      %s26 = sphi 0, %s26
      %s28 = sphi 0, %s26
      %s29 = sphi 0, %s28
      %s43 = sphi 0, %s29
      %s47 = sphi 0, %s47
      %s49 = sphi 0, %s47
      %s50 = sphi 0, %s49
      %s64 = sphi 0, %s50
      %s70 = sphi 0, %s72
      %s73 = sphi 0, %s70
      %s74 = sphi 0, %s73
      %s90 = sphi 0, %s74
      %s94 = sphi 0, %s94
      %s96 = sphi 0, %s94
      %s97 = sphi 0, %s96
      %s111 = sphi 0, %s97
      %s117 = sphi 0, %s119
      %s120 = sphi 0, %s117
      %s121 = sphi 0, %s120
      %s137 = sphi 0, %s121
      %s141 = sphi 0, %s141
      %s143 = sphi 0, %s141
      %s144 = sphi 0, %s143
      %s158 = sphi 0, %s144
      %s162 = sphi 0, %s162
      %s164 = sphi 0, %s162
      %s165 = sphi 0, %s164
      %s179 = sphi 0, %s165
      %s183 = sphi 0, %s183
      %s185 = sphi 0, %s183
      %s186 = sphi 0, %s185
      %s200 = sphi 0, %s186
      %s204 = sphi 0, %s204
      %s206 = sphi 0, %s204
      %s207 = sphi 0, %s206
      %s221 = sphi 0, %s207
      %s225 = sphi 0, %s225
      %s227 = sphi 0, %s225
      %s228 = sphi 0, %s227
      %s242 = sphi 0, %s228
      %s246 = sphi 0, %s246
      %s248 = sphi 0, %s246
      %s249 = sphi 0, %s248
      %s263 = sphi 0, %s249
      %s267 = sphi 0, %s267
      %s269 = sphi 0, %s267
      %s270 = sphi 0, %s269
      %s284 = sphi 0, %s270
      %s288 = sphi 0, %s288
      %s290 = sphi 0, %s288
      %s291 = sphi 0, %s290
      %s305 = sphi 0, %s291
    $region4: #{encoder_decoder_forward.1} parent=1 // loop_header_branch
      %21 = sbr.rel (%p19) target = $region8
    $region5: #{encoder_decoder_forward.1} parent=1 // loop_body
      %s23 = ssub.s32 %s18, 1
      %s24 = ssub.s32 %s18, 2
      %s25 = sadd.s32 %s18, 1
      %s27 = sadd.s32 %s26, 1
      %p30 = scmp.eq.s32.totalorder %s18, 3
      %p31 = scmp.ne.s32.totalorder %s26, %s28
      %p32 = scmp.eq.s32.totalorder %s18, 0
      %p33 = por %p31, %p32
      %p34 = scmp.ne.s32.totalorder %s26, %s28
      %p35 = scmp.eq.s32.totalorder %s23, 3
      %p36 = por %p34, %p35
      %p37 = scmp.ne.s32.totalorder %s28, %s29
      %p38 = scmp.eq.s32.totalorder %s23, 0
      %p39 = por %p37, %p38
      %p40 = scmp.ne.s32.totalorder %s28, %s29
      %p41 = scmp.eq.s32.totalorder %s24, 3
      %p42 = por %p40, %p41
      %p44 = scmp.ne.s32.totalorder %s29, %s43
      %p45 = scmp.eq.s32.totalorder %s24, 0
      %p46 = por %p44, %p45
      %s48 = sadd.s32 %s47, 1
      %p51 = scmp.eq.s32.totalorder %s18, 3
      %p52 = scmp.ne.s32.totalorder %s47, %s49
      %p53 = scmp.eq.s32.totalorder %s18, 0
      %p54 = por %p52, %p53
      %p55 = scmp.ne.s32.totalorder %s47, %s49
      %p56 = scmp.eq.s32.totalorder %s23, 3
      %p57 = por %p55, %p56
      %p58 = scmp.ne.s32.totalorder %s49, %s50
      %p59 = scmp.eq.s32.totalorder %s23, 0
      %p60 = por %p58, %p59
      %p61 = scmp.ne.s32.totalorder %s49, %s50
      %p62 = scmp.eq.s32.totalorder %s24, 3
      %p63 = por %p61, %p62
      %p65 = scmp.ne.s32.totalorder %s50, %s64
      %p66 = scmp.eq.s32.totalorder %s24, 0
      %p67 = por %p65, %p66
      %s68 = ssub.s32 %s18, %s25
      %p69 = scmp.eq.s32.totalorder %s68, 0
      %s71 = sadd.s32 %s70, 1
      %s72 = scalar_select %p69, %s70, %s71
      %p75 = pneg %p69
      %p76 = scmp.eq.s32.totalorder %s18, 3
      %p77 = por %p75, %p76
      %p78 = scmp.ne.s32.totalorder %s70, %s73
      %p79 = scmp.eq.s32.totalorder %s18, 0
      %p80 = por %p78, %p79
      %p81 = scmp.ne.s32.totalorder %s70, %s73
      %p82 = scmp.eq.s32.totalorder %s23, 3
      %p83 = por %p81, %p82
      %p84 = scmp.ne.s32.totalorder %s73, %s74
      %p85 = scmp.eq.s32.totalorder %s23, 0
      %p86 = por %p84, %p85
      %p87 = scmp.ne.s32.totalorder %s73, %s74
      %p88 = scmp.eq.s32.totalorder %s24, 3
      %p89 = por %p87, %p88
      %p91 = scmp.ne.s32.totalorder %s74, %s90
      %p92 = scmp.eq.s32.totalorder %s24, 0
      %p93 = por %p91, %p92
      %s95 = sadd.s32 %s94, 1
      %p98 = scmp.eq.s32.totalorder %s18, 3
      %p99 = scmp.ne.s32.totalorder %s94, %s96
      %p100 = scmp.eq.s32.totalorder %s18, 0
      %p101 = por %p99, %p100
      %p102 = scmp.ne.s32.totalorder %s94, %s96
      %p103 = scmp.eq.s32.totalorder %s23, 3
      %p104 = por %p102, %p103
      %p105 = scmp.ne.s32.totalorder %s96, %s97
      %p106 = scmp.eq.s32.totalorder %s23, 0
      %p107 = por %p105, %p106
      %p108 = scmp.ne.s32.totalorder %s96, %s97
      %p109 = scmp.eq.s32.totalorder %s24, 3
      %p110 = por %p108, %p109
      %p112 = scmp.ne.s32.totalorder %s97, %s111
      %p113 = scmp.eq.s32.totalorder %s24, 0
      %p114 = por %p112, %p113
      %s115 = ssub.s32 %s18, %s25
      %p116 = scmp.eq.s32.totalorder %s115, 0
      %s118 = sadd.s32 %s117, 1
      %s119 = scalar_select %p116, %s117, %s118
      %p122 = pneg %p116
      %p123 = scmp.eq.s32.totalorder %s18, 3
      %p124 = por %p122, %p123
      %p125 = scmp.ne.s32.totalorder %s117, %s120
      %p126 = scmp.eq.s32.totalorder %s18, 0
      %p127 = por %p125, %p126
      %p128 = scmp.ne.s32.totalorder %s117, %s120
      %p129 = scmp.eq.s32.totalorder %s23, 3
      %p130 = por %p128, %p129
      %p131 = scmp.ne.s32.totalorder %s120, %s121
      %p132 = scmp.eq.s32.totalorder %s23, 0
      %p133 = por %p131, %p132
      %p134 = scmp.ne.s32.totalorder %s120, %s121
      %p135 = scmp.eq.s32.totalorder %s24, 3
      %p136 = por %p134, %p135
      %p138 = scmp.ne.s32.totalorder %s121, %s137
      %p139 = scmp.eq.s32.totalorder %s24, 0
      %p140 = por %p138, %p139
      %s142 = sadd.s32 %s141, 1
      %p145 = scmp.eq.s32.totalorder %s18, 3
      %p146 = scmp.ne.s32.totalorder %s141, %s143
      %p147 = scmp.eq.s32.totalorder %s18, 0
      %p148 = por %p146, %p147
      %p149 = scmp.ne.s32.totalorder %s141, %s143
      %p150 = scmp.eq.s32.totalorder %s23, 3
      %p151 = por %p149, %p150
      %p152 = scmp.ne.s32.totalorder %s143, %s144
      %p153 = scmp.eq.s32.totalorder %s23, 0
      %p154 = por %p152, %p153
      %p155 = scmp.ne.s32.totalorder %s143, %s144
      %p156 = scmp.eq.s32.totalorder %s24, 3
      %p157 = por %p155, %p156
      %p159 = scmp.ne.s32.totalorder %s144, %s158
      %p160 = scmp.eq.s32.totalorder %s24, 0
      %p161 = por %p159, %p160
      %s163 = sadd.s32 %s162, 1
      %p166 = scmp.eq.s32.totalorder %s18, 3
      %p167 = scmp.ne.s32.totalorder %s162, %s164
      %p168 = scmp.eq.s32.totalorder %s18, 0
      %p169 = por %p167, %p168
      %p170 = scmp.ne.s32.totalorder %s162, %s164
      %p171 = scmp.eq.s32.totalorder %s23, 3
      %p172 = por %p170, %p171
      %p173 = scmp.ne.s32.totalorder %s164, %s165
      %p174 = scmp.eq.s32.totalorder %s23, 0
      %p175 = por %p173, %p174
      %p176 = scmp.ne.s32.totalorder %s164, %s165
      %p177 = scmp.eq.s32.totalorder %s24, 3
      %p178 = por %p176, %p177
      %p180 = scmp.ne.s32.totalorder %s165, %s179
      %p181 = scmp.eq.s32.totalorder %s24, 0
      %p182 = por %p180, %p181
      %s184 = sadd.s32 %s183, 1
      %p187 = scmp.eq.s32.totalorder %s18, 3
      %p188 = scmp.ne.s32.totalorder %s183, %s185
      %p189 = scmp.eq.s32.totalorder %s18, 0
      %p190 = por %p188, %p189
      %p191 = scmp.ne.s32.totalorder %s183, %s185
      %p192 = scmp.eq.s32.totalorder %s23, 3
      %p193 = por %p191, %p192
      %p194 = scmp.ne.s32.totalorder %s185, %s186
      %p195 = scmp.eq.s32.totalorder %s23, 0
      %p196 = por %p194, %p195
      %p197 = scmp.ne.s32.totalorder %s185, %s186
      %p198 = scmp.eq.s32.totalorder %s24, 3
      %p199 = por %p197, %p198
      %p201 = scmp.ne.s32.totalorder %s186, %s200
      %p202 = scmp.eq.s32.totalorder %s24, 0
      %p203 = por %p201, %p202
      %s205 = sadd.s32 %s204, 1
      %p208 = scmp.eq.s32.totalorder %s18, 3
      %p209 = scmp.ne.s32.totalorder %s204, %s206
      %p210 = scmp.eq.s32.totalorder %s18, 0
      %p211 = por %p209, %p210
      %p212 = scmp.ne.s32.totalorder %s204, %s206
      %p213 = scmp.eq.s32.totalorder %s23, 3
      %p214 = por %p212, %p213
      %p215 = scmp.ne.s32.totalorder %s206, %s207
      %p216 = scmp.eq.s32.totalorder %s23, 0
      %p217 = por %p215, %p216
      %p218 = scmp.ne.s32.totalorder %s206, %s207
      %p219 = scmp.eq.s32.totalorder %s24, 3
      %p220 = por %p218, %p219
      %p222 = scmp.ne.s32.totalorder %s207, %s221
      %p223 = scmp.eq.s32.totalorder %s24, 0
      %p224 = por %p222, %p223
      %s226 = sadd.s32 %s225, 1
      %p229 = scmp.eq.s32.totalorder %s18, 3
      %p230 = scmp.ne.s32.totalorder %s225, %s227
      %p231 = scmp.eq.s32.totalorder %s18, 0
      %p232 = por %p230, %p231
      %p233 = scmp.ne.s32.totalorder %s225, %s227
      %p234 = scmp.eq.s32.totalorder %s23, 3
      %p235 = por %p233, %p234
      %p236 = scmp.ne.s32.totalorder %s227, %s228
      %p237 = scmp.eq.s32.totalorder %s23, 0
      %p238 = por %p236, %p237
      %p239 = scmp.ne.s32.totalorder %s227, %s228
      %p240 = scmp.eq.s32.totalorder %s24, 3
      %p241 = por %p239, %p240
      %p243 = scmp.ne.s32.totalorder %s228, %s242
      %p244 = scmp.eq.s32.totalorder %s24, 0
      %p245 = por %p243, %p244
      %s247 = sadd.s32 %s246, 1
      %p250 = scmp.eq.s32.totalorder %s18, 3
      %p251 = scmp.ne.s32.totalorder %s246, %s248
      %p252 = scmp.eq.s32.totalorder %s18, 0
      %p253 = por %p251, %p252
      %p254 = scmp.ne.s32.totalorder %s246, %s248
      %p255 = scmp.eq.s32.totalorder %s23, 3
      %p256 = por %p254, %p255
      %p257 = scmp.ne.s32.totalorder %s248, %s249
      %p258 = scmp.eq.s32.totalorder %s23, 0
      %p259 = por %p257, %p258
      %p260 = scmp.ne.s32.totalorder %s248, %s249
      %p261 = scmp.eq.s32.totalorder %s24, 3
      %p262 = por %p260, %p261
      %p264 = scmp.ne.s32.totalorder %s249, %s263
      %p265 = scmp.eq.s32.totalorder %s24, 0
      %p266 = por %p264, %p265
      %s268 = sadd.s32 %s267, 1
      %p271 = scmp.eq.s32.totalorder %s18, 3
      %p272 = scmp.ne.s32.totalorder %s267, %s269
      %p273 = scmp.eq.s32.totalorder %s18, 0
      %p274 = por %p272, %p273
      %p275 = scmp.ne.s32.totalorder %s267, %s269
      %p276 = scmp.eq.s32.totalorder %s23, 3
      %p277 = por %p275, %p276
      %p278 = scmp.ne.s32.totalorder %s269, %s270
      %p279 = scmp.eq.s32.totalorder %s23, 0
      %p280 = por %p278, %p279
      %p281 = scmp.ne.s32.totalorder %s269, %s270
      %p282 = scmp.eq.s32.totalorder %s24, 3
      %p283 = por %p281, %p282
      %p285 = scmp.ne.s32.totalorder %s270, %s284
      %p286 = scmp.eq.s32.totalorder %s24, 0
      %p287 = por %p285, %p286
      %s289 = sadd.s32 %s288, 1
      %p292 = scmp.eq.s32.totalorder %s18, 3
      %p293 = scmp.ne.s32.totalorder %s288, %s290
      %p294 = scmp.eq.s32.totalorder %s18, 0
      %p295 = por %p293, %p294
      %p296 = scmp.ne.s32.totalorder %s288, %s290
      %p297 = scmp.eq.s32.totalorder %s23, 3
      %p298 = por %p296, %p297
      %p299 = scmp.ne.s32.totalorder %s290, %s291
      %p300 = scmp.eq.s32.totalorder %s23, 0
      %p301 = por %p299, %p300
      %p302 = scmp.ne.s32.totalorder %s290, %s291
      %p303 = scmp.eq.s32.totalorder %s24, 3
      %p304 = por %p302, %p303
      %p306 = scmp.ne.s32.totalorder %s291, %s305
      %p307 = scmp.eq.s32.totalorder %s24, 0
      %p308 = por %p306, %p307
      %p309 = scmp.le.s32.totalorder 1, %s18
      %p310 = scmp.lt.s32.totalorder %s18, 5
      %p311 = pnand %p309, %p310
      %p312 = pneg %p311
      // Predicated region
      $region9: #{encoder_decoder_forward.1} parent=5 // pred_check
        _
      $region10: #{encoder_decoder_forward.1} parent=5 // pred_check_branch
        %314 = sbr.rel (%p311) target = $region12
      $region11: #{encoder_decoder_forward.1} parent=5 // pred_region
        %s315 = ssub.s32 %s18, 1
        // Predicated region
        $region13: #{encoder_decoder_forward.1} parent=11 // pred_check
          %p316 = pneg %p39
        $region14: #{encoder_decoder_forward.1} parent=11 // pred_check_branch
          %318 = sbr.rel (%p316) target = $region16
        $region15: #{encoder_decoder_forward.1} parent=11 // pred_region
          _
        $region16: #{encoder_decoder_forward.1} parent=11 // pred_fallthru
          _
        // Predicated region
        $region17: #{encoder_decoder_forward.1} parent=11 // pred_check
          %p319 = pneg %p60
        $region18: #{encoder_decoder_forward.1} parent=11 // pred_check_branch
          %321 = sbr.rel (%p319) target = $region20
        $region19: #{encoder_decoder_forward.1} parent=11 // pred_region
          _
        $region20: #{encoder_decoder_forward.1} parent=11 // pred_fallthru
          _
        // Predicated region
        $region21: #{encoder_decoder_forward.1} parent=11 // pred_check
          %p322 = pneg %p107
        $region22: #{encoder_decoder_forward.1} parent=11 // pred_check_branch
          %324 = sbr.rel (%p322) target = $region24
        $region23: #{encoder_decoder_forward.1} parent=11 // pred_region
          _
        $region24: #{encoder_decoder_forward.1} parent=11 // pred_fallthru
          _
        // Predicated region
        $region25: #{encoder_decoder_forward.1} parent=11 // pred_check
          %p325 = pneg %p154
        $region26: #{encoder_decoder_forward.1} parent=11 // pred_check_branch
          %327 = sbr.rel (%p325) target = $region28
        $region27: #{encoder_decoder_forward.1} parent=11 // pred_region
          _
        $region28: #{encoder_decoder_forward.1} parent=11 // pred_fallthru
          _
        // Predicated region
        $region29: #{encoder_decoder_forward.1} parent=11 // pred_check
          %p328 = pneg %p175
        $region30: #{encoder_decoder_forward.1} parent=11 // pred_check_branch
          %330 = sbr.rel (%p328) target = $region32
        $region31: #{encoder_decoder_forward.1} parent=11 // pred_region
          _
        $region32: #{encoder_decoder_forward.1} parent=11 // pred_fallthru
          _
        // Predicated region
        $region33: #{encoder_decoder_forward.1} parent=11 // pred_check
          %p331 = pneg %p196
        $region34: #{encoder_decoder_forward.1} parent=11 // pred_check_branch
          %333 = sbr.rel (%p331) target = $region36
        $region35: #{encoder_decoder_forward.1} parent=11 // pred_region
          _
        $region36: #{encoder_decoder_forward.1} parent=11 // pred_fallthru
          _
        // Predicated region
        $region37: #{encoder_decoder_forward.1} parent=11 // pred_check
          %p334 = pneg %p217
        $region38: #{encoder_decoder_forward.1} parent=11 // pred_check_branch
          %336 = sbr.rel (%p334) target = $region40
        $region39: #{encoder_decoder_forward.1} parent=11 // pred_region
          _
        $region40: #{encoder_decoder_forward.1} parent=11 // pred_fallthru
          _
        // Predicated region
        $region41: #{encoder_decoder_forward.1} parent=11 // pred_check
          %p337 = pneg %p238
        $region42: #{encoder_decoder_forward.1} parent=11 // pred_check_branch
          %339 = sbr.rel (%p337) target = $region44
        $region43: #{encoder_decoder_forward.1} parent=11 // pred_region
          _
        $region44: #{encoder_decoder_forward.1} parent=11 // pred_fallthru
          _
        // Predicated region
        $region45: #{encoder_decoder_forward.1} parent=11 // pred_check
          %p340 = pneg %p259
        $region46: #{encoder_decoder_forward.1} parent=11 // pred_check_branch
          %342 = sbr.rel (%p340) target = $region48
        $region47: #{encoder_decoder_forward.1} parent=11 // pred_region
          _
        $region48: #{encoder_decoder_forward.1} parent=11 // pred_fallthru
          _
        // Predicated region
        $region49: #{encoder_decoder_forward.1} parent=11 // pred_check
          %p343 = pneg %p280
        $region50: #{encoder_decoder_forward.1} parent=11 // pred_check_branch
          %345 = sbr.rel (%p343) target = $region52
        $region51: #{encoder_decoder_forward.1} parent=11 // pred_region
          _
        $region52: #{encoder_decoder_forward.1} parent=11 // pred_fallthru
          _
      $region12: #{encoder_decoder_forward.1} parent=5 // pred_fallthru
        _
      %p346 = scmp.lt.s32.totalorder %s18, 4
      // Predicated region
      $region53: #{encoder_decoder_forward.1} parent=5 // pred_check
        %p347 = pneg %p346
      $region54: #{encoder_decoder_forward.1} parent=5 // pred_check_branch
        %349 = sbr.rel (%p347) target = $region56
      $region55: #{encoder_decoder_forward.1} parent=5 // pred_region
        // Predicated region
        $region57: #{encoder_decoder_forward.1} parent=55 // pred_check
          %p350 = pneg %p80
        $region58: #{encoder_decoder_forward.1} parent=55 // pred_check_branch
          %352 = sbr.rel (%p350) target = $region60
        $region59: #{encoder_decoder_forward.1} parent=55 // pred_region
          %s353 = sand.u32 %s70, 1
          %s354 = sand.u32 %s70, 1
          %s355 = smul.addr %s354, 256
          %s356 = scalar_lea.vmem [#allocation4], %s355
          %s357 = smul.u32 4, %s18
          %s358 = smul.addr %s357, 4
          %s359 = scalar_lea.vmem %s2, %s358
          // Predicated region
          $region61: #{encoder_decoder_forward.1} parent=59 // pred_check
            _
          $region62: #{encoder_decoder_forward.1} parent=59 // pred_check_branch
            %361 = sbr.rel (0) target = $region64
          $region63: #{encoder_decoder_forward.1} parent=59 // pred_region
            // Predicated region
            $region65: #{encoder_decoder_forward.1} parent=63 // pred_check
              _
            $region66: #{encoder_decoder_forward.1} parent=63 // pred_check_branch
              %363 = sbr.rel (0) target = $region68
            $region67: #{encoder_decoder_forward.1} parent=63 // pred_region
              loop: start=0, step=1, limit=1
              $region69: #{encoder_decoder_forward.1} parent=67 // loop_pre_header
                _
              $region70: #{encoder_decoder_forward.1} parent=67 // loop_header
                %s365 = sphi 0, %s369
                %p366 = scmp.ge.s32.totalorder %s365, 1
                %s370 = sphi %s359, %s359
                %s371 = sphi %s356, %s356
              $region71: #{encoder_decoder_forward.1} parent=67 // loop_header_branch
                %368 = sbr.rel (%p366) target = $region75
              $region72: #{encoder_decoder_forward.1} parent=67 // loop_body
                %v372 = vld [vmem:[%s370] sm:$0xff]
                %373 = vst [vmem:[%s371] sm:$0xff] %v372
                %v374 = vld [vmem:[%s370 + $0x8] sm:$0xff]
                %375 = vst [vmem:[%s371 + $0x8] sm:$0xff] %v374
                %v376 = vld [vmem:[%s370 + $0x40] sm:$0xff]
                %377 = vst [vmem:[%s371 + $0x10] sm:$0xff] %v376
                %v378 = vld [vmem:[%s370 + $0x48] sm:$0xff]
                %379 = vst [vmem:[%s371 + $0x18] sm:$0xff] %v378
                %v380 = vld [vmem:[%s370 + $0x80] sm:$0xff]
                %381 = vst [vmem:[%s371 + $0x20] sm:$0xff] %v380
                %v382 = vld [vmem:[%s370 + $0x88] sm:$0xff]
                %383 = vst [vmem:[%s371 + $0x28] sm:$0xff] %v382
                %v384 = vld [vmem:[%s370 + $0xc0] sm:$0xff]
                %385 = vst [vmem:[%s371 + $0x30] sm:$0xff] %v384
                %v386 = vld [vmem:[%s370 + $0xc8] sm:$0xff]
                %387 = vst [vmem:[%s371 + $0x38] sm:$0xff] %v386
                %v388 = vld [vmem:[%s370 + $0x100] sm:$0xff]
                %389 = vst [vmem:[%s371 + $0x40] sm:$0xff] %v388
                %v390 = vld [vmem:[%s370 + $0x108] sm:$0xff]
                %391 = vst [vmem:[%s371 + $0x48] sm:$0xff] %v390
                %v392 = vld [vmem:[%s370 + $0x140] sm:$0xff]
                %393 = vst [vmem:[%s371 + $0x50] sm:$0xff] %v392
                %v394 = vld [vmem:[%s370 + $0x148] sm:$0xff]
                %395 = vst [vmem:[%s371 + $0x58] sm:$0xff] %v394
                %v396 = vld [vmem:[%s370 + $0x180] sm:$0xff]
                %397 = vst [vmem:[%s371 + $0x60] sm:$0xff] %v396
                %v398 = vld [vmem:[%s370 + $0x188] sm:$0xff]
                %399 = vst [vmem:[%s371 + $0x68] sm:$0xff] %v398
                %v400 = vld [vmem:[%s370 + $0x1c0] sm:$0xff]
                %401 = vst [vmem:[%s371 + $0x70] sm:$0xff] %v400
                %v402 = vld [vmem:[%s370 + $0x1c8] sm:$0xff]
                %403 = vst [vmem:[%s371 + $0x78] sm:$0xff] %v402
                %v404 = vld [vmem:[%s370 + $0x200] sm:$0xff]
                %405 = vst [vmem:[%s371 + $0x80] sm:$0xff] %v404
                %v406 = vld [vmem:[%s370 + $0x208] sm:$0xff]
                %407 = vst [vmem:[%s371 + $0x88] sm:$0xff] %v406
                %v408 = vld [vmem:[%s370 + $0x240] sm:$0xff]
                %409 = vst [vmem:[%s371 + $0x90] sm:$0xff] %v408
                %v410 = vld [vmem:[%s370 + $0x248] sm:$0xff]
                %411 = vst [vmem:[%s371 + $0x98] sm:$0xff] %v410
                %v412 = vld [vmem:[%s370 + $0x280] sm:$0xff]
                %413 = vst [vmem:[%s371 + $0xa0] sm:$0xff] %v412
                %v414 = vld [vmem:[%s370 + $0x288] sm:$0xff]
                %415 = vst [vmem:[%s371 + $0xa8] sm:$0xff] %v414
                %v416 = vld [vmem:[%s370 + $0x2c0] sm:$0xff]
                %417 = vst [vmem:[%s371 + $0xb0] sm:$0xff] %v416
                %v418 = vld [vmem:[%s370 + $0x2c8] sm:$0xff]
                %419 = vst [vmem:[%s371 + $0xb8] sm:$0xff] %v418
                %v420 = vld [vmem:[%s370 + $0x300] sm:$0xff]
                %421 = vst [vmem:[%s371 + $0xc0] sm:$0xff] %v420
                %v422 = vld [vmem:[%s370 + $0x308] sm:$0xff]
                %423 = vst [vmem:[%s371 + $0xc8] sm:$0xff] %v422
                %v424 = vld [vmem:[%s370 + $0x340] sm:$0xff]
                %425 = vst [vmem:[%s371 + $0xd0] sm:$0xff] %v424
                %v426 = vld [vmem:[%s370 + $0x348] sm:$0xff]
                %427 = vst [vmem:[%s371 + $0xd8] sm:$0xff] %v426
                %v428 = vld [vmem:[%s370 + $0x380] sm:$0xff]
                %429 = vst [vmem:[%s371 + $0xe0] sm:$0xff] %v428
                %v430 = vld [vmem:[%s370 + $0x388] sm:$0xff]
                %431 = vst [vmem:[%s371 + $0xe8] sm:$0xff] %v430
                %v432 = vld [vmem:[%s370 + $0x3c0] sm:$0xff]
                %433 = vst [vmem:[%s371 + $0xf0] sm:$0xff] %v432
                %v434 = vld [vmem:[%s370 + $0x3c8] sm:$0xff]
                %435 = vst [vmem:[%s371 + $0xf8] sm:$0xff] %v434
              $region73: #{encoder_decoder_forward.1} parent=67 // loop_footer
                %s369 = sadd.s32 1, %s365
              $region74: #{encoder_decoder_forward.1} parent=67 // loop_footer_branch
                %364 = sbr.rel target = $region70
              $region75: #{encoder_decoder_forward.1} parent=67 // loop_exit
                _
            $region68: #{encoder_decoder_forward.1} parent=63 // pred_fallthru
              _
            // Predicated region
            $region76: #{encoder_decoder_forward.1} parent=63 // pred_check
              _
            $region77: #{encoder_decoder_forward.1} parent=63 // pred_check_branch
              %437 = sbr.rel target = $region79
            $region78: #{encoder_decoder_forward.1} parent=63 // pred_region
              _
            $region79: #{encoder_decoder_forward.1} parent=63 // pred_fallthru
              _
          $region64: #{encoder_decoder_forward.1} parent=59 // pred_fallthru
            _
          %438 = vnop
        $region60: #{encoder_decoder_forward.1} parent=55 // pred_fallthru
          _
        // Predicated region
        $region80: #{encoder_decoder_forward.1} parent=55 // pred_check
          %p439 = pneg %p127
        $region81: #{encoder_decoder_forward.1} parent=55 // pred_check_branch
          %441 = sbr.rel (%p439) target = $region83
        $region82: #{encoder_decoder_forward.1} parent=55 // pred_region
          %s442 = smul.u32 64, %s18
          %p443 = scmp.lt.s32.totalorder %s442, 255
          %s444 = scalar_select %p443, %s442, 255
          %s445 = smul.addr %s444, 4
          %s446 = scalar_lea.vmem %s4, %s445
          %s447 = smul.u32 64, %s18
        $region83: #{encoder_decoder_forward.1} parent=55 // pred_fallthru
          _
      $region56: #{encoder_decoder_forward.1} parent=5 // pred_fallthru
        _
      %p448 = scmp.le.s32.totalorder 1, %s18
      %p449 = scmp.lt.s32.totalorder %s18, 5
      %p450 = pnand %p448, %p449
      %p451 = pneg %p450
      // Predicated region
      $region84: #{encoder_decoder_forward.1} parent=5 // pred_check
        _
      $region85: #{encoder_decoder_forward.1} parent=5 // pred_check_branch
        %453 = sbr.rel (%p450) target = $region87
      $region86: #{encoder_decoder_forward.1} parent=5 // pred_region
        %s454 = ssub.s32 %s18, 1
        %s455 = sand.u32 %s73, 1
        %s456 = sand.u32 %s73, 1
        %s457 = smul.addr %s456, 256
        %s458 = scalar_lea.vmem [#allocation4], %s457
        // Predicated region
        $region88: #{encoder_decoder_forward.1} parent=86 // pred_check
          %p459 = pneg %p86
        $region89: #{encoder_decoder_forward.1} parent=86 // pred_check_branch
          %461 = sbr.rel (%p459) target = $region91
        $region90: #{encoder_decoder_forward.1} parent=86 // pred_region
          _
        $region91: #{encoder_decoder_forward.1} parent=86 // pred_fallthru
          _
        %p462 = pneg %p39
        %p463 = pneg %p36
        %p464 = pneg %p60
        %p465 = pneg %p57
        %s466 = sand.u32 %s73, 1
        %s467 = sand.u32 %s73, 1
        %s468 = smul.addr %s467, 256
        %s469 = scalar_lea.vmem [#allocation4], %s468
        %p470 = pneg %p86
        %p471 = pneg %p83
        %p472 = pneg %p107
        %p473 = pneg %p104
        %s474 = smul.u32 64, %s23
        %p475 = scmp.lt.s32.totalorder %s474, 255
        %s476 = scalar_select %p475, %s474, 255
        %s477 = smul.addr %s476, 4
        %s478 = scalar_lea.vmem %s4, %s477
        %p479 = pneg %p133
        %p480 = pneg %p130
        %p481 = pneg %p154
        %p482 = pneg %p151
        %p483 = pneg %p175
        %p484 = pneg %p172
        %p485 = pneg %p196
        %p486 = pneg %p193
        %p487 = pneg %p217
        %p488 = pneg %p214
        %p489 = pneg %p238
        %p490 = pneg %p235
        %p491 = pneg %p259
        %p492 = pneg %p256
        %p493 = pneg %p280
        %p494 = pneg %p277
        %p495 = pneg %p301
        %p496 = pneg %p298
        %s497 = smul.u32 4, %s23
        %s498 = smul.u32 64, %s23
        %p499 = scmp.lt.s32.totalorder %s498, 255
        %s500 = scalar_select %p499, %s498, 255
        %s501 = smul.addr %s500, 4
        %s502 = scalar_lea.vmem %s4, %s501
        %s503 = smul.u32 64, %s23
        %p505 = scmp.eq.s32.totalorder %s23, 0
        // Predicated region
        $region92: #{encoder_decoder_forward.1} parent=86 // pred_check
          %p506 = pneg %p505
        $region93: #{encoder_decoder_forward.1} parent=86 // pred_check_branch
          %508 = sbr.rel (%p506) target = $region95
        $region94: #{encoder_decoder_forward.1} parent=86 // pred_region
          %vm509 = vcmask 261120
          %510 = vst.msk [vmem:[#allocation2] sm:$0xff] %vm509, 0.0
        $region95: #{encoder_decoder_forward.1} parent=86 // pred_fallthru
          _
        %v511 = vld [vmem:[%s1] sm:$0xf]
        %v512 = vld [vmem:[%s1 + $0x4] sm:$0xf]
        %v513 = vld [vmem:[%s1 + $0x8] sm:$0xf]
        %v514 = vld [vmem:[%s1 + $0xc] sm:$0xf]
        %v515 = vld [vmem:[%s1 + $0x10] sm:$0xf]
        %v516 = vld [vmem:[%s1 + $0x14] sm:$0xf]
        %v517 = vld [vmem:[%s1 + $0x18] sm:$0xf]
        %v518 = vld [vmem:[%s1 + $0x1c] sm:$0xf]
        %v519 = vld [vmem:[%s1 + $0x20] sm:$0xf]
        %v520 = vld [vmem:[%s1 + $0x24] sm:$0xf]
        %v521 = vld [vmem:[%s1 + $0x28] sm:$0xf]
        %v522 = vld [vmem:[%s1 + $0x2c] sm:$0xf]
        %v523 = vld [vmem:[%s1 + $0x30] sm:$0xf]
        %v524 = vld [vmem:[%s1 + $0x34] sm:$0xf]
        %v525 = vld [vmem:[%s1 + $0x38] sm:$0xf]
        %v526 = vld [vmem:[%s1 + $0x3c] sm:$0xf]
        %v527 = vld [vmem:[%s1 + $0x40] sm:$0xf]
        %v528 = vld [vmem:[%s1 + $0x44] sm:$0xf]
        %v529 = vld [vmem:[%s1 + $0x48] sm:$0xf]
        %v530 = vld [vmem:[%s1 + $0x4c] sm:$0xf]
        %v531 = vld [vmem:[%s1 + $0x50] sm:$0xf]
        %v532 = vld [vmem:[%s1 + $0x54] sm:$0xf]
        %v533 = vld [vmem:[%s1 + $0x58] sm:$0xf]
        %v534 = vld [vmem:[%s1 + $0x5c] sm:$0xf]
        %v535 = vld [vmem:[%s1 + $0x60] sm:$0xf]
        %v536 = vld [vmem:[%s1 + $0x64] sm:$0xf]
        %v537 = vld [vmem:[%s1 + $0x68] sm:$0xf]
        %v538 = vld [vmem:[%s1 + $0x6c] sm:$0xf]
        %v539 = vld [vmem:[%s1 + $0x70] sm:$0xf]
        %v540 = vld [vmem:[%s1 + $0x74] sm:$0xf]
        %v541 = vld [vmem:[%s1 + $0x78] sm:$0xf]
        %v542 = vld [vmem:[%s1 + $0x7c] sm:$0xf]
        %v543 = vld [vmem:[%s1 + $0x80] sm:$0xf]
        %v544 = vld [vmem:[%s1 + $0x84] sm:$0xf]
        %v545 = vld [vmem:[%s1 + $0x88] sm:$0xf]
        %v546 = vld [vmem:[%s1 + $0x8c] sm:$0xf]
        %v547 = vld [vmem:[%s1 + $0x90] sm:$0xf]
        %v548 = vld [vmem:[%s1 + $0x94] sm:$0xf]
        %v549 = vld [vmem:[%s1 + $0x98] sm:$0xf]
        %v550 = vld [vmem:[%s1 + $0x9c] sm:$0xf]
        %v551 = vld [vmem:[%s1 + $0xa0] sm:$0xf]
        %v552 = vld [vmem:[%s1 + $0xa4] sm:$0xf]
        %v553 = vld [vmem:[%s1 + $0xa8] sm:$0xf]
        %v554 = vld [vmem:[%s1 + $0xac] sm:$0xf]
        %v555 = vld [vmem:[%s1 + $0xb0] sm:$0xf]
        %v556 = vld [vmem:[%s1 + $0xb4] sm:$0xf]
        %v557 = vld [vmem:[%s1 + $0xb8] sm:$0xf]
        %v558 = vld [vmem:[%s1 + $0xbc] sm:$0xf]
        %v559 = vld [vmem:[%s1 + $0xc0] sm:$0xf]
        %v560 = vld [vmem:[%s1 + $0xc4] sm:$0xf]
        %v561 = vld [vmem:[%s1 + $0xc8] sm:$0xf]
        %v562 = vld [vmem:[%s1 + $0xcc] sm:$0xf]
        %v563 = vld [vmem:[%s1 + $0xd0] sm:$0xf]
        %v564 = vld [vmem:[%s1 + $0xd4] sm:$0xf]
        %v565 = vld [vmem:[%s1 + $0xd8] sm:$0xf]
        %v566 = vld [vmem:[%s1 + $0xdc] sm:$0xf]
        %v567 = vld [vmem:[%s1 + $0xe0] sm:$0xf]
        %v568 = vld [vmem:[%s1 + $0xe4] sm:$0xf]
        %v569 = vld [vmem:[%s1 + $0xe8] sm:$0xf]
        %v570 = vld [vmem:[%s1 + $0xec] sm:$0xf]
        %v571 = vld [vmem:[%s1 + $0xf0] sm:$0xf]
        %v572 = vld [vmem:[%s1 + $0xf4] sm:$0xf]
        %v573 = vld [vmem:[%s1 + $0xf8] sm:$0xf]
        %v574 = vld [vmem:[%s1 + $0xfc] sm:$0xf]
        %v575 = vld [vmem:[%s458] sm:$0xff]
        %v576 = vld [vmem:[%s458 + $0x8] sm:$0xff]
        %v577 = vld [vmem:[%s458 + $0x10] sm:$0xff]
        %v578 = vld [vmem:[%s458 + $0x18] sm:$0xff]
        %v579 = vld [vmem:[%s458 + $0x20] sm:$0xff]
        %v580 = vld [vmem:[%s458 + $0x28] sm:$0xff]
        %v581 = vld [vmem:[%s458 + $0x30] sm:$0xff]
        %v582 = vld [vmem:[%s458 + $0x38] sm:$0xff]
        %v583 = vld [vmem:[%s458 + $0x40] sm:$0xff]
        %v584 = vld [vmem:[%s458 + $0x48] sm:$0xff]
        %v585 = vld [vmem:[%s458 + $0x50] sm:$0xff]
        %v586 = vld [vmem:[%s458 + $0x58] sm:$0xff]
        %v587 = vld [vmem:[%s458 + $0x60] sm:$0xff]
        %v588 = vld [vmem:[%s458 + $0x68] sm:$0xff]
        %v589 = vld [vmem:[%s458 + $0x70] sm:$0xff]
        %v590 = vld [vmem:[%s458 + $0x78] sm:$0xff]
        %v591 = vld [vmem:[%s458 + $0x80] sm:$0xff]
        %v592 = vld [vmem:[%s458 + $0x88] sm:$0xff]
        %v593 = vld [vmem:[%s458 + $0x90] sm:$0xff]
        %v594 = vld [vmem:[%s458 + $0x98] sm:$0xff]
        %v595 = vld [vmem:[%s458 + $0xa0] sm:$0xff]
        %v596 = vld [vmem:[%s458 + $0xa8] sm:$0xff]
        %v597 = vld [vmem:[%s458 + $0xb0] sm:$0xff]
        %v598 = vld [vmem:[%s458 + $0xb8] sm:$0xff]
        %v599 = vld [vmem:[%s458 + $0xc0] sm:$0xff]
        %v600 = vld [vmem:[%s458 + $0xc8] sm:$0xff]
        %v601 = vld [vmem:[%s458 + $0xd0] sm:$0xff]
        %v602 = vld [vmem:[%s458 + $0xd8] sm:$0xff]
        %v603 = vld [vmem:[%s458 + $0xe0] sm:$0xff]
        %v604 = vld [vmem:[%s458 + $0xe8] sm:$0xff]
        %v605 = vld [vmem:[%s458 + $0xf0] sm:$0xff]
        %v606 = vld [vmem:[%s458 + $0xf8] sm:$0xff]
        %v671 = vunpack.c.l.b16 %v511
        %v672 = vunpack.c.l.b16 %v512
        %v673 = vunpack.c.l.b16 %v513
        %v674 = vunpack.c.l.b16 %v514
        %v675 = vunpack.c.l.b16 %v515
        %v676 = vunpack.c.l.b16 %v516
        %v677 = vunpack.c.l.b16 %v517
        %v678 = vunpack.c.l.b16 %v518
        %v679 = vunpack.c.l.b16 %v519
        %v680 = vunpack.c.l.b16 %v520
        %v681 = vunpack.c.l.b16 %v521
        %v682 = vunpack.c.l.b16 %v522
        %v683 = vunpack.c.l.b16 %v523
        %v684 = vunpack.c.l.b16 %v524
        %v685 = vunpack.c.l.b16 %v525
        %v686 = vunpack.c.l.b16 %v526
        %v687 = vunpack.c.l.b16 %v527
        %v688 = vunpack.c.l.b16 %v528
        %v689 = vunpack.c.l.b16 %v529
        %v690 = vunpack.c.l.b16 %v530
        %v691 = vunpack.c.l.b16 %v531
        %v692 = vunpack.c.l.b16 %v532
        %v693 = vunpack.c.l.b16 %v533
        %v694 = vunpack.c.l.b16 %v534
        %v695 = vunpack.c.l.b16 %v535
        %v696 = vunpack.c.l.b16 %v536
        %v697 = vunpack.c.l.b16 %v537
        %v698 = vunpack.c.l.b16 %v538
        %v699 = vunpack.c.l.b16 %v539
        %v700 = vunpack.c.l.b16 %v540
        %v701 = vunpack.c.l.b16 %v541
        %v702 = vunpack.c.l.b16 %v542
        %v703 = vunpack.c.l.b16 %v543
        %v704 = vunpack.c.l.b16 %v544
        %v705 = vunpack.c.l.b16 %v545
        %v706 = vunpack.c.l.b16 %v546
        %v707 = vunpack.c.l.b16 %v547
        %v708 = vunpack.c.l.b16 %v548
        %v709 = vunpack.c.l.b16 %v549
        %v710 = vunpack.c.l.b16 %v550
        %v711 = vunpack.c.l.b16 %v551
        %v712 = vunpack.c.l.b16 %v552
        %v713 = vunpack.c.l.b16 %v553
        %v714 = vunpack.c.l.b16 %v554
        %v715 = vunpack.c.l.b16 %v555
        %v716 = vunpack.c.l.b16 %v556
        %v717 = vunpack.c.l.b16 %v557
        %v718 = vunpack.c.l.b16 %v558
        %v719 = vunpack.c.l.b16 %v559
        %v720 = vunpack.c.l.b16 %v560
        %v721 = vunpack.c.l.b16 %v561
        %v722 = vunpack.c.l.b16 %v562
        %v723 = vunpack.c.l.b16 %v563
        %v724 = vunpack.c.l.b16 %v564
        %v725 = vunpack.c.l.b16 %v565
        %v726 = vunpack.c.l.b16 %v566
        %v727 = vunpack.c.l.b16 %v567
        %v728 = vunpack.c.l.b16 %v568
        %v729 = vunpack.c.l.b16 %v569
        %v730 = vunpack.c.l.b16 %v570
        %v731 = vunpack.c.l.b16 %v571
        %v732 = vunpack.c.l.b16 %v572
        %v733 = vunpack.c.l.b16 %v573
        %v734 = vunpack.c.l.b16 %v574
        %v735 = vpack.c.b16 %v672, %v671
        %v736 = vpack.c.b16 %v674, %v673
        %v737 = vpack.c.b16 %v676, %v675
        %v738 = vpack.c.b16 %v678, %v677
        %v739 = vpack.c.b16 %v680, %v679
        %v740 = vpack.c.b16 %v682, %v681
        %v741 = vpack.c.b16 %v684, %v683
        %v742 = vpack.c.b16 %v686, %v685
        %v743 = vpack.c.b16 %v688, %v687
        %v744 = vpack.c.b16 %v690, %v689
        %v745 = vpack.c.b16 %v692, %v691
        %v746 = vpack.c.b16 %v694, %v693
        %v747 = vpack.c.b16 %v696, %v695
        %v748 = vpack.c.b16 %v698, %v697
        %v749 = vpack.c.b16 %v700, %v699
        %v750 = vpack.c.b16 %v702, %v701
        %v751 = vpack.c.b16 %v704, %v703
        %v752 = vpack.c.b16 %v706, %v705
        %v753 = vpack.c.b16 %v708, %v707
        %v754 = vpack.c.b16 %v710, %v709
        %v755 = vpack.c.b16 %v712, %v711
        %v756 = vpack.c.b16 %v714, %v713
        %v757 = vpack.c.b16 %v716, %v715
        %v758 = vpack.c.b16 %v718, %v717
        %v759 = vpack.c.b16 %v720, %v719
        %v760 = vpack.c.b16 %v722, %v721
        %v761 = vpack.c.b16 %v724, %v723
        %v762 = vpack.c.b16 %v726, %v725
        %v763 = vpack.c.b16 %v728, %v727
        %v764 = vpack.c.b16 %v730, %v729
        %v765 = vpack.c.b16 %v732, %v731
        %v766 = vpack.c.b16 %v734, %v733
        %v831 = vunpack.c.l.b16 %v575
        %v832 = vunpack.c.h.b16 %v575
        %v833 = vunpack.c.l.b16 %v576
        %v834 = vunpack.c.h.b16 %v576
        %v835 = vunpack.c.l.b16 %v577
        %v836 = vunpack.c.h.b16 %v577
        %v837 = vunpack.c.l.b16 %v578
        %v838 = vunpack.c.h.b16 %v578
        %v839 = vunpack.c.l.b16 %v579
        %v840 = vunpack.c.h.b16 %v579
        %v841 = vunpack.c.l.b16 %v580
        %v842 = vunpack.c.h.b16 %v580
        %v843 = vunpack.c.l.b16 %v581
        %v844 = vunpack.c.h.b16 %v581
        %v845 = vunpack.c.l.b16 %v582
        %v846 = vunpack.c.h.b16 %v582
        %v847 = vunpack.c.l.b16 %v583
        %v848 = vunpack.c.h.b16 %v583
        %v849 = vunpack.c.l.b16 %v584
        %v850 = vunpack.c.h.b16 %v584
        %v851 = vunpack.c.l.b16 %v585
        %v852 = vunpack.c.h.b16 %v585
        %v853 = vunpack.c.l.b16 %v586
        %v854 = vunpack.c.h.b16 %v586
        %v855 = vunpack.c.l.b16 %v587
        %v856 = vunpack.c.h.b16 %v587
        %v857 = vunpack.c.l.b16 %v588
        %v858 = vunpack.c.h.b16 %v588
        %v859 = vunpack.c.l.b16 %v589
        %v860 = vunpack.c.h.b16 %v589
        %v861 = vunpack.c.l.b16 %v590
        %v862 = vunpack.c.h.b16 %v590
        %v863 = vunpack.c.l.b16 %v591
        %v864 = vunpack.c.h.b16 %v591
        %v865 = vunpack.c.l.b16 %v592
        %v866 = vunpack.c.h.b16 %v592
        %v867 = vunpack.c.l.b16 %v593
        %v868 = vunpack.c.h.b16 %v593
        %v869 = vunpack.c.l.b16 %v594
        %v870 = vunpack.c.h.b16 %v594
        %v871 = vunpack.c.l.b16 %v595
        %v872 = vunpack.c.h.b16 %v595
        %v873 = vunpack.c.l.b16 %v596
        %v874 = vunpack.c.h.b16 %v596
        %v875 = vunpack.c.l.b16 %v597
        %v876 = vunpack.c.h.b16 %v597
        %v877 = vunpack.c.l.b16 %v598
        %v878 = vunpack.c.h.b16 %v598
        %v879 = vunpack.c.l.b16 %v599
        %v880 = vunpack.c.h.b16 %v599
        %v881 = vunpack.c.l.b16 %v600
        %v882 = vunpack.c.h.b16 %v600
        %v883 = vunpack.c.l.b16 %v601
        %v884 = vunpack.c.h.b16 %v601
        %v885 = vunpack.c.l.b16 %v602
        %v886 = vunpack.c.h.b16 %v602
        %v887 = vunpack.c.l.b16 %v603
        %v888 = vunpack.c.h.b16 %v603
        %v889 = vunpack.c.l.b16 %v604
        %v890 = vunpack.c.h.b16 %v604
        %v891 = vunpack.c.l.b16 %v605
        %v892 = vunpack.c.h.b16 %v605
        %v893 = vunpack.c.l.b16 %v606
        %v894 = vunpack.c.h.b16 %v606
        %v895 = vpack.c.b16 %v835, %v831
        %v896 = vpack.c.b16 %v836, %v832
        %v897 = vpack.c.b16 %v837, %v833
        %v898 = vpack.c.b16 %v838, %v834
        %v899 = vpack.c.b16 %v843, %v839
        %v900 = vpack.c.b16 %v844, %v840
        %v901 = vpack.c.b16 %v845, %v841
        %v902 = vpack.c.b16 %v846, %v842
        %v903 = vpack.c.b16 %v851, %v847
        %v904 = vpack.c.b16 %v852, %v848
        %v905 = vpack.c.b16 %v853, %v849
        %v906 = vpack.c.b16 %v854, %v850
        %v907 = vpack.c.b16 %v859, %v855
        %v908 = vpack.c.b16 %v860, %v856
        %v909 = vpack.c.b16 %v861, %v857
        %v910 = vpack.c.b16 %v862, %v858
        %v911 = vpack.c.b16 %v867, %v863
        %v912 = vpack.c.b16 %v868, %v864
        %v913 = vpack.c.b16 %v869, %v865
        %v914 = vpack.c.b16 %v870, %v866
        %v915 = vpack.c.b16 %v875, %v871
        %v916 = vpack.c.b16 %v876, %v872
        %v917 = vpack.c.b16 %v877, %v873
        %v918 = vpack.c.b16 %v878, %v874
        %v919 = vpack.c.b16 %v883, %v879
        %v920 = vpack.c.b16 %v884, %v880
        %v921 = vpack.c.b16 %v885, %v881
        %v922 = vpack.c.b16 %v886, %v882
        %v923 = vpack.c.b16 %v891, %v887
        %v924 = vpack.c.b16 %v892, %v888
        %v925 = vpack.c.b16 %v893, %v889
        %v926 = vpack.c.b16 %v894, %v890
        %959 = vmatpush.bf16.msra.mxu0 %v923
        %960 = vmatpush.bf16.msra.mxu0 %v919
        %961 = vmatpush.bf16.msra.mxu0 %v915
        %962 = vmatpush.bf16.msra.mxu0 %v911
        %963 = vmatpush.bf16.msra.mxu0 %v907
        %964 = vmatpush.bf16.msra.mxu0 %v903
        %965 = vmatpush.bf16.msra.mxu0 %v899
        %966 = vmatpush.bf16.msra.mxu0 %v895
        %967 = vmatmul.bf16.gmra.mxu0 %v735
        %v968 = vpop.f32.mrf.mxu0
        %v969 = vadd.f32 0.0, %v968
        %v970 = vpop.f32.mrf.mxu0
        %v971 = vadd.f32 0.0, %v970
        %972 = vmatmul.bf16.gmra.mxu0 %v736
        %v973 = vpop.f32.mrf.mxu0
        %v974 = vadd.f32 0.0, %v973
        %v975 = vpop.f32.mrf.mxu0
        %v976 = vadd.f32 0.0, %v975
        %977 = vmatmul.bf16.gmra.mxu0 %v737
        %v978 = vpop.f32.mrf.mxu0
        %v979 = vadd.f32 0.0, %v978
        %v980 = vpop.f32.mrf.mxu0
        %v981 = vadd.f32 0.0, %v980
        %982 = vmatmul.bf16.gmra.mxu0 %v738
        %v983 = vpop.f32.mrf.mxu0
        %v984 = vadd.f32 0.0, %v983
        %v985 = vpop.f32.mrf.mxu0
        %v986 = vadd.f32 0.0, %v985
        %987 = vmatmul.bf16.gmra.mxu0 %v739
        %v988 = vpop.f32.mrf.mxu0
        %v989 = vadd.f32 0.0, %v988
        %v990 = vpop.f32.mrf.mxu0
        %v991 = vadd.f32 0.0, %v990
        %992 = vmatmul.bf16.gmra.mxu0 %v740
        %v993 = vpop.f32.mrf.mxu0
        %v994 = vadd.f32 0.0, %v993
        %v995 = vpop.f32.mrf.mxu0
        %v996 = vadd.f32 0.0, %v995
        %997 = vmatmul.bf16.gmra.mxu0 %v741
        %v998 = vpop.f32.mrf.mxu0
        %v999 = vadd.f32 0.0, %v998
        %v1000 = vpop.f32.mrf.mxu0
        %v1001 = vadd.f32 0.0, %v1000
        %1002 = vmatmul.bf16.gmra.mxu0 %v742
        %v1003 = vpop.f32.mrf.mxu0
        %v1004 = vadd.f32 0.0, %v1003
        %v1005 = vpop.f32.mrf.mxu0
        %v1006 = vadd.f32 0.0, %v1005
        %1007 = vmatmul.bf16.gmra.mxu0 %v743
        %v1008 = vpop.f32.mrf.mxu0
        %v1009 = vadd.f32 0.0, %v1008
        %v1010 = vpop.f32.mrf.mxu0
        %v1011 = vadd.f32 0.0, %v1010
        %1012 = vmatmul.bf16.gmra.mxu0 %v744
        %v1013 = vpop.f32.mrf.mxu0
        %v1014 = vadd.f32 0.0, %v1013
        %v1015 = vpop.f32.mrf.mxu0
        %v1016 = vadd.f32 0.0, %v1015
        %1017 = vmatmul.bf16.gmra.mxu0 %v745
        %v1018 = vpop.f32.mrf.mxu0
        %v1019 = vadd.f32 0.0, %v1018
        %v1020 = vpop.f32.mrf.mxu0
        %v1021 = vadd.f32 0.0, %v1020
        %1022 = vmatmul.bf16.gmra.mxu0 %v746
        %v1023 = vpop.f32.mrf.mxu0
        %v1024 = vadd.f32 0.0, %v1023
        %v1025 = vpop.f32.mrf.mxu0
        %v1026 = vadd.f32 0.0, %v1025
        %1027 = vmatmul.bf16.gmra.mxu0 %v747
        %v1028 = vpop.f32.mrf.mxu0
        %v1029 = vadd.f32 0.0, %v1028
        %v1030 = vpop.f32.mrf.mxu0
        %v1031 = vadd.f32 0.0, %v1030
        %1032 = vmatmul.bf16.gmra.mxu0 %v748
        %v1033 = vpop.f32.mrf.mxu0
        %v1034 = vadd.f32 0.0, %v1033
        %v1035 = vpop.f32.mrf.mxu0
        %v1036 = vadd.f32 0.0, %v1035
        %1037 = vmatmul.bf16.gmra.mxu0 %v749
        %v1038 = vpop.f32.mrf.mxu0
        %v1039 = vadd.f32 0.0, %v1038
        %v1040 = vpop.f32.mrf.mxu0
        %v1041 = vadd.f32 0.0, %v1040
        %1042 = vmatmul.bf16.gmra.mxu0 %v750
        %v1043 = vpop.f32.mrf.mxu0
        %v1044 = vadd.f32 0.0, %v1043
        %v1045 = vpop.f32.mrf.mxu0
        %v1046 = vadd.f32 0.0, %v1045
        %1047 = vmatmul.bf16.gmra.mxu0 %v751
        %v1048 = vpop.f32.mrf.mxu0
        %v1049 = vadd.f32 0.0, %v1048
        %v1050 = vpop.f32.mrf.mxu0
        %v1051 = vadd.f32 0.0, %v1050
        %1052 = vmatmul.bf16.gmra.mxu0 %v752
        %v1053 = vpop.f32.mrf.mxu0
        %v1054 = vadd.f32 0.0, %v1053
        %v1055 = vpop.f32.mrf.mxu0
        %v1056 = vadd.f32 0.0, %v1055
        %1057 = vmatmul.bf16.gmra.mxu0 %v753
        %v1058 = vpop.f32.mrf.mxu0
        %v1059 = vadd.f32 0.0, %v1058
        %v1060 = vpop.f32.mrf.mxu0
        %v1061 = vadd.f32 0.0, %v1060
        %1062 = vmatmul.bf16.gmra.mxu0 %v754
        %v1063 = vpop.f32.mrf.mxu0
        %v1064 = vadd.f32 0.0, %v1063
        %v1065 = vpop.f32.mrf.mxu0
        %v1066 = vadd.f32 0.0, %v1065
        %1067 = vmatmul.bf16.gmra.mxu0 %v755
        %v1068 = vpop.f32.mrf.mxu0
        %v1069 = vadd.f32 0.0, %v1068
        %v1070 = vpop.f32.mrf.mxu0
        %v1071 = vadd.f32 0.0, %v1070
        %1072 = vmatmul.bf16.gmra.mxu0 %v756
        %v1073 = vpop.f32.mrf.mxu0
        %v1074 = vadd.f32 0.0, %v1073
        %v1075 = vpop.f32.mrf.mxu0
        %v1076 = vadd.f32 0.0, %v1075
        %1077 = vmatmul.bf16.gmra.mxu0 %v757
        %v1078 = vpop.f32.mrf.mxu0
        %v1079 = vadd.f32 0.0, %v1078
        %v1080 = vpop.f32.mrf.mxu0
        %v1081 = vadd.f32 0.0, %v1080
        %1082 = vmatmul.bf16.gmra.mxu0 %v758
        %v1083 = vpop.f32.mrf.mxu0
        %v1084 = vadd.f32 0.0, %v1083
        %v1085 = vpop.f32.mrf.mxu0
        %v1086 = vadd.f32 0.0, %v1085
        %1087 = vmatmul.bf16.gmra.mxu0 %v759
        %v1088 = vpop.f32.mrf.mxu0
        %v1089 = vadd.f32 0.0, %v1088
        %v1090 = vpop.f32.mrf.mxu0
        %v1091 = vadd.f32 0.0, %v1090
        %1092 = vmatmul.bf16.gmra.mxu0 %v760
        %v1093 = vpop.f32.mrf.mxu0
        %v1094 = vadd.f32 0.0, %v1093
        %v1095 = vpop.f32.mrf.mxu0
        %v1096 = vadd.f32 0.0, %v1095
        %1097 = vmatmul.bf16.gmra.mxu0 %v761
        %v1098 = vpop.f32.mrf.mxu0
        %v1099 = vadd.f32 0.0, %v1098
        %v1100 = vpop.f32.mrf.mxu0
        %v1101 = vadd.f32 0.0, %v1100
        %1102 = vmatmul.bf16.gmra.mxu0 %v762
        %v1103 = vpop.f32.mrf.mxu0
        %v1104 = vadd.f32 0.0, %v1103
        %v1105 = vpop.f32.mrf.mxu0
        %v1106 = vadd.f32 0.0, %v1105
        %1107 = vmatmul.bf16.gmra.mxu0 %v763
        %v1108 = vpop.f32.mrf.mxu0
        %v1109 = vadd.f32 0.0, %v1108
        %v1110 = vpop.f32.mrf.mxu0
        %v1111 = vadd.f32 0.0, %v1110
        %1112 = vmatmul.bf16.gmra.mxu0 %v764
        %v1113 = vpop.f32.mrf.mxu0
        %v1114 = vadd.f32 0.0, %v1113
        %v1115 = vpop.f32.mrf.mxu0
        %v1116 = vadd.f32 0.0, %v1115
        %1117 = vmatmul.bf16.gmra.mxu0 %v765
        %v1118 = vpop.f32.mrf.mxu0
        %v1119 = vadd.f32 0.0, %v1118
        %v1120 = vpop.f32.mrf.mxu0
        %v1121 = vadd.f32 0.0, %v1120
        %1122 = vmatmul.bf16.gmra.mxu0 %v766
        %v1123 = vpop.f32.mrf.mxu0
        %v1124 = vadd.f32 0.0, %v1123
        %v1125 = vpop.f32.mrf.mxu0
        %v1126 = vadd.f32 0.0, %v1125
        %1127 = vdwg.mxu0
        %1128 = vmatpush.bf16.msra.mxu0 %v924
        %1129 = vmatpush.bf16.msra.mxu0 %v920
        %1130 = vmatpush.bf16.msra.mxu0 %v916
        %1131 = vmatpush.bf16.msra.mxu0 %v912
        %1132 = vmatpush.bf16.msra.mxu0 %v908
        %1133 = vmatpush.bf16.msra.mxu0 %v904
        %1134 = vmatpush.bf16.msra.mxu0 %v900
        %1135 = vmatpush.bf16.msra.mxu0 %v896
        %1136 = vmatmul.bf16.gmra.mxu0 %v735
        %v1137 = vpop.f32.mrf.mxu0
        %v1138 = vadd.f32 0.0, %v1137
        %v1139 = vpop.f32.mrf.mxu0
        %v1140 = vadd.f32 0.0, %v1139
        %1141 = vmatmul.bf16.gmra.mxu0 %v736
        %v1142 = vpop.f32.mrf.mxu0
        %v1143 = vadd.f32 0.0, %v1142
        %v1144 = vpop.f32.mrf.mxu0
        %v1145 = vadd.f32 0.0, %v1144
        %1146 = vmatmul.bf16.gmra.mxu0 %v737
        %v1147 = vpop.f32.mrf.mxu0
        %v1148 = vadd.f32 0.0, %v1147
        %v1149 = vpop.f32.mrf.mxu0
        %v1150 = vadd.f32 0.0, %v1149
        %1151 = vmatmul.bf16.gmra.mxu0 %v738
        %v1152 = vpop.f32.mrf.mxu0
        %v1153 = vadd.f32 0.0, %v1152
        %v1154 = vpop.f32.mrf.mxu0
        %v1155 = vadd.f32 0.0, %v1154
        %1156 = vmatmul.bf16.gmra.mxu0 %v739
        %v1157 = vpop.f32.mrf.mxu0
        %v1158 = vadd.f32 0.0, %v1157
        %v1159 = vpop.f32.mrf.mxu0
        %v1160 = vadd.f32 0.0, %v1159
        %1161 = vmatmul.bf16.gmra.mxu0 %v740
        %v1162 = vpop.f32.mrf.mxu0
        %v1163 = vadd.f32 0.0, %v1162
        %v1164 = vpop.f32.mrf.mxu0
        %v1165 = vadd.f32 0.0, %v1164
        %1166 = vmatmul.bf16.gmra.mxu0 %v741
        %v1167 = vpop.f32.mrf.mxu0
        %v1168 = vadd.f32 0.0, %v1167
        %v1169 = vpop.f32.mrf.mxu0
        %v1170 = vadd.f32 0.0, %v1169
        %1171 = vmatmul.bf16.gmra.mxu0 %v742
        %v1172 = vpop.f32.mrf.mxu0
        %v1173 = vadd.f32 0.0, %v1172
        %v1174 = vpop.f32.mrf.mxu0
        %v1175 = vadd.f32 0.0, %v1174
        %1176 = vmatmul.bf16.gmra.mxu0 %v743
        %v1177 = vpop.f32.mrf.mxu0
        %v1178 = vadd.f32 0.0, %v1177
        %v1179 = vpop.f32.mrf.mxu0
        %v1180 = vadd.f32 0.0, %v1179
        %1181 = vmatmul.bf16.gmra.mxu0 %v744
        %v1182 = vpop.f32.mrf.mxu0
        %v1183 = vadd.f32 0.0, %v1182
        %v1184 = vpop.f32.mrf.mxu0
        %v1185 = vadd.f32 0.0, %v1184
        %1186 = vmatmul.bf16.gmra.mxu0 %v745
        %v1187 = vpop.f32.mrf.mxu0
        %v1188 = vadd.f32 0.0, %v1187
        %v1189 = vpop.f32.mrf.mxu0
        %v1190 = vadd.f32 0.0, %v1189
        %1191 = vmatmul.bf16.gmra.mxu0 %v746
        %v1192 = vpop.f32.mrf.mxu0
        %v1193 = vadd.f32 0.0, %v1192
        %v1194 = vpop.f32.mrf.mxu0
        %v1195 = vadd.f32 0.0, %v1194
        %1196 = vmatmul.bf16.gmra.mxu0 %v747
        %v1197 = vpop.f32.mrf.mxu0
        %v1198 = vadd.f32 0.0, %v1197
        %v1199 = vpop.f32.mrf.mxu0
        %v1200 = vadd.f32 0.0, %v1199
        %1201 = vmatmul.bf16.gmra.mxu0 %v748
        %v1202 = vpop.f32.mrf.mxu0
        %v1203 = vadd.f32 0.0, %v1202
        %v1204 = vpop.f32.mrf.mxu0
        %v1205 = vadd.f32 0.0, %v1204
        %1206 = vmatmul.bf16.gmra.mxu0 %v749
        %v1207 = vpop.f32.mrf.mxu0
        %v1208 = vadd.f32 0.0, %v1207
        %v1209 = vpop.f32.mrf.mxu0
        %v1210 = vadd.f32 0.0, %v1209
        %1211 = vmatmul.bf16.gmra.mxu0 %v750
        %v1212 = vpop.f32.mrf.mxu0
        %v1213 = vadd.f32 0.0, %v1212
        %v1214 = vpop.f32.mrf.mxu0
        %v1215 = vadd.f32 0.0, %v1214
        %1216 = vmatmul.bf16.gmra.mxu0 %v751
        %v1217 = vpop.f32.mrf.mxu0
        %v1218 = vadd.f32 0.0, %v1217
        %v1219 = vpop.f32.mrf.mxu0
        %v1220 = vadd.f32 0.0, %v1219
        %1221 = vmatmul.bf16.gmra.mxu0 %v752
        %v1222 = vpop.f32.mrf.mxu0
        %v1223 = vadd.f32 0.0, %v1222
        %v1224 = vpop.f32.mrf.mxu0
        %v1225 = vadd.f32 0.0, %v1224
        %1226 = vmatmul.bf16.gmra.mxu0 %v753
        %v1227 = vpop.f32.mrf.mxu0
        %v1228 = vadd.f32 0.0, %v1227
        %v1229 = vpop.f32.mrf.mxu0
        %v1230 = vadd.f32 0.0, %v1229
        %1231 = vmatmul.bf16.gmra.mxu0 %v754
        %v1232 = vpop.f32.mrf.mxu0
        %v1233 = vadd.f32 0.0, %v1232
        %v1234 = vpop.f32.mrf.mxu0
        %v1235 = vadd.f32 0.0, %v1234
        %1236 = vmatmul.bf16.gmra.mxu0 %v755
        %v1237 = vpop.f32.mrf.mxu0
        %v1238 = vadd.f32 0.0, %v1237
        %v1239 = vpop.f32.mrf.mxu0
        %v1240 = vadd.f32 0.0, %v1239
        %1241 = vmatmul.bf16.gmra.mxu0 %v756
        %v1242 = vpop.f32.mrf.mxu0
        %v1243 = vadd.f32 0.0, %v1242
        %v1244 = vpop.f32.mrf.mxu0
        %v1245 = vadd.f32 0.0, %v1244
        %1246 = vmatmul.bf16.gmra.mxu0 %v757
        %v1247 = vpop.f32.mrf.mxu0
        %v1248 = vadd.f32 0.0, %v1247
        %v1249 = vpop.f32.mrf.mxu0
        %v1250 = vadd.f32 0.0, %v1249
        %1251 = vmatmul.bf16.gmra.mxu0 %v758
        %v1252 = vpop.f32.mrf.mxu0
        %v1253 = vadd.f32 0.0, %v1252
        %v1254 = vpop.f32.mrf.mxu0
        %v1255 = vadd.f32 0.0, %v1254
        %1256 = vmatmul.bf16.gmra.mxu0 %v759
        %v1257 = vpop.f32.mrf.mxu0
        %v1258 = vadd.f32 0.0, %v1257
        %v1259 = vpop.f32.mrf.mxu0
        %v1260 = vadd.f32 0.0, %v1259
        %1261 = vmatmul.bf16.gmra.mxu0 %v760
        %v1262 = vpop.f32.mrf.mxu0
        %v1263 = vadd.f32 0.0, %v1262
        %v1264 = vpop.f32.mrf.mxu0
        %v1265 = vadd.f32 0.0, %v1264
        %1266 = vmatmul.bf16.gmra.mxu0 %v761
        %v1267 = vpop.f32.mrf.mxu0
        %v1268 = vadd.f32 0.0, %v1267
        %v1269 = vpop.f32.mrf.mxu0
        %v1270 = vadd.f32 0.0, %v1269
        %1271 = vmatmul.bf16.gmra.mxu0 %v762
        %v1272 = vpop.f32.mrf.mxu0
        %v1273 = vadd.f32 0.0, %v1272
        %v1274 = vpop.f32.mrf.mxu0
        %v1275 = vadd.f32 0.0, %v1274
        %1276 = vmatmul.bf16.gmra.mxu0 %v763
        %v1277 = vpop.f32.mrf.mxu0
        %v1278 = vadd.f32 0.0, %v1277
        %v1279 = vpop.f32.mrf.mxu0
        %v1280 = vadd.f32 0.0, %v1279
        %1281 = vmatmul.bf16.gmra.mxu0 %v764
        %v1282 = vpop.f32.mrf.mxu0
        %v1283 = vadd.f32 0.0, %v1282
        %v1284 = vpop.f32.mrf.mxu0
        %v1285 = vadd.f32 0.0, %v1284
        %1286 = vmatmul.bf16.gmra.mxu0 %v765
        %v1287 = vpop.f32.mrf.mxu0
        %v1288 = vadd.f32 0.0, %v1287
        %v1289 = vpop.f32.mrf.mxu0
        %v1290 = vadd.f32 0.0, %v1289
        %1291 = vmatmul.bf16.gmra.mxu0 %v766
        %v1292 = vpop.f32.mrf.mxu0
        %v1293 = vadd.f32 0.0, %v1292
        %v1294 = vpop.f32.mrf.mxu0
        %v1295 = vadd.f32 0.0, %v1294
        %1296 = vdwg.mxu0
        %1297 = vmatpush.bf16.msra.mxu0 %v925
        %1298 = vmatpush.bf16.msra.mxu0 %v921
        %1299 = vmatpush.bf16.msra.mxu0 %v917
        %1300 = vmatpush.bf16.msra.mxu0 %v913
        %1301 = vmatpush.bf16.msra.mxu0 %v909
        %1302 = vmatpush.bf16.msra.mxu0 %v905
        %1303 = vmatpush.bf16.msra.mxu0 %v901
        %1304 = vmatpush.bf16.msra.mxu0 %v897
        %1305 = vmatmul.bf16.gmra.mxu0 %v735
        %v1306 = vpop.f32.mrf.mxu0
        %v1307 = vadd.f32 0.0, %v1306
        %v1308 = vpop.f32.mrf.mxu0
        %v1309 = vadd.f32 0.0, %v1308
        %1310 = vmatmul.bf16.gmra.mxu0 %v736
        %v1311 = vpop.f32.mrf.mxu0
        %v1312 = vadd.f32 0.0, %v1311
        %v1313 = vpop.f32.mrf.mxu0
        %v1314 = vadd.f32 0.0, %v1313
        %1315 = vmatmul.bf16.gmra.mxu0 %v737
        %v1316 = vpop.f32.mrf.mxu0
        %v1317 = vadd.f32 0.0, %v1316
        %v1318 = vpop.f32.mrf.mxu0
        %v1319 = vadd.f32 0.0, %v1318
        %1320 = vmatmul.bf16.gmra.mxu0 %v738
        %v1321 = vpop.f32.mrf.mxu0
        %v1322 = vadd.f32 0.0, %v1321
        %v1323 = vpop.f32.mrf.mxu0
        %v1324 = vadd.f32 0.0, %v1323
        %1325 = vmatmul.bf16.gmra.mxu0 %v739
        %v1326 = vpop.f32.mrf.mxu0
        %v1327 = vadd.f32 0.0, %v1326
        %v1328 = vpop.f32.mrf.mxu0
        %v1329 = vadd.f32 0.0, %v1328
        %1330 = vmatmul.bf16.gmra.mxu0 %v740
        %v1331 = vpop.f32.mrf.mxu0
        %v1332 = vadd.f32 0.0, %v1331
        %v1333 = vpop.f32.mrf.mxu0
        %v1334 = vadd.f32 0.0, %v1333
        %1335 = vmatmul.bf16.gmra.mxu0 %v741
        %v1336 = vpop.f32.mrf.mxu0
        %v1337 = vadd.f32 0.0, %v1336
        %v1338 = vpop.f32.mrf.mxu0
        %v1339 = vadd.f32 0.0, %v1338
        %1340 = vmatmul.bf16.gmra.mxu0 %v742
        %v1341 = vpop.f32.mrf.mxu0
        %v1342 = vadd.f32 0.0, %v1341
        %v1343 = vpop.f32.mrf.mxu0
        %v1344 = vadd.f32 0.0, %v1343
        %1345 = vmatmul.bf16.gmra.mxu0 %v743
        %v1346 = vpop.f32.mrf.mxu0
        %v1347 = vadd.f32 0.0, %v1346
        %v1348 = vpop.f32.mrf.mxu0
        %v1349 = vadd.f32 0.0, %v1348
        %1350 = vmatmul.bf16.gmra.mxu0 %v744
        %v1351 = vpop.f32.mrf.mxu0
        %v1352 = vadd.f32 0.0, %v1351
        %v1353 = vpop.f32.mrf.mxu0
        %v1354 = vadd.f32 0.0, %v1353
        %1355 = vmatmul.bf16.gmra.mxu0 %v745
        %v1356 = vpop.f32.mrf.mxu0
        %v1357 = vadd.f32 0.0, %v1356
        %v1358 = vpop.f32.mrf.mxu0
        %v1359 = vadd.f32 0.0, %v1358
        %1360 = vmatmul.bf16.gmra.mxu0 %v746
        %v1361 = vpop.f32.mrf.mxu0
        %v1362 = vadd.f32 0.0, %v1361
        %v1363 = vpop.f32.mrf.mxu0
        %v1364 = vadd.f32 0.0, %v1363
        %1365 = vmatmul.bf16.gmra.mxu0 %v747
        %v1366 = vpop.f32.mrf.mxu0
        %v1367 = vadd.f32 0.0, %v1366
        %v1368 = vpop.f32.mrf.mxu0
        %v1369 = vadd.f32 0.0, %v1368
        %1370 = vmatmul.bf16.gmra.mxu0 %v748
        %v1371 = vpop.f32.mrf.mxu0
        %v1372 = vadd.f32 0.0, %v1371
        %v1373 = vpop.f32.mrf.mxu0
        %v1374 = vadd.f32 0.0, %v1373
        %1375 = vmatmul.bf16.gmra.mxu0 %v749
        %v1376 = vpop.f32.mrf.mxu0
        %v1377 = vadd.f32 0.0, %v1376
        %v1378 = vpop.f32.mrf.mxu0
        %v1379 = vadd.f32 0.0, %v1378
        %1380 = vmatmul.bf16.gmra.mxu0 %v750
        %v1381 = vpop.f32.mrf.mxu0
        %v1382 = vadd.f32 0.0, %v1381
        %v1383 = vpop.f32.mrf.mxu0
        %v1384 = vadd.f32 0.0, %v1383
        %1385 = vmatmul.bf16.gmra.mxu0 %v751
        %v1386 = vpop.f32.mrf.mxu0
        %v1387 = vadd.f32 0.0, %v1386
        %v1388 = vpop.f32.mrf.mxu0
        %v1389 = vadd.f32 0.0, %v1388
        %1390 = vmatmul.bf16.gmra.mxu0 %v752
        %v1391 = vpop.f32.mrf.mxu0
        %v1392 = vadd.f32 0.0, %v1391
        %v1393 = vpop.f32.mrf.mxu0
        %v1394 = vadd.f32 0.0, %v1393
        %1395 = vmatmul.bf16.gmra.mxu0 %v753
        %v1396 = vpop.f32.mrf.mxu0
        %v1397 = vadd.f32 0.0, %v1396
        %v1398 = vpop.f32.mrf.mxu0
        %v1399 = vadd.f32 0.0, %v1398
        %1400 = vmatmul.bf16.gmra.mxu0 %v754
        %v1401 = vpop.f32.mrf.mxu0
        %v1402 = vadd.f32 0.0, %v1401
        %v1403 = vpop.f32.mrf.mxu0
        %v1404 = vadd.f32 0.0, %v1403
        %1405 = vmatmul.bf16.gmra.mxu0 %v755
        %v1406 = vpop.f32.mrf.mxu0
        %v1407 = vadd.f32 0.0, %v1406
        %v1408 = vpop.f32.mrf.mxu0
        %v1409 = vadd.f32 0.0, %v1408
        %1410 = vmatmul.bf16.gmra.mxu0 %v756
        %v1411 = vpop.f32.mrf.mxu0
        %v1412 = vadd.f32 0.0, %v1411
        %v1413 = vpop.f32.mrf.mxu0
        %v1414 = vadd.f32 0.0, %v1413
        %1415 = vmatmul.bf16.gmra.mxu0 %v757
        %v1416 = vpop.f32.mrf.mxu0
        %v1417 = vadd.f32 0.0, %v1416
        %v1418 = vpop.f32.mrf.mxu0
        %v1419 = vadd.f32 0.0, %v1418
        %1420 = vmatmul.bf16.gmra.mxu0 %v758
        %v1421 = vpop.f32.mrf.mxu0
        %v1422 = vadd.f32 0.0, %v1421
        %v1423 = vpop.f32.mrf.mxu0
        %v1424 = vadd.f32 0.0, %v1423
        %1425 = vmatmul.bf16.gmra.mxu0 %v759
        %v1426 = vpop.f32.mrf.mxu0
        %v1427 = vadd.f32 0.0, %v1426
        %v1428 = vpop.f32.mrf.mxu0
        %v1429 = vadd.f32 0.0, %v1428
        %1430 = vmatmul.bf16.gmra.mxu0 %v760
        %v1431 = vpop.f32.mrf.mxu0
        %v1432 = vadd.f32 0.0, %v1431
        %v1433 = vpop.f32.mrf.mxu0
        %v1434 = vadd.f32 0.0, %v1433
        %1435 = vmatmul.bf16.gmra.mxu0 %v761
        %v1436 = vpop.f32.mrf.mxu0
        %v1437 = vadd.f32 0.0, %v1436
        %v1438 = vpop.f32.mrf.mxu0
        %v1439 = vadd.f32 0.0, %v1438
        %1440 = vmatmul.bf16.gmra.mxu0 %v762
        %v1441 = vpop.f32.mrf.mxu0
        %v1442 = vadd.f32 0.0, %v1441
        %v1443 = vpop.f32.mrf.mxu0
        %v1444 = vadd.f32 0.0, %v1443
        %1445 = vmatmul.bf16.gmra.mxu0 %v763
        %v1446 = vpop.f32.mrf.mxu0
        %v1447 = vadd.f32 0.0, %v1446
        %v1448 = vpop.f32.mrf.mxu0
        %v1449 = vadd.f32 0.0, %v1448
        %1450 = vmatmul.bf16.gmra.mxu0 %v764
        %v1451 = vpop.f32.mrf.mxu0
        %v1452 = vadd.f32 0.0, %v1451
        %v1453 = vpop.f32.mrf.mxu0
        %v1454 = vadd.f32 0.0, %v1453
        %1455 = vmatmul.bf16.gmra.mxu0 %v765
        %v1456 = vpop.f32.mrf.mxu0
        %v1457 = vadd.f32 0.0, %v1456
        %v1458 = vpop.f32.mrf.mxu0
        %v1459 = vadd.f32 0.0, %v1458
        %1460 = vmatmul.bf16.gmra.mxu0 %v766
        %v1461 = vpop.f32.mrf.mxu0
        %v1462 = vadd.f32 0.0, %v1461
        %v1463 = vpop.f32.mrf.mxu0
        %v1464 = vadd.f32 0.0, %v1463
        %1465 = vdwg.mxu0
        %1466 = vmatpush.bf16.msra.mxu0 %v926
        %1467 = vmatpush.bf16.msra.mxu0 %v922
        %1468 = vmatpush.bf16.msra.mxu0 %v918
        %1469 = vmatpush.bf16.msra.mxu0 %v914
        %1470 = vmatpush.bf16.msra.mxu0 %v910
        %1471 = vmatpush.bf16.msra.mxu0 %v906
        %1472 = vmatpush.bf16.msra.mxu0 %v902
        %1473 = vmatpush.bf16.msra.mxu0 %v898
        %1474 = vmatmul.bf16.gmra.mxu0 %v735
        %v1475 = vpop.f32.mrf.mxu0
        %v1476 = vadd.f32 0.0, %v1475
        %v1477 = vpop.f32.mrf.mxu0
        %v1478 = vadd.f32 0.0, %v1477
        %1479 = vmatmul.bf16.gmra.mxu0 %v736
        %v1480 = vpop.f32.mrf.mxu0
        %v1481 = vadd.f32 0.0, %v1480
        %v1482 = vpop.f32.mrf.mxu0
        %v1483 = vadd.f32 0.0, %v1482
        %1484 = vmatmul.bf16.gmra.mxu0 %v737
        %v1485 = vpop.f32.mrf.mxu0
        %v1486 = vadd.f32 0.0, %v1485
        %v1487 = vpop.f32.mrf.mxu0
        %v1488 = vadd.f32 0.0, %v1487
        %1489 = vmatmul.bf16.gmra.mxu0 %v738
        %v1490 = vpop.f32.mrf.mxu0
        %v1491 = vadd.f32 0.0, %v1490
        %v1492 = vpop.f32.mrf.mxu0
        %v1493 = vadd.f32 0.0, %v1492
        %1494 = vmatmul.bf16.gmra.mxu0 %v739
        %v1495 = vpop.f32.mrf.mxu0
        %v1496 = vadd.f32 0.0, %v1495
        %v1497 = vpop.f32.mrf.mxu0
        %v1498 = vadd.f32 0.0, %v1497
        %1499 = vmatmul.bf16.gmra.mxu0 %v740
        %v1500 = vpop.f32.mrf.mxu0
        %v1501 = vadd.f32 0.0, %v1500
        %v1502 = vpop.f32.mrf.mxu0
        %v1503 = vadd.f32 0.0, %v1502
        %1504 = vmatmul.bf16.gmra.mxu0 %v741
        %v1505 = vpop.f32.mrf.mxu0
        %v1506 = vadd.f32 0.0, %v1505
        %v1507 = vpop.f32.mrf.mxu0
        %v1508 = vadd.f32 0.0, %v1507
        %1509 = vmatmul.bf16.gmra.mxu0 %v742
        %v1510 = vpop.f32.mrf.mxu0
        %v1511 = vadd.f32 0.0, %v1510
        %v1512 = vpop.f32.mrf.mxu0
        %v1513 = vadd.f32 0.0, %v1512
        %1514 = vmatmul.bf16.gmra.mxu0 %v743
        %v1515 = vpop.f32.mrf.mxu0
        %v1516 = vadd.f32 0.0, %v1515
        %v1517 = vpop.f32.mrf.mxu0
        %v1518 = vadd.f32 0.0, %v1517
        %1519 = vmatmul.bf16.gmra.mxu0 %v744
        %v1520 = vpop.f32.mrf.mxu0
        %v1521 = vadd.f32 0.0, %v1520
        %v1522 = vpop.f32.mrf.mxu0
        %v1523 = vadd.f32 0.0, %v1522
        %1524 = vmatmul.bf16.gmra.mxu0 %v745
        %v1525 = vpop.f32.mrf.mxu0
        %v1526 = vadd.f32 0.0, %v1525
        %v1527 = vpop.f32.mrf.mxu0
        %v1528 = vadd.f32 0.0, %v1527
        %1529 = vmatmul.bf16.gmra.mxu0 %v746
        %v1530 = vpop.f32.mrf.mxu0
        %v1531 = vadd.f32 0.0, %v1530
        %v1532 = vpop.f32.mrf.mxu0
        %v1533 = vadd.f32 0.0, %v1532
        %1534 = vmatmul.bf16.gmra.mxu0 %v747
        %v1535 = vpop.f32.mrf.mxu0
        %v1536 = vadd.f32 0.0, %v1535
        %v1537 = vpop.f32.mrf.mxu0
        %v1538 = vadd.f32 0.0, %v1537
        %1539 = vmatmul.bf16.gmra.mxu0 %v748
        %v1540 = vpop.f32.mrf.mxu0
        %v1541 = vadd.f32 0.0, %v1540
        %v1542 = vpop.f32.mrf.mxu0
        %v1543 = vadd.f32 0.0, %v1542
        %1544 = vmatmul.bf16.gmra.mxu0 %v749
        %v1545 = vpop.f32.mrf.mxu0
        %v1546 = vadd.f32 0.0, %v1545
        %v1547 = vpop.f32.mrf.mxu0
        %v1548 = vadd.f32 0.0, %v1547
        %1549 = vmatmul.bf16.gmra.mxu0 %v750
        %v1550 = vpop.f32.mrf.mxu0
        %v1551 = vadd.f32 0.0, %v1550
        %v1552 = vpop.f32.mrf.mxu0
        %v1553 = vadd.f32 0.0, %v1552
        %1554 = vmatmul.bf16.gmra.mxu0 %v751
        %v1555 = vpop.f32.mrf.mxu0
        %v1556 = vadd.f32 0.0, %v1555
        %v1557 = vpop.f32.mrf.mxu0
        %v1558 = vadd.f32 0.0, %v1557
        %1559 = vmatmul.bf16.gmra.mxu0 %v752
        %v1560 = vpop.f32.mrf.mxu0
        %v1561 = vadd.f32 0.0, %v1560
        %v1562 = vpop.f32.mrf.mxu0
        %v1563 = vadd.f32 0.0, %v1562
        %1564 = vmatmul.bf16.gmra.mxu0 %v753
        %v1565 = vpop.f32.mrf.mxu0
        %v1566 = vadd.f32 0.0, %v1565
        %v1567 = vpop.f32.mrf.mxu0
        %v1568 = vadd.f32 0.0, %v1567
        %1569 = vmatmul.bf16.gmra.mxu0 %v754
        %v1570 = vpop.f32.mrf.mxu0
        %v1571 = vadd.f32 0.0, %v1570
        %v1572 = vpop.f32.mrf.mxu0
        %v1573 = vadd.f32 0.0, %v1572
        %1574 = vmatmul.bf16.gmra.mxu0 %v755
        %v1575 = vpop.f32.mrf.mxu0
        %v1576 = vadd.f32 0.0, %v1575
        %v1577 = vpop.f32.mrf.mxu0
        %v1578 = vadd.f32 0.0, %v1577
        %1579 = vmatmul.bf16.gmra.mxu0 %v756
        %v1580 = vpop.f32.mrf.mxu0
        %v1581 = vadd.f32 0.0, %v1580
        %v1582 = vpop.f32.mrf.mxu0
        %v1583 = vadd.f32 0.0, %v1582
        %1584 = vmatmul.bf16.gmra.mxu0 %v757
        %v1585 = vpop.f32.mrf.mxu0
        %v1586 = vadd.f32 0.0, %v1585
        %v1587 = vpop.f32.mrf.mxu0
        %v1588 = vadd.f32 0.0, %v1587
        %1589 = vmatmul.bf16.gmra.mxu0 %v758
        %v1590 = vpop.f32.mrf.mxu0
        %v1591 = vadd.f32 0.0, %v1590
        %v1592 = vpop.f32.mrf.mxu0
        %v1593 = vadd.f32 0.0, %v1592
        %1594 = vmatmul.bf16.gmra.mxu0 %v759
        %v1595 = vpop.f32.mrf.mxu0
        %v1596 = vadd.f32 0.0, %v1595
        %v1597 = vpop.f32.mrf.mxu0
        %v1598 = vadd.f32 0.0, %v1597
        %1599 = vmatmul.bf16.gmra.mxu0 %v760
        %v1600 = vpop.f32.mrf.mxu0
        %v1601 = vadd.f32 0.0, %v1600
        %v1602 = vpop.f32.mrf.mxu0
        %v1603 = vadd.f32 0.0, %v1602
        %1604 = vmatmul.bf16.gmra.mxu0 %v761
        %v1605 = vpop.f32.mrf.mxu0
        %v1606 = vadd.f32 0.0, %v1605
        %v1607 = vpop.f32.mrf.mxu0
        %v1608 = vadd.f32 0.0, %v1607
        %1609 = vmatmul.bf16.gmra.mxu0 %v762
        %v1610 = vpop.f32.mrf.mxu0
        %v1611 = vadd.f32 0.0, %v1610
        %v1612 = vpop.f32.mrf.mxu0
        %v1613 = vadd.f32 0.0, %v1612
        %1614 = vmatmul.bf16.gmra.mxu0 %v763
        %v1615 = vpop.f32.mrf.mxu0
        %v1616 = vadd.f32 0.0, %v1615
        %v1617 = vpop.f32.mrf.mxu0
        %v1618 = vadd.f32 0.0, %v1617
        %1619 = vmatmul.bf16.gmra.mxu0 %v764
        %v1620 = vpop.f32.mrf.mxu0
        %v1621 = vadd.f32 0.0, %v1620
        %v1622 = vpop.f32.mrf.mxu0
        %v1623 = vadd.f32 0.0, %v1622
        %1624 = vmatmul.bf16.gmra.mxu0 %v765
        %v1625 = vpop.f32.mrf.mxu0
        %v1626 = vadd.f32 0.0, %v1625
        %v1627 = vpop.f32.mrf.mxu0
        %v1628 = vadd.f32 0.0, %v1627
        %1629 = vmatmul.bf16.gmra.mxu0 %v766
        %v1630 = vpop.f32.mrf.mxu0
        %v1631 = vadd.f32 0.0, %v1630
        %v1632 = vpop.f32.mrf.mxu0
        %v1633 = vadd.f32 0.0, %v1632
        %1634 = vdwg.mxu0
        %v1635 = vmax.f32 %v969, 0.0
        %v1636 = vmax.f32 %v1138, 0.0
        %v1637 = vmax.f32 %v1307, 0.0
        %v1638 = vmax.f32 %v1476, 0.0
        %v1639 = vmax.f32 %v971, 0.0
        %v1640 = vmax.f32 %v1140, 0.0
        %v1641 = vmax.f32 %v1309, 0.0
        %v1642 = vmax.f32 %v1478, 0.0
        %v1643 = vmax.f32 %v974, 0.0
        %v1644 = vmax.f32 %v1143, 0.0
        %v1645 = vmax.f32 %v1312, 0.0
        %v1646 = vmax.f32 %v1481, 0.0
        %v1647 = vmax.f32 %v976, 0.0
        %v1648 = vmax.f32 %v1145, 0.0
        %v1649 = vmax.f32 %v1314, 0.0
        %v1650 = vmax.f32 %v1483, 0.0
        %v1651 = vmax.f32 %v979, 0.0
        %v1652 = vmax.f32 %v1148, 0.0
        %v1653 = vmax.f32 %v1317, 0.0
        %v1654 = vmax.f32 %v1486, 0.0
        %v1655 = vmax.f32 %v981, 0.0
        %v1656 = vmax.f32 %v1150, 0.0
        %v1657 = vmax.f32 %v1319, 0.0
        %v1658 = vmax.f32 %v1488, 0.0
        %v1659 = vmax.f32 %v984, 0.0
        %v1660 = vmax.f32 %v1153, 0.0
        %v1661 = vmax.f32 %v1322, 0.0
        %v1662 = vmax.f32 %v1491, 0.0
        %v1663 = vmax.f32 %v986, 0.0
        %v1664 = vmax.f32 %v1155, 0.0
        %v1665 = vmax.f32 %v1324, 0.0
        %v1666 = vmax.f32 %v1493, 0.0
        %v1667 = vmax.f32 %v989, 0.0
        %v1668 = vmax.f32 %v1158, 0.0
        %v1669 = vmax.f32 %v1327, 0.0
        %v1670 = vmax.f32 %v1496, 0.0
        %v1671 = vmax.f32 %v991, 0.0
        %v1672 = vmax.f32 %v1160, 0.0
        %v1673 = vmax.f32 %v1329, 0.0
        %v1674 = vmax.f32 %v1498, 0.0
        %v1675 = vmax.f32 %v994, 0.0
        %v1676 = vmax.f32 %v1163, 0.0
        %v1677 = vmax.f32 %v1332, 0.0
        %v1678 = vmax.f32 %v1501, 0.0
        %v1679 = vmax.f32 %v996, 0.0
        %v1680 = vmax.f32 %v1165, 0.0
        %v1681 = vmax.f32 %v1334, 0.0
        %v1682 = vmax.f32 %v1503, 0.0
        %v1683 = vmax.f32 %v999, 0.0
        %v1684 = vmax.f32 %v1168, 0.0
        %v1685 = vmax.f32 %v1337, 0.0
        %v1686 = vmax.f32 %v1506, 0.0
        %v1687 = vmax.f32 %v1001, 0.0
        %v1688 = vmax.f32 %v1170, 0.0
        %v1689 = vmax.f32 %v1339, 0.0
        %v1690 = vmax.f32 %v1508, 0.0
        %v1691 = vmax.f32 %v1004, 0.0
        %v1692 = vmax.f32 %v1173, 0.0
        %v1693 = vmax.f32 %v1342, 0.0
        %v1694 = vmax.f32 %v1511, 0.0
        %v1695 = vmax.f32 %v1006, 0.0
        %v1696 = vmax.f32 %v1175, 0.0
        %v1697 = vmax.f32 %v1344, 0.0
        %v1698 = vmax.f32 %v1513, 0.0
        %v1699 = vmax.f32 %v1009, 0.0
        %v1700 = vmax.f32 %v1178, 0.0
        %v1701 = vmax.f32 %v1347, 0.0
        %v1702 = vmax.f32 %v1516, 0.0
        %v1703 = vmax.f32 %v1011, 0.0
        %v1704 = vmax.f32 %v1180, 0.0
        %v1705 = vmax.f32 %v1349, 0.0
        %v1706 = vmax.f32 %v1518, 0.0
        %v1707 = vmax.f32 %v1014, 0.0
        %v1708 = vmax.f32 %v1183, 0.0
        %v1709 = vmax.f32 %v1352, 0.0
        %v1710 = vmax.f32 %v1521, 0.0
        %v1711 = vmax.f32 %v1016, 0.0
        %v1712 = vmax.f32 %v1185, 0.0
        %v1713 = vmax.f32 %v1354, 0.0
        %v1714 = vmax.f32 %v1523, 0.0
        %v1715 = vmax.f32 %v1019, 0.0
        %v1716 = vmax.f32 %v1188, 0.0
        %v1717 = vmax.f32 %v1357, 0.0
        %v1718 = vmax.f32 %v1526, 0.0
        %v1719 = vmax.f32 %v1021, 0.0
        %v1720 = vmax.f32 %v1190, 0.0
        %v1721 = vmax.f32 %v1359, 0.0
        %v1722 = vmax.f32 %v1528, 0.0
        %v1723 = vmax.f32 %v1024, 0.0
        %v1724 = vmax.f32 %v1193, 0.0
        %v1725 = vmax.f32 %v1362, 0.0
        %v1726 = vmax.f32 %v1531, 0.0
        %v1727 = vmax.f32 %v1026, 0.0
        %v1728 = vmax.f32 %v1195, 0.0
        %v1729 = vmax.f32 %v1364, 0.0
        %v1730 = vmax.f32 %v1533, 0.0
        %v1731 = vmax.f32 %v1029, 0.0
        %v1732 = vmax.f32 %v1198, 0.0
        %v1733 = vmax.f32 %v1367, 0.0
        %v1734 = vmax.f32 %v1536, 0.0
        %v1735 = vmax.f32 %v1031, 0.0
        %v1736 = vmax.f32 %v1200, 0.0
        %v1737 = vmax.f32 %v1369, 0.0
        %v1738 = vmax.f32 %v1538, 0.0
        %v1739 = vmax.f32 %v1034, 0.0
        %v1740 = vmax.f32 %v1203, 0.0
        %v1741 = vmax.f32 %v1372, 0.0
        %v1742 = vmax.f32 %v1541, 0.0
        %v1743 = vmax.f32 %v1036, 0.0
        %v1744 = vmax.f32 %v1205, 0.0
        %v1745 = vmax.f32 %v1374, 0.0
        %v1746 = vmax.f32 %v1543, 0.0
        %v1747 = vmax.f32 %v1039, 0.0
        %v1748 = vmax.f32 %v1208, 0.0
        %v1749 = vmax.f32 %v1377, 0.0
        %v1750 = vmax.f32 %v1546, 0.0
        %v1751 = vmax.f32 %v1041, 0.0
        %v1752 = vmax.f32 %v1210, 0.0
        %v1753 = vmax.f32 %v1379, 0.0
        %v1754 = vmax.f32 %v1548, 0.0
        %v1755 = vmax.f32 %v1044, 0.0
        %v1756 = vmax.f32 %v1213, 0.0
        %v1757 = vmax.f32 %v1382, 0.0
        %v1758 = vmax.f32 %v1551, 0.0
        %v1759 = vmax.f32 %v1046, 0.0
        %v1760 = vmax.f32 %v1215, 0.0
        %v1761 = vmax.f32 %v1384, 0.0
        %v1762 = vmax.f32 %v1553, 0.0
        %v1763 = vmax.f32 %v1049, 0.0
        %v1764 = vmax.f32 %v1218, 0.0
        %v1765 = vmax.f32 %v1387, 0.0
        %v1766 = vmax.f32 %v1556, 0.0
        %v1767 = vmax.f32 %v1051, 0.0
        %v1768 = vmax.f32 %v1220, 0.0
        %v1769 = vmax.f32 %v1389, 0.0
        %v1770 = vmax.f32 %v1558, 0.0
        %v1771 = vmax.f32 %v1054, 0.0
        %v1772 = vmax.f32 %v1223, 0.0
        %v1773 = vmax.f32 %v1392, 0.0
        %v1774 = vmax.f32 %v1561, 0.0
        %v1775 = vmax.f32 %v1056, 0.0
        %v1776 = vmax.f32 %v1225, 0.0
        %v1777 = vmax.f32 %v1394, 0.0
        %v1778 = vmax.f32 %v1563, 0.0
        %v1779 = vmax.f32 %v1059, 0.0
        %v1780 = vmax.f32 %v1228, 0.0
        %v1781 = vmax.f32 %v1397, 0.0
        %v1782 = vmax.f32 %v1566, 0.0
        %v1783 = vmax.f32 %v1061, 0.0
        %v1784 = vmax.f32 %v1230, 0.0
        %v1785 = vmax.f32 %v1399, 0.0
        %v1786 = vmax.f32 %v1568, 0.0
        %v1787 = vmax.f32 %v1064, 0.0
        %v1788 = vmax.f32 %v1233, 0.0
        %v1789 = vmax.f32 %v1402, 0.0
        %v1790 = vmax.f32 %v1571, 0.0
        %v1791 = vmax.f32 %v1066, 0.0
        %v1792 = vmax.f32 %v1235, 0.0
        %v1793 = vmax.f32 %v1404, 0.0
        %v1794 = vmax.f32 %v1573, 0.0
        %v1795 = vmax.f32 %v1069, 0.0
        %v1796 = vmax.f32 %v1238, 0.0
        %v1797 = vmax.f32 %v1407, 0.0
        %v1798 = vmax.f32 %v1576, 0.0
        %v1799 = vmax.f32 %v1071, 0.0
        %v1800 = vmax.f32 %v1240, 0.0
        %v1801 = vmax.f32 %v1409, 0.0
        %v1802 = vmax.f32 %v1578, 0.0
        %v1803 = vmax.f32 %v1074, 0.0
        %v1804 = vmax.f32 %v1243, 0.0
        %v1805 = vmax.f32 %v1412, 0.0
        %v1806 = vmax.f32 %v1581, 0.0
        %v1807 = vmax.f32 %v1076, 0.0
        %v1808 = vmax.f32 %v1245, 0.0
        %v1809 = vmax.f32 %v1414, 0.0
        %v1810 = vmax.f32 %v1583, 0.0
        %v1811 = vmax.f32 %v1079, 0.0
        %v1812 = vmax.f32 %v1248, 0.0
        %v1813 = vmax.f32 %v1417, 0.0
        %v1814 = vmax.f32 %v1586, 0.0
        %v1815 = vmax.f32 %v1081, 0.0
        %v1816 = vmax.f32 %v1250, 0.0
        %v1817 = vmax.f32 %v1419, 0.0
        %v1818 = vmax.f32 %v1588, 0.0
        %v1819 = vmax.f32 %v1084, 0.0
        %v1820 = vmax.f32 %v1253, 0.0
        %v1821 = vmax.f32 %v1422, 0.0
        %v1822 = vmax.f32 %v1591, 0.0
        %v1823 = vmax.f32 %v1086, 0.0
        %v1824 = vmax.f32 %v1255, 0.0
        %v1825 = vmax.f32 %v1424, 0.0
        %v1826 = vmax.f32 %v1593, 0.0
        %v1827 = vmax.f32 %v1089, 0.0
        %v1828 = vmax.f32 %v1258, 0.0
        %v1829 = vmax.f32 %v1427, 0.0
        %v1830 = vmax.f32 %v1596, 0.0
        %v1831 = vmax.f32 %v1091, 0.0
        %v1832 = vmax.f32 %v1260, 0.0
        %v1833 = vmax.f32 %v1429, 0.0
        %v1834 = vmax.f32 %v1598, 0.0
        %v1835 = vmax.f32 %v1094, 0.0
        %v1836 = vmax.f32 %v1263, 0.0
        %v1837 = vmax.f32 %v1432, 0.0
        %v1838 = vmax.f32 %v1601, 0.0
        %v1839 = vmax.f32 %v1096, 0.0
        %v1840 = vmax.f32 %v1265, 0.0
        %v1841 = vmax.f32 %v1434, 0.0
        %v1842 = vmax.f32 %v1603, 0.0
        %v1843 = vmax.f32 %v1099, 0.0
        %v1844 = vmax.f32 %v1268, 0.0
        %v1845 = vmax.f32 %v1437, 0.0
        %v1846 = vmax.f32 %v1606, 0.0
        %v1847 = vmax.f32 %v1101, 0.0
        %v1848 = vmax.f32 %v1270, 0.0
        %v1849 = vmax.f32 %v1439, 0.0
        %v1850 = vmax.f32 %v1608, 0.0
        %v1851 = vmax.f32 %v1104, 0.0
        %v1852 = vmax.f32 %v1273, 0.0
        %v1853 = vmax.f32 %v1442, 0.0
        %v1854 = vmax.f32 %v1611, 0.0
        %v1855 = vmax.f32 %v1106, 0.0
        %v1856 = vmax.f32 %v1275, 0.0
        %v1857 = vmax.f32 %v1444, 0.0
        %v1858 = vmax.f32 %v1613, 0.0
        %v1859 = vmax.f32 %v1109, 0.0
        %v1860 = vmax.f32 %v1278, 0.0
        %v1861 = vmax.f32 %v1447, 0.0
        %v1862 = vmax.f32 %v1616, 0.0
        %v1863 = vmax.f32 %v1111, 0.0
        %v1864 = vmax.f32 %v1280, 0.0
        %v1865 = vmax.f32 %v1449, 0.0
        %v1866 = vmax.f32 %v1618, 0.0
        %v1867 = vmax.f32 %v1114, 0.0
        %v1868 = vmax.f32 %v1283, 0.0
        %v1869 = vmax.f32 %v1452, 0.0
        %v1870 = vmax.f32 %v1621, 0.0
        %v1871 = vmax.f32 %v1116, 0.0
        %v1872 = vmax.f32 %v1285, 0.0
        %v1873 = vmax.f32 %v1454, 0.0
        %v1874 = vmax.f32 %v1623, 0.0
        %v1875 = vmax.f32 %v1119, 0.0
        %v1876 = vmax.f32 %v1288, 0.0
        %v1877 = vmax.f32 %v1457, 0.0
        %v1878 = vmax.f32 %v1626, 0.0
        %v1879 = vmax.f32 %v1121, 0.0
        %v1880 = vmax.f32 %v1290, 0.0
        %v1881 = vmax.f32 %v1459, 0.0
        %v1882 = vmax.f32 %v1628, 0.0
        %v1883 = vmax.f32 %v1124, 0.0
        %v1884 = vmax.f32 %v1293, 0.0
        %v1885 = vmax.f32 %v1462, 0.0
        %v1886 = vmax.f32 %v1631, 0.0
        %v1887 = vmax.f32 %v1126, 0.0
        %v1888 = vmax.f32 %v1295, 0.0
        %v1889 = vmax.f32 %v1464, 0.0
        %v1890 = vmax.f32 %v1633, 0.0
        %v1891 = vld [vmem:[%s3] sm:$0xff]
        %v1892 = vld [vmem:[%s3 + $0x8] sm:$0xff]
        %v1893 = vld [vmem:[%s3 + $0x10] sm:$0xff]
        %v1894 = vld [vmem:[%s3 + $0x18] sm:$0xff]
        %1895 = vmatpush.msra.mxu0 %v1695
        %1896 = vmatpush.msra.mxu0 %v1691
        %1897 = vmatpush.msra.mxu0 %v1687
        %1898 = vmatpush.msra.mxu0 %v1683
        %1899 = vmatpush.msra.mxu0 %v1679
        %1900 = vmatpush.msra.mxu0 %v1675
        %1901 = vmatpush.msra.mxu0 %v1671
        %1902 = vmatpush.msra.mxu0 %v1667
        %1903 = vmatpush.msra.mxu0 %v1663
        %1904 = vmatpush.msra.mxu0 %v1659
        %1905 = vmatpush.msra.mxu0 %v1655
        %1906 = vmatpush.msra.mxu0 %v1651
        %1907 = vmatpush.msra.mxu0 %v1647
        %1908 = vmatpush.msra.mxu0 %v1643
        %1909 = vmatpush.msra.mxu0 %v1639
        %1910 = vmatpush.msra.mxu0 %v1635
        %1911 = vmatmul.f32.gmra.mxu0 %v1891
        %v1912 = vpop.f32.mrf.mxu0
        %v1913 = vadd.f32 0.0, %v1912
        %1914 = vdwg.mxu0
        %1915 = vmatpush.msra.mxu0 %v1759
        %1916 = vmatpush.msra.mxu0 %v1755
        %1917 = vmatpush.msra.mxu0 %v1751
        %1918 = vmatpush.msra.mxu0 %v1747
        %1919 = vmatpush.msra.mxu0 %v1743
        %1920 = vmatpush.msra.mxu0 %v1739
        %1921 = vmatpush.msra.mxu0 %v1735
        %1922 = vmatpush.msra.mxu0 %v1731
        %1923 = vmatpush.msra.mxu0 %v1727
        %1924 = vmatpush.msra.mxu0 %v1723
        %1925 = vmatpush.msra.mxu0 %v1719
        %1926 = vmatpush.msra.mxu0 %v1715
        %1927 = vmatpush.msra.mxu0 %v1711
        %1928 = vmatpush.msra.mxu0 %v1707
        %1929 = vmatpush.msra.mxu0 %v1703
        %1930 = vmatpush.msra.mxu0 %v1699
        %1931 = vmatmul.f32.gmra.mxu0 %v1892
        %v1932 = vpop.f32.mrf.mxu0
        %v1933 = vadd.f32 %v1913, %v1932
        %1934 = vdwg.mxu0
        %1935 = vmatpush.msra.mxu0 %v1823
        %1936 = vmatpush.msra.mxu0 %v1819
        %1937 = vmatpush.msra.mxu0 %v1815
        %1938 = vmatpush.msra.mxu0 %v1811
        %1939 = vmatpush.msra.mxu0 %v1807
        %1940 = vmatpush.msra.mxu0 %v1803
        %1941 = vmatpush.msra.mxu0 %v1799
        %1942 = vmatpush.msra.mxu0 %v1795
        %1943 = vmatpush.msra.mxu0 %v1791
        %1944 = vmatpush.msra.mxu0 %v1787
        %1945 = vmatpush.msra.mxu0 %v1783
        %1946 = vmatpush.msra.mxu0 %v1779
        %1947 = vmatpush.msra.mxu0 %v1775
        %1948 = vmatpush.msra.mxu0 %v1771
        %1949 = vmatpush.msra.mxu0 %v1767
        %1950 = vmatpush.msra.mxu0 %v1763
        %1951 = vmatmul.f32.gmra.mxu0 %v1893
        %v1952 = vpop.f32.mrf.mxu0
        %v1953 = vadd.f32 %v1933, %v1952
        %1954 = vdwg.mxu0
        %1955 = vmatpush.msra.mxu0 %v1887
        %1956 = vmatpush.msra.mxu0 %v1883
        %1957 = vmatpush.msra.mxu0 %v1879
        %1958 = vmatpush.msra.mxu0 %v1875
        %1959 = vmatpush.msra.mxu0 %v1871
        %1960 = vmatpush.msra.mxu0 %v1867
        %1961 = vmatpush.msra.mxu0 %v1863
        %1962 = vmatpush.msra.mxu0 %v1859
        %1963 = vmatpush.msra.mxu0 %v1855
        %1964 = vmatpush.msra.mxu0 %v1851
        %1965 = vmatpush.msra.mxu0 %v1847
        %1966 = vmatpush.msra.mxu0 %v1843
        %1967 = vmatpush.msra.mxu0 %v1839
        %1968 = vmatpush.msra.mxu0 %v1835
        %1969 = vmatpush.msra.mxu0 %v1831
        %1970 = vmatpush.msra.mxu0 %v1827
        %1971 = vmatmul.f32.gmra.mxu0 %v1894
        %v1972 = vpop.f32.mrf.mxu0
        %v1973 = vadd.f32 %v1953, %v1972
        %1974 = vdwg.mxu0
        %1975 = vmatpush.msra.mxu0 %v1696
        %1976 = vmatpush.msra.mxu0 %v1692
        %1977 = vmatpush.msra.mxu0 %v1688
        %1978 = vmatpush.msra.mxu0 %v1684
        %1979 = vmatpush.msra.mxu0 %v1680
        %1980 = vmatpush.msra.mxu0 %v1676
        %1981 = vmatpush.msra.mxu0 %v1672
        %1982 = vmatpush.msra.mxu0 %v1668
        %1983 = vmatpush.msra.mxu0 %v1664
        %1984 = vmatpush.msra.mxu0 %v1660
        %1985 = vmatpush.msra.mxu0 %v1656
        %1986 = vmatpush.msra.mxu0 %v1652
        %1987 = vmatpush.msra.mxu0 %v1648
        %1988 = vmatpush.msra.mxu0 %v1644
        %1989 = vmatpush.msra.mxu0 %v1640
        %1990 = vmatpush.msra.mxu0 %v1636
        %1991 = vmatmul.f32.gmra.mxu0 %v1891
        %v1992 = vpop.f32.mrf.mxu0
        %v1993 = vadd.f32 0.0, %v1992
        %1994 = vdwg.mxu0
        %1995 = vmatpush.msra.mxu0 %v1760
        %1996 = vmatpush.msra.mxu0 %v1756
        %1997 = vmatpush.msra.mxu0 %v1752
        %1998 = vmatpush.msra.mxu0 %v1748
        %1999 = vmatpush.msra.mxu0 %v1744
        %2000 = vmatpush.msra.mxu0 %v1740
        %2001 = vmatpush.msra.mxu0 %v1736
        %2002 = vmatpush.msra.mxu0 %v1732
        %2003 = vmatpush.msra.mxu0 %v1728
        %2004 = vmatpush.msra.mxu0 %v1724
        %2005 = vmatpush.msra.mxu0 %v1720
        %2006 = vmatpush.msra.mxu0 %v1716
        %2007 = vmatpush.msra.mxu0 %v1712
        %2008 = vmatpush.msra.mxu0 %v1708
        %2009 = vmatpush.msra.mxu0 %v1704
        %2010 = vmatpush.msra.mxu0 %v1700
        %2011 = vmatmul.f32.gmra.mxu0 %v1892
        %v2012 = vpop.f32.mrf.mxu0
        %v2013 = vadd.f32 %v1993, %v2012
        %2014 = vdwg.mxu0
        %2015 = vmatpush.msra.mxu0 %v1824
        %2016 = vmatpush.msra.mxu0 %v1820
        %2017 = vmatpush.msra.mxu0 %v1816
        %2018 = vmatpush.msra.mxu0 %v1812
        %2019 = vmatpush.msra.mxu0 %v1808
        %2020 = vmatpush.msra.mxu0 %v1804
        %2021 = vmatpush.msra.mxu0 %v1800
        %2022 = vmatpush.msra.mxu0 %v1796
        %2023 = vmatpush.msra.mxu0 %v1792
        %2024 = vmatpush.msra.mxu0 %v1788
        %2025 = vmatpush.msra.mxu0 %v1784
        %2026 = vmatpush.msra.mxu0 %v1780
        %2027 = vmatpush.msra.mxu0 %v1776
        %2028 = vmatpush.msra.mxu0 %v1772
        %2029 = vmatpush.msra.mxu0 %v1768
        %2030 = vmatpush.msra.mxu0 %v1764
        %2031 = vmatmul.f32.gmra.mxu0 %v1893
        %v2032 = vpop.f32.mrf.mxu0
        %v2033 = vadd.f32 %v2013, %v2032
        %2034 = vdwg.mxu0
        %2035 = vmatpush.msra.mxu0 %v1888
        %2036 = vmatpush.msra.mxu0 %v1884
        %2037 = vmatpush.msra.mxu0 %v1880
        %2038 = vmatpush.msra.mxu0 %v1876
        %2039 = vmatpush.msra.mxu0 %v1872
        %2040 = vmatpush.msra.mxu0 %v1868
        %2041 = vmatpush.msra.mxu0 %v1864
        %2042 = vmatpush.msra.mxu0 %v1860
        %2043 = vmatpush.msra.mxu0 %v1856
        %2044 = vmatpush.msra.mxu0 %v1852
        %2045 = vmatpush.msra.mxu0 %v1848
        %2046 = vmatpush.msra.mxu0 %v1844
        %2047 = vmatpush.msra.mxu0 %v1840
        %2048 = vmatpush.msra.mxu0 %v1836
        %2049 = vmatpush.msra.mxu0 %v1832
        %2050 = vmatpush.msra.mxu0 %v1828
        %2051 = vmatmul.f32.gmra.mxu0 %v1894
        %v2052 = vpop.f32.mrf.mxu0
        %v2053 = vadd.f32 %v2033, %v2052
        %2054 = vdwg.mxu0
        %2055 = vmatpush.msra.mxu0 %v1697
        %2056 = vmatpush.msra.mxu0 %v1693
        %2057 = vmatpush.msra.mxu0 %v1689
        %2058 = vmatpush.msra.mxu0 %v1685
        %2059 = vmatpush.msra.mxu0 %v1681
        %2060 = vmatpush.msra.mxu0 %v1677
        %2061 = vmatpush.msra.mxu0 %v1673
        %2062 = vmatpush.msra.mxu0 %v1669
        %2063 = vmatpush.msra.mxu0 %v1665
        %2064 = vmatpush.msra.mxu0 %v1661
        %2065 = vmatpush.msra.mxu0 %v1657
        %2066 = vmatpush.msra.mxu0 %v1653
        %2067 = vmatpush.msra.mxu0 %v1649
        %2068 = vmatpush.msra.mxu0 %v1645
        %2069 = vmatpush.msra.mxu0 %v1641
        %2070 = vmatpush.msra.mxu0 %v1637
        %2071 = vmatmul.f32.gmra.mxu0 %v1891
        %v2072 = vpop.f32.mrf.mxu0
        %v2073 = vadd.f32 0.0, %v2072
        %2074 = vdwg.mxu0
        %2075 = vmatpush.msra.mxu0 %v1761
        %2076 = vmatpush.msra.mxu0 %v1757
        %2077 = vmatpush.msra.mxu0 %v1753
        %2078 = vmatpush.msra.mxu0 %v1749
        %2079 = vmatpush.msra.mxu0 %v1745
        %2080 = vmatpush.msra.mxu0 %v1741
        %2081 = vmatpush.msra.mxu0 %v1737
        %2082 = vmatpush.msra.mxu0 %v1733
        %2083 = vmatpush.msra.mxu0 %v1729
        %2084 = vmatpush.msra.mxu0 %v1725
        %2085 = vmatpush.msra.mxu0 %v1721
        %2086 = vmatpush.msra.mxu0 %v1717
        %2087 = vmatpush.msra.mxu0 %v1713
        %2088 = vmatpush.msra.mxu0 %v1709
        %2089 = vmatpush.msra.mxu0 %v1705
        %2090 = vmatpush.msra.mxu0 %v1701
        %2091 = vmatmul.f32.gmra.mxu0 %v1892
        %v2092 = vpop.f32.mrf.mxu0
        %v2093 = vadd.f32 %v2073, %v2092
        %2094 = vdwg.mxu0
        %2095 = vmatpush.msra.mxu0 %v1825
        %2096 = vmatpush.msra.mxu0 %v1821
        %2097 = vmatpush.msra.mxu0 %v1817
        %2098 = vmatpush.msra.mxu0 %v1813
        %2099 = vmatpush.msra.mxu0 %v1809
        %2100 = vmatpush.msra.mxu0 %v1805
        %2101 = vmatpush.msra.mxu0 %v1801
        %2102 = vmatpush.msra.mxu0 %v1797
        %2103 = vmatpush.msra.mxu0 %v1793
        %2104 = vmatpush.msra.mxu0 %v1789
        %2105 = vmatpush.msra.mxu0 %v1785
        %2106 = vmatpush.msra.mxu0 %v1781
        %2107 = vmatpush.msra.mxu0 %v1777
        %2108 = vmatpush.msra.mxu0 %v1773
        %2109 = vmatpush.msra.mxu0 %v1769
        %2110 = vmatpush.msra.mxu0 %v1765
        %2111 = vmatmul.f32.gmra.mxu0 %v1893
        %v2112 = vpop.f32.mrf.mxu0
        %v2113 = vadd.f32 %v2093, %v2112
        %2114 = vdwg.mxu0
        %2115 = vmatpush.msra.mxu0 %v1889
        %2116 = vmatpush.msra.mxu0 %v1885
        %2117 = vmatpush.msra.mxu0 %v1881
        %2118 = vmatpush.msra.mxu0 %v1877
        %2119 = vmatpush.msra.mxu0 %v1873
        %2120 = vmatpush.msra.mxu0 %v1869
        %2121 = vmatpush.msra.mxu0 %v1865
        %2122 = vmatpush.msra.mxu0 %v1861
        %2123 = vmatpush.msra.mxu0 %v1857
        %2124 = vmatpush.msra.mxu0 %v1853
        %2125 = vmatpush.msra.mxu0 %v1849
        %2126 = vmatpush.msra.mxu0 %v1845
        %2127 = vmatpush.msra.mxu0 %v1841
        %2128 = vmatpush.msra.mxu0 %v1837
        %2129 = vmatpush.msra.mxu0 %v1833
        %2130 = vmatpush.msra.mxu0 %v1829
        %2131 = vmatmul.f32.gmra.mxu0 %v1894
        %v2132 = vpop.f32.mrf.mxu0
        %v2133 = vadd.f32 %v2113, %v2132
        %2134 = vdwg.mxu0
        %2135 = vmatpush.msra.mxu0 %v1698
        %2136 = vmatpush.msra.mxu0 %v1694
        %2137 = vmatpush.msra.mxu0 %v1690
        %2138 = vmatpush.msra.mxu0 %v1686
        %2139 = vmatpush.msra.mxu0 %v1682
        %2140 = vmatpush.msra.mxu0 %v1678
        %2141 = vmatpush.msra.mxu0 %v1674
        %2142 = vmatpush.msra.mxu0 %v1670
        %2143 = vmatpush.msra.mxu0 %v1666
        %2144 = vmatpush.msra.mxu0 %v1662
        %2145 = vmatpush.msra.mxu0 %v1658
        %2146 = vmatpush.msra.mxu0 %v1654
        %2147 = vmatpush.msra.mxu0 %v1650
        %2148 = vmatpush.msra.mxu0 %v1646
        %2149 = vmatpush.msra.mxu0 %v1642
        %2150 = vmatpush.msra.mxu0 %v1638
        %2151 = vmatmul.f32.gmra.mxu0 %v1891
        %v2152 = vpop.f32.mrf.mxu0
        %v2153 = vadd.f32 0.0, %v2152
        %2154 = vdwg.mxu0
        %2155 = vmatpush.msra.mxu0 %v1762
        %2156 = vmatpush.msra.mxu0 %v1758
        %2157 = vmatpush.msra.mxu0 %v1754
        %2158 = vmatpush.msra.mxu0 %v1750
        %2159 = vmatpush.msra.mxu0 %v1746
        %2160 = vmatpush.msra.mxu0 %v1742
        %2161 = vmatpush.msra.mxu0 %v1738
        %2162 = vmatpush.msra.mxu0 %v1734
        %2163 = vmatpush.msra.mxu0 %v1730
        %2164 = vmatpush.msra.mxu0 %v1726
        %2165 = vmatpush.msra.mxu0 %v1722
        %2166 = vmatpush.msra.mxu0 %v1718
        %2167 = vmatpush.msra.mxu0 %v1714
        %2168 = vmatpush.msra.mxu0 %v1710
        %2169 = vmatpush.msra.mxu0 %v1706
        %2170 = vmatpush.msra.mxu0 %v1702
        %2171 = vmatmul.f32.gmra.mxu0 %v1892
        %v2172 = vpop.f32.mrf.mxu0
        %v2173 = vadd.f32 %v2153, %v2172
        %2174 = vdwg.mxu0
        %2175 = vmatpush.msra.mxu0 %v1826
        %2176 = vmatpush.msra.mxu0 %v1822
        %2177 = vmatpush.msra.mxu0 %v1818
        %2178 = vmatpush.msra.mxu0 %v1814
        %2179 = vmatpush.msra.mxu0 %v1810
        %2180 = vmatpush.msra.mxu0 %v1806
        %2181 = vmatpush.msra.mxu0 %v1802
        %2182 = vmatpush.msra.mxu0 %v1798
        %2183 = vmatpush.msra.mxu0 %v1794
        %2184 = vmatpush.msra.mxu0 %v1790
        %2185 = vmatpush.msra.mxu0 %v1786
        %2186 = vmatpush.msra.mxu0 %v1782
        %2187 = vmatpush.msra.mxu0 %v1778
        %2188 = vmatpush.msra.mxu0 %v1774
        %2189 = vmatpush.msra.mxu0 %v1770
        %2190 = vmatpush.msra.mxu0 %v1766
        %2191 = vmatmul.f32.gmra.mxu0 %v1893
        %v2192 = vpop.f32.mrf.mxu0
        %v2193 = vadd.f32 %v2173, %v2192
        %2194 = vdwg.mxu0
        %2195 = vmatpush.msra.mxu0 %v1890
        %2196 = vmatpush.msra.mxu0 %v1886
        %2197 = vmatpush.msra.mxu0 %v1882
        %2198 = vmatpush.msra.mxu0 %v1878
        %2199 = vmatpush.msra.mxu0 %v1874
        %2200 = vmatpush.msra.mxu0 %v1870
        %2201 = vmatpush.msra.mxu0 %v1866
        %2202 = vmatpush.msra.mxu0 %v1862
        %2203 = vmatpush.msra.mxu0 %v1858
        %2204 = vmatpush.msra.mxu0 %v1854
        %2205 = vmatpush.msra.mxu0 %v1850
        %2206 = vmatpush.msra.mxu0 %v1846
        %2207 = vmatpush.msra.mxu0 %v1842
        %2208 = vmatpush.msra.mxu0 %v1838
        %2209 = vmatpush.msra.mxu0 %v1834
        %2210 = vmatpush.msra.mxu0 %v1830
        %2211 = vmatmul.f32.gmra.mxu0 %v1894
        %v2212 = vpop.f32.mrf.mxu0
        %v2213 = vadd.f32 %v2193, %v2212
        %2214 = vdwg.mxu0
        %v2215 = vld [vmem:[#allocation2] sm:$0xff]
        %v2216 = vpack.c.bf16 %v1973, %v1973
        %v2217 = vpack.c.bf16 %v2053, %v2053
        %v2218 = vpack.c.bf16 %v2133, %v2133
        %v2219 = vpack.c.bf16 %v2213, %v2213
        %v2220 = vld [vmem:[%s502] sm:$0xf]
        %v2221 = vld [vmem:[%s502 + $0x4] sm:$0xf]
        %v2222 = vld [vmem:[%s502 + $0x8] sm:$0xf]
        %v2223 = vld [vmem:[%s502 + $0xc] sm:$0xf]
        %v2224 = vld [vmem:[%s502 + $0x10] sm:$0xf]
        %v2225 = vld [vmem:[%s502 + $0x14] sm:$0xf]
        %v2226 = vld [vmem:[%s502 + $0x18] sm:$0xf]
        %v2227 = vld [vmem:[%s502 + $0x1c] sm:$0xf]
        %v2228 = vld [vmem:[%s502 + $0x20] sm:$0xf]
        %v2229 = vld [vmem:[%s502 + $0x24] sm:$0xf]
        %v2230 = vld [vmem:[%s502 + $0x28] sm:$0xf]
        %v2231 = vld [vmem:[%s502 + $0x2c] sm:$0xf]
        %v2232 = vld [vmem:[%s502 + $0x30] sm:$0xf]
        %v2233 = vld [vmem:[%s502 + $0x34] sm:$0xf]
        %v2234 = vld [vmem:[%s502 + $0x38] sm:$0xf]
        %v2235 = vld [vmem:[%s502 + $0x3c] sm:$0xf]
        %v2236 = vld [vmem:[%s502 + $0x40] sm:$0xf]
        %v2237 = vld [vmem:[%s502 + $0x44] sm:$0xf]
        %v2238 = vld [vmem:[%s502 + $0x48] sm:$0xf]
        %v2239 = vld [vmem:[%s502 + $0x4c] sm:$0xf]
        %v2240 = vld [vmem:[%s502 + $0x50] sm:$0xf]
        %v2241 = vld [vmem:[%s502 + $0x54] sm:$0xf]
        %v2242 = vld [vmem:[%s502 + $0x58] sm:$0xf]
        %v2243 = vld [vmem:[%s502 + $0x5c] sm:$0xf]
        %v2244 = vld [vmem:[%s502 + $0x60] sm:$0xf]
        %v2245 = vld [vmem:[%s502 + $0x64] sm:$0xf]
        %v2246 = vld [vmem:[%s502 + $0x68] sm:$0xf]
        %v2247 = vld [vmem:[%s502 + $0x6c] sm:$0xf]
        %v2248 = vld [vmem:[%s502 + $0x70] sm:$0xf]
        %v2249 = vld [vmem:[%s502 + $0x74] sm:$0xf]
        %v2250 = vld [vmem:[%s502 + $0x78] sm:$0xf]
        %v2251 = vld [vmem:[%s502 + $0x7c] sm:$0xf]
        %v2252 = vld [vmem:[%s502 + $0x80] sm:$0xf]
        %v2253 = vld [vmem:[%s502 + $0x84] sm:$0xf]
        %v2254 = vld [vmem:[%s502 + $0x88] sm:$0xf]
        %v2255 = vld [vmem:[%s502 + $0x8c] sm:$0xf]
        %v2256 = vld [vmem:[%s502 + $0x90] sm:$0xf]
        %v2257 = vld [vmem:[%s502 + $0x94] sm:$0xf]
        %v2258 = vld [vmem:[%s502 + $0x98] sm:$0xf]
        %v2259 = vld [vmem:[%s502 + $0x9c] sm:$0xf]
        %v2260 = vld [vmem:[%s502 + $0xa0] sm:$0xf]
        %v2261 = vld [vmem:[%s502 + $0xa4] sm:$0xf]
        %v2262 = vld [vmem:[%s502 + $0xa8] sm:$0xf]
        %v2263 = vld [vmem:[%s502 + $0xac] sm:$0xf]
        %v2264 = vld [vmem:[%s502 + $0xb0] sm:$0xf]
        %v2265 = vld [vmem:[%s502 + $0xb4] sm:$0xf]
        %v2266 = vld [vmem:[%s502 + $0xb8] sm:$0xf]
        %v2267 = vld [vmem:[%s502 + $0xbc] sm:$0xf]
        %v2268 = vld [vmem:[%s502 + $0xc0] sm:$0xf]
        %v2269 = vld [vmem:[%s502 + $0xc4] sm:$0xf]
        %v2270 = vld [vmem:[%s502 + $0xc8] sm:$0xf]
        %v2271 = vld [vmem:[%s502 + $0xcc] sm:$0xf]
        %v2272 = vld [vmem:[%s502 + $0xd0] sm:$0xf]
        %v2273 = vld [vmem:[%s502 + $0xd4] sm:$0xf]
        %v2274 = vld [vmem:[%s502 + $0xd8] sm:$0xf]
        %v2275 = vld [vmem:[%s502 + $0xdc] sm:$0xf]
        %v2276 = vld [vmem:[%s502 + $0xe0] sm:$0xf]
        %v2277 = vld [vmem:[%s502 + $0xe4] sm:$0xf]
        %v2278 = vld [vmem:[%s502 + $0xe8] sm:$0xf]
        %v2279 = vld [vmem:[%s502 + $0xec] sm:$0xf]
        %v2280 = vld [vmem:[%s502 + $0xf0] sm:$0xf]
        %v2281 = vld [vmem:[%s502 + $0xf4] sm:$0xf]
        %v2282 = vld [vmem:[%s502 + $0xf8] sm:$0xf]
        %v2283 = vld [vmem:[%s502 + $0xfc] sm:$0xf]
        %v2348 = vunpack.c.l.b16 %v2220
        %v2349 = vunpack.c.l.b16 %v2221
        %v2350 = vunpack.c.l.b16 %v2222
        %v2351 = vunpack.c.l.b16 %v2223
        %v2352 = vunpack.c.l.b16 %v2224
        %v2353 = vunpack.c.l.b16 %v2225
        %v2354 = vunpack.c.l.b16 %v2226
        %v2355 = vunpack.c.l.b16 %v2227
        %v2356 = vunpack.c.l.b16 %v2228
        %v2357 = vunpack.c.l.b16 %v2229
        %v2358 = vunpack.c.l.b16 %v2230
        %v2359 = vunpack.c.l.b16 %v2231
        %v2360 = vunpack.c.l.b16 %v2232
        %v2361 = vunpack.c.l.b16 %v2233
        %v2362 = vunpack.c.l.b16 %v2234
        %v2363 = vunpack.c.l.b16 %v2235
        %v2364 = vunpack.c.l.b16 %v2236
        %v2365 = vunpack.c.l.b16 %v2237
        %v2366 = vunpack.c.l.b16 %v2238
        %v2367 = vunpack.c.l.b16 %v2239
        %v2368 = vunpack.c.l.b16 %v2240
        %v2369 = vunpack.c.l.b16 %v2241
        %v2370 = vunpack.c.l.b16 %v2242
        %v2371 = vunpack.c.l.b16 %v2243
        %v2372 = vunpack.c.l.b16 %v2244
        %v2373 = vunpack.c.l.b16 %v2245
        %v2374 = vunpack.c.l.b16 %v2246
        %v2375 = vunpack.c.l.b16 %v2247
        %v2376 = vunpack.c.l.b16 %v2248
        %v2377 = vunpack.c.l.b16 %v2249
        %v2378 = vunpack.c.l.b16 %v2250
        %v2379 = vunpack.c.l.b16 %v2251
        %v2380 = vunpack.c.l.b16 %v2252
        %v2381 = vunpack.c.l.b16 %v2253
        %v2382 = vunpack.c.l.b16 %v2254
        %v2383 = vunpack.c.l.b16 %v2255
        %v2384 = vunpack.c.l.b16 %v2256
        %v2385 = vunpack.c.l.b16 %v2257
        %v2386 = vunpack.c.l.b16 %v2258
        %v2387 = vunpack.c.l.b16 %v2259
        %v2388 = vunpack.c.l.b16 %v2260
        %v2389 = vunpack.c.l.b16 %v2261
        %v2390 = vunpack.c.l.b16 %v2262
        %v2391 = vunpack.c.l.b16 %v2263
        %v2392 = vunpack.c.l.b16 %v2264
        %v2393 = vunpack.c.l.b16 %v2265
        %v2394 = vunpack.c.l.b16 %v2266
        %v2395 = vunpack.c.l.b16 %v2267
        %v2396 = vunpack.c.l.b16 %v2268
        %v2397 = vunpack.c.l.b16 %v2269
        %v2398 = vunpack.c.l.b16 %v2270
        %v2399 = vunpack.c.l.b16 %v2271
        %v2400 = vunpack.c.l.b16 %v2272
        %v2401 = vunpack.c.l.b16 %v2273
        %v2402 = vunpack.c.l.b16 %v2274
        %v2403 = vunpack.c.l.b16 %v2275
        %v2404 = vunpack.c.l.b16 %v2276
        %v2405 = vunpack.c.l.b16 %v2277
        %v2406 = vunpack.c.l.b16 %v2278
        %v2407 = vunpack.c.l.b16 %v2279
        %v2408 = vunpack.c.l.b16 %v2280
        %v2409 = vunpack.c.l.b16 %v2281
        %v2410 = vunpack.c.l.b16 %v2282
        %v2411 = vunpack.c.l.b16 %v2283
        %v2412 = vpack.c.b16 %v2349, %v2348
        %v2413 = vpack.c.b16 %v2351, %v2350
        %v2414 = vpack.c.b16 %v2353, %v2352
        %v2415 = vpack.c.b16 %v2355, %v2354
        %v2416 = vpack.c.b16 %v2357, %v2356
        %v2417 = vpack.c.b16 %v2359, %v2358
        %v2418 = vpack.c.b16 %v2361, %v2360
        %v2419 = vpack.c.b16 %v2363, %v2362
        %v2420 = vpack.c.b16 %v2365, %v2364
        %v2421 = vpack.c.b16 %v2367, %v2366
        %v2422 = vpack.c.b16 %v2369, %v2368
        %v2423 = vpack.c.b16 %v2371, %v2370
        %v2424 = vpack.c.b16 %v2373, %v2372
        %v2425 = vpack.c.b16 %v2375, %v2374
        %v2426 = vpack.c.b16 %v2377, %v2376
        %v2427 = vpack.c.b16 %v2379, %v2378
        %v2428 = vpack.c.b16 %v2381, %v2380
        %v2429 = vpack.c.b16 %v2383, %v2382
        %v2430 = vpack.c.b16 %v2385, %v2384
        %v2431 = vpack.c.b16 %v2387, %v2386
        %v2432 = vpack.c.b16 %v2389, %v2388
        %v2433 = vpack.c.b16 %v2391, %v2390
        %v2434 = vpack.c.b16 %v2393, %v2392
        %v2435 = vpack.c.b16 %v2395, %v2394
        %v2436 = vpack.c.b16 %v2397, %v2396
        %v2437 = vpack.c.b16 %v2399, %v2398
        %v2438 = vpack.c.b16 %v2401, %v2400
        %v2439 = vpack.c.b16 %v2403, %v2402
        %v2440 = vpack.c.b16 %v2405, %v2404
        %v2441 = vpack.c.b16 %v2407, %v2406
        %v2442 = vpack.c.b16 %v2409, %v2408
        %v2443 = vpack.c.b16 %v2411, %v2410
        %2476 = vmatpush.bf16.msra.mxu0 %v2419
        %2477 = vmatpush.bf16.msra.mxu0 %v2418
        %2478 = vmatpush.bf16.msra.mxu0 %v2417
        %2479 = vmatpush.bf16.msra.mxu0 %v2416
        %2480 = vmatpush.bf16.msra.mxu0 %v2415
        %2481 = vmatpush.bf16.msra.mxu0 %v2414
        %2482 = vmatpush.bf16.msra.mxu0 %v2413
        %2483 = vmatpush.bf16.msra.mxu0 %v2412
        %2484 = vmatmul.bf16.gmra.mxu0 %v2216
        %v2485 = vpop.f32.mrf.mxu0
        %v2486 = vadd.f32 0.0, %v2485
        %v2487 = vpop.f32.mrf.mxu0
        %2488 = vdwg.mxu0
        %2489 = vmatpush.bf16.msra.mxu0 %v2427
        %2490 = vmatpush.bf16.msra.mxu0 %v2426
        %2491 = vmatpush.bf16.msra.mxu0 %v2425
        %2492 = vmatpush.bf16.msra.mxu0 %v2424
        %2493 = vmatpush.bf16.msra.mxu0 %v2423
        %2494 = vmatpush.bf16.msra.mxu0 %v2422
        %2495 = vmatpush.bf16.msra.mxu0 %v2421
        %2496 = vmatpush.bf16.msra.mxu0 %v2420
        %2497 = vmatmul.bf16.gmra.mxu0 %v2217
        %v2498 = vpop.f32.mrf.mxu0
        %v2499 = vadd.f32 %v2486, %v2498
        %v2500 = vpop.f32.mrf.mxu0
        %2501 = vdwg.mxu0
        %2502 = vmatpush.bf16.msra.mxu0 %v2435
        %2503 = vmatpush.bf16.msra.mxu0 %v2434
        %2504 = vmatpush.bf16.msra.mxu0 %v2433
        %2505 = vmatpush.bf16.msra.mxu0 %v2432
        %2506 = vmatpush.bf16.msra.mxu0 %v2431
        %2507 = vmatpush.bf16.msra.mxu0 %v2430
        %2508 = vmatpush.bf16.msra.mxu0 %v2429
        %2509 = vmatpush.bf16.msra.mxu0 %v2428
        %2510 = vmatmul.bf16.gmra.mxu0 %v2218
        %v2511 = vpop.f32.mrf.mxu0
        %v2512 = vadd.f32 %v2499, %v2511
        %v2513 = vpop.f32.mrf.mxu0
        %2514 = vdwg.mxu0
        %2515 = vmatpush.bf16.msra.mxu0 %v2443
        %2516 = vmatpush.bf16.msra.mxu0 %v2442
        %2517 = vmatpush.bf16.msra.mxu0 %v2441
        %2518 = vmatpush.bf16.msra.mxu0 %v2440
        %2519 = vmatpush.bf16.msra.mxu0 %v2439
        %2520 = vmatpush.bf16.msra.mxu0 %v2438
        %2521 = vmatpush.bf16.msra.mxu0 %v2437
        %2522 = vmatpush.bf16.msra.mxu0 %v2436
        %2523 = vmatmul.bf16.gmra.mxu0 %v2219
        %v2524 = vpop.f32.mrf.mxu0
        %v2525 = vadd.f32 %v2512, %v2524
        %v2526 = vpop.f32.mrf.mxu0
        %2527 = vdwg.mxu0
        %v2528 = vadd.f32 %v2215, %v2525
        %vm2529 = vcmask 261120
        %2530 = vst.msk [vmem:[#allocation2] sm:$0xff] %vm2529, %v2528
        %p2531 = scmp.eq.s32.totalorder %s23, 3
        // Predicated region
        $region96: #{encoder_decoder_forward.1} parent=86 // pred_check
          %p2532 = pneg %p2531
        $region97: #{encoder_decoder_forward.1} parent=86 // pred_check_branch
          %2534 = sbr.rel (%p2532) target = $region99
        $region98: #{encoder_decoder_forward.1} parent=86 // pred_region
          %v2535 = vld [vmem:[%s6] sm:$0xff]
          %v2536 = vld [vmem:[%s6 + $0x8] sm:$0xff]
          %v2537 = vld [vmem:[%s6 + $0x10] sm:$0xff]
          %v2538 = vld [vmem:[%s6 + $0x18] sm:$0xff]
          %v2539 = vld [vmem:[%s6 + $0x20] sm:$0xff]
          %v2540 = vld [vmem:[%s6 + $0x28] sm:$0xff]
          %v2541 = vld [vmem:[%s6 + $0x30] sm:$0xff]
          %v2542 = vld [vmem:[%s6 + $0x38] sm:$0xff]
          %v2543 = vld [vmem:[%s6 + $0x40] sm:$0xff]
          %v2544 = vld [vmem:[%s6 + $0x48] sm:$0xff]
          %v2545 = vld [vmem:[%s6 + $0x50] sm:$0xff]
          %v2546 = vld [vmem:[%s6 + $0x58] sm:$0xff]
          %v2547 = vld [vmem:[%s6 + $0x60] sm:$0xff]
          %v2548 = vld [vmem:[%s6 + $0x68] sm:$0xff]
          %v2549 = vld [vmem:[%s6 + $0x70] sm:$0xff]
          %v2550 = vld [vmem:[%s6 + $0x78] sm:$0xff]
          %v2551 = vld [vmem:[%s6 + $0x80] sm:$0xff]
          %v2552 = vld [vmem:[%s6 + $0x88] sm:$0xff]
          %v2553 = vld [vmem:[%s6 + $0x90] sm:$0xff]
          %v2554 = vld [vmem:[%s6 + $0x98] sm:$0xff]
          %v2555 = vld [vmem:[%s6 + $0xa0] sm:$0xff]
          %v2556 = vld [vmem:[%s6 + $0xa8] sm:$0xff]
          %v2557 = vld [vmem:[%s6 + $0xb0] sm:$0xff]
          %v2558 = vld [vmem:[%s6 + $0xb8] sm:$0xff]
          %v2559 = vld [vmem:[%s6 + $0xc0] sm:$0xff]
          %v2560 = vld [vmem:[%s6 + $0xc8] sm:$0xff]
          %v2561 = vld [vmem:[%s6 + $0xd0] sm:$0xff]
          %v2562 = vld [vmem:[%s6 + $0xd8] sm:$0xff]
          %v2563 = vld [vmem:[%s6 + $0xe0] sm:$0xff]
          %v2564 = vld [vmem:[%s6 + $0xe8] sm:$0xff]
          %v2565 = vld [vmem:[%s6 + $0xf0] sm:$0xff]
          %v2566 = vld [vmem:[%s6 + $0xf8] sm:$0xff]
          %v2567 = vld [vmem:[%s6 + $0x100] sm:$0xff]
          %v2568 = vld [vmem:[%s6 + $0x108] sm:$0xff]
          %v2569 = vld [vmem:[%s6 + $0x110] sm:$0xff]
          %v2570 = vld [vmem:[%s6 + $0x118] sm:$0xff]
          %v2571 = vld [vmem:[%s6 + $0x120] sm:$0xff]
          %v2572 = vld [vmem:[%s6 + $0x128] sm:$0xff]
          %v2573 = vld [vmem:[%s6 + $0x130] sm:$0xff]
          %v2574 = vld [vmem:[%s6 + $0x138] sm:$0xff]
          %v2575 = vld [vmem:[%s6 + $0x140] sm:$0xff]
          %v2576 = vld [vmem:[%s6 + $0x148] sm:$0xff]
          %v2577 = vld [vmem:[%s6 + $0x150] sm:$0xff]
          %v2578 = vld [vmem:[%s6 + $0x158] sm:$0xff]
          %v2579 = vld [vmem:[%s6 + $0x160] sm:$0xff]
          %v2580 = vld [vmem:[%s6 + $0x168] sm:$0xff]
          %v2581 = vld [vmem:[%s6 + $0x170] sm:$0xff]
          %v2582 = vld [vmem:[%s6 + $0x178] sm:$0xff]
          %v2583 = vld [vmem:[%s6 + $0x180] sm:$0xff]
          %v2584 = vld [vmem:[%s6 + $0x188] sm:$0xff]
          %v2585 = vld [vmem:[%s6 + $0x190] sm:$0xff]
          %v2586 = vld [vmem:[%s6 + $0x198] sm:$0xff]
          %v2587 = vld [vmem:[%s6 + $0x1a0] sm:$0xff]
          %v2588 = vld [vmem:[%s6 + $0x1a8] sm:$0xff]
          %v2589 = vld [vmem:[%s6 + $0x1b0] sm:$0xff]
          %v2590 = vld [vmem:[%s6 + $0x1b8] sm:$0xff]
          %v2591 = vld [vmem:[%s6 + $0x1c0] sm:$0xff]
          %v2592 = vld [vmem:[%s6 + $0x1c8] sm:$0xff]
          %v2593 = vld [vmem:[%s6 + $0x1d0] sm:$0xff]
          %v2594 = vld [vmem:[%s6 + $0x1d8] sm:$0xff]
          %v2595 = vld [vmem:[%s6 + $0x1e0] sm:$0xff]
          %v2596 = vld [vmem:[%s6 + $0x1e8] sm:$0xff]
          %v2597 = vld [vmem:[%s6 + $0x1f0] sm:$0xff]
          %v2598 = vld [vmem:[%s6 + $0x1f8] sm:$0xff]
          %v2599 = vld [vmem:[%s7] sm:$0xf]
          %v2600 = vld [vmem:[%s8] sm:$0xff]
          %v2601 = vld [vmem:[%s8 + $0x8] sm:$0xff]
          %v2602 = vld [vmem:[%s8 + $0x10] sm:$0xff]
          %v2603 = vld [vmem:[%s8 + $0x18] sm:$0xff]
          %v2604 = vld [vmem:[%s8 + $0x20] sm:$0xff]
          %v2605 = vld [vmem:[%s8 + $0x28] sm:$0xff]
          %v2606 = vld [vmem:[%s8 + $0x30] sm:$0xff]
          %v2607 = vld [vmem:[%s8 + $0x38] sm:$0xff]
          %v2608 = vld [vmem:[%s8 + $0x40] sm:$0xff]
          %v2609 = vld [vmem:[%s8 + $0x48] sm:$0xff]
          %v2610 = vld [vmem:[%s8 + $0x50] sm:$0xff]
          %v2611 = vld [vmem:[%s8 + $0x58] sm:$0xff]
          %v2612 = vld [vmem:[%s8 + $0x60] sm:$0xff]
          %v2613 = vld [vmem:[%s8 + $0x68] sm:$0xff]
          %v2614 = vld [vmem:[%s8 + $0x70] sm:$0xff]
          %v2615 = vld [vmem:[%s8 + $0x78] sm:$0xff]
          %v2616 = vld [vmem:[%s8 + $0x80] sm:$0xff]
          %v2617 = vld [vmem:[%s8 + $0x88] sm:$0xff]
          %v2618 = vld [vmem:[%s8 + $0x90] sm:$0xff]
          %v2619 = vld [vmem:[%s8 + $0x98] sm:$0xff]
          %v2620 = vld [vmem:[%s8 + $0xa0] sm:$0xff]
          %v2621 = vld [vmem:[%s8 + $0xa8] sm:$0xff]
          %v2622 = vld [vmem:[%s8 + $0xb0] sm:$0xff]
          %v2623 = vld [vmem:[%s8 + $0xb8] sm:$0xff]
          %v2624 = vld [vmem:[%s8 + $0xc0] sm:$0xff]
          %v2625 = vld [vmem:[%s8 + $0xc8] sm:$0xff]
          %v2626 = vld [vmem:[%s8 + $0xd0] sm:$0xff]
          %v2627 = vld [vmem:[%s8 + $0xd8] sm:$0xff]
          %v2628 = vld [vmem:[%s8 + $0xe0] sm:$0xff]
          %v2629 = vld [vmem:[%s8 + $0xe8] sm:$0xff]
          %v2630 = vld [vmem:[%s8 + $0xf0] sm:$0xff]
          %v2631 = vld [vmem:[%s8 + $0xf8] sm:$0xff]
          %v2632 = vld [vmem:[%s8 + $0x100] sm:$0xff]
          %v2633 = vld [vmem:[%s8 + $0x108] sm:$0xff]
          %v2634 = vld [vmem:[%s8 + $0x110] sm:$0xff]
          %v2635 = vld [vmem:[%s8 + $0x118] sm:$0xff]
          %v2636 = vld [vmem:[%s8 + $0x120] sm:$0xff]
          %v2637 = vld [vmem:[%s8 + $0x128] sm:$0xff]
          %v2638 = vld [vmem:[%s8 + $0x130] sm:$0xff]
          %v2639 = vld [vmem:[%s8 + $0x138] sm:$0xff]
          %v2640 = vld [vmem:[%s8 + $0x140] sm:$0xff]
          %v2641 = vld [vmem:[%s8 + $0x148] sm:$0xff]
          %v2642 = vld [vmem:[%s8 + $0x150] sm:$0xff]
          %v2643 = vld [vmem:[%s8 + $0x158] sm:$0xff]
          %v2644 = vld [vmem:[%s8 + $0x160] sm:$0xff]
          %v2645 = vld [vmem:[%s8 + $0x168] sm:$0xff]
          %v2646 = vld [vmem:[%s8 + $0x170] sm:$0xff]
          %v2647 = vld [vmem:[%s8 + $0x178] sm:$0xff]
          %v2648 = vld [vmem:[%s8 + $0x180] sm:$0xff]
          %v2649 = vld [vmem:[%s8 + $0x188] sm:$0xff]
          %v2650 = vld [vmem:[%s8 + $0x190] sm:$0xff]
          %v2651 = vld [vmem:[%s8 + $0x198] sm:$0xff]
          %v2652 = vld [vmem:[%s8 + $0x1a0] sm:$0xff]
          %v2653 = vld [vmem:[%s8 + $0x1a8] sm:$0xff]
          %v2654 = vld [vmem:[%s8 + $0x1b0] sm:$0xff]
          %v2655 = vld [vmem:[%s8 + $0x1b8] sm:$0xff]
          %v2656 = vld [vmem:[%s8 + $0x1c0] sm:$0xff]
          %v2657 = vld [vmem:[%s8 + $0x1c8] sm:$0xff]
          %v2658 = vld [vmem:[%s8 + $0x1d0] sm:$0xff]
          %v2659 = vld [vmem:[%s8 + $0x1d8] sm:$0xff]
          %v2660 = vld [vmem:[%s8 + $0x1e0] sm:$0xff]
          %v2661 = vld [vmem:[%s8 + $0x1e8] sm:$0xff]
          %v2662 = vld [vmem:[%s8 + $0x1f0] sm:$0xff]
          %v2663 = vld [vmem:[%s8 + $0x1f8] sm:$0xff]
          %v2664 = vld [vmem:[%s9] sm:$0xf]
          %v2665 = vld [vmem:[#allocation2] sm:$0xff]
          %v2666 = vld [vmem:[%s5] sm:$0x1]
          %v2668 = vperm.slane %v2666, 0
          %v2670 = vadd.f32 %v2665, %v2668
          %v2671 = vsel %vm2529, %v2670, 0.0
          %v2672 = vpack.c.bf16 %v2671, %v2671
          %v2674 = vperm.slane %v2599, 0
          %v2675 = vperm.slane %v2599, 1
          %v2676 = vperm.slane %v2599, 2
          %v2677 = vperm.slane %v2599, 3
          %v2746 = vunpack.c.l.b16 %v2535
          %v2747 = vunpack.c.h.b16 %v2535
          %v2748 = vunpack.c.l.b16 %v2536
          %v2749 = vunpack.c.h.b16 %v2536
          %v2750 = vunpack.c.l.b16 %v2537
          %v2751 = vunpack.c.h.b16 %v2537
          %v2752 = vunpack.c.l.b16 %v2538
          %v2753 = vunpack.c.h.b16 %v2538
          %v2754 = vunpack.c.l.b16 %v2539
          %v2755 = vunpack.c.h.b16 %v2539
          %v2756 = vunpack.c.l.b16 %v2540
          %v2757 = vunpack.c.h.b16 %v2540
          %v2758 = vunpack.c.l.b16 %v2541
          %v2759 = vunpack.c.h.b16 %v2541
          %v2760 = vunpack.c.l.b16 %v2542
          %v2761 = vunpack.c.h.b16 %v2542
          %v2762 = vunpack.c.l.b16 %v2543
          %v2763 = vunpack.c.h.b16 %v2543
          %v2764 = vunpack.c.l.b16 %v2544
          %v2765 = vunpack.c.h.b16 %v2544
          %v2766 = vunpack.c.l.b16 %v2545
          %v2767 = vunpack.c.h.b16 %v2545
          %v2768 = vunpack.c.l.b16 %v2546
          %v2769 = vunpack.c.h.b16 %v2546
          %v2770 = vunpack.c.l.b16 %v2547
          %v2771 = vunpack.c.h.b16 %v2547
          %v2772 = vunpack.c.l.b16 %v2548
          %v2773 = vunpack.c.h.b16 %v2548
          %v2774 = vunpack.c.l.b16 %v2549
          %v2775 = vunpack.c.h.b16 %v2549
          %v2776 = vunpack.c.l.b16 %v2550
          %v2777 = vunpack.c.h.b16 %v2550
          %v2778 = vunpack.c.l.b16 %v2551
          %v2779 = vunpack.c.h.b16 %v2551
          %v2780 = vunpack.c.l.b16 %v2552
          %v2781 = vunpack.c.h.b16 %v2552
          %v2782 = vunpack.c.l.b16 %v2553
          %v2783 = vunpack.c.h.b16 %v2553
          %v2784 = vunpack.c.l.b16 %v2554
          %v2785 = vunpack.c.h.b16 %v2554
          %v2786 = vunpack.c.l.b16 %v2555
          %v2787 = vunpack.c.h.b16 %v2555
          %v2788 = vunpack.c.l.b16 %v2556
          %v2789 = vunpack.c.h.b16 %v2556
          %v2790 = vunpack.c.l.b16 %v2557
          %v2791 = vunpack.c.h.b16 %v2557
          %v2792 = vunpack.c.l.b16 %v2558
          %v2793 = vunpack.c.h.b16 %v2558
          %v2794 = vunpack.c.l.b16 %v2559
          %v2795 = vunpack.c.h.b16 %v2559
          %v2796 = vunpack.c.l.b16 %v2560
          %v2797 = vunpack.c.h.b16 %v2560
          %v2798 = vunpack.c.l.b16 %v2561
          %v2799 = vunpack.c.h.b16 %v2561
          %v2800 = vunpack.c.l.b16 %v2562
          %v2801 = vunpack.c.h.b16 %v2562
          %v2802 = vunpack.c.l.b16 %v2563
          %v2803 = vunpack.c.h.b16 %v2563
          %v2804 = vunpack.c.l.b16 %v2564
          %v2805 = vunpack.c.h.b16 %v2564
          %v2806 = vunpack.c.l.b16 %v2565
          %v2807 = vunpack.c.h.b16 %v2565
          %v2808 = vunpack.c.l.b16 %v2566
          %v2809 = vunpack.c.h.b16 %v2566
          %v2810 = vunpack.c.l.b16 %v2567
          %v2811 = vunpack.c.h.b16 %v2567
          %v2812 = vunpack.c.l.b16 %v2568
          %v2813 = vunpack.c.h.b16 %v2568
          %v2814 = vunpack.c.l.b16 %v2569
          %v2815 = vunpack.c.h.b16 %v2569
          %v2816 = vunpack.c.l.b16 %v2570
          %v2817 = vunpack.c.h.b16 %v2570
          %v2818 = vunpack.c.l.b16 %v2571
          %v2819 = vunpack.c.h.b16 %v2571
          %v2820 = vunpack.c.l.b16 %v2572
          %v2821 = vunpack.c.h.b16 %v2572
          %v2822 = vunpack.c.l.b16 %v2573
          %v2823 = vunpack.c.h.b16 %v2573
          %v2824 = vunpack.c.l.b16 %v2574
          %v2825 = vunpack.c.h.b16 %v2574
          %v2826 = vunpack.c.l.b16 %v2575
          %v2827 = vunpack.c.h.b16 %v2575
          %v2828 = vunpack.c.l.b16 %v2576
          %v2829 = vunpack.c.h.b16 %v2576
          %v2830 = vunpack.c.l.b16 %v2577
          %v2831 = vunpack.c.h.b16 %v2577
          %v2832 = vunpack.c.l.b16 %v2578
          %v2833 = vunpack.c.h.b16 %v2578
          %v2834 = vunpack.c.l.b16 %v2579
          %v2835 = vunpack.c.h.b16 %v2579
          %v2836 = vunpack.c.l.b16 %v2580
          %v2837 = vunpack.c.h.b16 %v2580
          %v2838 = vunpack.c.l.b16 %v2581
          %v2839 = vunpack.c.h.b16 %v2581
          %v2840 = vunpack.c.l.b16 %v2582
          %v2841 = vunpack.c.h.b16 %v2582
          %v2842 = vunpack.c.l.b16 %v2583
          %v2843 = vunpack.c.h.b16 %v2583
          %v2844 = vunpack.c.l.b16 %v2584
          %v2845 = vunpack.c.h.b16 %v2584
          %v2846 = vunpack.c.l.b16 %v2585
          %v2847 = vunpack.c.h.b16 %v2585
          %v2848 = vunpack.c.l.b16 %v2586
          %v2849 = vunpack.c.h.b16 %v2586
          %v2850 = vunpack.c.l.b16 %v2587
          %v2851 = vunpack.c.h.b16 %v2587
          %v2852 = vunpack.c.l.b16 %v2588
          %v2853 = vunpack.c.h.b16 %v2588
          %v2854 = vunpack.c.l.b16 %v2589
          %v2855 = vunpack.c.h.b16 %v2589
          %v2856 = vunpack.c.l.b16 %v2590
          %v2857 = vunpack.c.h.b16 %v2590
          %v2858 = vunpack.c.l.b16 %v2591
          %v2859 = vunpack.c.h.b16 %v2591
          %v2860 = vunpack.c.l.b16 %v2592
          %v2861 = vunpack.c.h.b16 %v2592
          %v2862 = vunpack.c.l.b16 %v2593
          %v2863 = vunpack.c.h.b16 %v2593
          %v2864 = vunpack.c.l.b16 %v2594
          %v2865 = vunpack.c.h.b16 %v2594
          %v2866 = vunpack.c.l.b16 %v2595
          %v2867 = vunpack.c.h.b16 %v2595
          %v2868 = vunpack.c.l.b16 %v2596
          %v2869 = vunpack.c.h.b16 %v2596
          %v2870 = vunpack.c.l.b16 %v2597
          %v2871 = vunpack.c.h.b16 %v2597
          %v2872 = vunpack.c.l.b16 %v2598
          %v2873 = vunpack.c.h.b16 %v2598
          %v2874 = vpack.c.b16 %v2750, %v2746
          %v2875 = vpack.c.b16 %v2751, %v2747
          %v2876 = vpack.c.b16 %v2752, %v2748
          %v2877 = vpack.c.b16 %v2753, %v2749
          %v2878 = vpack.c.b16 %v2758, %v2754
          %v2879 = vpack.c.b16 %v2759, %v2755
          %v2880 = vpack.c.b16 %v2760, %v2756
          %v2881 = vpack.c.b16 %v2761, %v2757
          %v2882 = vpack.c.b16 %v2766, %v2762
          %v2883 = vpack.c.b16 %v2767, %v2763
          %v2884 = vpack.c.b16 %v2768, %v2764
          %v2885 = vpack.c.b16 %v2769, %v2765
          %v2886 = vpack.c.b16 %v2774, %v2770
          %v2887 = vpack.c.b16 %v2775, %v2771
          %v2888 = vpack.c.b16 %v2776, %v2772
          %v2889 = vpack.c.b16 %v2777, %v2773
          %v2890 = vpack.c.b16 %v2782, %v2778
          %v2891 = vpack.c.b16 %v2783, %v2779
          %v2892 = vpack.c.b16 %v2784, %v2780
          %v2893 = vpack.c.b16 %v2785, %v2781
          %v2894 = vpack.c.b16 %v2790, %v2786
          %v2895 = vpack.c.b16 %v2791, %v2787
          %v2896 = vpack.c.b16 %v2792, %v2788
          %v2897 = vpack.c.b16 %v2793, %v2789
          %v2898 = vpack.c.b16 %v2798, %v2794
          %v2899 = vpack.c.b16 %v2799, %v2795
          %v2900 = vpack.c.b16 %v2800, %v2796
          %v2901 = vpack.c.b16 %v2801, %v2797
          %v2902 = vpack.c.b16 %v2806, %v2802
          %v2903 = vpack.c.b16 %v2807, %v2803
          %v2904 = vpack.c.b16 %v2808, %v2804
          %v2905 = vpack.c.b16 %v2809, %v2805
          %v2906 = vpack.c.b16 %v2814, %v2810
          %v2907 = vpack.c.b16 %v2815, %v2811
          %v2908 = vpack.c.b16 %v2816, %v2812
          %v2909 = vpack.c.b16 %v2817, %v2813
          %v2910 = vpack.c.b16 %v2822, %v2818
          %v2911 = vpack.c.b16 %v2823, %v2819
          %v2912 = vpack.c.b16 %v2824, %v2820
          %v2913 = vpack.c.b16 %v2825, %v2821
          %v2914 = vpack.c.b16 %v2830, %v2826
          %v2915 = vpack.c.b16 %v2831, %v2827
          %v2916 = vpack.c.b16 %v2832, %v2828
          %v2917 = vpack.c.b16 %v2833, %v2829
          %v2918 = vpack.c.b16 %v2838, %v2834
          %v2919 = vpack.c.b16 %v2839, %v2835
          %v2920 = vpack.c.b16 %v2840, %v2836
          %v2921 = vpack.c.b16 %v2841, %v2837
          %v2922 = vpack.c.b16 %v2846, %v2842
          %v2923 = vpack.c.b16 %v2847, %v2843
          %v2924 = vpack.c.b16 %v2848, %v2844
          %v2925 = vpack.c.b16 %v2849, %v2845
          %v2926 = vpack.c.b16 %v2854, %v2850
          %v2927 = vpack.c.b16 %v2855, %v2851
          %v2928 = vpack.c.b16 %v2856, %v2852
          %v2929 = vpack.c.b16 %v2857, %v2853
          %v2930 = vpack.c.b16 %v2862, %v2858
          %v2931 = vpack.c.b16 %v2863, %v2859
          %v2932 = vpack.c.b16 %v2864, %v2860
          %v2933 = vpack.c.b16 %v2865, %v2861
          %v2934 = vpack.c.b16 %v2870, %v2866
          %v2935 = vpack.c.b16 %v2871, %v2867
          %v2936 = vpack.c.b16 %v2872, %v2868
          %v2937 = vpack.c.b16 %v2873, %v2869
          %3002 = vmatpush.bf16.msra.mxu0 %v2902
          %3003 = vmatpush.bf16.msra.mxu0 %v2898
          %3004 = vmatpush.bf16.msra.mxu0 %v2894
          %3005 = vmatpush.bf16.msra.mxu0 %v2890
          %3006 = vmatpush.bf16.msra.mxu0 %v2886
          %3007 = vmatpush.bf16.msra.mxu0 %v2882
          %3008 = vmatpush.bf16.msra.mxu0 %v2878
          %3009 = vmatpush.bf16.msra.mxu0 %v2874
          %3010 = vmatmul.bf16.gmra.mxu0 %v2672
          %v3011 = vpop.f32.mrf.mxu0
          %v3012 = vadd.f32 %v2674, %v3011
          %v3013 = vpop.f32.mrf.mxu0
          %3014 = vdwg.mxu0
          %3015 = vmatpush.bf16.msra.mxu0 %v2934
          %3016 = vmatpush.bf16.msra.mxu0 %v2930
          %3017 = vmatpush.bf16.msra.mxu0 %v2926
          %3018 = vmatpush.bf16.msra.mxu0 %v2922
          %3019 = vmatpush.bf16.msra.mxu0 %v2918
          %3020 = vmatpush.bf16.msra.mxu0 %v2914
          %3021 = vmatpush.bf16.msra.mxu0 %v2910
          %3022 = vmatpush.bf16.msra.mxu0 %v2906
          %3023 = vmatmul.bf16.gmra.mxu0 0
          %v3024 = vpop.f32.mrf.mxu0
          %v3025 = vadd.f32 %v3012, %v3024
          %v3026 = vpop.f32.mrf.mxu0
          %3027 = vdwg.mxu0
          %3028 = vmatpush.bf16.msra.mxu0 %v2903
          %3029 = vmatpush.bf16.msra.mxu0 %v2899
          %3030 = vmatpush.bf16.msra.mxu0 %v2895
          %3031 = vmatpush.bf16.msra.mxu0 %v2891
          %3032 = vmatpush.bf16.msra.mxu0 %v2887
          %3033 = vmatpush.bf16.msra.mxu0 %v2883
          %3034 = vmatpush.bf16.msra.mxu0 %v2879
          %3035 = vmatpush.bf16.msra.mxu0 %v2875
          %3036 = vmatmul.bf16.gmra.mxu0 %v2672
          %v3037 = vpop.f32.mrf.mxu0
          %v3038 = vadd.f32 %v2675, %v3037
          %v3039 = vpop.f32.mrf.mxu0
          %3040 = vdwg.mxu0
          %3041 = vmatpush.bf16.msra.mxu0 %v2935
          %3042 = vmatpush.bf16.msra.mxu0 %v2931
          %3043 = vmatpush.bf16.msra.mxu0 %v2927
          %3044 = vmatpush.bf16.msra.mxu0 %v2923
          %3045 = vmatpush.bf16.msra.mxu0 %v2919
          %3046 = vmatpush.bf16.msra.mxu0 %v2915
          %3047 = vmatpush.bf16.msra.mxu0 %v2911
          %3048 = vmatpush.bf16.msra.mxu0 %v2907
          %3049 = vmatmul.bf16.gmra.mxu0 0
          %v3050 = vpop.f32.mrf.mxu0
          %v3051 = vadd.f32 %v3038, %v3050
          %v3052 = vpop.f32.mrf.mxu0
          %3053 = vdwg.mxu0
          %3054 = vmatpush.bf16.msra.mxu0 %v2904
          %3055 = vmatpush.bf16.msra.mxu0 %v2900
          %3056 = vmatpush.bf16.msra.mxu0 %v2896
          %3057 = vmatpush.bf16.msra.mxu0 %v2892
          %3058 = vmatpush.bf16.msra.mxu0 %v2888
          %3059 = vmatpush.bf16.msra.mxu0 %v2884
          %3060 = vmatpush.bf16.msra.mxu0 %v2880
          %3061 = vmatpush.bf16.msra.mxu0 %v2876
          %3062 = vmatmul.bf16.gmra.mxu0 %v2672
          %v3063 = vpop.f32.mrf.mxu0
          %v3064 = vadd.f32 %v2676, %v3063
          %v3065 = vpop.f32.mrf.mxu0
          %3066 = vdwg.mxu0
          %3067 = vmatpush.bf16.msra.mxu0 %v2936
          %3068 = vmatpush.bf16.msra.mxu0 %v2932
          %3069 = vmatpush.bf16.msra.mxu0 %v2928
          %3070 = vmatpush.bf16.msra.mxu0 %v2924
          %3071 = vmatpush.bf16.msra.mxu0 %v2920
          %3072 = vmatpush.bf16.msra.mxu0 %v2916
          %3073 = vmatpush.bf16.msra.mxu0 %v2912
          %3074 = vmatpush.bf16.msra.mxu0 %v2908
          %3075 = vmatmul.bf16.gmra.mxu0 0
          %v3076 = vpop.f32.mrf.mxu0
          %v3077 = vadd.f32 %v3064, %v3076
          %v3078 = vpop.f32.mrf.mxu0
          %3079 = vdwg.mxu0
          %3080 = vmatpush.bf16.msra.mxu0 %v2905
          %3081 = vmatpush.bf16.msra.mxu0 %v2901
          %3082 = vmatpush.bf16.msra.mxu0 %v2897
          %3083 = vmatpush.bf16.msra.mxu0 %v2893
          %3084 = vmatpush.bf16.msra.mxu0 %v2889
          %3085 = vmatpush.bf16.msra.mxu0 %v2885
          %3086 = vmatpush.bf16.msra.mxu0 %v2881
          %3087 = vmatpush.bf16.msra.mxu0 %v2877
          %3088 = vmatmul.bf16.gmra.mxu0 %v2672
          %v3089 = vpop.f32.mrf.mxu0
          %v3090 = vadd.f32 %v2677, %v3089
          %v3091 = vpop.f32.mrf.mxu0
          %3092 = vdwg.mxu0
          %3093 = vmatpush.bf16.msra.mxu0 %v2937
          %3094 = vmatpush.bf16.msra.mxu0 %v2933
          %3095 = vmatpush.bf16.msra.mxu0 %v2929
          %3096 = vmatpush.bf16.msra.mxu0 %v2925
          %3097 = vmatpush.bf16.msra.mxu0 %v2921
          %3098 = vmatpush.bf16.msra.mxu0 %v2917
          %3099 = vmatpush.bf16.msra.mxu0 %v2913
          %3100 = vmatpush.bf16.msra.mxu0 %v2909
          %3101 = vmatmul.bf16.gmra.mxu0 0
          %v3102 = vpop.f32.mrf.mxu0
          %v3103 = vadd.f32 %v3090, %v3102
          %v3104 = vpop.f32.mrf.mxu0
          %3105 = vdwg.mxu0
          %v3106 = vxor.u32 %v3025, 2147483648
          %v3107 = vmul.f32 %v3106, 1.442695
          %v3108 = vpow.pop %v3107
          %v3109 = vadd.f32 %v3108, 1.0
          %v3110 = vrcp.pop %v3109
          %v3111 = vmul.f32 %v3109, %v3110
          %v3112 = vsub.f32 1.0, %v3111
          %v3113 = vmul.f32 %v3110, %v3112
          %v3114 = vadd.f32 %v3110, %v3113
          %vm3115 = vweird.f32 %v3109
          %vm3116 = vweird.f32 %v3110
          %vm3117 = vmor %vm3115, %vm3116
          %v3118 = vsel %vm3117, %v3110, %v3114
          %v3119 = vand.u32 2147483647, %v3109
          %vm3120 = vcmp.eq.f32.partialorder %v3119, 8.507059e+37
          %v3121 = vand.u32 %v3109, 2147483648
          %v3122 = vor.u32 1.1754944e-38, %v3121
          %v3123 = vsel %vm3120, %v3122, %v3118
          %v3124 = vmul.f32 1.0, %v3123
          %v3125 = vxor.u32 %v3051, 2147483648
          %v3126 = vmul.f32 %v3125, 1.442695
          %v3127 = vpow.pop %v3126
          %v3128 = vadd.f32 %v3127, 1.0
          %v3129 = vrcp.pop %v3128
          %v3130 = vmul.f32 %v3128, %v3129
          %v3131 = vsub.f32 1.0, %v3130
          %v3132 = vmul.f32 %v3129, %v3131
          %v3133 = vadd.f32 %v3129, %v3132
          %vm3134 = vweird.f32 %v3128
          %vm3135 = vweird.f32 %v3129
          %vm3136 = vmor %vm3134, %vm3135
          %v3137 = vsel %vm3136, %v3129, %v3133
          %v3138 = vand.u32 2147483647, %v3128
          %vm3139 = vcmp.eq.f32.partialorder %v3138, 8.507059e+37
          %v3140 = vand.u32 %v3128, 2147483648
          %v3141 = vor.u32 1.1754944e-38, %v3140
          %v3142 = vsel %vm3139, %v3141, %v3137
          %v3143 = vmul.f32 1.0, %v3142
          %v3144 = vtanh.pop %v3077
          %v3145 = vxor.u32 %v3103, 2147483648
          %v3146 = vmul.f32 %v3145, 1.442695
          %v3147 = vpow.pop %v3146
          %v3148 = vadd.f32 %v3147, 1.0
          %v3149 = vrcp.pop %v3148
          %v3150 = vmul.f32 %v3148, %v3149
          %v3151 = vsub.f32 1.0, %v3150
          %v3152 = vmul.f32 %v3149, %v3151
          %v3153 = vadd.f32 %v3149, %v3152
          %vm3154 = vweird.f32 %v3148
          %vm3155 = vweird.f32 %v3149
          %vm3156 = vmor %vm3154, %vm3155
          %v3157 = vsel %vm3156, %v3149, %v3153
          %v3158 = vand.u32 2147483647, %v3148
          %vm3159 = vcmp.eq.f32.partialorder %v3158, 8.507059e+37
          %v3160 = vand.u32 %v3148, 2147483648
          %v3161 = vor.u32 1.1754944e-38, %v3160
          %v3162 = vsel %vm3159, %v3161, %v3157
          %v3163 = vmul.f32 1.0, %v3162
          %v3164 = vmul.f32 %v3143, 0.0
          %v3165 = vmul.f32 %v3124, %v3144
          %v3166 = vadd.f32 %v3164, %v3165
          %v3167 = vtanh.pop %v3166
          %v3168 = vmul.f32 %v3163, %v3167
          %v3169 = vpack.c.bf16 %v3168, %v3168
          %v3171 = vperm.slane %v2664, 0
          %v3172 = vperm.slane %v2664, 1
          %v3173 = vperm.slane %v2664, 2
          %v3174 = vperm.slane %v2664, 3
          %v3243 = vunpack.c.l.b16 %v2600
          %v3244 = vunpack.c.h.b16 %v2600
          %v3245 = vunpack.c.l.b16 %v2601
          %v3246 = vunpack.c.h.b16 %v2601
          %v3247 = vunpack.c.l.b16 %v2602
          %v3248 = vunpack.c.h.b16 %v2602
          %v3249 = vunpack.c.l.b16 %v2603
          %v3250 = vunpack.c.h.b16 %v2603
          %v3251 = vunpack.c.l.b16 %v2604
          %v3252 = vunpack.c.h.b16 %v2604
          %v3253 = vunpack.c.l.b16 %v2605
          %v3254 = vunpack.c.h.b16 %v2605
          %v3255 = vunpack.c.l.b16 %v2606
          %v3256 = vunpack.c.h.b16 %v2606
          %v3257 = vunpack.c.l.b16 %v2607
          %v3258 = vunpack.c.h.b16 %v2607
          %v3259 = vunpack.c.l.b16 %v2608
          %v3260 = vunpack.c.h.b16 %v2608
          %v3261 = vunpack.c.l.b16 %v2609
          %v3262 = vunpack.c.h.b16 %v2609
          %v3263 = vunpack.c.l.b16 %v2610
          %v3264 = vunpack.c.h.b16 %v2610
          %v3265 = vunpack.c.l.b16 %v2611
          %v3266 = vunpack.c.h.b16 %v2611
          %v3267 = vunpack.c.l.b16 %v2612
          %v3268 = vunpack.c.h.b16 %v2612
          %v3269 = vunpack.c.l.b16 %v2613
          %v3270 = vunpack.c.h.b16 %v2613
          %v3271 = vunpack.c.l.b16 %v2614
          %v3272 = vunpack.c.h.b16 %v2614
          %v3273 = vunpack.c.l.b16 %v2615
          %v3274 = vunpack.c.h.b16 %v2615
          %v3275 = vunpack.c.l.b16 %v2616
          %v3276 = vunpack.c.h.b16 %v2616
          %v3277 = vunpack.c.l.b16 %v2617
          %v3278 = vunpack.c.h.b16 %v2617
          %v3279 = vunpack.c.l.b16 %v2618
          %v3280 = vunpack.c.h.b16 %v2618
          %v3281 = vunpack.c.l.b16 %v2619
          %v3282 = vunpack.c.h.b16 %v2619
          %v3283 = vunpack.c.l.b16 %v2620
          %v3284 = vunpack.c.h.b16 %v2620
          %v3285 = vunpack.c.l.b16 %v2621
          %v3286 = vunpack.c.h.b16 %v2621
          %v3287 = vunpack.c.l.b16 %v2622
          %v3288 = vunpack.c.h.b16 %v2622
          %v3289 = vunpack.c.l.b16 %v2623
          %v3290 = vunpack.c.h.b16 %v2623
          %v3291 = vunpack.c.l.b16 %v2624
          %v3292 = vunpack.c.h.b16 %v2624
          %v3293 = vunpack.c.l.b16 %v2625
          %v3294 = vunpack.c.h.b16 %v2625
          %v3295 = vunpack.c.l.b16 %v2626
          %v3296 = vunpack.c.h.b16 %v2626
          %v3297 = vunpack.c.l.b16 %v2627
          %v3298 = vunpack.c.h.b16 %v2627
          %v3299 = vunpack.c.l.b16 %v2628
          %v3300 = vunpack.c.h.b16 %v2628
          %v3301 = vunpack.c.l.b16 %v2629
          %v3302 = vunpack.c.h.b16 %v2629
          %v3303 = vunpack.c.l.b16 %v2630
          %v3304 = vunpack.c.h.b16 %v2630
          %v3305 = vunpack.c.l.b16 %v2631
          %v3306 = vunpack.c.h.b16 %v2631
          %v3307 = vunpack.c.l.b16 %v2632
          %v3308 = vunpack.c.h.b16 %v2632
          %v3309 = vunpack.c.l.b16 %v2633
          %v3310 = vunpack.c.h.b16 %v2633
          %v3311 = vunpack.c.l.b16 %v2634
          %v3312 = vunpack.c.h.b16 %v2634
          %v3313 = vunpack.c.l.b16 %v2635
          %v3314 = vunpack.c.h.b16 %v2635
          %v3315 = vunpack.c.l.b16 %v2636
          %v3316 = vunpack.c.h.b16 %v2636
          %v3317 = vunpack.c.l.b16 %v2637
          %v3318 = vunpack.c.h.b16 %v2637
          %v3319 = vunpack.c.l.b16 %v2638
          %v3320 = vunpack.c.h.b16 %v2638
          %v3321 = vunpack.c.l.b16 %v2639
          %v3322 = vunpack.c.h.b16 %v2639
          %v3323 = vunpack.c.l.b16 %v2640
          %v3324 = vunpack.c.h.b16 %v2640
          %v3325 = vunpack.c.l.b16 %v2641
          %v3326 = vunpack.c.h.b16 %v2641
          %v3327 = vunpack.c.l.b16 %v2642
          %v3328 = vunpack.c.h.b16 %v2642
          %v3329 = vunpack.c.l.b16 %v2643
          %v3330 = vunpack.c.h.b16 %v2643
          %v3331 = vunpack.c.l.b16 %v2644
          %v3332 = vunpack.c.h.b16 %v2644
          %v3333 = vunpack.c.l.b16 %v2645
          %v3334 = vunpack.c.h.b16 %v2645
          %v3335 = vunpack.c.l.b16 %v2646
          %v3336 = vunpack.c.h.b16 %v2646
          %v3337 = vunpack.c.l.b16 %v2647
          %v3338 = vunpack.c.h.b16 %v2647
          %v3339 = vunpack.c.l.b16 %v2648
          %v3340 = vunpack.c.h.b16 %v2648
          %v3341 = vunpack.c.l.b16 %v2649
          %v3342 = vunpack.c.h.b16 %v2649
          %v3343 = vunpack.c.l.b16 %v2650
          %v3344 = vunpack.c.h.b16 %v2650
          %v3345 = vunpack.c.l.b16 %v2651
          %v3346 = vunpack.c.h.b16 %v2651
          %v3347 = vunpack.c.l.b16 %v2652
          %v3348 = vunpack.c.h.b16 %v2652
          %v3349 = vunpack.c.l.b16 %v2653
          %v3350 = vunpack.c.h.b16 %v2653
          %v3351 = vunpack.c.l.b16 %v2654
          %v3352 = vunpack.c.h.b16 %v2654
          %v3353 = vunpack.c.l.b16 %v2655
          %v3354 = vunpack.c.h.b16 %v2655
          %v3355 = vunpack.c.l.b16 %v2656
          %v3356 = vunpack.c.h.b16 %v2656
          %v3357 = vunpack.c.l.b16 %v2657
          %v3358 = vunpack.c.h.b16 %v2657
          %v3359 = vunpack.c.l.b16 %v2658
          %v3360 = vunpack.c.h.b16 %v2658
          %v3361 = vunpack.c.l.b16 %v2659
          %v3362 = vunpack.c.h.b16 %v2659
          %v3363 = vunpack.c.l.b16 %v2660
          %v3364 = vunpack.c.h.b16 %v2660
          %v3365 = vunpack.c.l.b16 %v2661
          %v3366 = vunpack.c.h.b16 %v2661
          %v3367 = vunpack.c.l.b16 %v2662
          %v3368 = vunpack.c.h.b16 %v2662
          %v3369 = vunpack.c.l.b16 %v2663
          %v3370 = vunpack.c.h.b16 %v2663
          %v3371 = vpack.c.b16 %v3247, %v3243
          %v3372 = vpack.c.b16 %v3248, %v3244
          %v3373 = vpack.c.b16 %v3249, %v3245
          %v3374 = vpack.c.b16 %v3250, %v3246
          %v3375 = vpack.c.b16 %v3255, %v3251
          %v3376 = vpack.c.b16 %v3256, %v3252
          %v3377 = vpack.c.b16 %v3257, %v3253
          %v3378 = vpack.c.b16 %v3258, %v3254
          %v3379 = vpack.c.b16 %v3263, %v3259
          %v3380 = vpack.c.b16 %v3264, %v3260
          %v3381 = vpack.c.b16 %v3265, %v3261
          %v3382 = vpack.c.b16 %v3266, %v3262
          %v3383 = vpack.c.b16 %v3271, %v3267
          %v3384 = vpack.c.b16 %v3272, %v3268
          %v3385 = vpack.c.b16 %v3273, %v3269
          %v3386 = vpack.c.b16 %v3274, %v3270
          %v3387 = vpack.c.b16 %v3279, %v3275
          %v3388 = vpack.c.b16 %v3280, %v3276
          %v3389 = vpack.c.b16 %v3281, %v3277
          %v3390 = vpack.c.b16 %v3282, %v3278
          %v3391 = vpack.c.b16 %v3287, %v3283
          %v3392 = vpack.c.b16 %v3288, %v3284
          %v3393 = vpack.c.b16 %v3289, %v3285
          %v3394 = vpack.c.b16 %v3290, %v3286
          %v3395 = vpack.c.b16 %v3295, %v3291
          %v3396 = vpack.c.b16 %v3296, %v3292
          %v3397 = vpack.c.b16 %v3297, %v3293
          %v3398 = vpack.c.b16 %v3298, %v3294
          %v3399 = vpack.c.b16 %v3303, %v3299
          %v3400 = vpack.c.b16 %v3304, %v3300
          %v3401 = vpack.c.b16 %v3305, %v3301
          %v3402 = vpack.c.b16 %v3306, %v3302
          %v3403 = vpack.c.b16 %v3311, %v3307
          %v3404 = vpack.c.b16 %v3312, %v3308
          %v3405 = vpack.c.b16 %v3313, %v3309
          %v3406 = vpack.c.b16 %v3314, %v3310
          %v3407 = vpack.c.b16 %v3319, %v3315
          %v3408 = vpack.c.b16 %v3320, %v3316
          %v3409 = vpack.c.b16 %v3321, %v3317
          %v3410 = vpack.c.b16 %v3322, %v3318
          %v3411 = vpack.c.b16 %v3327, %v3323
          %v3412 = vpack.c.b16 %v3328, %v3324
          %v3413 = vpack.c.b16 %v3329, %v3325
          %v3414 = vpack.c.b16 %v3330, %v3326
          %v3415 = vpack.c.b16 %v3335, %v3331
          %v3416 = vpack.c.b16 %v3336, %v3332
          %v3417 = vpack.c.b16 %v3337, %v3333
          %v3418 = vpack.c.b16 %v3338, %v3334
          %v3419 = vpack.c.b16 %v3343, %v3339
          %v3420 = vpack.c.b16 %v3344, %v3340
          %v3421 = vpack.c.b16 %v3345, %v3341
          %v3422 = vpack.c.b16 %v3346, %v3342
          %v3423 = vpack.c.b16 %v3351, %v3347
          %v3424 = vpack.c.b16 %v3352, %v3348
          %v3425 = vpack.c.b16 %v3353, %v3349
          %v3426 = vpack.c.b16 %v3354, %v3350
          %v3427 = vpack.c.b16 %v3359, %v3355
          %v3428 = vpack.c.b16 %v3360, %v3356
          %v3429 = vpack.c.b16 %v3361, %v3357
          %v3430 = vpack.c.b16 %v3362, %v3358
          %v3431 = vpack.c.b16 %v3367, %v3363
          %v3432 = vpack.c.b16 %v3368, %v3364
          %v3433 = vpack.c.b16 %v3369, %v3365
          %v3434 = vpack.c.b16 %v3370, %v3366
          %3499 = vmatpush.bf16.msra.mxu0 %v3399
          %3500 = vmatpush.bf16.msra.mxu0 %v3395
          %3501 = vmatpush.bf16.msra.mxu0 %v3391
          %3502 = vmatpush.bf16.msra.mxu0 %v3387
          %3503 = vmatpush.bf16.msra.mxu0 %v3383
          %3504 = vmatpush.bf16.msra.mxu0 %v3379
          %3505 = vmatpush.bf16.msra.mxu0 %v3375
          %3506 = vmatpush.bf16.msra.mxu0 %v3371
          %3507 = vmatmul.bf16.gmra.mxu0 %v3169
          %v3508 = vpop.f32.mrf.mxu0
          %v3509 = vadd.f32 %v3171, %v3508
          %v3510 = vpop.f32.mrf.mxu0
          %3511 = vdwg.mxu0
          %3512 = vmatpush.bf16.msra.mxu0 %v3431
          %3513 = vmatpush.bf16.msra.mxu0 %v3427
          %3514 = vmatpush.bf16.msra.mxu0 %v3423
          %3515 = vmatpush.bf16.msra.mxu0 %v3419
          %3516 = vmatpush.bf16.msra.mxu0 %v3415
          %3517 = vmatpush.bf16.msra.mxu0 %v3411
          %3518 = vmatpush.bf16.msra.mxu0 %v3407
          %3519 = vmatpush.bf16.msra.mxu0 %v3403
          %3520 = vmatmul.bf16.gmra.mxu0 0
          %v3521 = vpop.f32.mrf.mxu0
          %v3522 = vadd.f32 %v3509, %v3521
          %v3523 = vpop.f32.mrf.mxu0
          %3524 = vdwg.mxu0
          %3525 = vmatpush.bf16.msra.mxu0 %v3400
          %3526 = vmatpush.bf16.msra.mxu0 %v3396
          %3527 = vmatpush.bf16.msra.mxu0 %v3392
          %3528 = vmatpush.bf16.msra.mxu0 %v3388
          %3529 = vmatpush.bf16.msra.mxu0 %v3384
          %3530 = vmatpush.bf16.msra.mxu0 %v3380
          %3531 = vmatpush.bf16.msra.mxu0 %v3376
          %3532 = vmatpush.bf16.msra.mxu0 %v3372
          %3533 = vmatmul.bf16.gmra.mxu0 %v3169
          %v3534 = vpop.f32.mrf.mxu0
          %v3535 = vadd.f32 %v3172, %v3534
          %v3536 = vpop.f32.mrf.mxu0
          %3537 = vdwg.mxu0
          %3538 = vmatpush.bf16.msra.mxu0 %v3432
          %3539 = vmatpush.bf16.msra.mxu0 %v3428
          %3540 = vmatpush.bf16.msra.mxu0 %v3424
          %3541 = vmatpush.bf16.msra.mxu0 %v3420
          %3542 = vmatpush.bf16.msra.mxu0 %v3416
          %3543 = vmatpush.bf16.msra.mxu0 %v3412
          %3544 = vmatpush.bf16.msra.mxu0 %v3408
          %3545 = vmatpush.bf16.msra.mxu0 %v3404
          %3546 = vmatmul.bf16.gmra.mxu0 0
          %v3547 = vpop.f32.mrf.mxu0
          %v3548 = vadd.f32 %v3535, %v3547
          %v3549 = vpop.f32.mrf.mxu0
          %3550 = vdwg.mxu0
          %3551 = vmatpush.bf16.msra.mxu0 %v3401
          %3552 = vmatpush.bf16.msra.mxu0 %v3397
          %3553 = vmatpush.bf16.msra.mxu0 %v3393
          %3554 = vmatpush.bf16.msra.mxu0 %v3389
          %3555 = vmatpush.bf16.msra.mxu0 %v3385
          %3556 = vmatpush.bf16.msra.mxu0 %v3381
          %3557 = vmatpush.bf16.msra.mxu0 %v3377
          %3558 = vmatpush.bf16.msra.mxu0 %v3373
          %3559 = vmatmul.bf16.gmra.mxu0 %v3169
          %v3560 = vpop.f32.mrf.mxu0
          %v3561 = vadd.f32 %v3173, %v3560
          %v3562 = vpop.f32.mrf.mxu0
          %3563 = vdwg.mxu0
          %3564 = vmatpush.bf16.msra.mxu0 %v3433
          %3565 = vmatpush.bf16.msra.mxu0 %v3429
          %3566 = vmatpush.bf16.msra.mxu0 %v3425
          %3567 = vmatpush.bf16.msra.mxu0 %v3421
          %3568 = vmatpush.bf16.msra.mxu0 %v3417
          %3569 = vmatpush.bf16.msra.mxu0 %v3413
          %3570 = vmatpush.bf16.msra.mxu0 %v3409
          %3571 = vmatpush.bf16.msra.mxu0 %v3405
          %3572 = vmatmul.bf16.gmra.mxu0 0
          %v3573 = vpop.f32.mrf.mxu0
          %v3574 = vadd.f32 %v3561, %v3573
          %v3575 = vpop.f32.mrf.mxu0
          %3576 = vdwg.mxu0
          %3577 = vmatpush.bf16.msra.mxu0 %v3402
          %3578 = vmatpush.bf16.msra.mxu0 %v3398
          %3579 = vmatpush.bf16.msra.mxu0 %v3394
          %3580 = vmatpush.bf16.msra.mxu0 %v3390
          %3581 = vmatpush.bf16.msra.mxu0 %v3386
          %3582 = vmatpush.bf16.msra.mxu0 %v3382
          %3583 = vmatpush.bf16.msra.mxu0 %v3378
          %3584 = vmatpush.bf16.msra.mxu0 %v3374
          %3585 = vmatmul.bf16.gmra.mxu0 %v3169
          %v3586 = vpop.f32.mrf.mxu0
          %v3587 = vadd.f32 %v3174, %v3586
          %v3588 = vpop.f32.mrf.mxu0
          %3589 = vdwg.mxu0
          %3590 = vmatpush.bf16.msra.mxu0 %v3434
          %3591 = vmatpush.bf16.msra.mxu0 %v3430
          %3592 = vmatpush.bf16.msra.mxu0 %v3426
          %3593 = vmatpush.bf16.msra.mxu0 %v3422
          %3594 = vmatpush.bf16.msra.mxu0 %v3418
          %3595 = vmatpush.bf16.msra.mxu0 %v3414
          %3596 = vmatpush.bf16.msra.mxu0 %v3410
          %3597 = vmatpush.bf16.msra.mxu0 %v3406
          %3598 = vmatmul.bf16.gmra.mxu0 0
          %v3599 = vpop.f32.mrf.mxu0
          %v3600 = vadd.f32 %v3587, %v3599
          %v3601 = vpop.f32.mrf.mxu0
          %3602 = vdwg.mxu0
          %v3603 = vxor.u32 %v3522, 2147483648
          %v3604 = vmul.f32 %v3603, 1.442695
          %v3605 = vpow.pop %v3604
          %v3606 = vadd.f32 %v3605, 1.0
          %v3607 = vrcp.pop %v3606
          %v3608 = vmul.f32 %v3606, %v3607
          %v3609 = vsub.f32 1.0, %v3608
          %v3610 = vmul.f32 %v3607, %v3609
          %v3611 = vadd.f32 %v3607, %v3610
          %vm3612 = vweird.f32 %v3606
          %vm3613 = vweird.f32 %v3607
          %vm3614 = vmor %vm3612, %vm3613
          %v3615 = vsel %vm3614, %v3607, %v3611
          %v3616 = vand.u32 2147483647, %v3606
          %vm3617 = vcmp.eq.f32.partialorder %v3616, 8.507059e+37
          %v3618 = vand.u32 %v3606, 2147483648
          %v3619 = vor.u32 1.1754944e-38, %v3618
          %v3620 = vsel %vm3617, %v3619, %v3615
          %v3621 = vmul.f32 1.0, %v3620
          %v3622 = vxor.u32 %v3548, 2147483648
          %v3623 = vmul.f32 %v3622, 1.442695
          %v3624 = vpow.pop %v3623
          %v3625 = vadd.f32 %v3624, 1.0
          %v3626 = vrcp.pop %v3625
          %v3627 = vmul.f32 %v3625, %v3626
          %v3628 = vsub.f32 1.0, %v3627
          %v3629 = vmul.f32 %v3626, %v3628
          %v3630 = vadd.f32 %v3626, %v3629
          %vm3631 = vweird.f32 %v3625
          %vm3632 = vweird.f32 %v3626
          %vm3633 = vmor %vm3631, %vm3632
          %v3634 = vsel %vm3633, %v3626, %v3630
          %v3635 = vand.u32 2147483647, %v3625
          %vm3636 = vcmp.eq.f32.partialorder %v3635, 8.507059e+37
          %v3637 = vand.u32 %v3625, 2147483648
          %v3638 = vor.u32 1.1754944e-38, %v3637
          %v3639 = vsel %vm3636, %v3638, %v3634
          %v3640 = vmul.f32 1.0, %v3639
          %v3641 = vtanh.pop %v3574
          %v3642 = vxor.u32 %v3600, 2147483648
          %v3643 = vmul.f32 %v3642, 1.442695
          %v3644 = vpow.pop %v3643
          %v3645 = vadd.f32 %v3644, 1.0
          %v3646 = vrcp.pop %v3645
          %v3647 = vmul.f32 %v3645, %v3646
          %v3648 = vsub.f32 1.0, %v3647
          %v3649 = vmul.f32 %v3646, %v3648
          %v3650 = vadd.f32 %v3646, %v3649
          %vm3651 = vweird.f32 %v3645
          %vm3652 = vweird.f32 %v3646
          %vm3653 = vmor %vm3651, %vm3652
          %v3654 = vsel %vm3653, %v3646, %v3650
          %v3655 = vand.u32 2147483647, %v3645
          %vm3656 = vcmp.eq.f32.partialorder %v3655, 8.507059e+37
          %v3657 = vand.u32 %v3645, 2147483648
          %v3658 = vor.u32 1.1754944e-38, %v3657
          %v3659 = vsel %vm3656, %v3658, %v3654
          %v3660 = vmul.f32 1.0, %v3659
          %v3661 = vmul.f32 %v3640, 0.0
          %v3662 = vmul.f32 %v3621, %v3641
          %v3663 = vadd.f32 %v3661, %v3662
          %v3664 = vtanh.pop %v3663
          %v3665 = vmul.f32 %v3660, %v3664
          %3666 = vst [vmem:[#allocation3] sm:$0xff] %v3665
          %v3667 = vld [vmem:[%s0] sm:$0xf]
          %3668 = vmatpush.bf16.msra.mxu0 %v2902
          %3669 = vmatpush.bf16.msra.mxu0 %v2898
          %3670 = vmatpush.bf16.msra.mxu0 %v2894
          %3671 = vmatpush.bf16.msra.mxu0 %v2890
          %3672 = vmatpush.bf16.msra.mxu0 %v2886
          %3673 = vmatpush.bf16.msra.mxu0 %v2882
          %3674 = vmatpush.bf16.msra.mxu0 %v2878
          %3675 = vmatpush.bf16.msra.mxu0 %v2874
          %3676 = vmatmul.bf16.gmra.mxu0 %v3667
          %v3677 = vpop.f32.mrf.mxu0
          %v3678 = vadd.f32 %v2674, %v3677
          %v3679 = vpop.f32.mrf.mxu0
          %3680 = vdwg.mxu0
          %3681 = vmatpush.bf16.msra.mxu0 %v2934
          %3682 = vmatpush.bf16.msra.mxu0 %v2930
          %3683 = vmatpush.bf16.msra.mxu0 %v2926
          %3684 = vmatpush.bf16.msra.mxu0 %v2922
          %3685 = vmatpush.bf16.msra.mxu0 %v2918
          %3686 = vmatpush.bf16.msra.mxu0 %v2914
          %3687 = vmatpush.bf16.msra.mxu0 %v2910
          %3688 = vmatpush.bf16.msra.mxu0 %v2906
          %3689 = vmatmul.bf16.gmra.mxu0 %v3169
          %v3690 = vpop.f32.mrf.mxu0
          %v3691 = vadd.f32 %v3678, %v3690
          %v3692 = vpop.f32.mrf.mxu0
          %3693 = vdwg.mxu0
          %3694 = vmatpush.bf16.msra.mxu0 %v2903
          %3695 = vmatpush.bf16.msra.mxu0 %v2899
          %3696 = vmatpush.bf16.msra.mxu0 %v2895
          %3697 = vmatpush.bf16.msra.mxu0 %v2891
          %3698 = vmatpush.bf16.msra.mxu0 %v2887
          %3699 = vmatpush.bf16.msra.mxu0 %v2883
          %3700 = vmatpush.bf16.msra.mxu0 %v2879
          %3701 = vmatpush.bf16.msra.mxu0 %v2875
          %3702 = vmatmul.bf16.gmra.mxu0 %v3667
          %v3703 = vpop.f32.mrf.mxu0
          %v3704 = vadd.f32 %v2675, %v3703
          %v3705 = vpop.f32.mrf.mxu0
          %3706 = vdwg.mxu0
          %3707 = vmatpush.bf16.msra.mxu0 %v2935
          %3708 = vmatpush.bf16.msra.mxu0 %v2931
          %3709 = vmatpush.bf16.msra.mxu0 %v2927
          %3710 = vmatpush.bf16.msra.mxu0 %v2923
          %3711 = vmatpush.bf16.msra.mxu0 %v2919
          %3712 = vmatpush.bf16.msra.mxu0 %v2915
          %3713 = vmatpush.bf16.msra.mxu0 %v2911
          %3714 = vmatpush.bf16.msra.mxu0 %v2907
          %3715 = vmatmul.bf16.gmra.mxu0 %v3169
          %v3716 = vpop.f32.mrf.mxu0
          %v3717 = vadd.f32 %v3704, %v3716
          %v3718 = vpop.f32.mrf.mxu0
          %3719 = vdwg.mxu0
          %3720 = vmatpush.bf16.msra.mxu0 %v2904
          %3721 = vmatpush.bf16.msra.mxu0 %v2900
          %3722 = vmatpush.bf16.msra.mxu0 %v2896
          %3723 = vmatpush.bf16.msra.mxu0 %v2892
          %3724 = vmatpush.bf16.msra.mxu0 %v2888
          %3725 = vmatpush.bf16.msra.mxu0 %v2884
          %3726 = vmatpush.bf16.msra.mxu0 %v2880
          %3727 = vmatpush.bf16.msra.mxu0 %v2876
          %3728 = vmatmul.bf16.gmra.mxu0 %v3667
          %v3729 = vpop.f32.mrf.mxu0
          %v3730 = vadd.f32 %v2676, %v3729
          %v3731 = vpop.f32.mrf.mxu0
          %3732 = vdwg.mxu0
          %3733 = vmatpush.bf16.msra.mxu0 %v2936
          %3734 = vmatpush.bf16.msra.mxu0 %v2932
          %3735 = vmatpush.bf16.msra.mxu0 %v2928
          %3736 = vmatpush.bf16.msra.mxu0 %v2924
          %3737 = vmatpush.bf16.msra.mxu0 %v2920
          %3738 = vmatpush.bf16.msra.mxu0 %v2916
          %3739 = vmatpush.bf16.msra.mxu0 %v2912
          %3740 = vmatpush.bf16.msra.mxu0 %v2908
          %3741 = vmatmul.bf16.gmra.mxu0 %v3169
          %v3742 = vpop.f32.mrf.mxu0
          %v3743 = vadd.f32 %v3730, %v3742
          %v3744 = vpop.f32.mrf.mxu0
          %3745 = vdwg.mxu0
          %3746 = vmatpush.bf16.msra.mxu0 %v2905
          %3747 = vmatpush.bf16.msra.mxu0 %v2901
          %3748 = vmatpush.bf16.msra.mxu0 %v2897
          %3749 = vmatpush.bf16.msra.mxu0 %v2893
          %3750 = vmatpush.bf16.msra.mxu0 %v2889
          %3751 = vmatpush.bf16.msra.mxu0 %v2885
          %3752 = vmatpush.bf16.msra.mxu0 %v2881
          %3753 = vmatpush.bf16.msra.mxu0 %v2877
          %3754 = vmatmul.bf16.gmra.mxu0 %v3667
          %v3755 = vpop.f32.mrf.mxu0
          %v3756 = vadd.f32 %v2677, %v3755
          %v3757 = vpop.f32.mrf.mxu0
          %3758 = vdwg.mxu0
          %3759 = vmatpush.bf16.msra.mxu0 %v2937
          %3760 = vmatpush.bf16.msra.mxu0 %v2933
          %3761 = vmatpush.bf16.msra.mxu0 %v2929
          %3762 = vmatpush.bf16.msra.mxu0 %v2925
          %3763 = vmatpush.bf16.msra.mxu0 %v2921
          %3764 = vmatpush.bf16.msra.mxu0 %v2917
          %3765 = vmatpush.bf16.msra.mxu0 %v2913
          %3766 = vmatpush.bf16.msra.mxu0 %v2909
          %3767 = vmatmul.bf16.gmra.mxu0 %v3169
          %v3768 = vpop.f32.mrf.mxu0
          %v3769 = vadd.f32 %v3756, %v3768
          %v3770 = vpop.f32.mrf.mxu0
          %3771 = vdwg.mxu0
          %v3772 = vxor.u32 %v3691, 2147483648
          %v3773 = vmul.f32 %v3772, 1.442695
          %v3774 = vpow.pop %v3773
          %v3775 = vadd.f32 %v3774, 1.0
          %v3776 = vrcp.pop %v3775
          %v3777 = vmul.f32 %v3775, %v3776
          %v3778 = vsub.f32 1.0, %v3777
          %v3779 = vmul.f32 %v3776, %v3778
          %v3780 = vadd.f32 %v3776, %v3779
          %vm3781 = vweird.f32 %v3775
          %vm3782 = vweird.f32 %v3776
          %vm3783 = vmor %vm3781, %vm3782
          %v3784 = vsel %vm3783, %v3776, %v3780
          %v3785 = vand.u32 2147483647, %v3775
          %vm3786 = vcmp.eq.f32.partialorder %v3785, 8.507059e+37
          %v3787 = vand.u32 %v3775, 2147483648
          %v3788 = vor.u32 1.1754944e-38, %v3787
          %v3789 = vsel %vm3786, %v3788, %v3784
          %v3790 = vmul.f32 1.0, %v3789
          %v3791 = vxor.u32 %v3717, 2147483648
          %v3792 = vmul.f32 %v3791, 1.442695
          %v3793 = vpow.pop %v3792
          %v3794 = vadd.f32 %v3793, 1.0
          %v3795 = vrcp.pop %v3794
          %v3796 = vmul.f32 %v3794, %v3795
          %v3797 = vsub.f32 1.0, %v3796
          %v3798 = vmul.f32 %v3795, %v3797
          %v3799 = vadd.f32 %v3795, %v3798
          %vm3800 = vweird.f32 %v3794
          %vm3801 = vweird.f32 %v3795
          %vm3802 = vmor %vm3800, %vm3801
          %v3803 = vsel %vm3802, %v3795, %v3799
          %v3804 = vand.u32 2147483647, %v3794
          %vm3805 = vcmp.eq.f32.partialorder %v3804, 8.507059e+37
          %v3806 = vand.u32 %v3794, 2147483648
          %v3807 = vor.u32 1.1754944e-38, %v3806
          %v3808 = vsel %vm3805, %v3807, %v3803
          %v3809 = vmul.f32 1.0, %v3808
          %v3810 = vtanh.pop %v3743
          %v3811 = vxor.u32 %v3769, 2147483648
          %v3812 = vmul.f32 %v3811, 1.442695
          %v3813 = vpow.pop %v3812
          %v3814 = vadd.f32 %v3813, 1.0
          %v3815 = vrcp.pop %v3814
          %v3816 = vmul.f32 %v3814, %v3815
          %v3817 = vsub.f32 1.0, %v3816
          %v3818 = vmul.f32 %v3815, %v3817
          %v3819 = vadd.f32 %v3815, %v3818
          %vm3820 = vweird.f32 %v3814
          %vm3821 = vweird.f32 %v3815
          %vm3822 = vmor %vm3820, %vm3821
          %v3823 = vsel %vm3822, %v3815, %v3819
          %v3824 = vand.u32 2147483647, %v3814
          %vm3825 = vcmp.eq.f32.partialorder %v3824, 8.507059e+37
          %v3826 = vand.u32 %v3814, 2147483648
          %v3827 = vor.u32 1.1754944e-38, %v3826
          %v3828 = vsel %vm3825, %v3827, %v3823
          %v3829 = vmul.f32 1.0, %v3828
          %v3830 = vmul.f32 %v3809, %v3166
          %v3831 = vmul.f32 %v3790, %v3810
          %v3832 = vadd.f32 %v3830, %v3831
          %v3833 = vtanh.pop %v3832
          %v3834 = vmul.f32 %v3829, %v3833
          %v3835 = vpack.c.bf16 %v3834, %v3834
          %v3836 = vpack.c.bf16 %v3665, %v3665
          %3837 = vmatpush.bf16.msra.mxu0 %v3399
          %3838 = vmatpush.bf16.msra.mxu0 %v3395
          %3839 = vmatpush.bf16.msra.mxu0 %v3391
          %3840 = vmatpush.bf16.msra.mxu0 %v3387
          %3841 = vmatpush.bf16.msra.mxu0 %v3383
          %3842 = vmatpush.bf16.msra.mxu0 %v3379
          %3843 = vmatpush.bf16.msra.mxu0 %v3375
          %3844 = vmatpush.bf16.msra.mxu0 %v3371
          %3845 = vmatmul.bf16.gmra.mxu0 %v3835
          %v3846 = vpop.f32.mrf.mxu0
          %v3847 = vadd.f32 %v3171, %v3846
          %v3848 = vpop.f32.mrf.mxu0
          %3849 = vdwg.mxu0
          %3850 = vmatpush.bf16.msra.mxu0 %v3431
          %3851 = vmatpush.bf16.msra.mxu0 %v3427
          %3852 = vmatpush.bf16.msra.mxu0 %v3423
          %3853 = vmatpush.bf16.msra.mxu0 %v3419
          %3854 = vmatpush.bf16.msra.mxu0 %v3415
          %3855 = vmatpush.bf16.msra.mxu0 %v3411
          %3856 = vmatpush.bf16.msra.mxu0 %v3407
          %3857 = vmatpush.bf16.msra.mxu0 %v3403
          %3858 = vmatmul.bf16.gmra.mxu0 %v3836
          %v3859 = vpop.f32.mrf.mxu0
          %v3860 = vadd.f32 %v3847, %v3859
          %v3861 = vpop.f32.mrf.mxu0
          %3862 = vdwg.mxu0
          %3863 = vmatpush.bf16.msra.mxu0 %v3400
          %3864 = vmatpush.bf16.msra.mxu0 %v3396
          %3865 = vmatpush.bf16.msra.mxu0 %v3392
          %3866 = vmatpush.bf16.msra.mxu0 %v3388
          %3867 = vmatpush.bf16.msra.mxu0 %v3384
          %3868 = vmatpush.bf16.msra.mxu0 %v3380
          %3869 = vmatpush.bf16.msra.mxu0 %v3376
          %3870 = vmatpush.bf16.msra.mxu0 %v3372
          %3871 = vmatmul.bf16.gmra.mxu0 %v3835
          %v3872 = vpop.f32.mrf.mxu0
          %v3873 = vadd.f32 %v3172, %v3872
          %v3874 = vpop.f32.mrf.mxu0
          %3875 = vdwg.mxu0
          %3876 = vmatpush.bf16.msra.mxu0 %v3432
          %3877 = vmatpush.bf16.msra.mxu0 %v3428
          %3878 = vmatpush.bf16.msra.mxu0 %v3424
          %3879 = vmatpush.bf16.msra.mxu0 %v3420
          %3880 = vmatpush.bf16.msra.mxu0 %v3416
          %3881 = vmatpush.bf16.msra.mxu0 %v3412
          %3882 = vmatpush.bf16.msra.mxu0 %v3408
          %3883 = vmatpush.bf16.msra.mxu0 %v3404
          %3884 = vmatmul.bf16.gmra.mxu0 %v3836
          %v3885 = vpop.f32.mrf.mxu0
          %v3886 = vadd.f32 %v3873, %v3885
          %v3887 = vpop.f32.mrf.mxu0
          %3888 = vdwg.mxu0
          %3889 = vmatpush.bf16.msra.mxu0 %v3401
          %3890 = vmatpush.bf16.msra.mxu0 %v3397
          %3891 = vmatpush.bf16.msra.mxu0 %v3393
          %3892 = vmatpush.bf16.msra.mxu0 %v3389
          %3893 = vmatpush.bf16.msra.mxu0 %v3385
          %3894 = vmatpush.bf16.msra.mxu0 %v3381
          %3895 = vmatpush.bf16.msra.mxu0 %v3377
          %3896 = vmatpush.bf16.msra.mxu0 %v3373
          %3897 = vmatmul.bf16.gmra.mxu0 %v3835
          %v3898 = vpop.f32.mrf.mxu0
          %v3899 = vadd.f32 %v3173, %v3898
          %v3900 = vpop.f32.mrf.mxu0
          %3901 = vdwg.mxu0
          %3902 = vmatpush.bf16.msra.mxu0 %v3433
          %3903 = vmatpush.bf16.msra.mxu0 %v3429
          %3904 = vmatpush.bf16.msra.mxu0 %v3425
          %3905 = vmatpush.bf16.msra.mxu0 %v3421
          %3906 = vmatpush.bf16.msra.mxu0 %v3417
          %3907 = vmatpush.bf16.msra.mxu0 %v3413
          %3908 = vmatpush.bf16.msra.mxu0 %v3409
          %3909 = vmatpush.bf16.msra.mxu0 %v3405
          %3910 = vmatmul.bf16.gmra.mxu0 %v3836
          %v3911 = vpop.f32.mrf.mxu0
          %v3912 = vadd.f32 %v3899, %v3911
          %v3913 = vpop.f32.mrf.mxu0
          %3914 = vdwg.mxu0
          %3915 = vmatpush.bf16.msra.mxu0 %v3402
          %3916 = vmatpush.bf16.msra.mxu0 %v3398
          %3917 = vmatpush.bf16.msra.mxu0 %v3394
          %3918 = vmatpush.bf16.msra.mxu0 %v3390
          %3919 = vmatpush.bf16.msra.mxu0 %v3386
          %3920 = vmatpush.bf16.msra.mxu0 %v3382
          %3921 = vmatpush.bf16.msra.mxu0 %v3378
          %3922 = vmatpush.bf16.msra.mxu0 %v3374
          %3923 = vmatmul.bf16.gmra.mxu0 %v3835
          %v3924 = vpop.f32.mrf.mxu0
          %v3925 = vadd.f32 %v3174, %v3924
          %v3926 = vpop.f32.mrf.mxu0
          %3927 = vdwg.mxu0
          %3928 = vmatpush.bf16.msra.mxu0 %v3434
          %3929 = vmatpush.bf16.msra.mxu0 %v3430
          %3930 = vmatpush.bf16.msra.mxu0 %v3426
          %3931 = vmatpush.bf16.msra.mxu0 %v3422
          %3932 = vmatpush.bf16.msra.mxu0 %v3418
          %3933 = vmatpush.bf16.msra.mxu0 %v3414
          %3934 = vmatpush.bf16.msra.mxu0 %v3410
          %3935 = vmatpush.bf16.msra.mxu0 %v3406
          %3936 = vmatmul.bf16.gmra.mxu0 %v3836
          %v3937 = vpop.f32.mrf.mxu0
          %v3938 = vadd.f32 %v3925, %v3937
          %v3939 = vpop.f32.mrf.mxu0
          %3940 = vdwg.mxu0
          %v3941 = vxor.u32 %v3860, 2147483648
          %v3942 = vmul.f32 %v3941, 1.442695
          %v3943 = vpow.pop %v3942
          %v3944 = vadd.f32 %v3943, 1.0
          %v3945 = vrcp.pop %v3944
          %v3946 = vmul.f32 %v3944, %v3945
          %v3947 = vsub.f32 1.0, %v3946
          %v3948 = vmul.f32 %v3945, %v3947
          %v3949 = vadd.f32 %v3945, %v3948
          %vm3950 = vweird.f32 %v3944
          %vm3951 = vweird.f32 %v3945
          %vm3952 = vmor %vm3950, %vm3951
          %v3953 = vsel %vm3952, %v3945, %v3949
          %v3954 = vand.u32 2147483647, %v3944
          %vm3955 = vcmp.eq.f32.partialorder %v3954, 8.507059e+37
          %v3956 = vand.u32 %v3944, 2147483648
          %v3957 = vor.u32 1.1754944e-38, %v3956
          %v3958 = vsel %vm3955, %v3957, %v3953
          %v3959 = vmul.f32 1.0, %v3958
          %v3960 = vxor.u32 %v3886, 2147483648
          %v3961 = vmul.f32 %v3960, 1.442695
          %v3962 = vpow.pop %v3961
          %v3963 = vadd.f32 %v3962, 1.0
          %v3964 = vrcp.pop %v3963
          %v3965 = vmul.f32 %v3963, %v3964
          %v3966 = vsub.f32 1.0, %v3965
          %v3967 = vmul.f32 %v3964, %v3966
          %v3968 = vadd.f32 %v3964, %v3967
          %vm3969 = vweird.f32 %v3963
          %vm3970 = vweird.f32 %v3964
          %vm3971 = vmor %vm3969, %vm3970
          %v3972 = vsel %vm3971, %v3964, %v3968
          %v3973 = vand.u32 2147483647, %v3963
          %vm3974 = vcmp.eq.f32.partialorder %v3973, 8.507059e+37
          %v3975 = vand.u32 %v3963, 2147483648
          %v3976 = vor.u32 1.1754944e-38, %v3975
          %v3977 = vsel %vm3974, %v3976, %v3972
          %v3978 = vmul.f32 1.0, %v3977
          %v3979 = vtanh.pop %v3912
          %v3980 = vxor.u32 %v3938, 2147483648
          %v3981 = vmul.f32 %v3980, 1.442695
          %v3982 = vpow.pop %v3981
          %v3983 = vadd.f32 %v3982, 1.0
          %v3984 = vrcp.pop %v3983
          %v3985 = vmul.f32 %v3983, %v3984
          %v3986 = vsub.f32 1.0, %v3985
          %v3987 = vmul.f32 %v3984, %v3986
          %v3988 = vadd.f32 %v3984, %v3987
          %vm3989 = vweird.f32 %v3983
          %vm3990 = vweird.f32 %v3984
          %vm3991 = vmor %vm3989, %vm3990
          %v3992 = vsel %vm3991, %v3984, %v3988
          %v3993 = vand.u32 2147483647, %v3983
          %vm3994 = vcmp.eq.f32.partialorder %v3993, 8.507059e+37
          %v3995 = vand.u32 %v3983, 2147483648
          %v3996 = vor.u32 1.1754944e-38, %v3995
          %v3997 = vsel %vm3994, %v3996, %v3992
          %v3998 = vmul.f32 1.0, %v3997
          %v3999 = vmul.f32 %v3978, %v3663
          %v4000 = vmul.f32 %v3959, %v3979
          %v4001 = vadd.f32 %v3999, %v4000
          %v4002 = vtanh.pop %v4001
          %v4003 = vmul.f32 %v3998, %v4002
          %s4004 = scalar_lea.vmem [#allocation3], 8
          %4005 = vst [vmem:[%s4004] sm:$0xff] %v4003
          %s4006 = scalar_lea.vmem %s0, 4
          %v4007 = vld [vmem:[%s4006] sm:$0xf]
          %4008 = vmatpush.bf16.msra.mxu0 %v2902
          %4009 = vmatpush.bf16.msra.mxu0 %v2898
          %4010 = vmatpush.bf16.msra.mxu0 %v2894
          %4011 = vmatpush.bf16.msra.mxu0 %v2890
          %4012 = vmatpush.bf16.msra.mxu0 %v2886
          %4013 = vmatpush.bf16.msra.mxu0 %v2882
          %4014 = vmatpush.bf16.msra.mxu0 %v2878
          %4015 = vmatpush.bf16.msra.mxu0 %v2874
          %4016 = vmatmul.bf16.gmra.mxu0 %v4007
          %v4017 = vpop.f32.mrf.mxu0
          %v4018 = vadd.f32 %v2674, %v4017
          %v4019 = vpop.f32.mrf.mxu0
          %4020 = vdwg.mxu0
          %4021 = vmatpush.bf16.msra.mxu0 %v2934
          %4022 = vmatpush.bf16.msra.mxu0 %v2930
          %4023 = vmatpush.bf16.msra.mxu0 %v2926
          %4024 = vmatpush.bf16.msra.mxu0 %v2922
          %4025 = vmatpush.bf16.msra.mxu0 %v2918
          %4026 = vmatpush.bf16.msra.mxu0 %v2914
          %4027 = vmatpush.bf16.msra.mxu0 %v2910
          %4028 = vmatpush.bf16.msra.mxu0 %v2906
          %4029 = vmatmul.bf16.gmra.mxu0 %v3835
          %v4030 = vpop.f32.mrf.mxu0
          %v4031 = vadd.f32 %v4018, %v4030
          %v4032 = vpop.f32.mrf.mxu0
          %4033 = vdwg.mxu0
          %4034 = vmatpush.bf16.msra.mxu0 %v2903
          %4035 = vmatpush.bf16.msra.mxu0 %v2899
          %4036 = vmatpush.bf16.msra.mxu0 %v2895
          %4037 = vmatpush.bf16.msra.mxu0 %v2891
          %4038 = vmatpush.bf16.msra.mxu0 %v2887
          %4039 = vmatpush.bf16.msra.mxu0 %v2883
          %4040 = vmatpush.bf16.msra.mxu0 %v2879
          %4041 = vmatpush.bf16.msra.mxu0 %v2875
          %4042 = vmatmul.bf16.gmra.mxu0 %v4007
          %v4043 = vpop.f32.mrf.mxu0
          %v4044 = vadd.f32 %v2675, %v4043
          %v4045 = vpop.f32.mrf.mxu0
          %4046 = vdwg.mxu0
          %4047 = vmatpush.bf16.msra.mxu0 %v2935
          %4048 = vmatpush.bf16.msra.mxu0 %v2931
          %4049 = vmatpush.bf16.msra.mxu0 %v2927
          %4050 = vmatpush.bf16.msra.mxu0 %v2923
          %4051 = vmatpush.bf16.msra.mxu0 %v2919
          %4052 = vmatpush.bf16.msra.mxu0 %v2915
          %4053 = vmatpush.bf16.msra.mxu0 %v2911
          %4054 = vmatpush.bf16.msra.mxu0 %v2907
          %4055 = vmatmul.bf16.gmra.mxu0 %v3835
          %v4056 = vpop.f32.mrf.mxu0
          %v4057 = vadd.f32 %v4044, %v4056
          %v4058 = vpop.f32.mrf.mxu0
          %4059 = vdwg.mxu0
          %4060 = vmatpush.bf16.msra.mxu0 %v2904
          %4061 = vmatpush.bf16.msra.mxu0 %v2900
          %4062 = vmatpush.bf16.msra.mxu0 %v2896
          %4063 = vmatpush.bf16.msra.mxu0 %v2892
          %4064 = vmatpush.bf16.msra.mxu0 %v2888
          %4065 = vmatpush.bf16.msra.mxu0 %v2884
          %4066 = vmatpush.bf16.msra.mxu0 %v2880
          %4067 = vmatpush.bf16.msra.mxu0 %v2876
          %4068 = vmatmul.bf16.gmra.mxu0 %v4007
          %v4069 = vpop.f32.mrf.mxu0
          %v4070 = vadd.f32 %v2676, %v4069
          %v4071 = vpop.f32.mrf.mxu0
          %4072 = vdwg.mxu0
          %4073 = vmatpush.bf16.msra.mxu0 %v2936
          %4074 = vmatpush.bf16.msra.mxu0 %v2932
          %4075 = vmatpush.bf16.msra.mxu0 %v2928
          %4076 = vmatpush.bf16.msra.mxu0 %v2924
          %4077 = vmatpush.bf16.msra.mxu0 %v2920
          %4078 = vmatpush.bf16.msra.mxu0 %v2916
          %4079 = vmatpush.bf16.msra.mxu0 %v2912
          %4080 = vmatpush.bf16.msra.mxu0 %v2908
          %4081 = vmatmul.bf16.gmra.mxu0 %v3835
          %v4082 = vpop.f32.mrf.mxu0
          %v4083 = vadd.f32 %v4070, %v4082
          %v4084 = vpop.f32.mrf.mxu0
          %4085 = vdwg.mxu0
          %4086 = vmatpush.bf16.msra.mxu0 %v2905
          %4087 = vmatpush.bf16.msra.mxu0 %v2901
          %4088 = vmatpush.bf16.msra.mxu0 %v2897
          %4089 = vmatpush.bf16.msra.mxu0 %v2893
          %4090 = vmatpush.bf16.msra.mxu0 %v2889
          %4091 = vmatpush.bf16.msra.mxu0 %v2885
          %4092 = vmatpush.bf16.msra.mxu0 %v2881
          %4093 = vmatpush.bf16.msra.mxu0 %v2877
          %4094 = vmatmul.bf16.gmra.mxu0 %v4007
          %v4095 = vpop.f32.mrf.mxu0
          %v4096 = vadd.f32 %v2677, %v4095
          %v4097 = vpop.f32.mrf.mxu0
          %4098 = vdwg.mxu0
          %4099 = vmatpush.bf16.msra.mxu0 %v2937
          %4100 = vmatpush.bf16.msra.mxu0 %v2933
          %4101 = vmatpush.bf16.msra.mxu0 %v2929
          %4102 = vmatpush.bf16.msra.mxu0 %v2925
          %4103 = vmatpush.bf16.msra.mxu0 %v2921
          %4104 = vmatpush.bf16.msra.mxu0 %v2917
          %4105 = vmatpush.bf16.msra.mxu0 %v2913
          %4106 = vmatpush.bf16.msra.mxu0 %v2909
          %4107 = vmatmul.bf16.gmra.mxu0 %v3835
          %v4108 = vpop.f32.mrf.mxu0
          %v4109 = vadd.f32 %v4096, %v4108
          %v4110 = vpop.f32.mrf.mxu0
          %4111 = vdwg.mxu0
          %v4112 = vxor.u32 %v4031, 2147483648
          %v4113 = vmul.f32 %v4112, 1.442695
          %v4114 = vpow.pop %v4113
          %v4115 = vadd.f32 %v4114, 1.0
          %v4116 = vrcp.pop %v4115
          %v4117 = vmul.f32 %v4115, %v4116
          %v4118 = vsub.f32 1.0, %v4117
          %v4119 = vmul.f32 %v4116, %v4118
          %v4120 = vadd.f32 %v4116, %v4119
          %vm4121 = vweird.f32 %v4115
          %vm4122 = vweird.f32 %v4116
          %vm4123 = vmor %vm4121, %vm4122
          %v4124 = vsel %vm4123, %v4116, %v4120
          %v4125 = vand.u32 2147483647, %v4115
          %vm4126 = vcmp.eq.f32.partialorder %v4125, 8.507059e+37
          %v4127 = vand.u32 %v4115, 2147483648
          %v4128 = vor.u32 1.1754944e-38, %v4127
          %v4129 = vsel %vm4126, %v4128, %v4124
          %v4130 = vmul.f32 1.0, %v4129
          %v4131 = vxor.u32 %v4057, 2147483648
          %v4132 = vmul.f32 %v4131, 1.442695
          %v4133 = vpow.pop %v4132
          %v4134 = vadd.f32 %v4133, 1.0
          %v4135 = vrcp.pop %v4134
          %v4136 = vmul.f32 %v4134, %v4135
          %v4137 = vsub.f32 1.0, %v4136
          %v4138 = vmul.f32 %v4135, %v4137
          %v4139 = vadd.f32 %v4135, %v4138
          %vm4140 = vweird.f32 %v4134
          %vm4141 = vweird.f32 %v4135
          %vm4142 = vmor %vm4140, %vm4141
          %v4143 = vsel %vm4142, %v4135, %v4139
          %v4144 = vand.u32 2147483647, %v4134
          %vm4145 = vcmp.eq.f32.partialorder %v4144, 8.507059e+37
          %v4146 = vand.u32 %v4134, 2147483648
          %v4147 = vor.u32 1.1754944e-38, %v4146
          %v4148 = vsel %vm4145, %v4147, %v4143
          %v4149 = vmul.f32 1.0, %v4148
          %v4150 = vtanh.pop %v4083
          %v4151 = vxor.u32 %v4109, 2147483648
          %v4152 = vmul.f32 %v4151, 1.442695
          %v4153 = vpow.pop %v4152
          %v4154 = vadd.f32 %v4153, 1.0
          %v4155 = vrcp.pop %v4154
          %v4156 = vmul.f32 %v4154, %v4155
          %v4157 = vsub.f32 1.0, %v4156
          %v4158 = vmul.f32 %v4155, %v4157
          %v4159 = vadd.f32 %v4155, %v4158
          %vm4160 = vweird.f32 %v4154
          %vm4161 = vweird.f32 %v4155
          %vm4162 = vmor %vm4160, %vm4161
          %v4163 = vsel %vm4162, %v4155, %v4159
          %v4164 = vand.u32 2147483647, %v4154
          %vm4165 = vcmp.eq.f32.partialorder %v4164, 8.507059e+37
          %v4166 = vand.u32 %v4154, 2147483648
          %v4167 = vor.u32 1.1754944e-38, %v4166
          %v4168 = vsel %vm4165, %v4167, %v4163
          %v4169 = vmul.f32 1.0, %v4168
          %v4170 = vmul.f32 %v4149, %v3832
          %v4171 = vmul.f32 %v4130, %v4150
          %v4172 = vadd.f32 %v4170, %v4171
          %v4173 = vtanh.pop %v4172
          %v4174 = vmul.f32 %v4169, %v4173
          %v4175 = vpack.c.bf16 %v4174, %v4174
          %v4176 = vpack.c.bf16 %v4003, %v4003
          %4177 = vmatpush.bf16.msra.mxu0 %v3399
          %4178 = vmatpush.bf16.msra.mxu0 %v3395
          %4179 = vmatpush.bf16.msra.mxu0 %v3391
          %4180 = vmatpush.bf16.msra.mxu0 %v3387
          %4181 = vmatpush.bf16.msra.mxu0 %v3383
          %4182 = vmatpush.bf16.msra.mxu0 %v3379
          %4183 = vmatpush.bf16.msra.mxu0 %v3375
          %4184 = vmatpush.bf16.msra.mxu0 %v3371
          %4185 = vmatmul.bf16.gmra.mxu0 %v4175
          %v4186 = vpop.f32.mrf.mxu0
          %v4187 = vadd.f32 %v3171, %v4186
          %v4188 = vpop.f32.mrf.mxu0
          %4189 = vdwg.mxu0
          %4190 = vmatpush.bf16.msra.mxu0 %v3431
          %4191 = vmatpush.bf16.msra.mxu0 %v3427
          %4192 = vmatpush.bf16.msra.mxu0 %v3423
          %4193 = vmatpush.bf16.msra.mxu0 %v3419
          %4194 = vmatpush.bf16.msra.mxu0 %v3415
          %4195 = vmatpush.bf16.msra.mxu0 %v3411
          %4196 = vmatpush.bf16.msra.mxu0 %v3407
          %4197 = vmatpush.bf16.msra.mxu0 %v3403
          %4198 = vmatmul.bf16.gmra.mxu0 %v4176
          %v4199 = vpop.f32.mrf.mxu0
          %v4200 = vadd.f32 %v4187, %v4199
          %v4201 = vpop.f32.mrf.mxu0
          %4202 = vdwg.mxu0
          %4203 = vmatpush.bf16.msra.mxu0 %v3400
          %4204 = vmatpush.bf16.msra.mxu0 %v3396
          %4205 = vmatpush.bf16.msra.mxu0 %v3392
          %4206 = vmatpush.bf16.msra.mxu0 %v3388
          %4207 = vmatpush.bf16.msra.mxu0 %v3384
          %4208 = vmatpush.bf16.msra.mxu0 %v3380
          %4209 = vmatpush.bf16.msra.mxu0 %v3376
          %4210 = vmatpush.bf16.msra.mxu0 %v3372
          %4211 = vmatmul.bf16.gmra.mxu0 %v4175
          %v4212 = vpop.f32.mrf.mxu0
          %v4213 = vadd.f32 %v3172, %v4212
          %v4214 = vpop.f32.mrf.mxu0
          %4215 = vdwg.mxu0
          %4216 = vmatpush.bf16.msra.mxu0 %v3432
          %4217 = vmatpush.bf16.msra.mxu0 %v3428
          %4218 = vmatpush.bf16.msra.mxu0 %v3424
          %4219 = vmatpush.bf16.msra.mxu0 %v3420
          %4220 = vmatpush.bf16.msra.mxu0 %v3416
          %4221 = vmatpush.bf16.msra.mxu0 %v3412
          %4222 = vmatpush.bf16.msra.mxu0 %v3408
          %4223 = vmatpush.bf16.msra.mxu0 %v3404
          %4224 = vmatmul.bf16.gmra.mxu0 %v4176
          %v4225 = vpop.f32.mrf.mxu0
          %v4226 = vadd.f32 %v4213, %v4225
          %v4227 = vpop.f32.mrf.mxu0
          %4228 = vdwg.mxu0
          %4229 = vmatpush.bf16.msra.mxu0 %v3401
          %4230 = vmatpush.bf16.msra.mxu0 %v3397
          %4231 = vmatpush.bf16.msra.mxu0 %v3393
          %4232 = vmatpush.bf16.msra.mxu0 %v3389
          %4233 = vmatpush.bf16.msra.mxu0 %v3385
          %4234 = vmatpush.bf16.msra.mxu0 %v3381
          %4235 = vmatpush.bf16.msra.mxu0 %v3377
          %4236 = vmatpush.bf16.msra.mxu0 %v3373
          %4237 = vmatmul.bf16.gmra.mxu0 %v4175
          %v4238 = vpop.f32.mrf.mxu0
          %v4239 = vadd.f32 %v3173, %v4238
          %v4240 = vpop.f32.mrf.mxu0
          %4241 = vdwg.mxu0
          %4242 = vmatpush.bf16.msra.mxu0 %v3433
          %4243 = vmatpush.bf16.msra.mxu0 %v3429
          %4244 = vmatpush.bf16.msra.mxu0 %v3425
          %4245 = vmatpush.bf16.msra.mxu0 %v3421
          %4246 = vmatpush.bf16.msra.mxu0 %v3417
          %4247 = vmatpush.bf16.msra.mxu0 %v3413
          %4248 = vmatpush.bf16.msra.mxu0 %v3409
          %4249 = vmatpush.bf16.msra.mxu0 %v3405
          %4250 = vmatmul.bf16.gmra.mxu0 %v4176
          %v4251 = vpop.f32.mrf.mxu0
          %v4252 = vadd.f32 %v4239, %v4251
          %v4253 = vpop.f32.mrf.mxu0
          %4254 = vdwg.mxu0
          %4255 = vmatpush.bf16.msra.mxu0 %v3402
          %4256 = vmatpush.bf16.msra.mxu0 %v3398
          %4257 = vmatpush.bf16.msra.mxu0 %v3394
          %4258 = vmatpush.bf16.msra.mxu0 %v3390
          %4259 = vmatpush.bf16.msra.mxu0 %v3386
          %4260 = vmatpush.bf16.msra.mxu0 %v3382
          %4261 = vmatpush.bf16.msra.mxu0 %v3378
          %4262 = vmatpush.bf16.msra.mxu0 %v3374
          %4263 = vmatmul.bf16.gmra.mxu0 %v4175
          %v4264 = vpop.f32.mrf.mxu0
          %v4265 = vadd.f32 %v3174, %v4264
          %v4266 = vpop.f32.mrf.mxu0
          %4267 = vdwg.mxu0
          %4268 = vmatpush.bf16.msra.mxu0 %v3434
          %4269 = vmatpush.bf16.msra.mxu0 %v3430
          %4270 = vmatpush.bf16.msra.mxu0 %v3426
          %4271 = vmatpush.bf16.msra.mxu0 %v3422
          %4272 = vmatpush.bf16.msra.mxu0 %v3418
          %4273 = vmatpush.bf16.msra.mxu0 %v3414
          %4274 = vmatpush.bf16.msra.mxu0 %v3410
          %4275 = vmatpush.bf16.msra.mxu0 %v3406
          %4276 = vmatmul.bf16.gmra.mxu0 %v4176
          %v4277 = vpop.f32.mrf.mxu0
          %v4278 = vadd.f32 %v4265, %v4277
          %v4279 = vpop.f32.mrf.mxu0
          %4280 = vdwg.mxu0
          %v4281 = vxor.u32 %v4200, 2147483648
          %v4282 = vmul.f32 %v4281, 1.442695
          %v4283 = vpow.pop %v4282
          %v4284 = vadd.f32 %v4283, 1.0
          %v4285 = vrcp.pop %v4284
          %v4286 = vmul.f32 %v4284, %v4285
          %v4287 = vsub.f32 1.0, %v4286
          %v4288 = vmul.f32 %v4285, %v4287
          %v4289 = vadd.f32 %v4285, %v4288
          %vm4290 = vweird.f32 %v4284
          %vm4291 = vweird.f32 %v4285
          %vm4292 = vmor %vm4290, %vm4291
          %v4293 = vsel %vm4292, %v4285, %v4289
          %v4294 = vand.u32 2147483647, %v4284
          %vm4295 = vcmp.eq.f32.partialorder %v4294, 8.507059e+37
          %v4296 = vand.u32 %v4284, 2147483648
          %v4297 = vor.u32 1.1754944e-38, %v4296
          %v4298 = vsel %vm4295, %v4297, %v4293
          %v4299 = vmul.f32 1.0, %v4298
          %v4300 = vxor.u32 %v4226, 2147483648
          %v4301 = vmul.f32 %v4300, 1.442695
          %v4302 = vpow.pop %v4301
          %v4303 = vadd.f32 %v4302, 1.0
          %v4304 = vrcp.pop %v4303
          %v4305 = vmul.f32 %v4303, %v4304
          %v4306 = vsub.f32 1.0, %v4305
          %v4307 = vmul.f32 %v4304, %v4306
          %v4308 = vadd.f32 %v4304, %v4307
          %vm4309 = vweird.f32 %v4303
          %vm4310 = vweird.f32 %v4304
          %vm4311 = vmor %vm4309, %vm4310
          %v4312 = vsel %vm4311, %v4304, %v4308
          %v4313 = vand.u32 2147483647, %v4303
          %vm4314 = vcmp.eq.f32.partialorder %v4313, 8.507059e+37
          %v4315 = vand.u32 %v4303, 2147483648
          %v4316 = vor.u32 1.1754944e-38, %v4315
          %v4317 = vsel %vm4314, %v4316, %v4312
          %v4318 = vmul.f32 1.0, %v4317
          %v4319 = vtanh.pop %v4252
          %v4320 = vxor.u32 %v4278, 2147483648
          %v4321 = vmul.f32 %v4320, 1.442695
          %v4322 = vpow.pop %v4321
          %v4323 = vadd.f32 %v4322, 1.0
          %v4324 = vrcp.pop %v4323
          %v4325 = vmul.f32 %v4323, %v4324
          %v4326 = vsub.f32 1.0, %v4325
          %v4327 = vmul.f32 %v4324, %v4326
          %v4328 = vadd.f32 %v4324, %v4327
          %vm4329 = vweird.f32 %v4323
          %vm4330 = vweird.f32 %v4324
          %vm4331 = vmor %vm4329, %vm4330
          %v4332 = vsel %vm4331, %v4324, %v4328
          %v4333 = vand.u32 2147483647, %v4323
          %vm4334 = vcmp.eq.f32.partialorder %v4333, 8.507059e+37
          %v4335 = vand.u32 %v4323, 2147483648
          %v4336 = vor.u32 1.1754944e-38, %v4335
          %v4337 = vsel %vm4334, %v4336, %v4332
          %v4338 = vmul.f32 1.0, %v4337
          %v4339 = vmul.f32 %v4318, %v4001
          %v4340 = vmul.f32 %v4299, %v4319
          %v4341 = vadd.f32 %v4339, %v4340
          %v4342 = vtanh.pop %v4341
          %v4343 = vmul.f32 %v4338, %v4342
          %s4344 = scalar_lea.vmem [#allocation3], 16
          %4345 = vst [vmem:[%s4344] sm:$0xff] %v4343
          %s4346 = scalar_lea.vmem %s0, 8
          %v4347 = vld [vmem:[%s4346] sm:$0xf]
          %4348 = vmatpush.bf16.msra.mxu0 %v2902
          %4349 = vmatpush.bf16.msra.mxu0 %v2898
          %4350 = vmatpush.bf16.msra.mxu0 %v2894
          %4351 = vmatpush.bf16.msra.mxu0 %v2890
          %4352 = vmatpush.bf16.msra.mxu0 %v2886
          %4353 = vmatpush.bf16.msra.mxu0 %v2882
          %4354 = vmatpush.bf16.msra.mxu0 %v2878
          %4355 = vmatpush.bf16.msra.mxu0 %v2874
          %4356 = vmatmul.bf16.gmra.mxu0 %v4347
          %v4357 = vpop.f32.mrf.mxu0
          %v4358 = vadd.f32 %v2674, %v4357
          %v4359 = vpop.f32.mrf.mxu0
          %4360 = vdwg.mxu0
          %4361 = vmatpush.bf16.msra.mxu0 %v2934
          %4362 = vmatpush.bf16.msra.mxu0 %v2930
          %4363 = vmatpush.bf16.msra.mxu0 %v2926
          %4364 = vmatpush.bf16.msra.mxu0 %v2922
          %4365 = vmatpush.bf16.msra.mxu0 %v2918
          %4366 = vmatpush.bf16.msra.mxu0 %v2914
          %4367 = vmatpush.bf16.msra.mxu0 %v2910
          %4368 = vmatpush.bf16.msra.mxu0 %v2906
          %4369 = vmatmul.bf16.gmra.mxu0 %v4175
          %v4370 = vpop.f32.mrf.mxu0
          %v4371 = vadd.f32 %v4358, %v4370
          %v4372 = vpop.f32.mrf.mxu0
          %4373 = vdwg.mxu0
          %4374 = vmatpush.bf16.msra.mxu0 %v2903
          %4375 = vmatpush.bf16.msra.mxu0 %v2899
          %4376 = vmatpush.bf16.msra.mxu0 %v2895
          %4377 = vmatpush.bf16.msra.mxu0 %v2891
          %4378 = vmatpush.bf16.msra.mxu0 %v2887
          %4379 = vmatpush.bf16.msra.mxu0 %v2883
          %4380 = vmatpush.bf16.msra.mxu0 %v2879
          %4381 = vmatpush.bf16.msra.mxu0 %v2875
          %4382 = vmatmul.bf16.gmra.mxu0 %v4347
          %v4383 = vpop.f32.mrf.mxu0
          %v4384 = vadd.f32 %v2675, %v4383
          %v4385 = vpop.f32.mrf.mxu0
          %4386 = vdwg.mxu0
          %4387 = vmatpush.bf16.msra.mxu0 %v2935
          %4388 = vmatpush.bf16.msra.mxu0 %v2931
          %4389 = vmatpush.bf16.msra.mxu0 %v2927
          %4390 = vmatpush.bf16.msra.mxu0 %v2923
          %4391 = vmatpush.bf16.msra.mxu0 %v2919
          %4392 = vmatpush.bf16.msra.mxu0 %v2915
          %4393 = vmatpush.bf16.msra.mxu0 %v2911
          %4394 = vmatpush.bf16.msra.mxu0 %v2907
          %4395 = vmatmul.bf16.gmra.mxu0 %v4175
          %v4396 = vpop.f32.mrf.mxu0
          %v4397 = vadd.f32 %v4384, %v4396
          %v4398 = vpop.f32.mrf.mxu0
          %4399 = vdwg.mxu0
          %4400 = vmatpush.bf16.msra.mxu0 %v2904
          %4401 = vmatpush.bf16.msra.mxu0 %v2900
          %4402 = vmatpush.bf16.msra.mxu0 %v2896
          %4403 = vmatpush.bf16.msra.mxu0 %v2892
          %4404 = vmatpush.bf16.msra.mxu0 %v2888
          %4405 = vmatpush.bf16.msra.mxu0 %v2884
          %4406 = vmatpush.bf16.msra.mxu0 %v2880
          %4407 = vmatpush.bf16.msra.mxu0 %v2876
          %4408 = vmatmul.bf16.gmra.mxu0 %v4347
          %v4409 = vpop.f32.mrf.mxu0
          %v4410 = vadd.f32 %v2676, %v4409
          %v4411 = vpop.f32.mrf.mxu0
          %4412 = vdwg.mxu0
          %4413 = vmatpush.bf16.msra.mxu0 %v2936
          %4414 = vmatpush.bf16.msra.mxu0 %v2932
          %4415 = vmatpush.bf16.msra.mxu0 %v2928
          %4416 = vmatpush.bf16.msra.mxu0 %v2924
          %4417 = vmatpush.bf16.msra.mxu0 %v2920
          %4418 = vmatpush.bf16.msra.mxu0 %v2916
          %4419 = vmatpush.bf16.msra.mxu0 %v2912
          %4420 = vmatpush.bf16.msra.mxu0 %v2908
          %4421 = vmatmul.bf16.gmra.mxu0 %v4175
          %v4422 = vpop.f32.mrf.mxu0
          %v4423 = vadd.f32 %v4410, %v4422
          %v4424 = vpop.f32.mrf.mxu0
          %4425 = vdwg.mxu0
          %4426 = vmatpush.bf16.msra.mxu0 %v2905
          %4427 = vmatpush.bf16.msra.mxu0 %v2901
          %4428 = vmatpush.bf16.msra.mxu0 %v2897
          %4429 = vmatpush.bf16.msra.mxu0 %v2893
          %4430 = vmatpush.bf16.msra.mxu0 %v2889
          %4431 = vmatpush.bf16.msra.mxu0 %v2885
          %4432 = vmatpush.bf16.msra.mxu0 %v2881
          %4433 = vmatpush.bf16.msra.mxu0 %v2877
          %4434 = vmatmul.bf16.gmra.mxu0 %v4347
          %v4435 = vpop.f32.mrf.mxu0
          %v4436 = vadd.f32 %v2677, %v4435
          %v4437 = vpop.f32.mrf.mxu0
          %4438 = vdwg.mxu0
          %4439 = vmatpush.bf16.msra.mxu0 %v2937
          %4440 = vmatpush.bf16.msra.mxu0 %v2933
          %4441 = vmatpush.bf16.msra.mxu0 %v2929
          %4442 = vmatpush.bf16.msra.mxu0 %v2925
          %4443 = vmatpush.bf16.msra.mxu0 %v2921
          %4444 = vmatpush.bf16.msra.mxu0 %v2917
          %4445 = vmatpush.bf16.msra.mxu0 %v2913
          %4446 = vmatpush.bf16.msra.mxu0 %v2909
          %4447 = vmatmul.bf16.gmra.mxu0 %v4175
          %v4448 = vpop.f32.mrf.mxu0
          %v4449 = vadd.f32 %v4436, %v4448
          %v4450 = vpop.f32.mrf.mxu0
          %4451 = vdwg.mxu0
          %v4452 = vxor.u32 %v4371, 2147483648
          %v4453 = vmul.f32 %v4452, 1.442695
          %v4454 = vpow.pop %v4453
          %v4455 = vadd.f32 %v4454, 1.0
          %v4456 = vrcp.pop %v4455
          %v4457 = vmul.f32 %v4455, %v4456
          %v4458 = vsub.f32 1.0, %v4457
          %v4459 = vmul.f32 %v4456, %v4458
          %v4460 = vadd.f32 %v4456, %v4459
          %vm4461 = vweird.f32 %v4455
          %vm4462 = vweird.f32 %v4456
          %vm4463 = vmor %vm4461, %vm4462
          %v4464 = vsel %vm4463, %v4456, %v4460
          %v4465 = vand.u32 2147483647, %v4455
          %vm4466 = vcmp.eq.f32.partialorder %v4465, 8.507059e+37
          %v4467 = vand.u32 %v4455, 2147483648
          %v4468 = vor.u32 1.1754944e-38, %v4467
          %v4469 = vsel %vm4466, %v4468, %v4464
          %v4470 = vmul.f32 1.0, %v4469
          %v4471 = vxor.u32 %v4397, 2147483648
          %v4472 = vmul.f32 %v4471, 1.442695
          %v4473 = vpow.pop %v4472
          %v4474 = vadd.f32 %v4473, 1.0
          %v4475 = vrcp.pop %v4474
          %v4476 = vmul.f32 %v4474, %v4475
          %v4477 = vsub.f32 1.0, %v4476
          %v4478 = vmul.f32 %v4475, %v4477
          %v4479 = vadd.f32 %v4475, %v4478
          %vm4480 = vweird.f32 %v4474
          %vm4481 = vweird.f32 %v4475
          %vm4482 = vmor %vm4480, %vm4481
          %v4483 = vsel %vm4482, %v4475, %v4479
          %v4484 = vand.u32 2147483647, %v4474
          %vm4485 = vcmp.eq.f32.partialorder %v4484, 8.507059e+37
          %v4486 = vand.u32 %v4474, 2147483648
          %v4487 = vor.u32 1.1754944e-38, %v4486
          %v4488 = vsel %vm4485, %v4487, %v4483
          %v4489 = vmul.f32 1.0, %v4488
          %v4490 = vtanh.pop %v4423
          %v4491 = vxor.u32 %v4449, 2147483648
          %v4492 = vmul.f32 %v4491, 1.442695
          %v4493 = vpow.pop %v4492
          %v4494 = vadd.f32 %v4493, 1.0
          %v4495 = vrcp.pop %v4494
          %v4496 = vmul.f32 %v4494, %v4495
          %v4497 = vsub.f32 1.0, %v4496
          %v4498 = vmul.f32 %v4495, %v4497
          %v4499 = vadd.f32 %v4495, %v4498
          %vm4500 = vweird.f32 %v4494
          %vm4501 = vweird.f32 %v4495
          %vm4502 = vmor %vm4500, %vm4501
          %v4503 = vsel %vm4502, %v4495, %v4499
          %v4504 = vand.u32 2147483647, %v4494
          %vm4505 = vcmp.eq.f32.partialorder %v4504, 8.507059e+37
          %v4506 = vand.u32 %v4494, 2147483648
          %v4507 = vor.u32 1.1754944e-38, %v4506
          %v4508 = vsel %vm4505, %v4507, %v4503
          %v4509 = vmul.f32 1.0, %v4508
          %v4510 = vmul.f32 %v4489, %v4172
          %v4511 = vmul.f32 %v4470, %v4490
          %v4512 = vadd.f32 %v4510, %v4511
          %v4513 = vtanh.pop %v4512
          %v4514 = vmul.f32 %v4509, %v4513
          %v4515 = vpack.c.bf16 %v4514, %v4514
          %v4516 = vpack.c.bf16 %v4343, %v4343
          %4517 = vmatpush.bf16.msra.mxu0 %v3399
          %4518 = vmatpush.bf16.msra.mxu0 %v3395
          %4519 = vmatpush.bf16.msra.mxu0 %v3391
          %4520 = vmatpush.bf16.msra.mxu0 %v3387
          %4521 = vmatpush.bf16.msra.mxu0 %v3383
          %4522 = vmatpush.bf16.msra.mxu0 %v3379
          %4523 = vmatpush.bf16.msra.mxu0 %v3375
          %4524 = vmatpush.bf16.msra.mxu0 %v3371
          %4525 = vmatmul.bf16.gmra.mxu0 %v4515
          %v4526 = vpop.f32.mrf.mxu0
          %v4527 = vadd.f32 %v3171, %v4526
          %v4528 = vpop.f32.mrf.mxu0
          %4529 = vdwg.mxu0
          %4530 = vmatpush.bf16.msra.mxu0 %v3431
          %4531 = vmatpush.bf16.msra.mxu0 %v3427
          %4532 = vmatpush.bf16.msra.mxu0 %v3423
          %4533 = vmatpush.bf16.msra.mxu0 %v3419
          %4534 = vmatpush.bf16.msra.mxu0 %v3415
          %4535 = vmatpush.bf16.msra.mxu0 %v3411
          %4536 = vmatpush.bf16.msra.mxu0 %v3407
          %4537 = vmatpush.bf16.msra.mxu0 %v3403
          %4538 = vmatmul.bf16.gmra.mxu0 %v4516
          %v4539 = vpop.f32.mrf.mxu0
          %v4540 = vadd.f32 %v4527, %v4539
          %v4541 = vpop.f32.mrf.mxu0
          %4542 = vdwg.mxu0
          %4543 = vmatpush.bf16.msra.mxu0 %v3400
          %4544 = vmatpush.bf16.msra.mxu0 %v3396
          %4545 = vmatpush.bf16.msra.mxu0 %v3392
          %4546 = vmatpush.bf16.msra.mxu0 %v3388
          %4547 = vmatpush.bf16.msra.mxu0 %v3384
          %4548 = vmatpush.bf16.msra.mxu0 %v3380
          %4549 = vmatpush.bf16.msra.mxu0 %v3376
          %4550 = vmatpush.bf16.msra.mxu0 %v3372
          %4551 = vmatmul.bf16.gmra.mxu0 %v4515
          %v4552 = vpop.f32.mrf.mxu0
          %v4553 = vadd.f32 %v3172, %v4552
          %v4554 = vpop.f32.mrf.mxu0
          %4555 = vdwg.mxu0
          %4556 = vmatpush.bf16.msra.mxu0 %v3432
          %4557 = vmatpush.bf16.msra.mxu0 %v3428
          %4558 = vmatpush.bf16.msra.mxu0 %v3424
          %4559 = vmatpush.bf16.msra.mxu0 %v3420
          %4560 = vmatpush.bf16.msra.mxu0 %v3416
          %4561 = vmatpush.bf16.msra.mxu0 %v3412
          %4562 = vmatpush.bf16.msra.mxu0 %v3408
          %4563 = vmatpush.bf16.msra.mxu0 %v3404
          %4564 = vmatmul.bf16.gmra.mxu0 %v4516
          %v4565 = vpop.f32.mrf.mxu0
          %v4566 = vadd.f32 %v4553, %v4565
          %v4567 = vpop.f32.mrf.mxu0
          %4568 = vdwg.mxu0
          %4569 = vmatpush.bf16.msra.mxu0 %v3401
          %4570 = vmatpush.bf16.msra.mxu0 %v3397
          %4571 = vmatpush.bf16.msra.mxu0 %v3393
          %4572 = vmatpush.bf16.msra.mxu0 %v3389
          %4573 = vmatpush.bf16.msra.mxu0 %v3385
          %4574 = vmatpush.bf16.msra.mxu0 %v3381
          %4575 = vmatpush.bf16.msra.mxu0 %v3377
          %4576 = vmatpush.bf16.msra.mxu0 %v3373
          %4577 = vmatmul.bf16.gmra.mxu0 %v4515
          %v4578 = vpop.f32.mrf.mxu0
          %v4579 = vadd.f32 %v3173, %v4578
          %v4580 = vpop.f32.mrf.mxu0
          %4581 = vdwg.mxu0
          %4582 = vmatpush.bf16.msra.mxu0 %v3433
          %4583 = vmatpush.bf16.msra.mxu0 %v3429
          %4584 = vmatpush.bf16.msra.mxu0 %v3425
          %4585 = vmatpush.bf16.msra.mxu0 %v3421
          %4586 = vmatpush.bf16.msra.mxu0 %v3417
          %4587 = vmatpush.bf16.msra.mxu0 %v3413
          %4588 = vmatpush.bf16.msra.mxu0 %v3409
          %4589 = vmatpush.bf16.msra.mxu0 %v3405
          %4590 = vmatmul.bf16.gmra.mxu0 %v4516
          %v4591 = vpop.f32.mrf.mxu0
          %v4592 = vadd.f32 %v4579, %v4591
          %v4593 = vpop.f32.mrf.mxu0
          %4594 = vdwg.mxu0
          %4595 = vmatpush.bf16.msra.mxu0 %v3402
          %4596 = vmatpush.bf16.msra.mxu0 %v3398
          %4597 = vmatpush.bf16.msra.mxu0 %v3394
          %4598 = vmatpush.bf16.msra.mxu0 %v3390
          %4599 = vmatpush.bf16.msra.mxu0 %v3386
          %4600 = vmatpush.bf16.msra.mxu0 %v3382
          %4601 = vmatpush.bf16.msra.mxu0 %v3378
          %4602 = vmatpush.bf16.msra.mxu0 %v3374
          %4603 = vmatmul.bf16.gmra.mxu0 %v4515
          %v4604 = vpop.f32.mrf.mxu0
          %v4605 = vadd.f32 %v3174, %v4604
          %v4606 = vpop.f32.mrf.mxu0
          %4607 = vdwg.mxu0
          %4608 = vmatpush.bf16.msra.mxu0 %v3434
          %4609 = vmatpush.bf16.msra.mxu0 %v3430
          %4610 = vmatpush.bf16.msra.mxu0 %v3426
          %4611 = vmatpush.bf16.msra.mxu0 %v3422
          %4612 = vmatpush.bf16.msra.mxu0 %v3418
          %4613 = vmatpush.bf16.msra.mxu0 %v3414
          %4614 = vmatpush.bf16.msra.mxu0 %v3410
          %4615 = vmatpush.bf16.msra.mxu0 %v3406
          %4616 = vmatmul.bf16.gmra.mxu0 %v4516
          %v4617 = vpop.f32.mrf.mxu0
          %v4618 = vadd.f32 %v4605, %v4617
          %v4619 = vpop.f32.mrf.mxu0
          %4620 = vdwg.mxu0
          %v4621 = vxor.u32 %v4540, 2147483648
          %v4622 = vmul.f32 %v4621, 1.442695
          %v4623 = vpow.pop %v4622
          %v4624 = vadd.f32 %v4623, 1.0
          %v4625 = vrcp.pop %v4624
          %v4626 = vmul.f32 %v4624, %v4625
          %v4627 = vsub.f32 1.0, %v4626
          %v4628 = vmul.f32 %v4625, %v4627
          %v4629 = vadd.f32 %v4625, %v4628
          %vm4630 = vweird.f32 %v4624
          %vm4631 = vweird.f32 %v4625
          %vm4632 = vmor %vm4630, %vm4631
          %v4633 = vsel %vm4632, %v4625, %v4629
          %v4634 = vand.u32 2147483647, %v4624
          %vm4635 = vcmp.eq.f32.partialorder %v4634, 8.507059e+37
          %v4636 = vand.u32 %v4624, 2147483648
          %v4637 = vor.u32 1.1754944e-38, %v4636
          %v4638 = vsel %vm4635, %v4637, %v4633
          %v4639 = vmul.f32 1.0, %v4638
          %v4640 = vxor.u32 %v4566, 2147483648
          %v4641 = vmul.f32 %v4640, 1.442695
          %v4642 = vpow.pop %v4641
          %v4643 = vadd.f32 %v4642, 1.0
          %v4644 = vrcp.pop %v4643
          %v4645 = vmul.f32 %v4643, %v4644
          %v4646 = vsub.f32 1.0, %v4645
          %v4647 = vmul.f32 %v4644, %v4646
          %v4648 = vadd.f32 %v4644, %v4647
          %vm4649 = vweird.f32 %v4643
          %vm4650 = vweird.f32 %v4644
          %vm4651 = vmor %vm4649, %vm4650
          %v4652 = vsel %vm4651, %v4644, %v4648
          %v4653 = vand.u32 2147483647, %v4643
          %vm4654 = vcmp.eq.f32.partialorder %v4653, 8.507059e+37
          %v4655 = vand.u32 %v4643, 2147483648
          %v4656 = vor.u32 1.1754944e-38, %v4655
          %v4657 = vsel %vm4654, %v4656, %v4652
          %v4658 = vmul.f32 1.0, %v4657
          %v4659 = vtanh.pop %v4592
          %v4660 = vxor.u32 %v4618, 2147483648
          %v4661 = vmul.f32 %v4660, 1.442695
          %v4662 = vpow.pop %v4661
          %v4663 = vadd.f32 %v4662, 1.0
          %v4664 = vrcp.pop %v4663
          %v4665 = vmul.f32 %v4663, %v4664
          %v4666 = vsub.f32 1.0, %v4665
          %v4667 = vmul.f32 %v4664, %v4666
          %v4668 = vadd.f32 %v4664, %v4667
          %vm4669 = vweird.f32 %v4663
          %vm4670 = vweird.f32 %v4664
          %vm4671 = vmor %vm4669, %vm4670
          %v4672 = vsel %vm4671, %v4664, %v4668
          %v4673 = vand.u32 2147483647, %v4663
          %vm4674 = vcmp.eq.f32.partialorder %v4673, 8.507059e+37
          %v4675 = vand.u32 %v4663, 2147483648
          %v4676 = vor.u32 1.1754944e-38, %v4675
          %v4677 = vsel %vm4674, %v4676, %v4672
          %v4678 = vmul.f32 1.0, %v4677
          %v4679 = vmul.f32 %v4658, %v4341
          %v4680 = vmul.f32 %v4639, %v4659
          %v4681 = vadd.f32 %v4679, %v4680
          %v4682 = vtanh.pop %v4681
          %v4683 = vmul.f32 %v4678, %v4682
          %s4684 = scalar_lea.vmem [#allocation3], 24
          %4685 = vst [vmem:[%s4684] sm:$0xff] %v4683
          %s4686 = scalar_lea.vmem %s0, 12
          %v4687 = vld [vmem:[%s4686] sm:$0xf]
          %4688 = vmatpush.bf16.msra.mxu0 %v2902
          %4689 = vmatpush.bf16.msra.mxu0 %v2898
          %4690 = vmatpush.bf16.msra.mxu0 %v2894
          %4691 = vmatpush.bf16.msra.mxu0 %v2890
          %4692 = vmatpush.bf16.msra.mxu0 %v2886
          %4693 = vmatpush.bf16.msra.mxu0 %v2882
          %4694 = vmatpush.bf16.msra.mxu0 %v2878
          %4695 = vmatpush.bf16.msra.mxu0 %v2874
          %4696 = vmatmul.bf16.gmra.mxu0 %v4687
          %v4697 = vpop.f32.mrf.mxu0
          %v4698 = vadd.f32 %v2674, %v4697
          %v4699 = vpop.f32.mrf.mxu0
          %4700 = vdwg.mxu0
          %4701 = vmatpush.bf16.msra.mxu0 %v2934
          %4702 = vmatpush.bf16.msra.mxu0 %v2930
          %4703 = vmatpush.bf16.msra.mxu0 %v2926
          %4704 = vmatpush.bf16.msra.mxu0 %v2922
          %4705 = vmatpush.bf16.msra.mxu0 %v2918
          %4706 = vmatpush.bf16.msra.mxu0 %v2914
          %4707 = vmatpush.bf16.msra.mxu0 %v2910
          %4708 = vmatpush.bf16.msra.mxu0 %v2906
          %4709 = vmatmul.bf16.gmra.mxu0 %v4515
          %v4710 = vpop.f32.mrf.mxu0
          %v4711 = vadd.f32 %v4698, %v4710
          %v4712 = vpop.f32.mrf.mxu0
          %4713 = vdwg.mxu0
          %4714 = vmatpush.bf16.msra.mxu0 %v2903
          %4715 = vmatpush.bf16.msra.mxu0 %v2899
          %4716 = vmatpush.bf16.msra.mxu0 %v2895
          %4717 = vmatpush.bf16.msra.mxu0 %v2891
          %4718 = vmatpush.bf16.msra.mxu0 %v2887
          %4719 = vmatpush.bf16.msra.mxu0 %v2883
          %4720 = vmatpush.bf16.msra.mxu0 %v2879
          %4721 = vmatpush.bf16.msra.mxu0 %v2875
          %4722 = vmatmul.bf16.gmra.mxu0 %v4687
          %v4723 = vpop.f32.mrf.mxu0
          %v4724 = vadd.f32 %v2675, %v4723
          %v4725 = vpop.f32.mrf.mxu0
          %4726 = vdwg.mxu0
          %4727 = vmatpush.bf16.msra.mxu0 %v2935
          %4728 = vmatpush.bf16.msra.mxu0 %v2931
          %4729 = vmatpush.bf16.msra.mxu0 %v2927
          %4730 = vmatpush.bf16.msra.mxu0 %v2923
          %4731 = vmatpush.bf16.msra.mxu0 %v2919
          %4732 = vmatpush.bf16.msra.mxu0 %v2915
          %4733 = vmatpush.bf16.msra.mxu0 %v2911
          %4734 = vmatpush.bf16.msra.mxu0 %v2907
          %4735 = vmatmul.bf16.gmra.mxu0 %v4515
          %v4736 = vpop.f32.mrf.mxu0
          %v4737 = vadd.f32 %v4724, %v4736
          %v4738 = vpop.f32.mrf.mxu0
          %4739 = vdwg.mxu0
          %4740 = vmatpush.bf16.msra.mxu0 %v2904
          %4741 = vmatpush.bf16.msra.mxu0 %v2900
          %4742 = vmatpush.bf16.msra.mxu0 %v2896
          %4743 = vmatpush.bf16.msra.mxu0 %v2892
          %4744 = vmatpush.bf16.msra.mxu0 %v2888
          %4745 = vmatpush.bf16.msra.mxu0 %v2884
          %4746 = vmatpush.bf16.msra.mxu0 %v2880
          %4747 = vmatpush.bf16.msra.mxu0 %v2876
          %4748 = vmatmul.bf16.gmra.mxu0 %v4687
          %v4749 = vpop.f32.mrf.mxu0
          %v4750 = vadd.f32 %v2676, %v4749
          %v4751 = vpop.f32.mrf.mxu0
          %4752 = vdwg.mxu0
          %4753 = vmatpush.bf16.msra.mxu0 %v2936
          %4754 = vmatpush.bf16.msra.mxu0 %v2932
          %4755 = vmatpush.bf16.msra.mxu0 %v2928
          %4756 = vmatpush.bf16.msra.mxu0 %v2924
          %4757 = vmatpush.bf16.msra.mxu0 %v2920
          %4758 = vmatpush.bf16.msra.mxu0 %v2916
          %4759 = vmatpush.bf16.msra.mxu0 %v2912
          %4760 = vmatpush.bf16.msra.mxu0 %v2908
          %4761 = vmatmul.bf16.gmra.mxu0 %v4515
          %v4762 = vpop.f32.mrf.mxu0
          %v4763 = vadd.f32 %v4750, %v4762
          %v4764 = vpop.f32.mrf.mxu0
          %4765 = vdwg.mxu0
          %4766 = vmatpush.bf16.msra.mxu0 %v2905
          %4767 = vmatpush.bf16.msra.mxu0 %v2901
          %4768 = vmatpush.bf16.msra.mxu0 %v2897
          %4769 = vmatpush.bf16.msra.mxu0 %v2893
          %4770 = vmatpush.bf16.msra.mxu0 %v2889
          %4771 = vmatpush.bf16.msra.mxu0 %v2885
          %4772 = vmatpush.bf16.msra.mxu0 %v2881
          %4773 = vmatpush.bf16.msra.mxu0 %v2877
          %4774 = vmatmul.bf16.gmra.mxu0 %v4687
          %v4775 = vpop.f32.mrf.mxu0
          %v4776 = vadd.f32 %v2677, %v4775
          %v4777 = vpop.f32.mrf.mxu0
          %4778 = vdwg.mxu0
          %4779 = vmatpush.bf16.msra.mxu0 %v2937
          %4780 = vmatpush.bf16.msra.mxu0 %v2933
          %4781 = vmatpush.bf16.msra.mxu0 %v2929
          %4782 = vmatpush.bf16.msra.mxu0 %v2925
          %4783 = vmatpush.bf16.msra.mxu0 %v2921
          %4784 = vmatpush.bf16.msra.mxu0 %v2917
          %4785 = vmatpush.bf16.msra.mxu0 %v2913
          %4786 = vmatpush.bf16.msra.mxu0 %v2909
          %4787 = vmatmul.bf16.gmra.mxu0 %v4515
          %v4788 = vpop.f32.mrf.mxu0
          %v4789 = vadd.f32 %v4776, %v4788
          %v4790 = vpop.f32.mrf.mxu0
          %4791 = vdwg.mxu0
          %v4792 = vxor.u32 %v4711, 2147483648
          %v4793 = vmul.f32 %v4792, 1.442695
          %v4794 = vpow.pop %v4793
          %v4795 = vadd.f32 %v4794, 1.0
          %v4796 = vrcp.pop %v4795
          %v4797 = vmul.f32 %v4795, %v4796
          %v4798 = vsub.f32 1.0, %v4797
          %v4799 = vmul.f32 %v4796, %v4798
          %v4800 = vadd.f32 %v4796, %v4799
          %vm4801 = vweird.f32 %v4795
          %vm4802 = vweird.f32 %v4796
          %vm4803 = vmor %vm4801, %vm4802
          %v4804 = vsel %vm4803, %v4796, %v4800
          %v4805 = vand.u32 2147483647, %v4795
          %vm4806 = vcmp.eq.f32.partialorder %v4805, 8.507059e+37
          %v4807 = vand.u32 %v4795, 2147483648
          %v4808 = vor.u32 1.1754944e-38, %v4807
          %v4809 = vsel %vm4806, %v4808, %v4804
          %v4810 = vmul.f32 1.0, %v4809
          %v4811 = vxor.u32 %v4737, 2147483648
          %v4812 = vmul.f32 %v4811, 1.442695
          %v4813 = vpow.pop %v4812
          %v4814 = vadd.f32 %v4813, 1.0
          %v4815 = vrcp.pop %v4814
          %v4816 = vmul.f32 %v4814, %v4815
          %v4817 = vsub.f32 1.0, %v4816
          %v4818 = vmul.f32 %v4815, %v4817
          %v4819 = vadd.f32 %v4815, %v4818
          %vm4820 = vweird.f32 %v4814
          %vm4821 = vweird.f32 %v4815
          %vm4822 = vmor %vm4820, %vm4821
          %v4823 = vsel %vm4822, %v4815, %v4819
          %v4824 = vand.u32 2147483647, %v4814
          %vm4825 = vcmp.eq.f32.partialorder %v4824, 8.507059e+37
          %v4826 = vand.u32 %v4814, 2147483648
          %v4827 = vor.u32 1.1754944e-38, %v4826
          %v4828 = vsel %vm4825, %v4827, %v4823
          %v4829 = vmul.f32 1.0, %v4828
          %v4830 = vtanh.pop %v4763
          %v4831 = vxor.u32 %v4789, 2147483648
          %v4832 = vmul.f32 %v4831, 1.442695
          %v4833 = vpow.pop %v4832
          %v4834 = vadd.f32 %v4833, 1.0
          %v4835 = vrcp.pop %v4834
          %v4836 = vmul.f32 %v4834, %v4835
          %v4837 = vsub.f32 1.0, %v4836
          %v4838 = vmul.f32 %v4835, %v4837
          %v4839 = vadd.f32 %v4835, %v4838
          %vm4840 = vweird.f32 %v4834
          %vm4841 = vweird.f32 %v4835
          %vm4842 = vmor %vm4840, %vm4841
          %v4843 = vsel %vm4842, %v4835, %v4839
          %v4844 = vand.u32 2147483647, %v4834
          %vm4845 = vcmp.eq.f32.partialorder %v4844, 8.507059e+37
          %v4846 = vand.u32 %v4834, 2147483648
          %v4847 = vor.u32 1.1754944e-38, %v4846
          %v4848 = vsel %vm4845, %v4847, %v4843
          %v4849 = vmul.f32 1.0, %v4848
          %v4850 = vmul.f32 %v4829, %v4512
          %v4851 = vmul.f32 %v4810, %v4830
          %v4852 = vadd.f32 %v4850, %v4851
          %v4853 = vtanh.pop %v4852
          %v4854 = vmul.f32 %v4849, %v4853
          %v4855 = vpack.c.bf16 %v4854, %v4854
          %v4856 = vpack.c.bf16 %v4683, %v4683
          %4857 = vmatpush.bf16.msra.mxu0 %v3399
          %4858 = vmatpush.bf16.msra.mxu0 %v3395
          %4859 = vmatpush.bf16.msra.mxu0 %v3391
          %4860 = vmatpush.bf16.msra.mxu0 %v3387
          %4861 = vmatpush.bf16.msra.mxu0 %v3383
          %4862 = vmatpush.bf16.msra.mxu0 %v3379
          %4863 = vmatpush.bf16.msra.mxu0 %v3375
          %4864 = vmatpush.bf16.msra.mxu0 %v3371
          %4865 = vmatmul.bf16.gmra.mxu0 %v4855
          %v4866 = vpop.f32.mrf.mxu0
          %v4867 = vadd.f32 %v3171, %v4866
          %v4868 = vpop.f32.mrf.mxu0
          %4869 = vdwg.mxu0
          %4870 = vmatpush.bf16.msra.mxu0 %v3431
          %4871 = vmatpush.bf16.msra.mxu0 %v3427
          %4872 = vmatpush.bf16.msra.mxu0 %v3423
          %4873 = vmatpush.bf16.msra.mxu0 %v3419
          %4874 = vmatpush.bf16.msra.mxu0 %v3415
          %4875 = vmatpush.bf16.msra.mxu0 %v3411
          %4876 = vmatpush.bf16.msra.mxu0 %v3407
          %4877 = vmatpush.bf16.msra.mxu0 %v3403
          %4878 = vmatmul.bf16.gmra.mxu0 %v4856
          %v4879 = vpop.f32.mrf.mxu0
          %v4880 = vadd.f32 %v4867, %v4879
          %v4881 = vpop.f32.mrf.mxu0
          %4882 = vdwg.mxu0
          %4883 = vmatpush.bf16.msra.mxu0 %v3400
          %4884 = vmatpush.bf16.msra.mxu0 %v3396
          %4885 = vmatpush.bf16.msra.mxu0 %v3392
          %4886 = vmatpush.bf16.msra.mxu0 %v3388
          %4887 = vmatpush.bf16.msra.mxu0 %v3384
          %4888 = vmatpush.bf16.msra.mxu0 %v3380
          %4889 = vmatpush.bf16.msra.mxu0 %v3376
          %4890 = vmatpush.bf16.msra.mxu0 %v3372
          %4891 = vmatmul.bf16.gmra.mxu0 %v4855
          %v4892 = vpop.f32.mrf.mxu0
          %v4893 = vadd.f32 %v3172, %v4892
          %v4894 = vpop.f32.mrf.mxu0
          %4895 = vdwg.mxu0
          %4896 = vmatpush.bf16.msra.mxu0 %v3432
          %4897 = vmatpush.bf16.msra.mxu0 %v3428
          %4898 = vmatpush.bf16.msra.mxu0 %v3424
          %4899 = vmatpush.bf16.msra.mxu0 %v3420
          %4900 = vmatpush.bf16.msra.mxu0 %v3416
          %4901 = vmatpush.bf16.msra.mxu0 %v3412
          %4902 = vmatpush.bf16.msra.mxu0 %v3408
          %4903 = vmatpush.bf16.msra.mxu0 %v3404
          %4904 = vmatmul.bf16.gmra.mxu0 %v4856
          %v4905 = vpop.f32.mrf.mxu0
          %v4906 = vadd.f32 %v4893, %v4905
          %v4907 = vpop.f32.mrf.mxu0
          %4908 = vdwg.mxu0
          %4909 = vmatpush.bf16.msra.mxu0 %v3401
          %4910 = vmatpush.bf16.msra.mxu0 %v3397
          %4911 = vmatpush.bf16.msra.mxu0 %v3393
          %4912 = vmatpush.bf16.msra.mxu0 %v3389
          %4913 = vmatpush.bf16.msra.mxu0 %v3385
          %4914 = vmatpush.bf16.msra.mxu0 %v3381
          %4915 = vmatpush.bf16.msra.mxu0 %v3377
          %4916 = vmatpush.bf16.msra.mxu0 %v3373
          %4917 = vmatmul.bf16.gmra.mxu0 %v4855
          %v4918 = vpop.f32.mrf.mxu0
          %v4919 = vadd.f32 %v3173, %v4918
          %v4920 = vpop.f32.mrf.mxu0
          %4921 = vdwg.mxu0
          %4922 = vmatpush.bf16.msra.mxu0 %v3433
          %4923 = vmatpush.bf16.msra.mxu0 %v3429
          %4924 = vmatpush.bf16.msra.mxu0 %v3425
          %4925 = vmatpush.bf16.msra.mxu0 %v3421
          %4926 = vmatpush.bf16.msra.mxu0 %v3417
          %4927 = vmatpush.bf16.msra.mxu0 %v3413
          %4928 = vmatpush.bf16.msra.mxu0 %v3409
          %4929 = vmatpush.bf16.msra.mxu0 %v3405
          %4930 = vmatmul.bf16.gmra.mxu0 %v4856
          %v4931 = vpop.f32.mrf.mxu0
          %v4932 = vadd.f32 %v4919, %v4931
          %v4933 = vpop.f32.mrf.mxu0
          %4934 = vdwg.mxu0
          %4935 = vmatpush.bf16.msra.mxu0 %v3402
          %4936 = vmatpush.bf16.msra.mxu0 %v3398
          %4937 = vmatpush.bf16.msra.mxu0 %v3394
          %4938 = vmatpush.bf16.msra.mxu0 %v3390
          %4939 = vmatpush.bf16.msra.mxu0 %v3386
          %4940 = vmatpush.bf16.msra.mxu0 %v3382
          %4941 = vmatpush.bf16.msra.mxu0 %v3378
          %4942 = vmatpush.bf16.msra.mxu0 %v3374
          %4943 = vmatmul.bf16.gmra.mxu0 %v4855
          %v4944 = vpop.f32.mrf.mxu0
          %v4945 = vadd.f32 %v3174, %v4944
          %v4946 = vpop.f32.mrf.mxu0
          %4947 = vdwg.mxu0
          %4948 = vmatpush.bf16.msra.mxu0 %v3434
          %4949 = vmatpush.bf16.msra.mxu0 %v3430
          %4950 = vmatpush.bf16.msra.mxu0 %v3426
          %4951 = vmatpush.bf16.msra.mxu0 %v3422
          %4952 = vmatpush.bf16.msra.mxu0 %v3418
          %4953 = vmatpush.bf16.msra.mxu0 %v3414
          %4954 = vmatpush.bf16.msra.mxu0 %v3410
          %4955 = vmatpush.bf16.msra.mxu0 %v3406
          %4956 = vmatmul.bf16.gmra.mxu0 %v4856
          %v4957 = vpop.f32.mrf.mxu0
          %v4958 = vadd.f32 %v4945, %v4957
          %v4959 = vpop.f32.mrf.mxu0
          %4960 = vdwg.mxu0
          %v4961 = vxor.u32 %v4880, 2147483648
          %v4962 = vmul.f32 %v4961, 1.442695
          %v4963 = vpow.pop %v4962
          %v4964 = vadd.f32 %v4963, 1.0
          %v4965 = vrcp.pop %v4964
          %v4966 = vmul.f32 %v4964, %v4965
          %v4967 = vsub.f32 1.0, %v4966
          %v4968 = vmul.f32 %v4965, %v4967
          %v4969 = vadd.f32 %v4965, %v4968
          %vm4970 = vweird.f32 %v4964
          %vm4971 = vweird.f32 %v4965
          %vm4972 = vmor %vm4970, %vm4971
          %v4973 = vsel %vm4972, %v4965, %v4969
          %v4974 = vand.u32 2147483647, %v4964
          %vm4975 = vcmp.eq.f32.partialorder %v4974, 8.507059e+37
          %v4976 = vand.u32 %v4964, 2147483648
          %v4977 = vor.u32 1.1754944e-38, %v4976
          %v4978 = vsel %vm4975, %v4977, %v4973
          %v4979 = vmul.f32 1.0, %v4978
          %v4980 = vxor.u32 %v4906, 2147483648
          %v4981 = vmul.f32 %v4980, 1.442695
          %v4982 = vpow.pop %v4981
          %v4983 = vadd.f32 %v4982, 1.0
          %v4984 = vrcp.pop %v4983
          %v4985 = vmul.f32 %v4983, %v4984
          %v4986 = vsub.f32 1.0, %v4985
          %v4987 = vmul.f32 %v4984, %v4986
          %v4988 = vadd.f32 %v4984, %v4987
          %vm4989 = vweird.f32 %v4983
          %vm4990 = vweird.f32 %v4984
          %vm4991 = vmor %vm4989, %vm4990
          %v4992 = vsel %vm4991, %v4984, %v4988
          %v4993 = vand.u32 2147483647, %v4983
          %vm4994 = vcmp.eq.f32.partialorder %v4993, 8.507059e+37
          %v4995 = vand.u32 %v4983, 2147483648
          %v4996 = vor.u32 1.1754944e-38, %v4995
          %v4997 = vsel %vm4994, %v4996, %v4992
          %v4998 = vmul.f32 1.0, %v4997
          %v4999 = vtanh.pop %v4932
          %v5000 = vxor.u32 %v4958, 2147483648
          %v5001 = vmul.f32 %v5000, 1.442695
          %v5002 = vpow.pop %v5001
          %v5003 = vadd.f32 %v5002, 1.0
          %v5004 = vrcp.pop %v5003
          %v5005 = vmul.f32 %v5003, %v5004
          %v5006 = vsub.f32 1.0, %v5005
          %v5007 = vmul.f32 %v5004, %v5006
          %v5008 = vadd.f32 %v5004, %v5007
          %vm5009 = vweird.f32 %v5003
          %vm5010 = vweird.f32 %v5004
          %vm5011 = vmor %vm5009, %vm5010
          %v5012 = vsel %vm5011, %v5004, %v5008
          %v5013 = vand.u32 2147483647, %v5003
          %vm5014 = vcmp.eq.f32.partialorder %v5013, 8.507059e+37
          %v5015 = vand.u32 %v5003, 2147483648
          %v5016 = vor.u32 1.1754944e-38, %v5015
          %v5017 = vsel %vm5014, %v5016, %v5012
          %v5018 = vmul.f32 1.0, %v5017
          %v5019 = vmul.f32 %v4998, %v4681
          %v5020 = vmul.f32 %v4979, %v4999
          %v5021 = vadd.f32 %v5019, %v5020
          %v5022 = vtanh.pop %v5021
          %v5023 = vmul.f32 %v5018, %v5022
          %s5024 = scalar_lea.vmem [#allocation3], 32
          %5025 = vst [vmem:[%s5024] sm:$0xff] %v5023
          %s5026 = scalar_lea.vmem %s0, 16
          %v5027 = vld [vmem:[%s5026] sm:$0xf]
          %5028 = vmatpush.bf16.msra.mxu0 %v2902
          %5029 = vmatpush.bf16.msra.mxu0 %v2898
          %5030 = vmatpush.bf16.msra.mxu0 %v2894
          %5031 = vmatpush.bf16.msra.mxu0 %v2890
          %5032 = vmatpush.bf16.msra.mxu0 %v2886
          %5033 = vmatpush.bf16.msra.mxu0 %v2882
          %5034 = vmatpush.bf16.msra.mxu0 %v2878
          %5035 = vmatpush.bf16.msra.mxu0 %v2874
          %5036 = vmatmul.bf16.gmra.mxu0 %v5027
          %v5037 = vpop.f32.mrf.mxu0
          %v5038 = vadd.f32 %v2674, %v5037
          %v5039 = vpop.f32.mrf.mxu0
          %5040 = vdwg.mxu0
          %5041 = vmatpush.bf16.msra.mxu0 %v2934
          %5042 = vmatpush.bf16.msra.mxu0 %v2930
          %5043 = vmatpush.bf16.msra.mxu0 %v2926
          %5044 = vmatpush.bf16.msra.mxu0 %v2922
          %5045 = vmatpush.bf16.msra.mxu0 %v2918
          %5046 = vmatpush.bf16.msra.mxu0 %v2914
          %5047 = vmatpush.bf16.msra.mxu0 %v2910
          %5048 = vmatpush.bf16.msra.mxu0 %v2906
          %5049 = vmatmul.bf16.gmra.mxu0 %v4855
          %v5050 = vpop.f32.mrf.mxu0
          %v5051 = vadd.f32 %v5038, %v5050
          %v5052 = vpop.f32.mrf.mxu0
          %5053 = vdwg.mxu0
          %5054 = vmatpush.bf16.msra.mxu0 %v2903
          %5055 = vmatpush.bf16.msra.mxu0 %v2899
          %5056 = vmatpush.bf16.msra.mxu0 %v2895
          %5057 = vmatpush.bf16.msra.mxu0 %v2891
          %5058 = vmatpush.bf16.msra.mxu0 %v2887
          %5059 = vmatpush.bf16.msra.mxu0 %v2883
          %5060 = vmatpush.bf16.msra.mxu0 %v2879
          %5061 = vmatpush.bf16.msra.mxu0 %v2875
          %5062 = vmatmul.bf16.gmra.mxu0 %v5027
          %v5063 = vpop.f32.mrf.mxu0
          %v5064 = vadd.f32 %v2675, %v5063
          %v5065 = vpop.f32.mrf.mxu0
          %5066 = vdwg.mxu0
          %5067 = vmatpush.bf16.msra.mxu0 %v2935
          %5068 = vmatpush.bf16.msra.mxu0 %v2931
          %5069 = vmatpush.bf16.msra.mxu0 %v2927
          %5070 = vmatpush.bf16.msra.mxu0 %v2923
          %5071 = vmatpush.bf16.msra.mxu0 %v2919
          %5072 = vmatpush.bf16.msra.mxu0 %v2915
          %5073 = vmatpush.bf16.msra.mxu0 %v2911
          %5074 = vmatpush.bf16.msra.mxu0 %v2907
          %5075 = vmatmul.bf16.gmra.mxu0 %v4855
          %v5076 = vpop.f32.mrf.mxu0
          %v5077 = vadd.f32 %v5064, %v5076
          %v5078 = vpop.f32.mrf.mxu0
          %5079 = vdwg.mxu0
          %5080 = vmatpush.bf16.msra.mxu0 %v2904
          %5081 = vmatpush.bf16.msra.mxu0 %v2900
          %5082 = vmatpush.bf16.msra.mxu0 %v2896
          %5083 = vmatpush.bf16.msra.mxu0 %v2892
          %5084 = vmatpush.bf16.msra.mxu0 %v2888
          %5085 = vmatpush.bf16.msra.mxu0 %v2884
          %5086 = vmatpush.bf16.msra.mxu0 %v2880
          %5087 = vmatpush.bf16.msra.mxu0 %v2876
          %5088 = vmatmul.bf16.gmra.mxu0 %v5027
          %v5089 = vpop.f32.mrf.mxu0
          %v5090 = vadd.f32 %v2676, %v5089
          %v5091 = vpop.f32.mrf.mxu0
          %5092 = vdwg.mxu0
          %5093 = vmatpush.bf16.msra.mxu0 %v2936
          %5094 = vmatpush.bf16.msra.mxu0 %v2932
          %5095 = vmatpush.bf16.msra.mxu0 %v2928
          %5096 = vmatpush.bf16.msra.mxu0 %v2924
          %5097 = vmatpush.bf16.msra.mxu0 %v2920
          %5098 = vmatpush.bf16.msra.mxu0 %v2916
          %5099 = vmatpush.bf16.msra.mxu0 %v2912
          %5100 = vmatpush.bf16.msra.mxu0 %v2908
          %5101 = vmatmul.bf16.gmra.mxu0 %v4855
          %v5102 = vpop.f32.mrf.mxu0
          %v5103 = vadd.f32 %v5090, %v5102
          %v5104 = vpop.f32.mrf.mxu0
          %5105 = vdwg.mxu0
          %5106 = vmatpush.bf16.msra.mxu0 %v2905
          %5107 = vmatpush.bf16.msra.mxu0 %v2901
          %5108 = vmatpush.bf16.msra.mxu0 %v2897
          %5109 = vmatpush.bf16.msra.mxu0 %v2893
          %5110 = vmatpush.bf16.msra.mxu0 %v2889
          %5111 = vmatpush.bf16.msra.mxu0 %v2885
          %5112 = vmatpush.bf16.msra.mxu0 %v2881
          %5113 = vmatpush.bf16.msra.mxu0 %v2877
          %5114 = vmatmul.bf16.gmra.mxu0 %v5027
          %v5115 = vpop.f32.mrf.mxu0
          %v5116 = vadd.f32 %v2677, %v5115
          %v5117 = vpop.f32.mrf.mxu0
          %5118 = vdwg.mxu0
          %5119 = vmatpush.bf16.msra.mxu0 %v2937
          %5120 = vmatpush.bf16.msra.mxu0 %v2933
          %5121 = vmatpush.bf16.msra.mxu0 %v2929
          %5122 = vmatpush.bf16.msra.mxu0 %v2925
          %5123 = vmatpush.bf16.msra.mxu0 %v2921
          %5124 = vmatpush.bf16.msra.mxu0 %v2917
          %5125 = vmatpush.bf16.msra.mxu0 %v2913
          %5126 = vmatpush.bf16.msra.mxu0 %v2909
          %5127 = vmatmul.bf16.gmra.mxu0 %v4855
          %v5128 = vpop.f32.mrf.mxu0
          %v5129 = vadd.f32 %v5116, %v5128
          %v5130 = vpop.f32.mrf.mxu0
          %5131 = vdwg.mxu0
          %v5132 = vxor.u32 %v5051, 2147483648
          %v5133 = vmul.f32 %v5132, 1.442695
          %v5134 = vpow.pop %v5133
          %v5135 = vadd.f32 %v5134, 1.0
          %v5136 = vrcp.pop %v5135
          %v5137 = vmul.f32 %v5135, %v5136
          %v5138 = vsub.f32 1.0, %v5137
          %v5139 = vmul.f32 %v5136, %v5138
          %v5140 = vadd.f32 %v5136, %v5139
          %vm5141 = vweird.f32 %v5135
          %vm5142 = vweird.f32 %v5136
          %vm5143 = vmor %vm5141, %vm5142
          %v5144 = vsel %vm5143, %v5136, %v5140
          %v5145 = vand.u32 2147483647, %v5135
          %vm5146 = vcmp.eq.f32.partialorder %v5145, 8.507059e+37
          %v5147 = vand.u32 %v5135, 2147483648
          %v5148 = vor.u32 1.1754944e-38, %v5147
          %v5149 = vsel %vm5146, %v5148, %v5144
          %v5150 = vmul.f32 1.0, %v5149
          %v5151 = vxor.u32 %v5077, 2147483648
          %v5152 = vmul.f32 %v5151, 1.442695
          %v5153 = vpow.pop %v5152
          %v5154 = vadd.f32 %v5153, 1.0
          %v5155 = vrcp.pop %v5154
          %v5156 = vmul.f32 %v5154, %v5155
          %v5157 = vsub.f32 1.0, %v5156
          %v5158 = vmul.f32 %v5155, %v5157
          %v5159 = vadd.f32 %v5155, %v5158
          %vm5160 = vweird.f32 %v5154
          %vm5161 = vweird.f32 %v5155
          %vm5162 = vmor %vm5160, %vm5161
          %v5163 = vsel %vm5162, %v5155, %v5159
          %v5164 = vand.u32 2147483647, %v5154
          %vm5165 = vcmp.eq.f32.partialorder %v5164, 8.507059e+37
          %v5166 = vand.u32 %v5154, 2147483648
          %v5167 = vor.u32 1.1754944e-38, %v5166
          %v5168 = vsel %vm5165, %v5167, %v5163
          %v5169 = vmul.f32 1.0, %v5168
          %v5170 = vtanh.pop %v5103
          %v5171 = vxor.u32 %v5129, 2147483648
          %v5172 = vmul.f32 %v5171, 1.442695
          %v5173 = vpow.pop %v5172
          %v5174 = vadd.f32 %v5173, 1.0
          %v5175 = vrcp.pop %v5174
          %v5176 = vmul.f32 %v5174, %v5175
          %v5177 = vsub.f32 1.0, %v5176
          %v5178 = vmul.f32 %v5175, %v5177
          %v5179 = vadd.f32 %v5175, %v5178
          %vm5180 = vweird.f32 %v5174
          %vm5181 = vweird.f32 %v5175
          %vm5182 = vmor %vm5180, %vm5181
          %v5183 = vsel %vm5182, %v5175, %v5179
          %v5184 = vand.u32 2147483647, %v5174
          %vm5185 = vcmp.eq.f32.partialorder %v5184, 8.507059e+37
          %v5186 = vand.u32 %v5174, 2147483648
          %v5187 = vor.u32 1.1754944e-38, %v5186
          %v5188 = vsel %vm5185, %v5187, %v5183
          %v5189 = vmul.f32 1.0, %v5188
          %v5190 = vmul.f32 %v5169, %v4852
          %v5191 = vmul.f32 %v5150, %v5170
          %v5192 = vadd.f32 %v5190, %v5191
          %v5193 = vtanh.pop %v5192
          %v5194 = vmul.f32 %v5189, %v5193
          %v5195 = vpack.c.bf16 %v5194, %v5194
          %v5196 = vpack.c.bf16 %v5023, %v5023
          %5197 = vmatpush.bf16.msra.mxu0 %v3399
          %5198 = vmatpush.bf16.msra.mxu0 %v3395
          %5199 = vmatpush.bf16.msra.mxu0 %v3391
          %5200 = vmatpush.bf16.msra.mxu0 %v3387
          %5201 = vmatpush.bf16.msra.mxu0 %v3383
          %5202 = vmatpush.bf16.msra.mxu0 %v3379
          %5203 = vmatpush.bf16.msra.mxu0 %v3375
          %5204 = vmatpush.bf16.msra.mxu0 %v3371
          %5205 = vmatmul.bf16.gmra.mxu0 %v5195
          %v5206 = vpop.f32.mrf.mxu0
          %v5207 = vadd.f32 %v3171, %v5206
          %v5208 = vpop.f32.mrf.mxu0
          %5209 = vdwg.mxu0
          %5210 = vmatpush.bf16.msra.mxu0 %v3431
          %5211 = vmatpush.bf16.msra.mxu0 %v3427
          %5212 = vmatpush.bf16.msra.mxu0 %v3423
          %5213 = vmatpush.bf16.msra.mxu0 %v3419
          %5214 = vmatpush.bf16.msra.mxu0 %v3415
          %5215 = vmatpush.bf16.msra.mxu0 %v3411
          %5216 = vmatpush.bf16.msra.mxu0 %v3407
          %5217 = vmatpush.bf16.msra.mxu0 %v3403
          %5218 = vmatmul.bf16.gmra.mxu0 %v5196
          %v5219 = vpop.f32.mrf.mxu0
          %v5220 = vadd.f32 %v5207, %v5219
          %v5221 = vpop.f32.mrf.mxu0
          %5222 = vdwg.mxu0
          %5223 = vmatpush.bf16.msra.mxu0 %v3400
          %5224 = vmatpush.bf16.msra.mxu0 %v3396
          %5225 = vmatpush.bf16.msra.mxu0 %v3392
          %5226 = vmatpush.bf16.msra.mxu0 %v3388
          %5227 = vmatpush.bf16.msra.mxu0 %v3384
          %5228 = vmatpush.bf16.msra.mxu0 %v3380
          %5229 = vmatpush.bf16.msra.mxu0 %v3376
          %5230 = vmatpush.bf16.msra.mxu0 %v3372
          %5231 = vmatmul.bf16.gmra.mxu0 %v5195
          %v5232 = vpop.f32.mrf.mxu0
          %v5233 = vadd.f32 %v3172, %v5232
          %v5234 = vpop.f32.mrf.mxu0
          %5235 = vdwg.mxu0
          %5236 = vmatpush.bf16.msra.mxu0 %v3432
          %5237 = vmatpush.bf16.msra.mxu0 %v3428
          %5238 = vmatpush.bf16.msra.mxu0 %v3424
          %5239 = vmatpush.bf16.msra.mxu0 %v3420
          %5240 = vmatpush.bf16.msra.mxu0 %v3416
          %5241 = vmatpush.bf16.msra.mxu0 %v3412
          %5242 = vmatpush.bf16.msra.mxu0 %v3408
          %5243 = vmatpush.bf16.msra.mxu0 %v3404
          %5244 = vmatmul.bf16.gmra.mxu0 %v5196
          %v5245 = vpop.f32.mrf.mxu0
          %v5246 = vadd.f32 %v5233, %v5245
          %v5247 = vpop.f32.mrf.mxu0
          %5248 = vdwg.mxu0
          %5249 = vmatpush.bf16.msra.mxu0 %v3401
          %5250 = vmatpush.bf16.msra.mxu0 %v3397
          %5251 = vmatpush.bf16.msra.mxu0 %v3393
          %5252 = vmatpush.bf16.msra.mxu0 %v3389
          %5253 = vmatpush.bf16.msra.mxu0 %v3385
          %5254 = vmatpush.bf16.msra.mxu0 %v3381
          %5255 = vmatpush.bf16.msra.mxu0 %v3377
          %5256 = vmatpush.bf16.msra.mxu0 %v3373
          %5257 = vmatmul.bf16.gmra.mxu0 %v5195
          %v5258 = vpop.f32.mrf.mxu0
          %v5259 = vadd.f32 %v3173, %v5258
          %v5260 = vpop.f32.mrf.mxu0
          %5261 = vdwg.mxu0
          %5262 = vmatpush.bf16.msra.mxu0 %v3433
          %5263 = vmatpush.bf16.msra.mxu0 %v3429
          %5264 = vmatpush.bf16.msra.mxu0 %v3425
          %5265 = vmatpush.bf16.msra.mxu0 %v3421
          %5266 = vmatpush.bf16.msra.mxu0 %v3417
          %5267 = vmatpush.bf16.msra.mxu0 %v3413
          %5268 = vmatpush.bf16.msra.mxu0 %v3409
          %5269 = vmatpush.bf16.msra.mxu0 %v3405
          %5270 = vmatmul.bf16.gmra.mxu0 %v5196
          %v5271 = vpop.f32.mrf.mxu0
          %v5272 = vadd.f32 %v5259, %v5271
          %v5273 = vpop.f32.mrf.mxu0
          %5274 = vdwg.mxu0
          %5275 = vmatpush.bf16.msra.mxu0 %v3402
          %5276 = vmatpush.bf16.msra.mxu0 %v3398
          %5277 = vmatpush.bf16.msra.mxu0 %v3394
          %5278 = vmatpush.bf16.msra.mxu0 %v3390
          %5279 = vmatpush.bf16.msra.mxu0 %v3386
          %5280 = vmatpush.bf16.msra.mxu0 %v3382
          %5281 = vmatpush.bf16.msra.mxu0 %v3378
          %5282 = vmatpush.bf16.msra.mxu0 %v3374
          %5283 = vmatmul.bf16.gmra.mxu0 %v5195
          %v5284 = vpop.f32.mrf.mxu0
          %v5285 = vadd.f32 %v3174, %v5284
          %v5286 = vpop.f32.mrf.mxu0
          %5287 = vdwg.mxu0
          %5288 = vmatpush.bf16.msra.mxu0 %v3434
          %5289 = vmatpush.bf16.msra.mxu0 %v3430
          %5290 = vmatpush.bf16.msra.mxu0 %v3426
          %5291 = vmatpush.bf16.msra.mxu0 %v3422
          %5292 = vmatpush.bf16.msra.mxu0 %v3418
          %5293 = vmatpush.bf16.msra.mxu0 %v3414
          %5294 = vmatpush.bf16.msra.mxu0 %v3410
          %5295 = vmatpush.bf16.msra.mxu0 %v3406
          %5296 = vmatmul.bf16.gmra.mxu0 %v5196
          %v5297 = vpop.f32.mrf.mxu0
          %v5298 = vadd.f32 %v5285, %v5297
          %v5299 = vpop.f32.mrf.mxu0
          %5300 = vdwg.mxu0
          %v5301 = vxor.u32 %v5220, 2147483648
          %v5302 = vmul.f32 %v5301, 1.442695
          %v5303 = vpow.pop %v5302
          %v5304 = vadd.f32 %v5303, 1.0
          %v5305 = vrcp.pop %v5304
          %v5306 = vmul.f32 %v5304, %v5305
          %v5307 = vsub.f32 1.0, %v5306
          %v5308 = vmul.f32 %v5305, %v5307
          %v5309 = vadd.f32 %v5305, %v5308
          %vm5310 = vweird.f32 %v5304
          %vm5311 = vweird.f32 %v5305
          %vm5312 = vmor %vm5310, %vm5311
          %v5313 = vsel %vm5312, %v5305, %v5309
          %v5314 = vand.u32 2147483647, %v5304
          %vm5315 = vcmp.eq.f32.partialorder %v5314, 8.507059e+37
          %v5316 = vand.u32 %v5304, 2147483648
          %v5317 = vor.u32 1.1754944e-38, %v5316
          %v5318 = vsel %vm5315, %v5317, %v5313
          %v5319 = vmul.f32 1.0, %v5318
          %v5320 = vxor.u32 %v5246, 2147483648
          %v5321 = vmul.f32 %v5320, 1.442695
          %v5322 = vpow.pop %v5321
          %v5323 = vadd.f32 %v5322, 1.0
          %v5324 = vrcp.pop %v5323
          %v5325 = vmul.f32 %v5323, %v5324
          %v5326 = vsub.f32 1.0, %v5325
          %v5327 = vmul.f32 %v5324, %v5326
          %v5328 = vadd.f32 %v5324, %v5327
          %vm5329 = vweird.f32 %v5323
          %vm5330 = vweird.f32 %v5324
          %vm5331 = vmor %vm5329, %vm5330
          %v5332 = vsel %vm5331, %v5324, %v5328
          %v5333 = vand.u32 2147483647, %v5323
          %vm5334 = vcmp.eq.f32.partialorder %v5333, 8.507059e+37
          %v5335 = vand.u32 %v5323, 2147483648
          %v5336 = vor.u32 1.1754944e-38, %v5335
          %v5337 = vsel %vm5334, %v5336, %v5332
          %v5338 = vmul.f32 1.0, %v5337
          %v5339 = vtanh.pop %v5272
          %v5340 = vxor.u32 %v5298, 2147483648
          %v5341 = vmul.f32 %v5340, 1.442695
          %v5342 = vpow.pop %v5341
          %v5343 = vadd.f32 %v5342, 1.0
          %v5344 = vrcp.pop %v5343
          %v5345 = vmul.f32 %v5343, %v5344
          %v5346 = vsub.f32 1.0, %v5345
          %v5347 = vmul.f32 %v5344, %v5346
          %v5348 = vadd.f32 %v5344, %v5347
          %vm5349 = vweird.f32 %v5343
          %vm5350 = vweird.f32 %v5344
          %vm5351 = vmor %vm5349, %vm5350
          %v5352 = vsel %vm5351, %v5344, %v5348
          %v5353 = vand.u32 2147483647, %v5343
          %vm5354 = vcmp.eq.f32.partialorder %v5353, 8.507059e+37
          %v5355 = vand.u32 %v5343, 2147483648
          %v5356 = vor.u32 1.1754944e-38, %v5355
          %v5357 = vsel %vm5354, %v5356, %v5352
          %v5358 = vmul.f32 1.0, %v5357
          %v5359 = vmul.f32 %v5338, %v5021
          %v5360 = vmul.f32 %v5319, %v5339
          %v5361 = vadd.f32 %v5359, %v5360
          %v5362 = vtanh.pop %v5361
          %v5363 = vmul.f32 %v5358, %v5362
          %s5364 = scalar_lea.vmem [#allocation3], 40
          %5365 = vst [vmem:[%s5364] sm:$0xff] %v5363
          %s5366 = scalar_lea.vmem %s0, 20
          %v5367 = vld [vmem:[%s5366] sm:$0xf]
          %5368 = vmatpush.bf16.msra.mxu0 %v2902
          %5369 = vmatpush.bf16.msra.mxu0 %v2898
          %5370 = vmatpush.bf16.msra.mxu0 %v2894
          %5371 = vmatpush.bf16.msra.mxu0 %v2890
          %5372 = vmatpush.bf16.msra.mxu0 %v2886
          %5373 = vmatpush.bf16.msra.mxu0 %v2882
          %5374 = vmatpush.bf16.msra.mxu0 %v2878
          %5375 = vmatpush.bf16.msra.mxu0 %v2874
          %5376 = vmatmul.bf16.gmra.mxu0 %v5367
          %v5377 = vpop.f32.mrf.mxu0
          %v5378 = vadd.f32 %v2674, %v5377
          %v5379 = vpop.f32.mrf.mxu0
          %5380 = vdwg.mxu0
          %5381 = vmatpush.bf16.msra.mxu0 %v2934
          %5382 = vmatpush.bf16.msra.mxu0 %v2930
          %5383 = vmatpush.bf16.msra.mxu0 %v2926
          %5384 = vmatpush.bf16.msra.mxu0 %v2922
          %5385 = vmatpush.bf16.msra.mxu0 %v2918
          %5386 = vmatpush.bf16.msra.mxu0 %v2914
          %5387 = vmatpush.bf16.msra.mxu0 %v2910
          %5388 = vmatpush.bf16.msra.mxu0 %v2906
          %5389 = vmatmul.bf16.gmra.mxu0 %v5195
          %v5390 = vpop.f32.mrf.mxu0
          %v5391 = vadd.f32 %v5378, %v5390
          %v5392 = vpop.f32.mrf.mxu0
          %5393 = vdwg.mxu0
          %5394 = vmatpush.bf16.msra.mxu0 %v2903
          %5395 = vmatpush.bf16.msra.mxu0 %v2899
          %5396 = vmatpush.bf16.msra.mxu0 %v2895
          %5397 = vmatpush.bf16.msra.mxu0 %v2891
          %5398 = vmatpush.bf16.msra.mxu0 %v2887
          %5399 = vmatpush.bf16.msra.mxu0 %v2883
          %5400 = vmatpush.bf16.msra.mxu0 %v2879
          %5401 = vmatpush.bf16.msra.mxu0 %v2875
          %5402 = vmatmul.bf16.gmra.mxu0 %v5367
          %v5403 = vpop.f32.mrf.mxu0
          %v5404 = vadd.f32 %v2675, %v5403
          %v5405 = vpop.f32.mrf.mxu0
          %5406 = vdwg.mxu0
          %5407 = vmatpush.bf16.msra.mxu0 %v2935
          %5408 = vmatpush.bf16.msra.mxu0 %v2931
          %5409 = vmatpush.bf16.msra.mxu0 %v2927
          %5410 = vmatpush.bf16.msra.mxu0 %v2923
          %5411 = vmatpush.bf16.msra.mxu0 %v2919
          %5412 = vmatpush.bf16.msra.mxu0 %v2915
          %5413 = vmatpush.bf16.msra.mxu0 %v2911
          %5414 = vmatpush.bf16.msra.mxu0 %v2907
          %5415 = vmatmul.bf16.gmra.mxu0 %v5195
          %v5416 = vpop.f32.mrf.mxu0
          %v5417 = vadd.f32 %v5404, %v5416
          %v5418 = vpop.f32.mrf.mxu0
          %5419 = vdwg.mxu0
          %5420 = vmatpush.bf16.msra.mxu0 %v2904
          %5421 = vmatpush.bf16.msra.mxu0 %v2900
          %5422 = vmatpush.bf16.msra.mxu0 %v2896
          %5423 = vmatpush.bf16.msra.mxu0 %v2892
          %5424 = vmatpush.bf16.msra.mxu0 %v2888
          %5425 = vmatpush.bf16.msra.mxu0 %v2884
          %5426 = vmatpush.bf16.msra.mxu0 %v2880
          %5427 = vmatpush.bf16.msra.mxu0 %v2876
          %5428 = vmatmul.bf16.gmra.mxu0 %v5367
          %v5429 = vpop.f32.mrf.mxu0
          %v5430 = vadd.f32 %v2676, %v5429
          %v5431 = vpop.f32.mrf.mxu0
          %5432 = vdwg.mxu0
          %5433 = vmatpush.bf16.msra.mxu0 %v2936
          %5434 = vmatpush.bf16.msra.mxu0 %v2932
          %5435 = vmatpush.bf16.msra.mxu0 %v2928
          %5436 = vmatpush.bf16.msra.mxu0 %v2924
          %5437 = vmatpush.bf16.msra.mxu0 %v2920
          %5438 = vmatpush.bf16.msra.mxu0 %v2916
          %5439 = vmatpush.bf16.msra.mxu0 %v2912
          %5440 = vmatpush.bf16.msra.mxu0 %v2908
          %5441 = vmatmul.bf16.gmra.mxu0 %v5195
          %v5442 = vpop.f32.mrf.mxu0
          %v5443 = vadd.f32 %v5430, %v5442
          %v5444 = vpop.f32.mrf.mxu0
          %5445 = vdwg.mxu0
          %5446 = vmatpush.bf16.msra.mxu0 %v2905
          %5447 = vmatpush.bf16.msra.mxu0 %v2901
          %5448 = vmatpush.bf16.msra.mxu0 %v2897
          %5449 = vmatpush.bf16.msra.mxu0 %v2893
          %5450 = vmatpush.bf16.msra.mxu0 %v2889
          %5451 = vmatpush.bf16.msra.mxu0 %v2885
          %5452 = vmatpush.bf16.msra.mxu0 %v2881
          %5453 = vmatpush.bf16.msra.mxu0 %v2877
          %5454 = vmatmul.bf16.gmra.mxu0 %v5367
          %v5455 = vpop.f32.mrf.mxu0
          %v5456 = vadd.f32 %v2677, %v5455
          %v5457 = vpop.f32.mrf.mxu0
          %5458 = vdwg.mxu0
          %5459 = vmatpush.bf16.msra.mxu0 %v2937
          %5460 = vmatpush.bf16.msra.mxu0 %v2933
          %5461 = vmatpush.bf16.msra.mxu0 %v2929
          %5462 = vmatpush.bf16.msra.mxu0 %v2925
          %5463 = vmatpush.bf16.msra.mxu0 %v2921
          %5464 = vmatpush.bf16.msra.mxu0 %v2917
          %5465 = vmatpush.bf16.msra.mxu0 %v2913
          %5466 = vmatpush.bf16.msra.mxu0 %v2909
          %5467 = vmatmul.bf16.gmra.mxu0 %v5195
          %v5468 = vpop.f32.mrf.mxu0
          %v5469 = vadd.f32 %v5456, %v5468
          %v5470 = vpop.f32.mrf.mxu0
          %5471 = vdwg.mxu0
          %v5472 = vxor.u32 %v5391, 2147483648
          %v5473 = vmul.f32 %v5472, 1.442695
          %v5474 = vpow.pop %v5473
          %v5475 = vadd.f32 %v5474, 1.0
          %v5476 = vrcp.pop %v5475
          %v5477 = vmul.f32 %v5475, %v5476
          %v5478 = vsub.f32 1.0, %v5477
          %v5479 = vmul.f32 %v5476, %v5478
          %v5480 = vadd.f32 %v5476, %v5479
          %vm5481 = vweird.f32 %v5475
          %vm5482 = vweird.f32 %v5476
          %vm5483 = vmor %vm5481, %vm5482
          %v5484 = vsel %vm5483, %v5476, %v5480
          %v5485 = vand.u32 2147483647, %v5475
          %vm5486 = vcmp.eq.f32.partialorder %v5485, 8.507059e+37
          %v5487 = vand.u32 %v5475, 2147483648
          %v5488 = vor.u32 1.1754944e-38, %v5487
          %v5489 = vsel %vm5486, %v5488, %v5484
          %v5490 = vmul.f32 1.0, %v5489
          %v5491 = vxor.u32 %v5417, 2147483648
          %v5492 = vmul.f32 %v5491, 1.442695
          %v5493 = vpow.pop %v5492
          %v5494 = vadd.f32 %v5493, 1.0
          %v5495 = vrcp.pop %v5494
          %v5496 = vmul.f32 %v5494, %v5495
          %v5497 = vsub.f32 1.0, %v5496
          %v5498 = vmul.f32 %v5495, %v5497
          %v5499 = vadd.f32 %v5495, %v5498
          %vm5500 = vweird.f32 %v5494
          %vm5501 = vweird.f32 %v5495
          %vm5502 = vmor %vm5500, %vm5501
          %v5503 = vsel %vm5502, %v5495, %v5499
          %v5504 = vand.u32 2147483647, %v5494
          %vm5505 = vcmp.eq.f32.partialorder %v5504, 8.507059e+37
          %v5506 = vand.u32 %v5494, 2147483648
          %v5507 = vor.u32 1.1754944e-38, %v5506
          %v5508 = vsel %vm5505, %v5507, %v5503
          %v5509 = vmul.f32 1.0, %v5508
          %v5510 = vtanh.pop %v5443
          %v5511 = vxor.u32 %v5469, 2147483648
          %v5512 = vmul.f32 %v5511, 1.442695
          %v5513 = vpow.pop %v5512
          %v5514 = vadd.f32 %v5513, 1.0
          %v5515 = vrcp.pop %v5514
          %v5516 = vmul.f32 %v5514, %v5515
          %v5517 = vsub.f32 1.0, %v5516
          %v5518 = vmul.f32 %v5515, %v5517
          %v5519 = vadd.f32 %v5515, %v5518
          %vm5520 = vweird.f32 %v5514
          %vm5521 = vweird.f32 %v5515
          %vm5522 = vmor %vm5520, %vm5521
          %v5523 = vsel %vm5522, %v5515, %v5519
          %v5524 = vand.u32 2147483647, %v5514
          %vm5525 = vcmp.eq.f32.partialorder %v5524, 8.507059e+37
          %v5526 = vand.u32 %v5514, 2147483648
          %v5527 = vor.u32 1.1754944e-38, %v5526
          %v5528 = vsel %vm5525, %v5527, %v5523
          %v5529 = vmul.f32 1.0, %v5528
          %v5530 = vmul.f32 %v5509, %v5192
          %v5531 = vmul.f32 %v5490, %v5510
          %v5532 = vadd.f32 %v5530, %v5531
          %v5533 = vtanh.pop %v5532
          %v5534 = vmul.f32 %v5529, %v5533
          %v5535 = vpack.c.bf16 %v5534, %v5534
          %v5536 = vpack.c.bf16 %v5363, %v5363
          %5537 = vmatpush.bf16.msra.mxu0 %v3399
          %5538 = vmatpush.bf16.msra.mxu0 %v3395
          %5539 = vmatpush.bf16.msra.mxu0 %v3391
          %5540 = vmatpush.bf16.msra.mxu0 %v3387
          %5541 = vmatpush.bf16.msra.mxu0 %v3383
          %5542 = vmatpush.bf16.msra.mxu0 %v3379
          %5543 = vmatpush.bf16.msra.mxu0 %v3375
          %5544 = vmatpush.bf16.msra.mxu0 %v3371
          %5545 = vmatmul.bf16.gmra.mxu0 %v5535
          %v5546 = vpop.f32.mrf.mxu0
          %v5547 = vadd.f32 %v3171, %v5546
          %v5548 = vpop.f32.mrf.mxu0
          %5549 = vdwg.mxu0
          %5550 = vmatpush.bf16.msra.mxu0 %v3431
          %5551 = vmatpush.bf16.msra.mxu0 %v3427
          %5552 = vmatpush.bf16.msra.mxu0 %v3423
          %5553 = vmatpush.bf16.msra.mxu0 %v3419
          %5554 = vmatpush.bf16.msra.mxu0 %v3415
          %5555 = vmatpush.bf16.msra.mxu0 %v3411
          %5556 = vmatpush.bf16.msra.mxu0 %v3407
          %5557 = vmatpush.bf16.msra.mxu0 %v3403
          %5558 = vmatmul.bf16.gmra.mxu0 %v5536
          %v5559 = vpop.f32.mrf.mxu0
          %v5560 = vadd.f32 %v5547, %v5559
          %v5561 = vpop.f32.mrf.mxu0
          %5562 = vdwg.mxu0
          %5563 = vmatpush.bf16.msra.mxu0 %v3400
          %5564 = vmatpush.bf16.msra.mxu0 %v3396
          %5565 = vmatpush.bf16.msra.mxu0 %v3392
          %5566 = vmatpush.bf16.msra.mxu0 %v3388
          %5567 = vmatpush.bf16.msra.mxu0 %v3384
          %5568 = vmatpush.bf16.msra.mxu0 %v3380
          %5569 = vmatpush.bf16.msra.mxu0 %v3376
          %5570 = vmatpush.bf16.msra.mxu0 %v3372
          %5571 = vmatmul.bf16.gmra.mxu0 %v5535
          %v5572 = vpop.f32.mrf.mxu0
          %v5573 = vadd.f32 %v3172, %v5572
          %v5574 = vpop.f32.mrf.mxu0
          %5575 = vdwg.mxu0
          %5576 = vmatpush.bf16.msra.mxu0 %v3432
          %5577 = vmatpush.bf16.msra.mxu0 %v3428
          %5578 = vmatpush.bf16.msra.mxu0 %v3424
          %5579 = vmatpush.bf16.msra.mxu0 %v3420
          %5580 = vmatpush.bf16.msra.mxu0 %v3416
          %5581 = vmatpush.bf16.msra.mxu0 %v3412
          %5582 = vmatpush.bf16.msra.mxu0 %v3408
          %5583 = vmatpush.bf16.msra.mxu0 %v3404
          %5584 = vmatmul.bf16.gmra.mxu0 %v5536
          %v5585 = vpop.f32.mrf.mxu0
          %v5586 = vadd.f32 %v5573, %v5585
          %v5587 = vpop.f32.mrf.mxu0
          %5588 = vdwg.mxu0
          %5589 = vmatpush.bf16.msra.mxu0 %v3401
          %5590 = vmatpush.bf16.msra.mxu0 %v3397
          %5591 = vmatpush.bf16.msra.mxu0 %v3393
          %5592 = vmatpush.bf16.msra.mxu0 %v3389
          %5593 = vmatpush.bf16.msra.mxu0 %v3385
          %5594 = vmatpush.bf16.msra.mxu0 %v3381
          %5595 = vmatpush.bf16.msra.mxu0 %v3377
          %5596 = vmatpush.bf16.msra.mxu0 %v3373
          %5597 = vmatmul.bf16.gmra.mxu0 %v5535
          %v5598 = vpop.f32.mrf.mxu0
          %v5599 = vadd.f32 %v3173, %v5598
          %v5600 = vpop.f32.mrf.mxu0
          %5601 = vdwg.mxu0
          %5602 = vmatpush.bf16.msra.mxu0 %v3433
          %5603 = vmatpush.bf16.msra.mxu0 %v3429
          %5604 = vmatpush.bf16.msra.mxu0 %v3425
          %5605 = vmatpush.bf16.msra.mxu0 %v3421
          %5606 = vmatpush.bf16.msra.mxu0 %v3417
          %5607 = vmatpush.bf16.msra.mxu0 %v3413
          %5608 = vmatpush.bf16.msra.mxu0 %v3409
          %5609 = vmatpush.bf16.msra.mxu0 %v3405
          %5610 = vmatmul.bf16.gmra.mxu0 %v5536
          %v5611 = vpop.f32.mrf.mxu0
          %v5612 = vadd.f32 %v5599, %v5611
          %v5613 = vpop.f32.mrf.mxu0
          %5614 = vdwg.mxu0
          %5615 = vmatpush.bf16.msra.mxu0 %v3402
          %5616 = vmatpush.bf16.msra.mxu0 %v3398
          %5617 = vmatpush.bf16.msra.mxu0 %v3394
          %5618 = vmatpush.bf16.msra.mxu0 %v3390
          %5619 = vmatpush.bf16.msra.mxu0 %v3386
          %5620 = vmatpush.bf16.msra.mxu0 %v3382
          %5621 = vmatpush.bf16.msra.mxu0 %v3378
          %5622 = vmatpush.bf16.msra.mxu0 %v3374
          %5623 = vmatmul.bf16.gmra.mxu0 %v5535
          %v5624 = vpop.f32.mrf.mxu0
          %v5625 = vadd.f32 %v3174, %v5624
          %v5626 = vpop.f32.mrf.mxu0
          %5627 = vdwg.mxu0
          %5628 = vmatpush.bf16.msra.mxu0 %v3434
          %5629 = vmatpush.bf16.msra.mxu0 %v3430
          %5630 = vmatpush.bf16.msra.mxu0 %v3426
          %5631 = vmatpush.bf16.msra.mxu0 %v3422
          %5632 = vmatpush.bf16.msra.mxu0 %v3418
          %5633 = vmatpush.bf16.msra.mxu0 %v3414
          %5634 = vmatpush.bf16.msra.mxu0 %v3410
          %5635 = vmatpush.bf16.msra.mxu0 %v3406
          %5636 = vmatmul.bf16.gmra.mxu0 %v5536
          %v5637 = vpop.f32.mrf.mxu0
          %v5638 = vadd.f32 %v5625, %v5637
          %v5639 = vpop.f32.mrf.mxu0
          %5640 = vdwg.mxu0
          %v5641 = vxor.u32 %v5560, 2147483648
          %v5642 = vmul.f32 %v5641, 1.442695
          %v5643 = vpow.pop %v5642
          %v5644 = vadd.f32 %v5643, 1.0
          %v5645 = vrcp.pop %v5644
          %v5646 = vmul.f32 %v5644, %v5645
          %v5647 = vsub.f32 1.0, %v5646
          %v5648 = vmul.f32 %v5645, %v5647
          %v5649 = vadd.f32 %v5645, %v5648
          %vm5650 = vweird.f32 %v5644
          %vm5651 = vweird.f32 %v5645
          %vm5652 = vmor %vm5650, %vm5651
          %v5653 = vsel %vm5652, %v5645, %v5649
          %v5654 = vand.u32 2147483647, %v5644
          %vm5655 = vcmp.eq.f32.partialorder %v5654, 8.507059e+37
          %v5656 = vand.u32 %v5644, 2147483648
          %v5657 = vor.u32 1.1754944e-38, %v5656
          %v5658 = vsel %vm5655, %v5657, %v5653
          %v5659 = vmul.f32 1.0, %v5658
          %v5660 = vxor.u32 %v5586, 2147483648
          %v5661 = vmul.f32 %v5660, 1.442695
          %v5662 = vpow.pop %v5661
          %v5663 = vadd.f32 %v5662, 1.0
          %v5664 = vrcp.pop %v5663
          %v5665 = vmul.f32 %v5663, %v5664
          %v5666 = vsub.f32 1.0, %v5665
          %v5667 = vmul.f32 %v5664, %v5666
          %v5668 = vadd.f32 %v5664, %v5667
          %vm5669 = vweird.f32 %v5663
          %vm5670 = vweird.f32 %v5664
          %vm5671 = vmor %vm5669, %vm5670
          %v5672 = vsel %vm5671, %v5664, %v5668
          %v5673 = vand.u32 2147483647, %v5663
          %vm5674 = vcmp.eq.f32.partialorder %v5673, 8.507059e+37
          %v5675 = vand.u32 %v5663, 2147483648
          %v5676 = vor.u32 1.1754944e-38, %v5675
          %v5677 = vsel %vm5674, %v5676, %v5672
          %v5678 = vmul.f32 1.0, %v5677
          %v5679 = vtanh.pop %v5612
          %v5680 = vxor.u32 %v5638, 2147483648
          %v5681 = vmul.f32 %v5680, 1.442695
          %v5682 = vpow.pop %v5681
          %v5683 = vadd.f32 %v5682, 1.0
          %v5684 = vrcp.pop %v5683
          %v5685 = vmul.f32 %v5683, %v5684
          %v5686 = vsub.f32 1.0, %v5685
          %v5687 = vmul.f32 %v5684, %v5686
          %v5688 = vadd.f32 %v5684, %v5687
          %vm5689 = vweird.f32 %v5683
          %vm5690 = vweird.f32 %v5684
          %vm5691 = vmor %vm5689, %vm5690
          %v5692 = vsel %vm5691, %v5684, %v5688
          %v5693 = vand.u32 2147483647, %v5683
          %vm5694 = vcmp.eq.f32.partialorder %v5693, 8.507059e+37
          %v5695 = vand.u32 %v5683, 2147483648
          %v5696 = vor.u32 1.1754944e-38, %v5695
          %v5697 = vsel %vm5694, %v5696, %v5692
          %v5698 = vmul.f32 1.0, %v5697
          %v5699 = vmul.f32 %v5678, %v5361
          %v5700 = vmul.f32 %v5659, %v5679
          %v5701 = vadd.f32 %v5699, %v5700
          %v5702 = vtanh.pop %v5701
          %v5703 = vmul.f32 %v5698, %v5702
          %s5704 = scalar_lea.vmem [#allocation3], 48
          %5705 = vst [vmem:[%s5704] sm:$0xff] %v5703
          %s5706 = scalar_lea.vmem %s0, 24
          %v5707 = vld [vmem:[%s5706] sm:$0xf]
          %5708 = vmatpush.bf16.msra.mxu0 %v2902
          %5709 = vmatpush.bf16.msra.mxu0 %v2898
          %5710 = vmatpush.bf16.msra.mxu0 %v2894
          %5711 = vmatpush.bf16.msra.mxu0 %v2890
          %5712 = vmatpush.bf16.msra.mxu0 %v2886
          %5713 = vmatpush.bf16.msra.mxu0 %v2882
          %5714 = vmatpush.bf16.msra.mxu0 %v2878
          %5715 = vmatpush.bf16.msra.mxu0 %v2874
          %5716 = vmatmul.bf16.gmra.mxu0 %v5707
          %v5717 = vpop.f32.mrf.mxu0
          %v5718 = vadd.f32 %v2674, %v5717
          %v5719 = vpop.f32.mrf.mxu0
          %5720 = vdwg.mxu0
          %5721 = vmatpush.bf16.msra.mxu0 %v2934
          %5722 = vmatpush.bf16.msra.mxu0 %v2930
          %5723 = vmatpush.bf16.msra.mxu0 %v2926
          %5724 = vmatpush.bf16.msra.mxu0 %v2922
          %5725 = vmatpush.bf16.msra.mxu0 %v2918
          %5726 = vmatpush.bf16.msra.mxu0 %v2914
          %5727 = vmatpush.bf16.msra.mxu0 %v2910
          %5728 = vmatpush.bf16.msra.mxu0 %v2906
          %5729 = vmatmul.bf16.gmra.mxu0 %v5535
          %v5730 = vpop.f32.mrf.mxu0
          %v5731 = vadd.f32 %v5718, %v5730
          %v5732 = vpop.f32.mrf.mxu0
          %5733 = vdwg.mxu0
          %5734 = vmatpush.bf16.msra.mxu0 %v2903
          %5735 = vmatpush.bf16.msra.mxu0 %v2899
          %5736 = vmatpush.bf16.msra.mxu0 %v2895
          %5737 = vmatpush.bf16.msra.mxu0 %v2891
          %5738 = vmatpush.bf16.msra.mxu0 %v2887
          %5739 = vmatpush.bf16.msra.mxu0 %v2883
          %5740 = vmatpush.bf16.msra.mxu0 %v2879
          %5741 = vmatpush.bf16.msra.mxu0 %v2875
          %5742 = vmatmul.bf16.gmra.mxu0 %v5707
          %v5743 = vpop.f32.mrf.mxu0
          %v5744 = vadd.f32 %v2675, %v5743
          %v5745 = vpop.f32.mrf.mxu0
          %5746 = vdwg.mxu0
          %5747 = vmatpush.bf16.msra.mxu0 %v2935
          %5748 = vmatpush.bf16.msra.mxu0 %v2931
          %5749 = vmatpush.bf16.msra.mxu0 %v2927
          %5750 = vmatpush.bf16.msra.mxu0 %v2923
          %5751 = vmatpush.bf16.msra.mxu0 %v2919
          %5752 = vmatpush.bf16.msra.mxu0 %v2915
          %5753 = vmatpush.bf16.msra.mxu0 %v2911
          %5754 = vmatpush.bf16.msra.mxu0 %v2907
          %5755 = vmatmul.bf16.gmra.mxu0 %v5535
          %v5756 = vpop.f32.mrf.mxu0
          %v5757 = vadd.f32 %v5744, %v5756
          %v5758 = vpop.f32.mrf.mxu0
          %5759 = vdwg.mxu0
          %5760 = vmatpush.bf16.msra.mxu0 %v2904
          %5761 = vmatpush.bf16.msra.mxu0 %v2900
          %5762 = vmatpush.bf16.msra.mxu0 %v2896
          %5763 = vmatpush.bf16.msra.mxu0 %v2892
          %5764 = vmatpush.bf16.msra.mxu0 %v2888
          %5765 = vmatpush.bf16.msra.mxu0 %v2884
          %5766 = vmatpush.bf16.msra.mxu0 %v2880
          %5767 = vmatpush.bf16.msra.mxu0 %v2876
          %5768 = vmatmul.bf16.gmra.mxu0 %v5707
          %v5769 = vpop.f32.mrf.mxu0
          %v5770 = vadd.f32 %v2676, %v5769
          %v5771 = vpop.f32.mrf.mxu0
          %5772 = vdwg.mxu0
          %5773 = vmatpush.bf16.msra.mxu0 %v2936
          %5774 = vmatpush.bf16.msra.mxu0 %v2932
          %5775 = vmatpush.bf16.msra.mxu0 %v2928
          %5776 = vmatpush.bf16.msra.mxu0 %v2924
          %5777 = vmatpush.bf16.msra.mxu0 %v2920
          %5778 = vmatpush.bf16.msra.mxu0 %v2916
          %5779 = vmatpush.bf16.msra.mxu0 %v2912
          %5780 = vmatpush.bf16.msra.mxu0 %v2908
          %5781 = vmatmul.bf16.gmra.mxu0 %v5535
          %v5782 = vpop.f32.mrf.mxu0
          %v5783 = vadd.f32 %v5770, %v5782
          %v5784 = vpop.f32.mrf.mxu0
          %5785 = vdwg.mxu0
          %5786 = vmatpush.bf16.msra.mxu0 %v2905
          %5787 = vmatpush.bf16.msra.mxu0 %v2901
          %5788 = vmatpush.bf16.msra.mxu0 %v2897
          %5789 = vmatpush.bf16.msra.mxu0 %v2893
          %5790 = vmatpush.bf16.msra.mxu0 %v2889
          %5791 = vmatpush.bf16.msra.mxu0 %v2885
          %5792 = vmatpush.bf16.msra.mxu0 %v2881
          %5793 = vmatpush.bf16.msra.mxu0 %v2877
          %5794 = vmatmul.bf16.gmra.mxu0 %v5707
          %v5795 = vpop.f32.mrf.mxu0
          %v5796 = vadd.f32 %v2677, %v5795
          %v5797 = vpop.f32.mrf.mxu0
          %5798 = vdwg.mxu0
          %5799 = vmatpush.bf16.msra.mxu0 %v2937
          %5800 = vmatpush.bf16.msra.mxu0 %v2933
          %5801 = vmatpush.bf16.msra.mxu0 %v2929
          %5802 = vmatpush.bf16.msra.mxu0 %v2925
          %5803 = vmatpush.bf16.msra.mxu0 %v2921
          %5804 = vmatpush.bf16.msra.mxu0 %v2917
          %5805 = vmatpush.bf16.msra.mxu0 %v2913
          %5806 = vmatpush.bf16.msra.mxu0 %v2909
          %5807 = vmatmul.bf16.gmra.mxu0 %v5535
          %v5808 = vpop.f32.mrf.mxu0
          %v5809 = vadd.f32 %v5796, %v5808
          %v5810 = vpop.f32.mrf.mxu0
          %5811 = vdwg.mxu0
          %v5812 = vxor.u32 %v5731, 2147483648
          %v5813 = vmul.f32 %v5812, 1.442695
          %v5814 = vpow.pop %v5813
          %v5815 = vadd.f32 %v5814, 1.0
          %v5816 = vrcp.pop %v5815
          %v5817 = vmul.f32 %v5815, %v5816
          %v5818 = vsub.f32 1.0, %v5817
          %v5819 = vmul.f32 %v5816, %v5818
          %v5820 = vadd.f32 %v5816, %v5819
          %vm5821 = vweird.f32 %v5815
          %vm5822 = vweird.f32 %v5816
          %vm5823 = vmor %vm5821, %vm5822
          %v5824 = vsel %vm5823, %v5816, %v5820
          %v5825 = vand.u32 2147483647, %v5815
          %vm5826 = vcmp.eq.f32.partialorder %v5825, 8.507059e+37
          %v5827 = vand.u32 %v5815, 2147483648
          %v5828 = vor.u32 1.1754944e-38, %v5827
          %v5829 = vsel %vm5826, %v5828, %v5824
          %v5830 = vmul.f32 1.0, %v5829
          %v5831 = vxor.u32 %v5757, 2147483648
          %v5832 = vmul.f32 %v5831, 1.442695
          %v5833 = vpow.pop %v5832
          %v5834 = vadd.f32 %v5833, 1.0
          %v5835 = vrcp.pop %v5834
          %v5836 = vmul.f32 %v5834, %v5835
          %v5837 = vsub.f32 1.0, %v5836
          %v5838 = vmul.f32 %v5835, %v5837
          %v5839 = vadd.f32 %v5835, %v5838
          %vm5840 = vweird.f32 %v5834
          %vm5841 = vweird.f32 %v5835
          %vm5842 = vmor %vm5840, %vm5841
          %v5843 = vsel %vm5842, %v5835, %v5839
          %v5844 = vand.u32 2147483647, %v5834
          %vm5845 = vcmp.eq.f32.partialorder %v5844, 8.507059e+37
          %v5846 = vand.u32 %v5834, 2147483648
          %v5847 = vor.u32 1.1754944e-38, %v5846
          %v5848 = vsel %vm5845, %v5847, %v5843
          %v5849 = vmul.f32 1.0, %v5848
          %v5850 = vtanh.pop %v5783
          %v5851 = vxor.u32 %v5809, 2147483648
          %v5852 = vmul.f32 %v5851, 1.442695
          %v5853 = vpow.pop %v5852
          %v5854 = vadd.f32 %v5853, 1.0
          %v5855 = vrcp.pop %v5854
          %v5856 = vmul.f32 %v5854, %v5855
          %v5857 = vsub.f32 1.0, %v5856
          %v5858 = vmul.f32 %v5855, %v5857
          %v5859 = vadd.f32 %v5855, %v5858
          %vm5860 = vweird.f32 %v5854
          %vm5861 = vweird.f32 %v5855
          %vm5862 = vmor %vm5860, %vm5861
          %v5863 = vsel %vm5862, %v5855, %v5859
          %v5864 = vand.u32 2147483647, %v5854
          %vm5865 = vcmp.eq.f32.partialorder %v5864, 8.507059e+37
          %v5866 = vand.u32 %v5854, 2147483648
          %v5867 = vor.u32 1.1754944e-38, %v5866
          %v5868 = vsel %vm5865, %v5867, %v5863
          %v5869 = vmul.f32 1.0, %v5868
          %v5870 = vmul.f32 %v5849, %v5532
          %v5871 = vmul.f32 %v5830, %v5850
          %v5872 = vadd.f32 %v5870, %v5871
          %v5873 = vtanh.pop %v5872
          %v5874 = vmul.f32 %v5869, %v5873
          %v5875 = vpack.c.bf16 %v5874, %v5874
          %v5876 = vpack.c.bf16 %v5703, %v5703
          %5877 = vmatpush.bf16.msra.mxu0 %v3399
          %5878 = vmatpush.bf16.msra.mxu0 %v3395
          %5879 = vmatpush.bf16.msra.mxu0 %v3391
          %5880 = vmatpush.bf16.msra.mxu0 %v3387
          %5881 = vmatpush.bf16.msra.mxu0 %v3383
          %5882 = vmatpush.bf16.msra.mxu0 %v3379
          %5883 = vmatpush.bf16.msra.mxu0 %v3375
          %5884 = vmatpush.bf16.msra.mxu0 %v3371
          %5885 = vmatmul.bf16.gmra.mxu0 %v5875
          %v5886 = vpop.f32.mrf.mxu0
          %v5887 = vadd.f32 %v3171, %v5886
          %v5888 = vpop.f32.mrf.mxu0
          %5889 = vdwg.mxu0
          %5890 = vmatpush.bf16.msra.mxu0 %v3431
          %5891 = vmatpush.bf16.msra.mxu0 %v3427
          %5892 = vmatpush.bf16.msra.mxu0 %v3423
          %5893 = vmatpush.bf16.msra.mxu0 %v3419
          %5894 = vmatpush.bf16.msra.mxu0 %v3415
          %5895 = vmatpush.bf16.msra.mxu0 %v3411
          %5896 = vmatpush.bf16.msra.mxu0 %v3407
          %5897 = vmatpush.bf16.msra.mxu0 %v3403
          %5898 = vmatmul.bf16.gmra.mxu0 %v5876
          %v5899 = vpop.f32.mrf.mxu0
          %v5900 = vadd.f32 %v5887, %v5899
          %v5901 = vpop.f32.mrf.mxu0
          %5902 = vdwg.mxu0
          %5903 = vmatpush.bf16.msra.mxu0 %v3400
          %5904 = vmatpush.bf16.msra.mxu0 %v3396
          %5905 = vmatpush.bf16.msra.mxu0 %v3392
          %5906 = vmatpush.bf16.msra.mxu0 %v3388
          %5907 = vmatpush.bf16.msra.mxu0 %v3384
          %5908 = vmatpush.bf16.msra.mxu0 %v3380
          %5909 = vmatpush.bf16.msra.mxu0 %v3376
          %5910 = vmatpush.bf16.msra.mxu0 %v3372
          %5911 = vmatmul.bf16.gmra.mxu0 %v5875
          %v5912 = vpop.f32.mrf.mxu0
          %v5913 = vadd.f32 %v3172, %v5912
          %v5914 = vpop.f32.mrf.mxu0
          %5915 = vdwg.mxu0
          %5916 = vmatpush.bf16.msra.mxu0 %v3432
          %5917 = vmatpush.bf16.msra.mxu0 %v3428
          %5918 = vmatpush.bf16.msra.mxu0 %v3424
          %5919 = vmatpush.bf16.msra.mxu0 %v3420
          %5920 = vmatpush.bf16.msra.mxu0 %v3416
          %5921 = vmatpush.bf16.msra.mxu0 %v3412
          %5922 = vmatpush.bf16.msra.mxu0 %v3408
          %5923 = vmatpush.bf16.msra.mxu0 %v3404
          %5924 = vmatmul.bf16.gmra.mxu0 %v5876
          %v5925 = vpop.f32.mrf.mxu0
          %v5926 = vadd.f32 %v5913, %v5925
          %v5927 = vpop.f32.mrf.mxu0
          %5928 = vdwg.mxu0
          %5929 = vmatpush.bf16.msra.mxu0 %v3401
          %5930 = vmatpush.bf16.msra.mxu0 %v3397
          %5931 = vmatpush.bf16.msra.mxu0 %v3393
          %5932 = vmatpush.bf16.msra.mxu0 %v3389
          %5933 = vmatpush.bf16.msra.mxu0 %v3385
          %5934 = vmatpush.bf16.msra.mxu0 %v3381
          %5935 = vmatpush.bf16.msra.mxu0 %v3377
          %5936 = vmatpush.bf16.msra.mxu0 %v3373
          %5937 = vmatmul.bf16.gmra.mxu0 %v5875
          %v5938 = vpop.f32.mrf.mxu0
          %v5939 = vadd.f32 %v3173, %v5938
          %v5940 = vpop.f32.mrf.mxu0
          %5941 = vdwg.mxu0
          %5942 = vmatpush.bf16.msra.mxu0 %v3433
          %5943 = vmatpush.bf16.msra.mxu0 %v3429
          %5944 = vmatpush.bf16.msra.mxu0 %v3425
          %5945 = vmatpush.bf16.msra.mxu0 %v3421
          %5946 = vmatpush.bf16.msra.mxu0 %v3417
          %5947 = vmatpush.bf16.msra.mxu0 %v3413
          %5948 = vmatpush.bf16.msra.mxu0 %v3409
          %5949 = vmatpush.bf16.msra.mxu0 %v3405
          %5950 = vmatmul.bf16.gmra.mxu0 %v5876
          %v5951 = vpop.f32.mrf.mxu0
          %v5952 = vadd.f32 %v5939, %v5951
          %v5953 = vpop.f32.mrf.mxu0
          %5954 = vdwg.mxu0
          %5955 = vmatpush.bf16.msra.mxu0 %v3402
          %5956 = vmatpush.bf16.msra.mxu0 %v3398
          %5957 = vmatpush.bf16.msra.mxu0 %v3394
          %5958 = vmatpush.bf16.msra.mxu0 %v3390
          %5959 = vmatpush.bf16.msra.mxu0 %v3386
          %5960 = vmatpush.bf16.msra.mxu0 %v3382
          %5961 = vmatpush.bf16.msra.mxu0 %v3378
          %5962 = vmatpush.bf16.msra.mxu0 %v3374
          %5963 = vmatmul.bf16.gmra.mxu0 %v5875
          %v5964 = vpop.f32.mrf.mxu0
          %v5965 = vadd.f32 %v3174, %v5964
          %v5966 = vpop.f32.mrf.mxu0
          %5967 = vdwg.mxu0
          %5968 = vmatpush.bf16.msra.mxu0 %v3434
          %5969 = vmatpush.bf16.msra.mxu0 %v3430
          %5970 = vmatpush.bf16.msra.mxu0 %v3426
          %5971 = vmatpush.bf16.msra.mxu0 %v3422
          %5972 = vmatpush.bf16.msra.mxu0 %v3418
          %5973 = vmatpush.bf16.msra.mxu0 %v3414
          %5974 = vmatpush.bf16.msra.mxu0 %v3410
          %5975 = vmatpush.bf16.msra.mxu0 %v3406
          %5976 = vmatmul.bf16.gmra.mxu0 %v5876
          %v5977 = vpop.f32.mrf.mxu0
          %v5978 = vadd.f32 %v5965, %v5977
          %v5979 = vpop.f32.mrf.mxu0
          %5980 = vdwg.mxu0
          %v5981 = vxor.u32 %v5900, 2147483648
          %v5982 = vmul.f32 %v5981, 1.442695
          %v5983 = vpow.pop %v5982
          %v5984 = vadd.f32 %v5983, 1.0
          %v5985 = vrcp.pop %v5984
          %v5986 = vmul.f32 %v5984, %v5985
          %v5987 = vsub.f32 1.0, %v5986
          %v5988 = vmul.f32 %v5985, %v5987
          %v5989 = vadd.f32 %v5985, %v5988
          %vm5990 = vweird.f32 %v5984
          %vm5991 = vweird.f32 %v5985
          %vm5992 = vmor %vm5990, %vm5991
          %v5993 = vsel %vm5992, %v5985, %v5989
          %v5994 = vand.u32 2147483647, %v5984
          %vm5995 = vcmp.eq.f32.partialorder %v5994, 8.507059e+37
          %v5996 = vand.u32 %v5984, 2147483648
          %v5997 = vor.u32 1.1754944e-38, %v5996
          %v5998 = vsel %vm5995, %v5997, %v5993
          %v5999 = vmul.f32 1.0, %v5998
          %v6000 = vxor.u32 %v5926, 2147483648
          %v6001 = vmul.f32 %v6000, 1.442695
          %v6002 = vpow.pop %v6001
          %v6003 = vadd.f32 %v6002, 1.0
          %v6004 = vrcp.pop %v6003
          %v6005 = vmul.f32 %v6003, %v6004
          %v6006 = vsub.f32 1.0, %v6005
          %v6007 = vmul.f32 %v6004, %v6006
          %v6008 = vadd.f32 %v6004, %v6007
          %vm6009 = vweird.f32 %v6003
          %vm6010 = vweird.f32 %v6004
          %vm6011 = vmor %vm6009, %vm6010
          %v6012 = vsel %vm6011, %v6004, %v6008
          %v6013 = vand.u32 2147483647, %v6003
          %vm6014 = vcmp.eq.f32.partialorder %v6013, 8.507059e+37
          %v6015 = vand.u32 %v6003, 2147483648
          %v6016 = vor.u32 1.1754944e-38, %v6015
          %v6017 = vsel %vm6014, %v6016, %v6012
          %v6018 = vmul.f32 1.0, %v6017
          %v6019 = vtanh.pop %v5952
          %v6020 = vxor.u32 %v5978, 2147483648
          %v6021 = vmul.f32 %v6020, 1.442695
          %v6022 = vpow.pop %v6021
          %v6023 = vadd.f32 %v6022, 1.0
          %v6024 = vrcp.pop %v6023
          %v6025 = vmul.f32 %v6023, %v6024
          %v6026 = vsub.f32 1.0, %v6025
          %v6027 = vmul.f32 %v6024, %v6026
          %v6028 = vadd.f32 %v6024, %v6027
          %vm6029 = vweird.f32 %v6023
          %vm6030 = vweird.f32 %v6024
          %vm6031 = vmor %vm6029, %vm6030
          %v6032 = vsel %vm6031, %v6024, %v6028
          %v6033 = vand.u32 2147483647, %v6023
          %vm6034 = vcmp.eq.f32.partialorder %v6033, 8.507059e+37
          %v6035 = vand.u32 %v6023, 2147483648
          %v6036 = vor.u32 1.1754944e-38, %v6035
          %v6037 = vsel %vm6034, %v6036, %v6032
          %v6038 = vmul.f32 1.0, %v6037
          %v6039 = vmul.f32 %v6018, %v5701
          %v6040 = vmul.f32 %v5999, %v6019
          %v6041 = vadd.f32 %v6039, %v6040
          %v6042 = vtanh.pop %v6041
          %v6043 = vmul.f32 %v6038, %v6042
          %s6044 = scalar_lea.vmem [#allocation3], 56
          %6045 = vst [vmem:[%s6044] sm:$0xff] %v6043
          %v6046 = vld [vmem:[#allocation3] sm:$0xff]
          %v6047 = vld [vmem:[#allocation3 + $0x8] sm:$0xff]
          %v6048 = vld [vmem:[#allocation3 + $0x10] sm:$0xff]
          %v6049 = vld [vmem:[#allocation3 + $0x18] sm:$0xff]
          %v6050 = vld [vmem:[#allocation3 + $0x20] sm:$0xff]
          %v6051 = vld [vmem:[#allocation3 + $0x28] sm:$0xff]
          %v6052 = vld [vmem:[#allocation3 + $0x30] sm:$0xff]
          %v6053 = vld [vmem:[#allocation3 + $0x38] sm:$0xff]
          %v6054 = vpack.c.bf16 %v6047, %v6046
          %v6055 = vpack.c.bf16 %v6049, %v6048
          %v6056 = vpack.c.bf16 %v6051, %v6050
          %v6057 = vpack.c.bf16 %v6053, %v6052
          %v6058 = vld [vmem:[%s10] sm:$0xf]
          %v6059 = vld [vmem:[%s10 + $0x4] sm:$0xf]
          %v6060 = vld [vmem:[%s10 + $0x8] sm:$0xf]
          %v6061 = vld [vmem:[%s10 + $0xc] sm:$0xf]
          %v6062 = vld [vmem:[%s10 + $0x10] sm:$0xf]
          %v6063 = vld [vmem:[%s10 + $0x14] sm:$0xf]
          %v6064 = vld [vmem:[%s10 + $0x18] sm:$0xf]
          %v6065 = vld [vmem:[%s10 + $0x1c] sm:$0xf]
          %v6066 = vld [vmem:[%s10 + $0x20] sm:$0xf]
          %v6067 = vld [vmem:[%s10 + $0x24] sm:$0xf]
          %v6068 = vld [vmem:[%s10 + $0x28] sm:$0xf]
          %v6069 = vld [vmem:[%s10 + $0x2c] sm:$0xf]
          %v6070 = vld [vmem:[%s10 + $0x30] sm:$0xf]
          %v6071 = vld [vmem:[%s10 + $0x34] sm:$0xf]
          %v6072 = vld [vmem:[%s10 + $0x38] sm:$0xf]
          %v6073 = vld [vmem:[%s10 + $0x3c] sm:$0xf]
          %v6074 = vld [vmem:[%s11] sm:$0x1]
          %v6076 = vperm.slane %v6074, 0
          %v6094 = vunpack.c.l.b16 %v6058
          %v6095 = vunpack.c.l.b16 %v6059
          %v6096 = vunpack.c.l.b16 %v6060
          %v6097 = vunpack.c.l.b16 %v6061
          %v6098 = vunpack.c.l.b16 %v6062
          %v6099 = vunpack.c.l.b16 %v6063
          %v6100 = vunpack.c.l.b16 %v6064
          %v6101 = vunpack.c.l.b16 %v6065
          %v6102 = vunpack.c.l.b16 %v6066
          %v6103 = vunpack.c.l.b16 %v6067
          %v6104 = vunpack.c.l.b16 %v6068
          %v6105 = vunpack.c.l.b16 %v6069
          %v6106 = vunpack.c.l.b16 %v6070
          %v6107 = vunpack.c.l.b16 %v6071
          %v6108 = vunpack.c.l.b16 %v6072
          %v6109 = vunpack.c.l.b16 %v6073
          %v6110 = vpack.c.b16 %v6095, %v6094
          %v6111 = vpack.c.b16 %v6097, %v6096
          %v6112 = vpack.c.b16 %v6099, %v6098
          %v6113 = vpack.c.b16 %v6101, %v6100
          %v6114 = vpack.c.b16 %v6103, %v6102
          %v6115 = vpack.c.b16 %v6105, %v6104
          %v6116 = vpack.c.b16 %v6107, %v6106
          %v6117 = vpack.c.b16 %v6109, %v6108
          %6126 = vmatpush.bf16.msra.mxu0 %v6117
          %6127 = vmatpush.bf16.msra.mxu0 %v6116
          %6128 = vmatpush.bf16.msra.mxu0 %v6115
          %6129 = vmatpush.bf16.msra.mxu0 %v6114
          %6130 = vmatpush.bf16.msra.mxu0 %v6113
          %6131 = vmatpush.bf16.msra.mxu0 %v6112
          %6132 = vmatpush.bf16.msra.mxu0 %v6111
          %6133 = vmatpush.bf16.msra.mxu0 %v6110
          %6134 = vmatmul.bf16.gmra.mxu0 %v6054
          %v6135 = vpop.f32.mrf.mxu0
          %v6136 = vadd.f32 %v6076, %v6135
          %v6137 = vpop.f32.mrf.mxu0
          %v6138 = vadd.f32 %v6076, %v6137
          %6139 = vmatmul.bf16.gmra.mxu0 %v6055
          %v6140 = vpop.f32.mrf.mxu0
          %v6141 = vadd.f32 %v6076, %v6140
          %v6142 = vpop.f32.mrf.mxu0
          %v6143 = vadd.f32 %v6076, %v6142
          %6144 = vmatmul.bf16.gmra.mxu0 %v6056
          %v6145 = vpop.f32.mrf.mxu0
          %v6146 = vadd.f32 %v6076, %v6145
          %v6147 = vpop.f32.mrf.mxu0
          %v6148 = vadd.f32 %v6076, %v6147
          %6149 = vmatmul.bf16.gmra.mxu0 %v6057
          %v6150 = vpop.f32.mrf.mxu0
          %v6151 = vadd.f32 %v6076, %v6150
          %v6152 = vpop.f32.mrf.mxu0
          %v6153 = vadd.f32 %v6076, %v6152
          %6154 = vdwg.mxu0
          %6155 = vst [vmem:[%s12] sm:$0xff] %v6136
          %6156 = vst [vmem:[%s12 + $0x8] sm:$0xff] %v6138
          %6157 = vst [vmem:[%s12 + $0x10] sm:$0xff] %v6141
          %6158 = vst [vmem:[%s12 + $0x18] sm:$0xff] %v6143
          %6159 = vst [vmem:[%s12 + $0x20] sm:$0xff] %v6146
          %6160 = vst [vmem:[%s12 + $0x28] sm:$0xff] %v6148
          %6161 = vst [vmem:[%s12 + $0x30] sm:$0xff] %v6151
          %6162 = vst [vmem:[%s12 + $0x38] sm:$0xff] %v6153
        $region99: #{encoder_decoder_forward.1} parent=86 // pred_fallthru
          _
        // Predicated region
        $region100: #{encoder_decoder_forward.1} parent=86 // pred_check
          %p6163 = pneg %p298
        $region101: #{encoder_decoder_forward.1} parent=86 // pred_check_branch
          %6165 = sbr.rel (%p6163) target = $region103
        $region102: #{encoder_decoder_forward.1} parent=86 // pred_region
          _
        $region103: #{encoder_decoder_forward.1} parent=86 // pred_fallthru
          _
        // Predicated region
        $region104: #{encoder_decoder_forward.1} parent=86 // pred_check
          %p6166 = pneg %p298
        $region105: #{encoder_decoder_forward.1} parent=86 // pred_check_branch
          %6168 = sbr.rel (%p6166) target = $region107
        $region106: #{encoder_decoder_forward.1} parent=86 // pred_region
          _
        $region107: #{encoder_decoder_forward.1} parent=86 // pred_fallthru
          _
      $region87: #{encoder_decoder_forward.1} parent=5 // pred_fallthru
        _
      %p6169 = scmp.le.s32.totalorder 2, %s18
      // Predicated region
      $region108: #{encoder_decoder_forward.1} parent=5 // pred_check
        %p6170 = pneg %p6169
      $region109: #{encoder_decoder_forward.1} parent=5 // pred_check_branch
        %6172 = sbr.rel (%p6170) target = $region111
      $region110: #{encoder_decoder_forward.1} parent=5 // pred_region
        %s6173 = ssub.s32 %s18, 2
      $region111: #{encoder_decoder_forward.1} parent=5 // pred_fallthru
        _
    $region6: #{encoder_decoder_forward.1} parent=1 // loop_footer
      %s22 = sadd.s32 1, %s18
    $region7: #{encoder_decoder_forward.1} parent=1 // loop_footer_branch
      %17 = sbr.rel target = $region3
    $region8: #{encoder_decoder_forward.1} parent=1 // loop_exit
      _

</llo_original>
